<compile_context>
chip_gen: v6e
topology: v6e:2x2x1
jax: 0.10.0
libtpu: 0.0.40
codegen_flags: <defaults>
</compile_context>

<pallas_src>
import numpy as np

import jax
import jax.numpy as jnp
from jax import lax
from jax.experimental import pallas as pl
from jax.experimental.pallas import tpu as pltpu

_NEG_SLOPE = 0.01        # nn.LeakyReLU default negative_slope
_BN_EPS = 1e-5           # nn.BatchNorm2d default eps
_TAPS = tuple((dh, dw) for dh in (-1, 0, 1) for dw in (-1, 0, 1))


def _round_up(v, m):
    return (v + m - 1) // m * m


def _vmem_limit_bytes():
    """Per-generation VMEM limit: ~100 MiB on 128 MiB parts, cap-8 MiB on v7x."""
    try:
        cap = int(pltpu.get_tpu_info().vmem_capacity_bytes)
    except Exception:
        cap = 0
    if cap <= 0:
        return 64 * 1024 * 1024                      # proven-safe default
    return max(32 * 1024 * 1024, min(cap - 8 * 1024 * 1024, 100 * 1024 * 1024))


def _pick_row_tile(oh, est_fn, budget):
    """Largest divisor of OH in [8, 48] whose estimated VMEM fits the budget."""
    cands = [d for d in range(8, 49) if oh % d == 0]
    if not cands:
        return oh
    fit = [d for d in cands if est_fn(d) <= budget]
    pool = fit if fit else [min(cands)]
    multi = [d for d in pool if oh // d >= 2]
    return max(multi) if multi else max(pool)


def _bilinear_taps(n_in, n_out):
    """Per-output 2-tap (i0, i1, w_lo, w_hi) for 1-D bilinear, align_corners=True."""
    scale = (n_in - 1) / (n_out - 1) if n_out > 1 else 0.0
    src = np.arange(n_out, dtype=np.float64) * scale
    i0 = np.clip(np.floor(src).astype(np.int64), 0, n_in - 1)
    i1 = np.clip(i0 + 1, 0, n_in - 1)
    frac = (src - i0).astype(np.float32)
    return (i0.astype(np.int32), i1.astype(np.int32),
            (1.0 - frac).astype(np.float32), frac.astype(np.float32))


def _bilinear_matrix(n_in, n_out):
    """(n_out, n_in) dense 1-D bilinear operator (reference path only)."""
    i0, i1, w0, w1 = _bilinear_taps(n_in, n_out)
    m = np.zeros((n_out, n_in), np.float32)
    rows = np.arange(n_out)
    m[rows, i0] += w0
    m[rows, i1] += w1
    return jnp.asarray(m)


def _buffered_spec(shape, index_map):
    """Constant-block spec; single-buffered when this JAX supports pipeline_mode."""
    try:
        return pl.BlockSpec(shape, index_map, pipeline_mode=pl.Buffered(1))
    except (TypeError, AttributeError):
        return pl.BlockSpec(shape, index_map)


def _make_kernel(OH, CinP, Wp, PW, TH, WIN, XROWS, LZ, LO):
    """Build the per-(batch, row-tile) kernel body."""

    def kernel(h0_ref, h1_ref, wl_ref, wh_ref, xs_ref,      # scalar-prefetch (SMEM)
               x_hbm, skip_hbm, cm_ref, wsk_ref, w1_ref, bnb_ref, w2_ref,
               cmask_ref, out_ref,
               x_buf, skip_buf, xw_ref, yfull_ref, zfull_ref, dma_sem):
        n = pl.program_id(0)
        r = pl.program_id(1)
        a = r * TH                                   # first output row of this tile
        xs = xs_ref[r]                               # first source row of the x window

        # ---- manual DMAs: x source-row window and (TH+4)-row skip window ---------
        xcopy = pltpu.make_async_copy(
            x_hbm.at[n, pl.ds(xs * Wp, XROWS * Wp), :], x_buf, dma_sem.at[0])
        xcopy.start()
        scopy = pltpu.make_async_copy(
            skip_hbm.at[n, pl.ds(a * PW, WIN * PW), :], skip_buf, dma_sem.at[1])
        scopy.start()

        # Zero conv-padding rows of the in-place buffers (every step: scratch is
        # per-core persistent and megacore may start a core at any grid point).
        zero_pw = jnp.zeros((PW, CinP), jnp.bfloat16)
        yfull_ref[pl.ds(0, PW), :] = zero_pw
        yfull_ref[pl.ds((WIN + 1) * PW, PW), :] = zero_pw
        zfull_ref[pl.ds(0, PW), :] = zero_pw
        zfull_ref[pl.ds((TH + 3) * PW, PW), :] = zero_pw

        # ---- width-upsample each distinct source row once (MXU) ------------------
        xcopy.wait()
        for p in range(XROWS):
            xw_ref[pl.ds(p * PW, PW), :] = jnp.dot(
                cm_ref[...], x_buf[pl.ds(p * Wp, Wp), :],
                preferred_element_type=jnp.float32).astype(jnp.bfloat16)

        # ---- height blend (VPU, 2 taps) + 1x1 skip conv, written in place --------
        scopy.wait()
        for pr in range(WIN):
            j = a + pr                               # padded-output-row table index
            s0 = pl.multiple_of((h0_ref[j] - xs) * PW, 8)
            s1 = pl.multiple_of((h1_ref[j] - xs) * PW, 8)
            up = (xw_ref[pl.ds(s0, PW), :].astype(jnp.float32) * wl_ref[j]
                  + xw_ref[pl.ds(s1, PW), :].astype(jnp.float32) * wh_ref[j])
            sk = jnp.dot(skip_buf[pl.ds(pr * PW, PW), :], wsk_ref[...],
                         preferred_element_type=jnp.float32)
            yfull_ref[pl.ds((pr + 1) * PW, PW), :] = (up + sk).astype(jnp.bfloat16)

        def conv3x3(src_ref, w_ref, length):
            # zero-padded 3x3 conv on the flattened (row, padded-width) axis;
            # tap dots kept adjacent so the MXU can chain accumulation.
            acc = None
            for t, (dh, dw) in enumerate(_TAPS):
                s = (2 + dh) * PW + dw               # static slice start
                part = jnp.dot(src_ref[pl.ds(s, length), :], w_ref[t],
                               preferred_element_type=jnp.float32)
                acc = part if acc is None else acc + part
            return acc

        # ---- conv3x3 (in->in, BN scale pre-folded) + bias + LeakyReLU ------------
        z = conv3x3(yfull_ref, w1_ref, LZ) + bnb_ref[...]
        z = jnp.where(z > 0, z, _NEG_SLOPE * z) * cmask_ref[...]   # f32 throughout
        top_f = (a > 0).astype(jnp.float32)          # halo rows outside the image
        bot_f = (a + TH < OH).astype(jnp.float32)    # act as conv2's zero padding
        zfull_ref[pl.ds(PW, PW), :] = (z[:PW] * top_f).astype(jnp.bfloat16)
        zfull_ref[pl.ds(2 * PW, LZ - 2 * PW), :] = z[PW:LZ - PW].astype(jnp.bfloat16)
        zfull_ref[pl.ds((TH + 2) * PW, PW), :] = (z[LZ - PW:] * bot_f).astype(jnp.bfloat16)

        # ---- conv3x3 (in->out) ----------------------------------------------------
        out_ref[0] = conv3x3(zfull_ref, w2_ref, LO).astype(out_ref.dtype)

    return kernel


def fpn_block_forward(x, skip, params):
    """FPNBlock forward. x: (N,in_ch,H,W), skip: (N,out_ch,2H,2W) -> (N,out_ch,2H,2W)."""
    x = jnp.asarray(x, jnp.float32)
    skip = jnp.asarray(skip, jnp.float32)
    N, Cin, H, W = x.shape
    Nk, Cout, OH, OW = skip.shape
    assert N == Nk and OH == 2 * H and OW == 2 * W

    CinP = _round_up(Cin, 128)          # lane-dense channel padding
    CoutP = _round_up(Cout, 128)
    Wp = _round_up(W, 8)                # sublane-aligned source row width
    PW = _round_up(OW + 2, 8)           # padded output row width (>=1 zero col each side)

    vmem_limit = _vmem_limit_bytes()

    def est_vmem(th):
        win = th + 4
        xr = th // 2 + 5
        b = xr * Wp * CinP * 2                          # x source window (bf16)
        b += win * PW * CoutP * 2                       # skip window (bf16)
        b += xr * PW * CinP * 2                         # width-upsampled rows (bf16)
        b += (th + 6) * PW * CinP * 2                   # padded conv1 input (bf16)
        b += (th + 4) * PW * CinP * 2                   # padded conv2 input (bf16)
        b += 2 * th * PW * CoutP * 4                    # double-buffered f32 output
        b += 2 * (9 * CinP * CinP + 9 * CinP * CoutP + CoutP * CinP + CinP) * 2
        b += 2 * (th + 2) * PW * CinP * 4               # conv1 f32 accum + relayout slack
        b += th * PW * CoutP * 4                        # conv2 f32 accumulator
        return b

    TH = _pick_row_tile(OH, est_vmem, int(vmem_limit * 0.55))
    RT = OH // TH
    WIN = TH + 4                        # window rows = tile + 2-row halo each side
    LZ = (TH + 2) * PW                  # flattened rows of the conv1 output
    LO = TH * PW                        # flattened rows of the tile output

    # ---- host-side constant prep (plain numpy / JAX glue) --------------------------
    # height-upsample tap tables, indexed by padded output row (offset 2; pad rows
    # get zero weights and in-range tap indices so relative offsets stay in-bounds)
    i0, i1, w0, w1 = _bilinear_taps(H, OH)
    h0_tab = np.zeros(OH + 4, np.int32)
    h1_tab = np.zeros(OH + 4, np.int32)
    wl_tab = np.zeros(OH + 4, np.float32)
    wh_tab = np.zeros(OH + 4, np.float32)
    h0_tab[2:OH + 2] = i0; h1_tab[2:OH + 2] = i1
    wl_tab[2:OH + 2] = w0; wh_tab[2:OH + 2] = w1
    h0_tab[:2] = i0[0]; h1_tab[:2] = i1[0]
    h0_tab[OH + 2:] = i0[-1]; h1_tab[OH + 2:] = i1[-1]

    # per-tile source-row window start + fixed window height
    xs_tab = np.zeros(RT, np.int32)
    spans = []
    for r in range(RT):
        jlo, jhi = r * TH, r * TH + WIN
        rows = np.concatenate([h0_tab[jlo:jhi], h1_tab[jlo:jhi]])
        lo, hi = int(rows.min()), int(rows.max())
        spans.append(hi - lo + 1)
        xs_tab[r] = lo
    XROWS = max(spans)
    xs_tab = np.clip(np.minimum(xs_tab, H - XROWS), 0, None).astype(np.int32)

    # width-upsample operator with zero rows at the width-pad columns
    j0, j1, v0, v1 = _bilinear_taps(W, OW)
    cm = np.zeros((PW, Wp), np.float32)
    cm[np.arange(OW) + 1, j0] += v0
    cm[np.arange(OW) + 1, j1] += v1

    # column mask for the conv1 output (its pad columns are conv2's zero padding)
    col = np.arange(LZ) % PW
    cmask = ((col >= 1) & (col <= OW)).astype(np.float32).reshape(LZ, 1)

    # inputs in kernel layout (cast to bf16 *before* the pad/transpose passes)
    x_b = x.astype(jnp.bfloat16)
    skip_b = skip.astype(jnp.bfloat16)
    x_k = jnp.pad(x_b.transpose(0, 2, 3, 1),
                  ((0, 0), (0, 0), (0, Wp - W), (0, CinP - Cin)))
    x_k = x_k.reshape(N, H * Wp, CinP)

    skip_k = jnp.pad(skip_b.transpose(0, 2, 3, 1),
                     ((0, 0), (2, 2), (1, PW - OW - 1), (0, CoutP - Cout)))
    skip_k = skip_k.reshape(N, (OH + 4) * PW, CoutP)

    # weights (PyTorch OIHW -> per-tap (C_in, C_out)), BN scale folded, channel padded
    bn_scale = params["bn_gamma"] / jnp.sqrt(params["bn_var"] + _BN_EPS)
    bn_bias = params["bn_beta"] - params["bn_mean"] * bn_scale

    wsk = jnp.zeros((CoutP, CinP), jnp.float32)
    wsk = wsk.at[:Cout, :Cin].set(params["skip_w"][:, :, 0, 0].T)

    w1 = params["merge0_w"].transpose(2, 3, 1, 0).reshape(9, Cin, Cin)
    w1 = w1 * bn_scale[None, None, :]
    w1p = jnp.zeros((9, CinP, CinP), jnp.float32).at[:, :Cin, :Cin].set(w1)

    w2 = params["merge3_w"].transpose(2, 3, 1, 0).reshape(9, Cin, Cout)
    w2p = jnp.zeros((9, CinP, CoutP), jnp.float32).at[:, :Cin, :Cout].set(w2)

    bnb = jnp.zeros((1, CinP), jnp.float32).at[0, :Cin].set(bn_bias)

    kernel = _make_kernel(OH, CinP, Wp, PW, TH, WIN, XROWS, LZ, LO)

    grid_spec = pltpu.PrefetchScalarGridSpec(
        num_scalar_prefetch=5,
        grid=(N, RT),
        in_specs=[
            pl.BlockSpec(memory_space=pl.ANY),                             # x (HBM)
            pl.BlockSpec(memory_space=pl.ANY),                             # skip (HBM)
            _buffered_spec((PW, Wp), lambda n, r, *_: (0, 0)),             # width op
            _buffered_spec((CoutP, CinP), lambda n, r, *_: (0, 0)),        # 1x1 skip w
            _buffered_spec((9, CinP, CinP), lambda n, r, *_: (0, 0, 0)),   # conv1 w
            _buffered_spec((1, CinP), lambda n, r, *_: (0, 0)),            # bn bias
            _buffered_spec((9, CinP, CoutP), lambda n, r, *_: (0, 0, 0)),  # conv2 w
            _buffered_spec((LZ, 1), lambda n, r, *_: (0, 0)),              # col mask
        ],
        out_specs=pl.BlockSpec((1, LO, CoutP), lambda n, r, *_: (n, r, 0)),
        scratch_shapes=[
            pltpu.VMEM((XROWS * Wp, CinP), jnp.bfloat16),     # x source window
            pltpu.VMEM((WIN * PW, CoutP), jnp.bfloat16),      # skip window
            pltpu.VMEM((XROWS * PW, CinP), jnp.bfloat16),     # width-upsampled rows
            pltpu.VMEM(((WIN + 2) * PW, CinP), jnp.bfloat16),  # padded conv1 input
            pltpu.VMEM(((TH + 4) * PW, CinP), jnp.bfloat16),   # padded conv2 input
            pltpu.SemaphoreType.DMA((2,)),
        ],
    )

    out_p = pl.pallas_call(
        kernel,
        out_shape=jax.ShapeDtypeStruct((N, OH * PW, CoutP), jnp.float32),
        grid_spec=grid_spec,
        compiler_params=pltpu.CompilerParams(
            dimension_semantics=("parallel", "parallel"),
            vmem_limit_bytes=vmem_limit),
    )(jnp.asarray(h0_tab), jnp.asarray(h1_tab),
      jnp.asarray(wl_tab), jnp.asarray(wh_tab), jnp.asarray(xs_tab),
      x_k, skip_k,
      jnp.asarray(cm, jnp.bfloat16),
      wsk.astype(jnp.bfloat16), w1p.astype(jnp.bfloat16), bnb,
      w2p.astype(jnp.bfloat16), jnp.asarray(cmask, jnp.float32))

    # TODO(synk): consumers could take the padded NHWC-flat layout directly to
    # avoid this extra un-pad/transpose pass over HBM.
    out = out_p.reshape(N, OH, PW, CoutP)[:, :, 1:OW + 1, :Cout]
    return out.transpose(0, 3, 1, 2)


def fpn_block_reference(x, skip, params):
    """Pure-JAX reference (XLA convs) for validation."""
    N, Cin, H, W = x.shape
    OH, OW = 2 * H, 2 * W
    hi = lax.Precision.HIGHEST
    R = _bilinear_matrix(H, OH)
    Cm = _bilinear_matrix(W, OW)
    x_up = jnp.einsum('Oh,Pw,nchw->ncOP', R, Cm, x, precision=hi)
    dn = ('NCHW', 'OIHW', 'NCHW')
    sk = lax.conv_general_dilated(skip, params['skip_w'], (1, 1), 'VALID',
                                  dimension_numbers=dn, precision=hi)
    y = x_up + sk
    z = lax.conv_general_dilated(y, params['merge0_w'], (1, 1),
                                 ((1, 1), (1, 1)), dimension_numbers=dn,
                                 precision=hi)
    scale = params['bn_gamma'] / jnp.sqrt(params['bn_var'] + _BN_EPS)
    bias = params['bn_beta'] - params['bn_mean'] * scale
    z = z * scale[None, :, None, None] + bias[None, :, None, None]
    z = jnp.where(z > 0, z, _NEG_SLOPE * z)
    out = lax.conv_general_dilated(z, params['merge3_w'], (1, 1),
                                   ((1, 1), (1, 1)), dimension_numbers=dn,
                                   precision=hi)
    return out


if __name__ == "__main__":
    N, in_ch, out_ch, H, W = 2, 8, 16, 8, 8
    key = jax.random.PRNGKey(0)
    ks = jax.random.split(key, 8)
    x = jax.random.normal(ks[0], (N, in_ch, H, W), jnp.float32)
    skip = jax.random.normal(ks[1], (N, out_ch, 2 * H, 2 * W), jnp.float32)
    params = {
        # PyTorch parameter shapes (OIHW), deterministically initialized.
        "skip_w":   0.2 * jax.random.normal(ks[2], (in_ch, out_ch, 1, 1), jnp.float32),
        "merge0_w": 0.2 * jax.random.normal(ks[3], (in_ch, in_ch, 3, 3), jnp.float32),
        "merge3_w": 0.2 * jax.random.normal(ks[4], (out_ch, in_ch, 3, 3), jnp.float32),
        "bn_gamma": 1.0 + 0.1 * jax.random.normal(ks[5], (in_ch,), jnp.float32),
        "bn_beta":  0.1 * jax.random.normal(ks[6], (in_ch,), jnp.float32),
        "bn_mean":  0.1 * jax.random.normal(ks[7], (in_ch,), jnp.float32),
        "bn_var":   jnp.linspace(0.5, 1.5, in_ch, dtype=jnp.float32),
    }

    out = jax.block_until_ready(fpn_block_forward(x, skip, params))
    ref = jax.block_until_ready(fpn_block_reference(x, skip, params))

    assert out.shape == (N, out_ch, 2 * H, 2 * W), out.shape
    max_err = float(jnp.max(jnp.abs(out - ref)))
    # bf16 MXU operands with f32 accumulation -> tolerance accounts for bf16 rounding.
    if not bool(jnp.allclose(out, ref, atol=1e-1, rtol=2e-2)):
        raise AssertionError(f"Pallas kernel mismatch vs reference, max abs err {max_err}")
    print("KERNEL_OK")
</pallas_src>

<mosaic_0001>
module attributes {stable_mosaic.version = 11 : i64} {
  func.func @kernel(%arg0: i32, %arg1: i32, %arg2: memref<20xi32, #tpu.memory_space<smem>>, %arg3: memref<20xi32, #tpu.memory_space<smem>>, %arg4: memref<20xf32, #tpu.memory_space<smem>>, %arg5: memref<20xf32, #tpu.memory_space<smem>>, %arg6: memref<2xi32, #tpu.memory_space<smem>>, %arg7: memref<2x64x128xbf16, #tpu.memory_space<any>>, %arg8: memref<2x480x128xbf16, #tpu.memory_space<any>>, %arg9: memref<24x8xbf16, #tpu.memory_space<vmem>>, %arg10: memref<128x128xbf16, #tpu.memory_space<vmem>>, %arg11: memref<9x128x128xbf16, #tpu.memory_space<vmem>>, %arg12: memref<1x128xf32, #tpu.memory_space<vmem>>, %arg13: memref<9x128x128xbf16, #tpu.memory_space<vmem>>, %arg14: memref<240x1xf32, #tpu.memory_space<vmem>>, %arg15: memref<1x192x128xf32, #tpu.memory_space<vmem>>, %arg16: memref<48x128xbf16, #tpu.memory_space<vmem>>, %arg17: memref<288x128xbf16, #tpu.memory_space<vmem>>, %arg18: memref<144x128xbf16, #tpu.memory_space<vmem>>, %arg19: memref<336x128xbf16, #tpu.memory_space<vmem>>, %arg20: memref<288x128xbf16, #tpu.memory_space<vmem>>, %arg21: memref<2x!tpu.dma_semaphore, #tpu.memory_space<semaphore_mem>>) attributes {dimension_semantics = [#tpu.dimension_semantics<parallel>, #tpu.dimension_semantics<parallel>], iteration_bounds = array<i64: 2, 2>, scalar_prefetch = 5 : i64, scratch_operands = 6 : i64, tpu.core_type = #tpu.core_type<tc>, window_params = [{}, {}, {pipeline_mode = #tpu.pipeline_mode<synchronous>, transform_indices = @transform_2, window_bounds = array<i64: 24, 8>}, {pipeline_mode = #tpu.pipeline_mode<synchronous>, transform_indices = @transform_3, window_bounds = array<i64: 128, 128>}, {pipeline_mode = #tpu.pipeline_mode<synchronous>, transform_indices = @transform_4, window_bounds = array<i64: 9, 128, 128>}, {pipeline_mode = #tpu.pipeline_mode<synchronous>, transform_indices = @transform_5, window_bounds = array<i64: 1, 128>}, {pipeline_mode = #tpu.pipeline_mode<synchronous>, transform_indices = @transform_6, window_bounds = array<i64: 9, 128, 128>}, {pipeline_mode = #tpu.pipeline_mode<synchronous>, transform_indices = @transform_7, window_bounds = array<i64: 240, 1>}, {transform_indices = @transform_8, window_bounds = array<i64: 1, 192, 128>}]} {
    %c8_i32 = arith.constant 8 : i32
    %0 = arith.muli %arg1, %c8_i32 : i32
    %1 = arith.index_cast %arg1 : i32 to index
    %2 = memref.load %arg6[%1] : memref<2xi32, #tpu.memory_space<smem>>
    %c8_i32_0 = arith.constant 8 : i32
    %3 = arith.muli %2, %c8_i32_0 : i32
    %c0_i32 = arith.constant 0 : i32
    %c0_i32_1 = arith.constant 0 : i32
    %4 = tpu.memref_slice %arg7[%arg0, %3, %c0_i32_1] : memref<2x64x128xbf16, #tpu.memory_space<any>> -> memref<1x48x128xbf16, #tpu.memory_space<any>>
    %5 = tpu.memref_squeeze %4 : memref<1x48x128xbf16, #tpu.memory_space<any>> -> memref<48x128xbf16, #tpu.memory_space<any>>
    %6 = tpu.memref_slice %arg21[%c0_i32] : memref<2x!tpu.dma_semaphore, #tpu.memory_space<semaphore_mem>> -> memref<1x!tpu.dma_semaphore, #tpu.memory_space<semaphore_mem>>
    %7 = tpu.memref_squeeze %6 : memref<1x!tpu.dma_semaphore, #tpu.memory_space<semaphore_mem>> -> memref<!tpu.dma_semaphore, #tpu.memory_space<semaphore_mem>>
    tpu.enqueue_dma source(%5 : memref<48x128xbf16, #tpu.memory_space<any>>) target(%arg16 : memref<48x128xbf16, #tpu.memory_space<vmem>>) target_semaphore(%7 : memref<!tpu.dma_semaphore, #tpu.memory_space<semaphore_mem>>)
    %c24_i32 = arith.constant 24 : i32
    %8 = arith.muli %0, %c24_i32 : i32
    %c1_i32 = arith.constant 1 : i32
    %c0_i32_2 = arith.constant 0 : i32
    %9 = tpu.memref_slice %arg8[%arg0, %8, %c0_i32_2] : memref<2x480x128xbf16, #tpu.memory_space<any>> -> memref<1x288x128xbf16, #tpu.memory_space<any>>
    %10 = tpu.memref_squeeze %9 : memref<1x288x128xbf16, #tpu.memory_space<any>> -> memref<288x128xbf16, #tpu.memory_space<any>>
    %11 = tpu.memref_slice %arg21[%c1_i32] : memref<2x!tpu.dma_semaphore, #tpu.memory_space<semaphore_mem>> -> memref<1x!tpu.dma_semaphore, #tpu.memory_space<semaphore_mem>>
    %12 = tpu.memref_squeeze %11 : memref<1x!tpu.dma_semaphore, #tpu.memory_space<semaphore_mem>> -> memref<!tpu.dma_semaphore, #tpu.memory_space<semaphore_mem>>
    tpu.enqueue_dma source(%10 : memref<288x128xbf16, #tpu.memory_space<any>>) target(%arg17 : memref<288x128xbf16, #tpu.memory_space<vmem>>) target_semaphore(%12 : memref<!tpu.dma_semaphore, #tpu.memory_space<semaphore_mem>>)
    %cst = arith.constant 0.000000e+00 : bf16
    %13 = vector.broadcast %cst : bf16 to vector<24x128xbf16>
    %c0 = arith.constant 0 : index
    %c0_3 = arith.constant 0 : index
    %14 = vector.load %arg19[%c0, %c0_3] : memref<336x128xbf16, #tpu.memory_space<vmem>>, vector<24x128xbf16>
    tpu.vector_store %arg19[%c0, %c0_3], %13 {strides = array<i32>} : memref<336x128xbf16, #tpu.memory_space<vmem>>, vector<24x128xbf16>,
    %c312 = arith.constant 312 : index
    %c0_4 = arith.constant 0 : index
    %15 = vector.load %arg19[%c312, %c0_4] : memref<336x128xbf16, #tpu.memory_space<vmem>>, vector<24x128xbf16>
    tpu.vector_store %arg19[%c312, %c0_4], %13 {strides = array<i32>} : memref<336x128xbf16, #tpu.memory_space<vmem>>, vector<24x128xbf16>,
    %c0_5 = arith.constant 0 : index
    %c0_6 = arith.constant 0 : index
    %16 = vector.load %arg20[%c0_5, %c0_6] : memref<288x128xbf16, #tpu.memory_space<vmem>>, vector<24x128xbf16>
    tpu.vector_store %arg20[%c0_5, %c0_6], %13 {strides = array<i32>} : memref<288x128xbf16, #tpu.memory_space<vmem>>, vector<24x128xbf16>,
    %c264 = arith.constant 264 : index
    %c0_7 = arith.constant 0 : index
    %17 = vector.load %arg20[%c264, %c0_7] : memref<288x128xbf16, #tpu.memory_space<vmem>>, vector<24x128xbf16>
    tpu.vector_store %arg20[%c264, %c0_7], %13 {strides = array<i32>} : memref<288x128xbf16, #tpu.memory_space<vmem>>, vector<24x128xbf16>,
    %c0_i32_8 = arith.constant 0 : i32
    %c0_i32_9 = arith.constant 0 : i32
    %18 = tpu.memref_slice %arg7[%arg0, %3, %c0_i32_9] : memref<2x64x128xbf16, #tpu.memory_space<any>> -> memref<1x48x128xbf16, #tpu.memory_space<any>>
    %19 = tpu.memref_squeeze %18 : memref<1x48x128xbf16, #tpu.memory_space<any>> -> memref<48x128xbf16, #tpu.memory_space<any>>
    %20 = tpu.memref_slice %arg21[%c0_i32_8] : memref<2x!tpu.dma_semaphore, #tpu.memory_space<semaphore_mem>> -> memref<1x!tpu.dma_semaphore, #tpu.memory_space<semaphore_mem>>
    %21 = tpu.memref_squeeze %20 : memref<1x!tpu.dma_semaphore, #tpu.memory_space<semaphore_mem>> -> memref<!tpu.dma_semaphore, #tpu.memory_space<semaphore_mem>>
    tpu.wait_dma2 semaphore(%21 : memref<!tpu.dma_semaphore, #tpu.memory_space<semaphore_mem>>) src(%19 : memref<48x128xbf16, #tpu.memory_space<any>>) dst(%arg16 : memref<48x128xbf16, #tpu.memory_space<vmem>>)
    %c0_10 = arith.constant 0 : index
    %c0_11 = arith.constant 0 : index
    %22 = vector.load %arg9[%c0_10, %c0_11] : memref<24x8xbf16, #tpu.memory_space<vmem>>, vector<24x8xbf16>
    %c0_12 = arith.constant 0 : index
    %c0_13 = arith.constant 0 : index
    %23 = vector.load %arg16[%c0_12, %c0_13] : memref<48x128xbf16, #tpu.memory_space<vmem>>, vector<8x128xbf16>
    %cst_14 = arith.constant dense<0.000000e+00> : vector<24x128xf32>
    %24 = tpu.matmul %22, %23, %cst_14 {dimension_numbers = #tpu.dot_dimension_numbers<[1], [0], [0], [1], [0, 0, 1, 1], [], []>} : vector<24x8xbf16>, vector<8x128xbf16>, vector<24x128xf32> -> vector<24x128xf32>
    %25 = arith.truncf %24 : vector<24x128xf32> to vector<24x128xbf16>
    %c0_15 = arith.constant 0 : index
    %c0_16 = arith.constant 0 : index
    %26 = vector.load %arg18[%c0_15, %c0_16] : memref<144x128xbf16, #tpu.memory_space<vmem>>, vector<24x128xbf16>
    tpu.vector_store %arg18[%c0_15, %c0_16], %25 {strides = array<i32>} : memref<144x128xbf16, #tpu.memory_space<vmem>>, vector<24x128xbf16>,
    %c0_17 = arith.constant 0 : index
    %c0_18 = arith.constant 0 : index
    %27 = vector.load %arg9[%c0_17, %c0_18] : memref<24x8xbf16, #tpu.memory_space<vmem>>, vector<24x8xbf16>
    %c8 = arith.constant 8 : index
    %c0_19 = arith.constant 0 : index
    %28 = vector.load %arg16[%c8, %c0_19] : memref<48x128xbf16, #tpu.memory_space<vmem>>, vector<8x128xbf16>
    %cst_20 = arith.constant dense<0.000000e+00> : vector<24x128xf32>
    %29 = tpu.matmul %27, %28, %cst_20 {dimension_numbers = #tpu.dot_dimension_numbers<[1], [0], [0], [1], [0, 0, 1, 1], [], []>} : vector<24x8xbf16>, vector<8x128xbf16>, vector<24x128xf32> -> vector<24x128xf32>
    %30 = arith.truncf %29 : vector<24x128xf32> to vector<24x128xbf16>
    %c24 = arith.constant 24 : index
    %c0_21 = arith.constant 0 : index
    %31 = vector.load %arg18[%c24, %c0_21] : memref<144x128xbf16, #tpu.memory_space<vmem>>, vector<24x128xbf16>
    tpu.vector_store %arg18[%c24, %c0_21], %30 {strides = array<i32>} : memref<144x128xbf16, #tpu.memory_space<vmem>>, vector<24x128xbf16>,
    %c0_22 = arith.constant 0 : index
    %c0_23 = arith.constant 0 : index
    %32 = vector.load %arg9[%c0_22, %c0_23] : memref<24x8xbf16, #tpu.memory_space<vmem>>, vector<24x8xbf16>
    %c16 = arith.constant 16 : index
    %c0_24 = arith.constant 0 : index
    %33 = vector.load %arg16[%c16, %c0_24] : memref<48x128xbf16, #tpu.memory_space<vmem>>, vector<8x128xbf16>
    %cst_25 = arith.constant dense<0.000000e+00> : vector<24x128xf32>
    %34 = tpu.matmul %32, %33, %cst_25 {dimension_numbers = #tpu.dot_dimension_numbers<[1], [0], [0], [1], [0, 0, 1, 1], [], []>} : vector<24x8xbf16>, vector<8x128xbf16>, vector<24x128xf32> -> vector<24x128xf32>
    %35 = arith.truncf %34 : vector<24x128xf32> to vector<24x128xbf16>
    %c48 = arith.constant 48 : index
    %c0_26 = arith.constant 0 : index
    %36 = vector.load %arg18[%c48, %c0_26] : memref<144x128xbf16, #tpu.memory_space<vmem>>, vector<24x128xbf16>
    tpu.vector_store %arg18[%c48, %c0_26], %35 {strides = array<i32>} : memref<144x128xbf16, #tpu.memory_space<vmem>>, vector<24x128xbf16>,
    %c0_27 = arith.constant 0 : index
    %c0_28 = arith.constant 0 : index
    %37 = vector.load %arg9[%c0_27, %c0_28] : memref<24x8xbf16, #tpu.memory_space<vmem>>, vector<24x8xbf16>
    %c24_29 = arith.constant 24 : index
    %c0_30 = arith.constant 0 : index
    %38 = vector.load %arg16[%c24_29, %c0_30] : memref<48x128xbf16, #tpu.memory_space<vmem>>, vector<8x128xbf16>
    %cst_31 = arith.constant dense<0.000000e+00> : vector<24x128xf32>
    %39 = tpu.matmul %37, %38, %cst_31 {dimension_numbers = #tpu.dot_dimension_numbers<[1], [0], [0], [1], [0, 0, 1, 1], [], []>} : vector<24x8xbf16>, vector<8x128xbf16>, vector<24x128xf32> -> vector<24x128xf32>
    %40 = arith.truncf %39 : vector<24x128xf32> to vector<24x128xbf16>
    %c72 = arith.constant 72 : index
    %c0_32 = arith.constant 0 : index
    %41 = vector.load %arg18[%c72, %c0_32] : memref<144x128xbf16, #tpu.memory_space<vmem>>, vector<24x128xbf16>
    tpu.vector_store %arg18[%c72, %c0_32], %40 {strides = array<i32>} : memref<144x128xbf16, #tpu.memory_space<vmem>>, vector<24x128xbf16>,
    %c0_33 = arith.constant 0 : index
    %c0_34 = arith.constant 0 : index
    %42 = vector.load %arg9[%c0_33, %c0_34] : memref<24x8xbf16, #tpu.memory_space<vmem>>, vector<24x8xbf16>
    %c32 = arith.constant 32 : index
    %c0_35 = arith.constant 0 : index
    %43 = vector.load %arg16[%c32, %c0_35] : memref<48x128xbf16, #tpu.memory_space<vmem>>, vector<8x128xbf16>
    %cst_36 = arith.constant dense<0.000000e+00> : vector<24x128xf32>
    %44 = tpu.matmul %42, %43, %cst_36 {dimension_numbers = #tpu.dot_dimension_numbers<[1], [0], [0], [1], [0, 0, 1, 1], [], []>} : vector<24x8xbf16>, vector<8x128xbf16>, vector<24x128xf32> -> vector<24x128xf32>
    %45 = arith.truncf %44 : vector<24x128xf32> to vector<24x128xbf16>
    %c96 = arith.constant 96 : index
    %c0_37 = arith.constant 0 : index
    %46 = vector.load %arg18[%c96, %c0_37] : memref<144x128xbf16, #tpu.memory_space<vmem>>, vector<24x128xbf16>
    tpu.vector_store %arg18[%c96, %c0_37], %45 {strides = array<i32>} : memref<144x128xbf16, #tpu.memory_space<vmem>>, vector<24x128xbf16>,
    %c0_38 = arith.constant 0 : index
    %c0_39 = arith.constant 0 : index
    %47 = vector.load %arg9[%c0_38, %c0_39] : memref<24x8xbf16, #tpu.memory_space<vmem>>, vector<24x8xbf16>
    %c40 = arith.constant 40 : index
    %c0_40 = arith.constant 0 : index
    %48 = vector.load %arg16[%c40, %c0_40] : memref<48x128xbf16, #tpu.memory_space<vmem>>, vector<8x128xbf16>
    %cst_41 = arith.constant dense<0.000000e+00> : vector<24x128xf32>
    %49 = tpu.matmul %47, %48, %cst_41 {dimension_numbers = #tpu.dot_dimension_numbers<[1], [0], [0], [1], [0, 0, 1, 1], [], []>} : vector<24x8xbf16>, vector<8x128xbf16>, vector<24x128xf32> -> vector<24x128xf32>
    %50 = arith.truncf %49 : vector<24x128xf32> to vector<24x128xbf16>
    %c120 = arith.constant 120 : index
    %c0_42 = arith.constant 0 : index
    %51 = vector.load %arg18[%c120, %c0_42] : memref<144x128xbf16, #tpu.memory_space<vmem>>, vector<24x128xbf16>
    tpu.vector_store %arg18[%c120, %c0_42], %50 {strides = array<i32>} : memref<144x128xbf16, #tpu.memory_space<vmem>>, vector<24x128xbf16>,
    %c1_i32_43 = arith.constant 1 : i32
    %c0_i32_44 = arith.constant 0 : i32
    %52 = tpu.memref_slice %arg8[%arg0, %8, %c0_i32_44] : memref<2x480x128xbf16, #tpu.memory_space<any>> -> memref<1x288x128xbf16, #tpu.memory_space<any>>
    %53 = tpu.memref_squeeze %52 : memref<1x288x128xbf16, #tpu.memory_space<any>> -> memref<288x128xbf16, #tpu.memory_space<any>>
    %54 = tpu.memref_slice %arg21[%c1_i32_43] : memref<2x!tpu.dma_semaphore, #tpu.memory_space<semaphore_mem>> -> memref<1x!tpu.dma_semaphore, #tpu.memory_space<semaphore_mem>>
    %55 = tpu.memref_squeeze %54 : memref<1x!tpu.dma_semaphore, #tpu.memory_space<semaphore_mem>> -> memref<!tpu.dma_semaphore, #tpu.memory_space<semaphore_mem>>
    tpu.wait_dma2 semaphore(%55 : memref<!tpu.dma_semaphore, #tpu.memory_space<semaphore_mem>>) src(%53 : memref<288x128xbf16, #tpu.memory_space<any>>) dst(%arg17 : memref<288x128xbf16, #tpu.memory_space<vmem>>)
    %c0_i32_45 = arith.constant 0 : i32
    %56 = arith.addi %0, %c0_i32_45 : i32
    %57 = arith.index_cast %56 : i32 to index
    %58 = memref.load %arg2[%57] : memref<20xi32, #tpu.memory_space<smem>>
    %59 = arith.subi %58, %2 : i32
    %c24_i32_46 = arith.constant 24 : i32
    %60 = arith.muli %59, %c24_i32_46 : i32
    %61 = tpu.assume_multiple %60, 8 : i32
    %62 = arith.index_cast %56 : i32 to index
    %63 = memref.load %arg3[%62] : memref<20xi32, #tpu.memory_space<smem>>
    %64 = arith.subi %63, %2 : i32
    %c24_i32_47 = arith.constant 24 : i32
    %65 = arith.muli %64, %c24_i32_47 : i32
    %66 = tpu.assume_multiple %65, 8 : i32
    %67 = arith.index_cast %61 : i32 to index
    %c0_48 = arith.constant 0 : index
    %68 = vector.load %arg18[%67, %c0_48] : memref<144x128xbf16, #tpu.memory_space<vmem>>, vector<24x128xbf16>
    %69 = arith.extf %68 : vector<24x128xbf16> to vector<24x128xf32>
    %70 = arith.index_cast %56 : i32 to index
    %71 = memref.load %arg4[%70] : memref<20xf32, #tpu.memory_space<smem>>
    %72 = vector.broadcast %71 : f32 to vector<24x128xf32>
    %73 = arith.mulf %69, %72 : vector<24x128xf32>
    %74 = arith.index_cast %66 : i32 to index
    %c0_49 = arith.constant 0 : index
    %75 = vector.load %arg18[%74, %c0_49] : memref<144x128xbf16, #tpu.memory_space<vmem>>, vector<24x128xbf16>
    %76 = arith.extf %75 : vector<24x128xbf16> to vector<24x128xf32>
    %77 = arith.index_cast %56 : i32 to index
    %78 = memref.load %arg5[%77] : memref<20xf32, #tpu.memory_space<smem>>
    %79 = vector.broadcast %78 : f32 to vector<24x128xf32>
    %80 = arith.mulf %76, %79 : vector<24x128xf32>
    %81 = arith.addf %73, %80 : vector<24x128xf32>
    %c0_50 = arith.constant 0 : index
    %c0_51 = arith.constant 0 : index
    %82 = vector.load %arg17[%c0_50, %c0_51] : memref<288x128xbf16, #tpu.memory_space<vmem>>, vector<24x128xbf16>
    %c0_52 = arith.constant 0 : index
    %c0_53 = arith.constant 0 : index
    %83 = vector.load %arg10[%c0_52, %c0_53] : memref<128x128xbf16, #tpu.memory_space<vmem>>, vector<128x128xbf16>
    %cst_54 = arith.constant dense<0.000000e+00> : vector<24x128xf32>
    %84 = tpu.matmul %82, %83, %cst_54 {dimension_numbers = #tpu.dot_dimension_numbers<[1], [0], [0], [1], [0, 0, 1, 1], [], []>} : vector<24x128xbf16>, vector<128x128xbf16>, vector<24x128xf32> -> vector<24x128xf32>
    %85 = arith.addf %81, %84 : vector<24x128xf32>
    %86 = arith.truncf %85 : vector<24x128xf32> to vector<24x128xbf16>
    %c24_55 = arith.constant 24 : index
    %c0_56 = arith.constant 0 : index
    %87 = vector.load %arg19[%c24_55, %c0_56] : memref<336x128xbf16, #tpu.memory_space<vmem>>, vector<24x128xbf16>
    tpu.vector_store %arg19[%c24_55, %c0_56], %86 {strides = array<i32>} : memref<336x128xbf16, #tpu.memory_space<vmem>>, vector<24x128xbf16>,
    %c1_i32_57 = arith.constant 1 : i32
    %88 = arith.addi %0, %c1_i32_57 : i32
    %89 = arith.index_cast %88 : i32 to index
    %90 = memref.load %arg2[%89] : memref<20xi32, #tpu.memory_space<smem>>
    %91 = arith.subi %90, %2 : i32
    %c24_i32_58 = arith.constant 24 : i32
    %92 = arith.muli %91, %c24_i32_58 : i32
    %93 = tpu.assume_multiple %92, 8 : i32
    %94 = arith.index_cast %88 : i32 to index
    %95 = memref.load %arg3[%94] : memref<20xi32, #tpu.memory_space<smem>>
    %96 = arith.subi %95, %2 : i32
    %c24_i32_59 = arith.constant 24 : i32
    %97 = arith.muli %96, %c24_i32_59 : i32
    %98 = tpu.assume_multiple %97, 8 : i32
    %99 = arith.index_cast %93 : i32 to index
    %c0_60 = arith.constant 0 : index
    %100 = vector.load %arg18[%99, %c0_60] : memref<144x128xbf16, #tpu.memory_space<vmem>>, vector<24x128xbf16>
    %101 = arith.extf %100 : vector<24x128xbf16> to vector<24x128xf32>
    %102 = arith.index_cast %88 : i32 to index
    %103 = memref.load %arg4[%102] : memref<20xf32, #tpu.memory_space<smem>>
    %104 = vector.broadcast %103 : f32 to vector<24x128xf32>
    %105 = arith.mulf %101, %104 : vector<24x128xf32>
    %106 = arith.index_cast %98 : i32 to index
    %c0_61 = arith.constant 0 : index
    %107 = vector.load %arg18[%106, %c0_61] : memref<144x128xbf16, #tpu.memory_space<vmem>>, vector<24x128xbf16>
    %108 = arith.extf %107 : vector<24x128xbf16> to vector<24x128xf32>
    %109 = arith.index_cast %88 : i32 to index
    %110 = memref.load %arg5[%109] : memref<20xf32, #tpu.memory_space<smem>>
    %111 = vector.broadcast %110 : f32 to vector<24x128xf32>
    %112 = arith.mulf %108, %111 : vector<24x128xf32>
    %113 = arith.addf %105, %112 : vector<24x128xf32>
    %c24_62 = arith.constant 24 : index
    %c0_63 = arith.constant 0 : index
    %114 = vector.load %arg17[%c24_62, %c0_63] : memref<288x128xbf16, #tpu.memory_space<vmem>>, vector<24x128xbf16>
    %c0_64 = arith.constant 0 : index
    %c0_65 = arith.constant 0 : index
    %115 = vector.load %arg10[%c0_64, %c0_65] : memref<128x128xbf16, #tpu.memory_space<vmem>>, vector<128x128xbf16>
    %cst_66 = arith.constant dense<0.000000e+00> : vector<24x128xf32>
    %116 = tpu.matmul %114, %115, %cst_66 {dimension_numbers = #tpu.dot_dimension_numbers<[1], [0], [0], [1], [0, 0, 1, 1], [], []>} : vector<24x128xbf16>, vector<128x128xbf16>, vector<24x128xf32> -> vector<24x128xf32>
    %117 = arith.addf %113, %116 : vector<24x128xf32>
    %118 = arith.truncf %117 : vector<24x128xf32> to vector<24x128xbf16>
    %c48_67 = arith.constant 48 : index
    %c0_68 = arith.constant 0 : index
    %119 = vector.load %arg19[%c48_67, %c0_68] : memref<336x128xbf16, #tpu.memory_space<vmem>>, vector<24x128xbf16>
    tpu.vector_store %arg19[%c48_67, %c0_68], %118 {strides = array<i32>} : memref<336x128xbf16, #tpu.memory_space<vmem>>, vector<24x128xbf16>,
    %c2_i32 = arith.constant 2 : i32
    %120 = arith.addi %0, %c2_i32 : i32
    %121 = arith.index_cast %120 : i32 to index
    %122 = memref.load %arg2[%121] : memref<20xi32, #tpu.memory_space<smem>>
    %123 = arith.subi %122, %2 : i32
    %c24_i32_69 = arith.constant 24 : i32
    %124 = arith.muli %123, %c24_i32_69 : i32
    %125 = tpu.assume_multiple %124, 8 : i32
    %126 = arith.index_cast %120 : i32 to index
    %127 = memref.load %arg3[%126] : memref<20xi32, #tpu.memory_space<smem>>
    %128 = arith.subi %127, %2 : i32
    %c24_i32_70 = arith.constant 24 : i32
    %129 = arith.muli %128, %c24_i32_70 : i32
    %130 = tpu.assume_multiple %129, 8 : i32
    %131 = arith.index_cast %125 : i32 to index
    %c0_71 = arith.constant 0 : index
    %132 = vector.load %arg18[%131, %c0_71] : memref<144x128xbf16, #tpu.memory_space<vmem>>, vector<24x128xbf16>
    %133 = arith.extf %132 : vector<24x128xbf16> to vector<24x128xf32>
    %134 = arith.index_cast %120 : i32 to index
    %135 = memref.load %arg4[%134] : memref<20xf32, #tpu.memory_space<smem>>
    %136 = vector.broadcast %135 : f32 to vector<24x128xf32>
    %137 = arith.mulf %133, %136 : vector<24x128xf32>
    %138 = arith.index_cast %130 : i32 to index
    %c0_72 = arith.constant 0 : index
    %139 = vector.load %arg18[%138, %c0_72] : memref<144x128xbf16, #tpu.memory_space<vmem>>, vector<24x128xbf16>
    %140 = arith.extf %139 : vector<24x128xbf16> to vector<24x128xf32>
    %141 = arith.index_cast %120 : i32 to index
    %142 = memref.load %arg5[%141] : memref<20xf32, #tpu.memory_space<smem>>
    %143 = vector.broadcast %142 : f32 to vector<24x128xf32>
    %144 = arith.mulf %140, %143 : vector<24x128xf32>
    %145 = arith.addf %137, %144 : vector<24x128xf32>
    %c48_73 = arith.constant 48 : index
    %c0_74 = arith.constant 0 : index
    %146 = vector.load %arg17[%c48_73, %c0_74] : memref<288x128xbf16, #tpu.memory_space<vmem>>, vector<24x128xbf16>
    %c0_75 = arith.constant 0 : index
    %c0_76 = arith.constant 0 : index
    %147 = vector.load %arg10[%c0_75, %c0_76] : memref<128x128xbf16, #tpu.memory_space<vmem>>, vector<128x128xbf16>
    %cst_77 = arith.constant dense<0.000000e+00> : vector<24x128xf32>
    %148 = tpu.matmul %146, %147, %cst_77 {dimension_numbers = #tpu.dot_dimension_numbers<[1], [0], [0], [1], [0, 0, 1, 1], [], []>} : vector<24x128xbf16>, vector<128x128xbf16>, vector<24x128xf32> -> vector<24x128xf32>
    %149 = arith.addf %145, %148 : vector<24x128xf32>
    %150 = arith.truncf %149 : vector<24x128xf32> to vector<24x128xbf16>
    %c72_78 = arith.constant 72 : index
    %c0_79 = arith.constant 0 : index
    %151 = vector.load %arg19[%c72_78, %c0_79] : memref<336x128xbf16, #tpu.memory_space<vmem>>, vector<24x128xbf16>
    tpu.vector_store %arg19[%c72_78, %c0_79], %150 {strides = array<i32>} : memref<336x128xbf16, #tpu.memory_space<vmem>>, vector<24x128xbf16>,
    %c3_i32 = arith.constant 3 : i32
    %152 = arith.addi %0, %c3_i32 : i32
    %153 = arith.index_cast %152 : i32 to index
    %154 = memref.load %arg2[%153] : memref<20xi32, #tpu.memory_space<smem>>
    %155 = arith.subi %154, %2 : i32
    %c24_i32_80 = arith.constant 24 : i32
    %156 = arith.muli %155, %c24_i32_80 : i32
    %157 = tpu.assume_multiple %156, 8 : i32
    %158 = arith.index_cast %152 : i32 to index
    %159 = memref.load %arg3[%158] : memref<20xi32, #tpu.memory_space<smem>>
    %160 = arith.subi %159, %2 : i32
    %c24_i32_81 = arith.constant 24 : i32
    %161 = arith.muli %160, %c24_i32_81 : i32
    %162 = tpu.assume_multiple %161, 8 : i32
    %163 = arith.index_cast %157 : i32 to index
    %c0_82 = arith.constant 0 : index
    %164 = vector.load %arg18[%163, %c0_82] : memref<144x128xbf16, #tpu.memory_space<vmem>>, vector<24x128xbf16>
    %165 = arith.extf %164 : vector<24x128xbf16> to vector<24x128xf32>
    %166 = arith.index_cast %152 : i32 to index
    %167 = memref.load %arg4[%166] : memref<20xf32, #tpu.memory_space<smem>>
    %168 = vector.broadcast %167 : f32 to vector<24x128xf32>
    %169 = arith.mulf %165, %168 : vector<24x128xf32>
    %170 = arith.index_cast %162 : i32 to index
    %c0_83 = arith.constant 0 : index
    %171 = vector.load %arg18[%170, %c0_83] : memref<144x128xbf16, #tpu.memory_space<vmem>>, vector<24x128xbf16>
    %172 = arith.extf %171 : vector<24x128xbf16> to vector<24x128xf32>
    %173 = arith.index_cast %152 : i32 to index
    %174 = memref.load %arg5[%173] : memref<20xf32, #tpu.memory_space<smem>>
    %175 = vector.broadcast %174 : f32 to vector<24x128xf32>
    %176 = arith.mulf %172, %175 : vector<24x128xf32>
    %177 = arith.addf %169, %176 : vector<24x128xf32>
    %c72_84 = arith.constant 72 : index
    %c0_85 = arith.constant 0 : index
    %178 = vector.load %arg17[%c72_84, %c0_85] : memref<288x128xbf16, #tpu.memory_space<vmem>>, vector<24x128xbf16>
    %c0_86 = arith.constant 0 : index
    %c0_87 = arith.constant 0 : index
    %179 = vector.load %arg10[%c0_86, %c0_87] : memref<128x128xbf16, #tpu.memory_space<vmem>>, vector<128x128xbf16>
    %cst_88 = arith.constant dense<0.000000e+00> : vector<24x128xf32>
    %180 = tpu.matmul %178, %179, %cst_88 {dimension_numbers = #tpu.dot_dimension_numbers<[1], [0], [0], [1], [0, 0, 1, 1], [], []>} : vector<24x128xbf16>, vector<128x128xbf16>, vector<24x128xf32> -> vector<24x128xf32>
    %181 = arith.addf %177, %180 : vector<24x128xf32>
    %182 = arith.truncf %181 : vector<24x128xf32> to vector<24x128xbf16>
    %c96_89 = arith.constant 96 : index
    %c0_90 = arith.constant 0 : index
    %183 = vector.load %arg19[%c96_89, %c0_90] : memref<336x128xbf16, #tpu.memory_space<vmem>>, vector<24x128xbf16>
    tpu.vector_store %arg19[%c96_89, %c0_90], %182 {strides = array<i32>} : memref<336x128xbf16, #tpu.memory_space<vmem>>, vector<24x128xbf16>,
    %c4_i32 = arith.constant 4 : i32
    %184 = arith.addi %0, %c4_i32 : i32
    %185 = arith.index_cast %184 : i32 to index
    %186 = memref.load %arg2[%185] : memref<20xi32, #tpu.memory_space<smem>>
    %187 = arith.subi %186, %2 : i32
    %c24_i32_91 = arith.constant 24 : i32
    %188 = arith.muli %187, %c24_i32_91 : i32
    %189 = tpu.assume_multiple %188, 8 : i32
    %190 = arith.index_cast %184 : i32 to index
    %191 = memref.load %arg3[%190] : memref<20xi32, #tpu.memory_space<smem>>
    %192 = arith.subi %191, %2 : i32
    %c24_i32_92 = arith.constant 24 : i32
    %193 = arith.muli %192, %c24_i32_92 : i32
    %194 = tpu.assume_multiple %193, 8 : i32
    %195 = arith.index_cast %189 : i32 to index
    %c0_93 = arith.constant 0 : index
    %196 = vector.load %arg18[%195, %c0_93] : memref<144x128xbf16, #tpu.memory_space<vmem>>, vector<24x128xbf16>
    %197 = arith.extf %196 : vector<24x128xbf16> to vector<24x128xf32>
    %198 = arith.index_cast %184 : i32 to index
    %199 = memref.load %arg4[%198] : memref<20xf32, #tpu.memory_space<smem>>
    %200 = vector.broadcast %199 : f32 to vector<24x128xf32>
    %201 = arith.mulf %197, %200 : vector<24x128xf32>
    %202 = arith.index_cast %194 : i32 to index
    %c0_94 = arith.constant 0 : index
    %203 = vector.load %arg18[%202, %c0_94] : memref<144x128xbf16, #tpu.memory_space<vmem>>, vector<24x128xbf16>
    %204 = arith.extf %203 : vector<24x128xbf16> to vector<24x128xf32>
    %205 = arith.index_cast %184 : i32 to index
    %206 = memref.load %arg5[%205] : memref<20xf32, #tpu.memory_space<smem>>
    %207 = vector.broadcast %206 : f32 to vector<24x128xf32>
    %208 = arith.mulf %204, %207 : vector<24x128xf32>
    %209 = arith.addf %201, %208 : vector<24x128xf32>
    %c96_95 = arith.constant 96 : index
    %c0_96 = arith.constant 0 : index
    %210 = vector.load %arg17[%c96_95, %c0_96] : memref<288x128xbf16, #tpu.memory_space<vmem>>, vector<24x128xbf16>
    %c0_97 = arith.constant 0 : index
    %c0_98 = arith.constant 0 : index
    %211 = vector.load %arg10[%c0_97, %c0_98] : memref<128x128xbf16, #tpu.memory_space<vmem>>, vector<128x128xbf16>
    %cst_99 = arith.constant dense<0.000000e+00> : vector<24x128xf32>
    %212 = tpu.matmul %210, %211, %cst_99 {dimension_numbers = #tpu.dot_dimension_numbers<[1], [0], [0], [1], [0, 0, 1, 1], [], []>} : vector<24x128xbf16>, vector<128x128xbf16>, vector<24x128xf32> -> vector<24x128xf32>
    %213 = arith.addf %209, %212 : vector<24x128xf32>
    %214 = arith.truncf %213 : vector<24x128xf32> to vector<24x128xbf16>
    %c120_100 = arith.constant 120 : index
    %c0_101 = arith.constant 0 : index
    %215 = vector.load %arg19[%c120_100, %c0_101] : memref<336x128xbf16, #tpu.memory_space<vmem>>, vector<24x128xbf16>
    tpu.vector_store %arg19[%c120_100, %c0_101], %214 {strides = array<i32>} : memref<336x128xbf16, #tpu.memory_space<vmem>>, vector<24x128xbf16>,
    %c5_i32 = arith.constant 5 : i32
    %216 = arith.addi %0, %c5_i32 : i32
    %217 = arith.index_cast %216 : i32 to index
    %218 = memref.load %arg2[%217] : memref<20xi32, #tpu.memory_space<smem>>
    %219 = arith.subi %218, %2 : i32
    %c24_i32_102 = arith.constant 24 : i32
    %220 = arith.muli %219, %c24_i32_102 : i32
    %221 = tpu.assume_multiple %220, 8 : i32
    %222 = arith.index_cast %216 : i32 to index
    %223 = memref.load %arg3[%222] : memref<20xi32, #tpu.memory_space<smem>>
    %224 = arith.subi %223, %2 : i32
    %c24_i32_103 = arith.constant 24 : i32
    %225 = arith.muli %224, %c24_i32_103 : i32
    %226 = tpu.assume_multiple %225, 8 : i32
    %227 = arith.index_cast %221 : i32 to index
    %c0_104 = arith.constant 0 : index
    %228 = vector.load %arg18[%227, %c0_104] : memref<144x128xbf16, #tpu.memory_space<vmem>>, vector<24x128xbf16>
    %229 = arith.extf %228 : vector<24x128xbf16> to vector<24x128xf32>
    %230 = arith.index_cast %216 : i32 to index
    %231 = memref.load %arg4[%230] : memref<20xf32, #tpu.memory_space<smem>>
    %232 = vector.broadcast %231 : f32 to vector<24x128xf32>
    %233 = arith.mulf %229, %232 : vector<24x128xf32>
    %234 = arith.index_cast %226 : i32 to index
    %c0_105 = arith.constant 0 : index
    %235 = vector.load %arg18[%234, %c0_105] : memref<144x128xbf16, #tpu.memory_space<vmem>>, vector<24x128xbf16>
    %236 = arith.extf %235 : vector<24x128xbf16> to vector<24x128xf32>
    %237 = arith.index_cast %216 : i32 to index
    %238 = memref.load %arg5[%237] : memref<20xf32, #tpu.memory_space<smem>>
    %239 = vector.broadcast %238 : f32 to vector<24x128xf32>
    %240 = arith.mulf %236, %239 : vector<24x128xf32>
    %241 = arith.addf %233, %240 : vector<24x128xf32>
    %c120_106 = arith.constant 120 : index
    %c0_107 = arith.constant 0 : index
    %242 = vector.load %arg17[%c120_106, %c0_107] : memref<288x128xbf16, #tpu.memory_space<vmem>>, vector<24x128xbf16>
    %c0_108 = arith.constant 0 : index
    %c0_109 = arith.constant 0 : index
    %243 = vector.load %arg10[%c0_108, %c0_109] : memref<128x128xbf16, #tpu.memory_space<vmem>>, vector<128x128xbf16>
    %cst_110 = arith.constant dense<0.000000e+00> : vector<24x128xf32>
    %244 = tpu.matmul %242, %243, %cst_110 {dimension_numbers = #tpu.dot_dimension_numbers<[1], [0], [0], [1], [0, 0, 1, 1], [], []>} : vector<24x128xbf16>, vector<128x128xbf16>, vector<24x128xf32> -> vector<24x128xf32>
    %245 = arith.addf %241, %244 : vector<24x128xf32>
    %246 = arith.truncf %245 : vector<24x128xf32> to vector<24x128xbf16>
    %c144 = arith.constant 144 : index
    %c0_111 = arith.constant 0 : index
    %247 = vector.load %arg19[%c144, %c0_111] : memref<336x128xbf16, #tpu.memory_space<vmem>>, vector<24x128xbf16>
    tpu.vector_store %arg19[%c144, %c0_111], %246 {strides = array<i32>} : memref<336x128xbf16, #tpu.memory_space<vmem>>, vector<24x128xbf16>,
    %c6_i32 = arith.constant 6 : i32
    %248 = arith.addi %0, %c6_i32 : i32
    %249 = arith.index_cast %248 : i32 to index
    %250 = memref.load %arg2[%249] : memref<20xi32, #tpu.memory_space<smem>>
    %251 = arith.subi %250, %2 : i32
    %c24_i32_112 = arith.constant 24 : i32
    %252 = arith.muli %251, %c24_i32_112 : i32
    %253 = tpu.assume_multiple %252, 8 : i32
    %254 = arith.index_cast %248 : i32 to index
    %255 = memref.load %arg3[%254] : memref<20xi32, #tpu.memory_space<smem>>
    %256 = arith.subi %255, %2 : i32
    %c24_i32_113 = arith.constant 24 : i32
    %257 = arith.muli %256, %c24_i32_113 : i32
    %258 = tpu.assume_multiple %257, 8 : i32
    %259 = arith.index_cast %253 : i32 to index
    %c0_114 = arith.constant 0 : index
    %260 = vector.load %arg18[%259, %c0_114] : memref<144x128xbf16, #tpu.memory_space<vmem>>, vector<24x128xbf16>
    %261 = arith.extf %260 : vector<24x128xbf16> to vector<24x128xf32>
    %262 = arith.index_cast %248 : i32 to index
    %263 = memref.load %arg4[%262] : memref<20xf32, #tpu.memory_space<smem>>
    %264 = vector.broadcast %263 : f32 to vector<24x128xf32>
    %265 = arith.mulf %261, %264 : vector<24x128xf32>
    %266 = arith.index_cast %258 : i32 to index
    %c0_115 = arith.constant 0 : index
    %267 = vector.load %arg18[%266, %c0_115] : memref<144x128xbf16, #tpu.memory_space<vmem>>, vector<24x128xbf16>
    %268 = arith.extf %267 : vector<24x128xbf16> to vector<24x128xf32>
    %269 = arith.index_cast %248 : i32 to index
    %270 = memref.load %arg5[%269] : memref<20xf32, #tpu.memory_space<smem>>
    %271 = vector.broadcast %270 : f32 to vector<24x128xf32>
    %272 = arith.mulf %268, %271 : vector<24x128xf32>
    %273 = arith.addf %265, %272 : vector<24x128xf32>
    %c144_116 = arith.constant 144 : index
    %c0_117 = arith.constant 0 : index
    %274 = vector.load %arg17[%c144_116, %c0_117] : memref<288x128xbf16, #tpu.memory_space<vmem>>, vector<24x128xbf16>
    %c0_118 = arith.constant 0 : index
    %c0_119 = arith.constant 0 : index
    %275 = vector.load %arg10[%c0_118, %c0_119] : memref<128x128xbf16, #tpu.memory_space<vmem>>, vector<128x128xbf16>
    %cst_120 = arith.constant dense<0.000000e+00> : vector<24x128xf32>
    %276 = tpu.matmul %274, %275, %cst_120 {dimension_numbers = #tpu.dot_dimension_numbers<[1], [0], [0], [1], [0, 0, 1, 1], [], []>} : vector<24x128xbf16>, vector<128x128xbf16>, vector<24x128xf32> -> vector<24x128xf32>
    %277 = arith.addf %273, %276 : vector<24x128xf32>
    %278 = arith.truncf %277 : vector<24x128xf32> to vector<24x128xbf16>
    %c168 = arith.constant 168 : index
    %c0_121 = arith.constant 0 : index
    %279 = vector.load %arg19[%c168, %c0_121] : memref<336x128xbf16, #tpu.memory_space<vmem>>, vector<24x128xbf16>
    tpu.vector_store %arg19[%c168, %c0_121], %278 {strides = array<i32>} : memref<336x128xbf16, #tpu.memory_space<vmem>>, vector<24x128xbf16>,
    %c7_i32 = arith.constant 7 : i32
    %280 = arith.addi %0, %c7_i32 : i32
    %281 = arith.index_cast %280 : i32 to index
    %282 = memref.load %arg2[%281] : memref<20xi32, #tpu.memory_space<smem>>
    %283 = arith.subi %282, %2 : i32
    %c24_i32_122 = arith.constant 24 : i32
    %284 = arith.muli %283, %c24_i32_122 : i32
    %285 = tpu.assume_multiple %284, 8 : i32
    %286 = arith.index_cast %280 : i32 to index
    %287 = memref.load %arg3[%286] : memref<20xi32, #tpu.memory_space<smem>>
    %288 = arith.subi %287, %2 : i32
    %c24_i32_123 = arith.constant 24 : i32
    %289 = arith.muli %288, %c24_i32_123 : i32
    %290 = tpu.assume_multiple %289, 8 : i32
    %291 = arith.index_cast %285 : i32 to index
    %c0_124 = arith.constant 0 : index
    %292 = vector.load %arg18[%291, %c0_124] : memref<144x128xbf16, #tpu.memory_space<vmem>>, vector<24x128xbf16>
    %293 = arith.extf %292 : vector<24x128xbf16> to vector<24x128xf32>
    %294 = arith.index_cast %280 : i32 to index
    %295 = memref.load %arg4[%294] : memref<20xf32, #tpu.memory_space<smem>>
    %296 = vector.broadcast %295 : f32 to vector<24x128xf32>
    %297 = arith.mulf %293, %296 : vector<24x128xf32>
    %298 = arith.index_cast %290 : i32 to index
    %c0_125 = arith.constant 0 : index
    %299 = vector.load %arg18[%298, %c0_125] : memref<144x128xbf16, #tpu.memory_space<vmem>>, vector<24x128xbf16>
    %300 = arith.extf %299 : vector<24x128xbf16> to vector<24x128xf32>
    %301 = arith.index_cast %280 : i32 to index
    %302 = memref.load %arg5[%301] : memref<20xf32, #tpu.memory_space<smem>>
    %303 = vector.broadcast %302 : f32 to vector<24x128xf32>
    %304 = arith.mulf %300, %303 : vector<24x128xf32>
    %305 = arith.addf %297, %304 : vector<24x128xf32>
    %c168_126 = arith.constant 168 : index
    %c0_127 = arith.constant 0 : index
    %306 = vector.load %arg17[%c168_126, %c0_127] : memref<288x128xbf16, #tpu.memory_space<vmem>>, vector<24x128xbf16>
    %c0_128 = arith.constant 0 : index
    %c0_129 = arith.constant 0 : index
    %307 = vector.load %arg10[%c0_128, %c0_129] : memref<128x128xbf16, #tpu.memory_space<vmem>>, vector<128x128xbf16>
    %cst_130 = arith.constant dense<0.000000e+00> : vector<24x128xf32>
    %308 = tpu.matmul %306, %307, %cst_130 {dimension_numbers = #tpu.dot_dimension_numbers<[1], [0], [0], [1], [0, 0, 1, 1], [], []>} : vector<24x128xbf16>, vector<128x128xbf16>, vector<24x128xf32> -> vector<24x128xf32>
    %309 = arith.addf %305, %308 : vector<24x128xf32>
    %310 = arith.truncf %309 : vector<24x128xf32> to vector<24x128xbf16>
    %c192 = arith.constant 192 : index
    %c0_131 = arith.constant 0 : index
    %311 = vector.load %arg19[%c192, %c0_131] : memref<336x128xbf16, #tpu.memory_space<vmem>>, vector<24x128xbf16>
    tpu.vector_store %arg19[%c192, %c0_131], %310 {strides = array<i32>} : memref<336x128xbf16, #tpu.memory_space<vmem>>, vector<24x128xbf16>,
    %c8_i32_132 = arith.constant 8 : i32
    %312 = arith.addi %0, %c8_i32_132 : i32
    %313 = arith.index_cast %312 : i32 to index
    %314 = memref.load %arg2[%313] : memref<20xi32, #tpu.memory_space<smem>>
    %315 = arith.subi %314, %2 : i32
    %c24_i32_133 = arith.constant 24 : i32
    %316 = arith.muli %315, %c24_i32_133 : i32
    %317 = tpu.assume_multiple %316, 8 : i32
    %318 = arith.index_cast %312 : i32 to index
    %319 = memref.load %arg3[%318] : memref<20xi32, #tpu.memory_space<smem>>
    %320 = arith.subi %319, %2 : i32
    %c24_i32_134 = arith.constant 24 : i32
    %321 = arith.muli %320, %c24_i32_134 : i32
    %322 = tpu.assume_multiple %321, 8 : i32
    %323 = arith.index_cast %317 : i32 to index
    %c0_135 = arith.constant 0 : index
    %324 = vector.load %arg18[%323, %c0_135] : memref<144x128xbf16, #tpu.memory_space<vmem>>, vector<24x128xbf16>
    %325 = arith.extf %324 : vector<24x128xbf16> to vector<24x128xf32>
    %326 = arith.index_cast %312 : i32 to index
    %327 = memref.load %arg4[%326] : memref<20xf32, #tpu.memory_space<smem>>
    %328 = vector.broadcast %327 : f32 to vector<24x128xf32>
    %329 = arith.mulf %325, %328 : vector<24x128xf32>
    %330 = arith.index_cast %322 : i32 to index
    %c0_136 = arith.constant 0 : index
    %331 = vector.load %arg18[%330, %c0_136] : memref<144x128xbf16, #tpu.memory_space<vmem>>, vector<24x128xbf16>
    %332 = arith.extf %331 : vector<24x128xbf16> to vector<24x128xf32>
    %333 = arith.index_cast %312 : i32 to index
    %334 = memref.load %arg5[%333] : memref<20xf32, #tpu.memory_space<smem>>
    %335 = vector.broadcast %334 : f32 to vector<24x128xf32>
    %336 = arith.mulf %332, %335 : vector<24x128xf32>
    %337 = arith.addf %329, %336 : vector<24x128xf32>
    %c192_137 = arith.constant 192 : index
    %c0_138 = arith.constant 0 : index
    %338 = vector.load %arg17[%c192_137, %c0_138] : memref<288x128xbf16, #tpu.memory_space<vmem>>, vector<24x128xbf16>
    %c0_139 = arith.constant 0 : index
    %c0_140 = arith.constant 0 : index
    %339 = vector.load %arg10[%c0_139, %c0_140] : memref<128x128xbf16, #tpu.memory_space<vmem>>, vector<128x128xbf16>
    %cst_141 = arith.constant dense<0.000000e+00> : vector<24x128xf32>
    %340 = tpu.matmul %338, %339, %cst_141 {dimension_numbers = #tpu.dot_dimension_numbers<[1], [0], [0], [1], [0, 0, 1, 1], [], []>} : vector<24x128xbf16>, vector<128x128xbf16>, vector<24x128xf32> -> vector<24x128xf32>
    %341 = arith.addf %337, %340 : vector<24x128xf32>
    %342 = arith.truncf %341 : vector<24x128xf32> to vector<24x128xbf16>
    %c216 = arith.constant 216 : index
    %c0_142 = arith.constant 0 : index
    %343 = vector.load %arg19[%c216, %c0_142] : memref<336x128xbf16, #tpu.memory_space<vmem>>, vector<24x128xbf16>
    tpu.vector_store %arg19[%c216, %c0_142], %342 {strides = array<i32>} : memref<336x128xbf16, #tpu.memory_space<vmem>>, vector<24x128xbf16>,
    %c9_i32 = arith.constant 9 : i32
    %344 = arith.addi %0, %c9_i32 : i32
    %345 = arith.index_cast %344 : i32 to index
    %346 = memref.load %arg2[%345] : memref<20xi32, #tpu.memory_space<smem>>
    %347 = arith.subi %346, %2 : i32
    %c24_i32_143 = arith.constant 24 : i32
    %348 = arith.muli %347, %c24_i32_143 : i32
    %349 = tpu.assume_multiple %348, 8 : i32
    %350 = arith.index_cast %344 : i32 to index
    %351 = memref.load %arg3[%350] : memref<20xi32, #tpu.memory_space<smem>>
    %352 = arith.subi %351, %2 : i32
    %c24_i32_144 = arith.constant 24 : i32
    %353 = arith.muli %352, %c24_i32_144 : i32
    %354 = tpu.assume_multiple %353, 8 : i32
    %355 = arith.index_cast %349 : i32 to index
    %c0_145 = arith.constant 0 : index
    %356 = vector.load %arg18[%355, %c0_145] : memref<144x128xbf16, #tpu.memory_space<vmem>>, vector<24x128xbf16>
    %357 = arith.extf %356 : vector<24x128xbf16> to vector<24x128xf32>
    %358 = arith.index_cast %344 : i32 to index
    %359 = memref.load %arg4[%358] : memref<20xf32, #tpu.memory_space<smem>>
    %360 = vector.broadcast %359 : f32 to vector<24x128xf32>
    %361 = arith.mulf %357, %360 : vector<24x128xf32>
    %362 = arith.index_cast %354 : i32 to index
    %c0_146 = arith.constant 0 : index
    %363 = vector.load %arg18[%362, %c0_146] : memref<144x128xbf16, #tpu.memory_space<vmem>>, vector<24x128xbf16>
    %364 = arith.extf %363 : vector<24x128xbf16> to vector<24x128xf32>
    %365 = arith.index_cast %344 : i32 to index
    %366 = memref.load %arg5[%365] : memref<20xf32, #tpu.memory_space<smem>>
    %367 = vector.broadcast %366 : f32 to vector<24x128xf32>
    %368 = arith.mulf %364, %367 : vector<24x128xf32>
    %369 = arith.addf %361, %368 : vector<24x128xf32>
    %c216_147 = arith.constant 216 : index
    %c0_148 = arith.constant 0 : index
    %370 = vector.load %arg17[%c216_147, %c0_148] : memref<288x128xbf16, #tpu.memory_space<vmem>>, vector<24x128xbf16>
    %c0_149 = arith.constant 0 : index
    %c0_150 = arith.constant 0 : index
    %371 = vector.load %arg10[%c0_149, %c0_150] : memref<128x128xbf16, #tpu.memory_space<vmem>>, vector<128x128xbf16>
    %cst_151 = arith.constant dense<0.000000e+00> : vector<24x128xf32>
    %372 = tpu.matmul %370, %371, %cst_151 {dimension_numbers = #tpu.dot_dimension_numbers<[1], [0], [0], [1], [0, 0, 1, 1], [], []>} : vector<24x128xbf16>, vector<128x128xbf16>, vector<24x128xf32> -> vector<24x128xf32>
    %373 = arith.addf %369, %372 : vector<24x128xf32>
    %374 = arith.truncf %373 : vector<24x128xf32> to vector<24x128xbf16>
    %c240 = arith.constant 240 : index
    %c0_152 = arith.constant 0 : index
    %375 = vector.load %arg19[%c240, %c0_152] : memref<336x128xbf16, #tpu.memory_space<vmem>>, vector<24x128xbf16>
    tpu.vector_store %arg19[%c240, %c0_152], %374 {strides = array<i32>} : memref<336x128xbf16, #tpu.memory_space<vmem>>, vector<24x128xbf16>,
    %c10_i32 = arith.constant 10 : i32
    %376 = arith.addi %0, %c10_i32 : i32
    %377 = arith.index_cast %376 : i32 to index
    %378 = memref.load %arg2[%377] : memref<20xi32, #tpu.memory_space<smem>>
    %379 = arith.subi %378, %2 : i32
    %c24_i32_153 = arith.constant 24 : i32
    %380 = arith.muli %379, %c24_i32_153 : i32
    %381 = tpu.assume_multiple %380, 8 : i32
    %382 = arith.index_cast %376 : i32 to index
    %383 = memref.load %arg3[%382] : memref<20xi32, #tpu.memory_space<smem>>
    %384 = arith.subi %383, %2 : i32
    %c24_i32_154 = arith.constant 24 : i32
    %385 = arith.muli %384, %c24_i32_154 : i32
    %386 = tpu.assume_multiple %385, 8 : i32
    %387 = arith.index_cast %381 : i32 to index
    %c0_155 = arith.constant 0 : index
    %388 = vector.load %arg18[%387, %c0_155] : memref<144x128xbf16, #tpu.memory_space<vmem>>, vector<24x128xbf16>
    %389 = arith.extf %388 : vector<24x128xbf16> to vector<24x128xf32>
    %390 = arith.index_cast %376 : i32 to index
    %391 = memref.load %arg4[%390] : memref<20xf32, #tpu.memory_space<smem>>
    %392 = vector.broadcast %391 : f32 to vector<24x128xf32>
    %393 = arith.mulf %389, %392 : vector<24x128xf32>
    %394 = arith.index_cast %386 : i32 to index
    %c0_156 = arith.constant 0 : index
    %395 = vector.load %arg18[%394, %c0_156] : memref<144x128xbf16, #tpu.memory_space<vmem>>, vector<24x128xbf16>
    %396 = arith.extf %395 : vector<24x128xbf16> to vector<24x128xf32>
    %397 = arith.index_cast %376 : i32 to index
    %398 = memref.load %arg5[%397] : memref<20xf32, #tpu.memory_space<smem>>
    %399 = vector.broadcast %398 : f32 to vector<24x128xf32>
    %400 = arith.mulf %396, %399 : vector<24x128xf32>
    %401 = arith.addf %393, %400 : vector<24x128xf32>
    %c240_157 = arith.constant 240 : index
    %c0_158 = arith.constant 0 : index
    %402 = vector.load %arg17[%c240_157, %c0_158] : memref<288x128xbf16, #tpu.memory_space<vmem>>, vector<24x128xbf16>
    %c0_159 = arith.constant 0 : index
    %c0_160 = arith.constant 0 : index
    %403 = vector.load %arg10[%c0_159, %c0_160] : memref<128x128xbf16, #tpu.memory_space<vmem>>, vector<128x128xbf16>
    %cst_161 = arith.constant dense<0.000000e+00> : vector<24x128xf32>
    %404 = tpu.matmul %402, %403, %cst_161 {dimension_numbers = #tpu.dot_dimension_numbers<[1], [0], [0], [1], [0, 0, 1, 1], [], []>} : vector<24x128xbf16>, vector<128x128xbf16>, vector<24x128xf32> -> vector<24x128xf32>
    %405 = arith.addf %401, %404 : vector<24x128xf32>
    %406 = arith.truncf %405 : vector<24x128xf32> to vector<24x128xbf16>
    %c264_162 = arith.constant 264 : index
    %c0_163 = arith.constant 0 : index
    %407 = vector.load %arg19[%c264_162, %c0_163] : memref<336x128xbf16, #tpu.memory_space<vmem>>, vector<24x128xbf16>
    tpu.vector_store %arg19[%c264_162, %c0_163], %406 {strides = array<i32>} : memref<336x128xbf16, #tpu.memory_space<vmem>>, vector<24x128xbf16>,
    %c11_i32 = arith.constant 11 : i32
    %408 = arith.addi %0, %c11_i32 : i32
    %409 = arith.index_cast %408 : i32 to index
    %410 = memref.load %arg2[%409] : memref<20xi32, #tpu.memory_space<smem>>
    %411 = arith.subi %410, %2 : i32
    %c24_i32_164 = arith.constant 24 : i32
    %412 = arith.muli %411, %c24_i32_164 : i32
    %413 = tpu.assume_multiple %412, 8 : i32
    %414 = arith.index_cast %408 : i32 to index
    %415 = memref.load %arg3[%414] : memref<20xi32, #tpu.memory_space<smem>>
    %416 = arith.subi %415, %2 : i32
    %c24_i32_165 = arith.constant 24 : i32
    %417 = arith.muli %416, %c24_i32_165 : i32
    %418 = tpu.assume_multiple %417, 8 : i32
    %419 = arith.index_cast %413 : i32 to index
    %c0_166 = arith.constant 0 : index
    %420 = vector.load %arg18[%419, %c0_166] : memref<144x128xbf16, #tpu.memory_space<vmem>>, vector<24x128xbf16>
    %421 = arith.extf %420 : vector<24x128xbf16> to vector<24x128xf32>
    %422 = arith.index_cast %408 : i32 to index
    %423 = memref.load %arg4[%422] : memref<20xf32, #tpu.memory_space<smem>>
    %424 = vector.broadcast %423 : f32 to vector<24x128xf32>
    %425 = arith.mulf %421, %424 : vector<24x128xf32>
    %426 = arith.index_cast %418 : i32 to index
    %c0_167 = arith.constant 0 : index
    %427 = vector.load %arg18[%426, %c0_167] : memref<144x128xbf16, #tpu.memory_space<vmem>>, vector<24x128xbf16>
    %428 = arith.extf %427 : vector<24x128xbf16> to vector<24x128xf32>
    %429 = arith.index_cast %408 : i32 to index
    %430 = memref.load %arg5[%429] : memref<20xf32, #tpu.memory_space<smem>>
    %431 = vector.broadcast %430 : f32 to vector<24x128xf32>
    %432 = arith.mulf %428, %431 : vector<24x128xf32>
    %433 = arith.addf %425, %432 : vector<24x128xf32>
    %c264_168 = arith.constant 264 : index
    %c0_169 = arith.constant 0 : index
    %434 = vector.load %arg17[%c264_168, %c0_169] : memref<288x128xbf16, #tpu.memory_space<vmem>>, vector<24x128xbf16>
    %c0_170 = arith.constant 0 : index
    %c0_171 = arith.constant 0 : index
    %435 = vector.load %arg10[%c0_170, %c0_171] : memref<128x128xbf16, #tpu.memory_space<vmem>>, vector<128x128xbf16>
    %cst_172 = arith.constant dense<0.000000e+00> : vector<24x128xf32>
    %436 = tpu.matmul %434, %435, %cst_172 {dimension_numbers = #tpu.dot_dimension_numbers<[1], [0], [0], [1], [0, 0, 1, 1], [], []>} : vector<24x128xbf16>, vector<128x128xbf16>, vector<24x128xf32> -> vector<24x128xf32>
    %437 = arith.addf %433, %436 : vector<24x128xf32>
    %438 = arith.truncf %437 : vector<24x128xf32> to vector<24x128xbf16>
    %c288 = arith.constant 288 : index
    %c0_173 = arith.constant 0 : index
    %439 = vector.load %arg19[%c288, %c0_173] : memref<336x128xbf16, #tpu.memory_space<vmem>>, vector<24x128xbf16>
    tpu.vector_store %arg19[%c288, %c0_173], %438 {strides = array<i32>} : memref<336x128xbf16, #tpu.memory_space<vmem>>, vector<24x128xbf16>,
    %c23 = arith.constant 23 : index
    %c0_174 = arith.constant 0 : index
    %440 = vector.load %arg19[%c23, %c0_174] : memref<336x128xbf16, #tpu.memory_space<vmem>>, vector<240x128xbf16>
    %c0_175 = arith.constant 0 : index
    %c0_176 = arith.constant 0 : index
    %c0_177 = arith.constant 0 : index
    %441 = vector.load %arg11[%c0_175, %c0_176, %c0_177] : memref<9x128x128xbf16, #tpu.memory_space<vmem>>, vector<1x128x128xbf16>
    %442 = vector.shape_cast %441 : vector<1x128x128xbf16> to vector<128x128xbf16>
    %cst_178 = arith.constant dense<0.000000e+00> : vector<240x128xf32>
    %443 = tpu.matmul %440, %442, %cst_178 {dimension_numbers = #tpu.dot_dimension_numbers<[1], [0], [0], [1], [0, 0, 1, 1], [], []>} : vector<240x128xbf16>, vector<128x128xbf16>, vector<240x128xf32> -> vector<240x128xf32>
    %c24_179 = arith.constant 24 : index
    %c0_180 = arith.constant 0 : index
    %444 = vector.load %arg19[%c24_179, %c0_180] : memref<336x128xbf16, #tpu.memory_space<vmem>>, vector<240x128xbf16>
    %c1 = arith.constant 1 : index
    %c0_181 = arith.constant 0 : index
    %c0_182 = arith.constant 0 : index
    %445 = vector.load %arg11[%c1, %c0_181, %c0_182] : memref<9x128x128xbf16, #tpu.memory_space<vmem>>, vector<1x128x128xbf16>
    %446 = vector.shape_cast %445 : vector<1x128x128xbf16> to vector<128x128xbf16>
    %cst_183 = arith.constant dense<0.000000e+00> : vector<240x128xf32>
    %447 = tpu.matmul %444, %446, %cst_183 {dimension_numbers = #tpu.dot_dimension_numbers<[1], [0], [0], [1], [0, 0, 1, 1], [], []>} : vector<240x128xbf16>, vector<128x128xbf16>, vector<240x128xf32> -> vector<240x128xf32>
    %448 = arith.addf %443, %447 : vector<240x128xf32>
    %c25 = arith.constant 25 : index
    %c0_184 = arith.constant 0 : index
    %449 = vector.load %arg19[%c25, %c0_184] : memref<336x128xbf16, #tpu.memory_space<vmem>>, vector<240x128xbf16>
    %c2 = arith.constant 2 : index
    %c0_185 = arith.constant 0 : index
    %c0_186 = arith.constant 0 : index
    %450 = vector.load %arg11[%c2, %c0_185, %c0_186] : memref<9x128x128xbf16, #tpu.memory_space<vmem>>, vector<1x128x128xbf16>
    %451 = vector.shape_cast %450 : vector<1x128x128xbf16> to vector<128x128xbf16>
    %cst_187 = arith.constant dense<0.000000e+00> : vector<240x128xf32>
    %452 = tpu.matmul %449, %451, %cst_187 {dimension_numbers = #tpu.dot_dimension_numbers<[1], [0], [0], [1], [0, 0, 1, 1], [], []>} : vector<240x128xbf16>, vector<128x128xbf16>, vector<240x128xf32> -> vector<240x128xf32>
    %453 = arith.addf %448, %452 : vector<240x128xf32>
    %c47 = arith.constant 47 : index
    %c0_188 = arith.constant 0 : index
    %454 = vector.load %arg19[%c47, %c0_188] : memref<336x128xbf16, #tpu.memory_space<vmem>>, vector<240x128xbf16>
    %c3 = arith.constant 3 : index
    %c0_189 = arith.constant 0 : index
    %c0_190 = arith.constant 0 : index
    %455 = vector.load %arg11[%c3, %c0_189, %c0_190] : memref<9x128x128xbf16, #tpu.memory_space<vmem>>, vector<1x128x128xbf16>
    %456 = vector.shape_cast %455 : vector<1x128x128xbf16> to vector<128x128xbf16>
    %cst_191 = arith.constant dense<0.000000e+00> : vector<240x128xf32>
    %457 = tpu.matmul %454, %456, %cst_191 {dimension_numbers = #tpu.dot_dimension_numbers<[1], [0], [0], [1], [0, 0, 1, 1], [], []>} : vector<240x128xbf16>, vector<128x128xbf16>, vector<240x128xf32> -> vector<240x128xf32>
    %458 = arith.addf %453, %457 : vector<240x128xf32>
    %c48_192 = arith.constant 48 : index
    %c0_193 = arith.constant 0 : index
    %459 = vector.load %arg19[%c48_192, %c0_193] : memref<336x128xbf16, #tpu.memory_space<vmem>>, vector<240x128xbf16>
    %c4 = arith.constant 4 : index
    %c0_194 = arith.constant 0 : index
    %c0_195 = arith.constant 0 : index
    %460 = vector.load %arg11[%c4, %c0_194, %c0_195] : memref<9x128x128xbf16, #tpu.memory_space<vmem>>, vector<1x128x128xbf16>
    %461 = vector.shape_cast %460 : vector<1x128x128xbf16> to vector<128x128xbf16>
    %cst_196 = arith.constant dense<0.000000e+00> : vector<240x128xf32>
    %462 = tpu.matmul %459, %461, %cst_196 {dimension_numbers = #tpu.dot_dimension_numbers<[1], [0], [0], [1], [0, 0, 1, 1], [], []>} : vector<240x128xbf16>, vector<128x128xbf16>, vector<240x128xf32> -> vector<240x128xf32>
    %463 = arith.addf %458, %462 : vector<240x128xf32>
    %c49 = arith.constant 49 : index
    %c0_197 = arith.constant 0 : index
    %464 = vector.load %arg19[%c49, %c0_197] : memref<336x128xbf16, #tpu.memory_space<vmem>>, vector<240x128xbf16>
    %c5 = arith.constant 5 : index
    %c0_198 = arith.constant 0 : index
    %c0_199 = arith.constant 0 : index
    %465 = vector.load %arg11[%c5, %c0_198, %c0_199] : memref<9x128x128xbf16, #tpu.memory_space<vmem>>, vector<1x128x128xbf16>
    %466 = vector.shape_cast %465 : vector<1x128x128xbf16> to vector<128x128xbf16>
    %cst_200 = arith.constant dense<0.000000e+00> : vector<240x128xf32>
    %467 = tpu.matmul %464, %466, %cst_200 {dimension_numbers = #tpu.dot_dimension_numbers<[1], [0], [0], [1], [0, 0, 1, 1], [], []>} : vector<240x128xbf16>, vector<128x128xbf16>, vector<240x128xf32> -> vector<240x128xf32>
    %468 = arith.addf %463, %467 : vector<240x128xf32>
    %c71 = arith.constant 71 : index
    %c0_201 = arith.constant 0 : index
    %469 = vector.load %arg19[%c71, %c0_201] : memref<336x128xbf16, #tpu.memory_space<vmem>>, vector<240x128xbf16>
    %c6 = arith.constant 6 : index
    %c0_202 = arith.constant 0 : index
    %c0_203 = arith.constant 0 : index
    %470 = vector.load %arg11[%c6, %c0_202, %c0_203] : memref<9x128x128xbf16, #tpu.memory_space<vmem>>, vector<1x128x128xbf16>
    %471 = vector.shape_cast %470 : vector<1x128x128xbf16> to vector<128x128xbf16>
    %cst_204 = arith.constant dense<0.000000e+00> : vector<240x128xf32>
    %472 = tpu.matmul %469, %471, %cst_204 {dimension_numbers = #tpu.dot_dimension_numbers<[1], [0], [0], [1], [0, 0, 1, 1], [], []>} : vector<240x128xbf16>, vector<128x128xbf16>, vector<240x128xf32> -> vector<240x128xf32>
    %473 = arith.addf %468, %472 : vector<240x128xf32>
    %c72_205 = arith.constant 72 : index
    %c0_206 = arith.constant 0 : index
    %474 = vector.load %arg19[%c72_205, %c0_206] : memref<336x128xbf16, #tpu.memory_space<vmem>>, vector<240x128xbf16>
    %c7 = arith.constant 7 : index
    %c0_207 = arith.constant 0 : index
    %c0_208 = arith.constant 0 : index
    %475 = vector.load %arg11[%c7, %c0_207, %c0_208] : memref<9x128x128xbf16, #tpu.memory_space<vmem>>, vector<1x128x128xbf16>
    %476 = vector.shape_cast %475 : vector<1x128x128xbf16> to vector<128x128xbf16>
    %cst_209 = arith.constant dense<0.000000e+00> : vector<240x128xf32>
    %477 = tpu.matmul %474, %476, %cst_209 {dimension_numbers = #tpu.dot_dimension_numbers<[1], [0], [0], [1], [0, 0, 1, 1], [], []>} : vector<240x128xbf16>, vector<128x128xbf16>, vector<240x128xf32> -> vector<240x128xf32>
    %478 = arith.addf %473, %477 : vector<240x128xf32>
    %c73 = arith.constant 73 : index
    %c0_210 = arith.constant 0 : index
    %479 = vector.load %arg19[%c73, %c0_210] : memref<336x128xbf16, #tpu.memory_space<vmem>>, vector<240x128xbf16>
    %c8_211 = arith.constant 8 : index
    %c0_212 = arith.constant 0 : index
    %c0_213 = arith.constant 0 : index
    %480 = vector.load %arg11[%c8_211, %c0_212, %c0_213] : memref<9x128x128xbf16, #tpu.memory_space<vmem>>, vector<1x128x128xbf16>
    %481 = vector.shape_cast %480 : vector<1x128x128xbf16> to vector<128x128xbf16>
    %cst_214 = arith.constant dense<0.000000e+00> : vector<240x128xf32>
    %482 = tpu.matmul %479, %481, %cst_214 {dimension_numbers = #tpu.dot_dimension_numbers<[1], [0], [0], [1], [0, 0, 1, 1], [], []>} : vector<240x128xbf16>, vector<128x128xbf16>, vector<240x128xf32> -> vector<240x128xf32>
    %483 = arith.addf %478, %482 : vector<240x128xf32>
    %c0_215 = arith.constant 0 : index
    %c0_216 = arith.constant 0 : index
    %484 = vector.load %arg12[%c0_215, %c0_216] : memref<1x128xf32, #tpu.memory_space<vmem>>, vector<1x128xf32>
    %485 = vector.broadcast %484 : vector<1x128xf32> to vector<240x128xf32>
    %486 = arith.addf %483, %485 : vector<240x128xf32>
    %cst_217 = arith.constant 0.000000e+00 : f32
    %487 = vector.broadcast %cst_217 : f32 to vector<240x128xf32>
    %488 = arith.cmpf ogt, %486, %487 : vector<240x128xf32>
    %cst_218 = arith.constant 0.00999999977 : f32
    %489 = vector.broadcast %cst_218 : f32 to vector<240x128xf32>
    %490 = arith.mulf %489, %486 : vector<240x128xf32>
    %491 = arith.select %488, %486, %490 : vector<240x128xi1>, vector<240x128xf32>
    %c0_219 = arith.constant 0 : index
    %c0_220 = arith.constant 0 : index
    %492 = vector.load %arg14[%c0_219, %c0_220] : memref<240x1xf32, #tpu.memory_space<vmem>>, vector<240x1xf32>
    %493 = vector.broadcast %492 : vector<240x1xf32> to vector<240x128xf32>
    %494 = arith.mulf %491, %493 : vector<240x128xf32>
    %c0_i32_221 = arith.constant 0 : i32
    %495 = arith.cmpi sgt, %0, %c0_i32_221 : i32
    %496 = arith.extui %495 : i1 to i32
    %497 = arith.sitofp %496 : i32 to f32
    %c8_i32_222 = arith.constant 8 : i32
    %498 = arith.addi %0, %c8_i32_222 : i32
    %c16_i32 = arith.constant 16 : i32
    %499 = arith.cmpi slt, %498, %c16_i32 : i32
    %500 = arith.extui %499 : i1 to i32
    %501 = arith.sitofp %500 : i32 to f32
    %502 = vector.extract_strided_slice %494 {offsets = [0, 0], sizes = [24, 128], strides = [1, 1]} : vector<240x128xf32> to vector<24x128xf32>
    %503 = vector.broadcast %497 : f32 to vector<24x128xf32>
    %504 = arith.mulf %502, %503 : vector<24x128xf32>
    %505 = arith.truncf %504 : vector<24x128xf32> to vector<24x128xbf16>
    %c24_223 = arith.constant 24 : index
    %c0_224 = arith.constant 0 : index
    %506 = vector.load %arg20[%c24_223, %c0_224] : memref<288x128xbf16, #tpu.memory_space<vmem>>, vector<24x128xbf16>
    tpu.vector_store %arg20[%c24_223, %c0_224], %505 {strides = array<i32>} : memref<288x128xbf16, #tpu.memory_space<vmem>>, vector<24x128xbf16>,
    %507 = vector.extract_strided_slice %494 {offsets = [24, 0], sizes = [192, 128], strides = [1, 1]} : vector<240x128xf32> to vector<192x128xf32>
    %508 = arith.truncf %507 : vector<192x128xf32> to vector<192x128xbf16>
    %c48_225 = arith.constant 48 : index
    %c0_226 = arith.constant 0 : index
    %509 = vector.load %arg20[%c48_225, %c0_226] : memref<288x128xbf16, #tpu.memory_space<vmem>>, vector<192x128xbf16>
    tpu.vector_store %arg20[%c48_225, %c0_226], %508 {strides = array<i32>} : memref<288x128xbf16, #tpu.memory_space<vmem>>, vector<192x128xbf16>,
    %510 = vector.extract_strided_slice %494 {offsets = [216, 0], sizes = [24, 128], strides = [1, 1]} : vector<240x128xf32> to vector<24x128xf32>
    %511 = vector.broadcast %501 : f32 to vector<24x128xf32>
    %512 = arith.mulf %510, %511 : vector<24x128xf32>
    %513 = arith.truncf %512 : vector<24x128xf32> to vector<24x128xbf16>
    %c240_227 = arith.constant 240 : index
    %c0_228 = arith.constant 0 : index
    %514 = vector.load %arg20[%c240_227, %c0_228] : memref<288x128xbf16, #tpu.memory_space<vmem>>, vector<24x128xbf16>
    tpu.vector_store %arg20[%c240_227, %c0_228], %513 {strides = array<i32>} : memref<288x128xbf16, #tpu.memory_space<vmem>>, vector<24x128xbf16>,
    %c23_229 = arith.constant 23 : index
    %c0_230 = arith.constant 0 : index
    %515 = vector.load %arg20[%c23_229, %c0_230] : memref<288x128xbf16, #tpu.memory_space<vmem>>, vector<192x128xbf16>
    %c0_231 = arith.constant 0 : index
    %c0_232 = arith.constant 0 : index
    %c0_233 = arith.constant 0 : index
    %516 = vector.load %arg13[%c0_231, %c0_232, %c0_233] : memref<9x128x128xbf16, #tpu.memory_space<vmem>>, vector<1x128x128xbf16>
    %517 = vector.shape_cast %516 : vector<1x128x128xbf16> to vector<128x128xbf16>
    %cst_234 = arith.constant dense<0.000000e+00> : vector<192x128xf32>
    %518 = tpu.matmul %515, %517, %cst_234 {dimension_numbers = #tpu.dot_dimension_numbers<[1], [0], [0], [1], [0, 0, 1, 1], [], []>} : vector<192x128xbf16>, vector<128x128xbf16>, vector<192x128xf32> -> vector<192x128xf32>
    %c24_235 = arith.constant 24 : index
    %c0_236 = arith.constant 0 : index
    %519 = vector.load %arg20[%c24_235, %c0_236] : memref<288x128xbf16, #tpu.memory_space<vmem>>, vector<192x128xbf16>
    %c1_237 = arith.constant 1 : index
    %c0_238 = arith.constant 0 : index
    %c0_239 = arith.constant 0 : index
    %520 = vector.load %arg13[%c1_237, %c0_238, %c0_239] : memref<9x128x128xbf16, #tpu.memory_space<vmem>>, vector<1x128x128xbf16>
    %521 = vector.shape_cast %520 : vector<1x128x128xbf16> to vector<128x128xbf16>
    %cst_240 = arith.constant dense<0.000000e+00> : vector<192x128xf32>
    %522 = tpu.matmul %519, %521, %cst_240 {dimension_numbers = #tpu.dot_dimension_numbers<[1], [0], [0], [1], [0, 0, 1, 1], [], []>} : vector<192x128xbf16>, vector<128x128xbf16>, vector<192x128xf32> -> vector<192x128xf32>
    %523 = arith.addf %518, %522 : vector<192x128xf32>
    %c25_241 = arith.constant 25 : index
    %c0_242 = arith.constant 0 : index
    %524 = vector.load %arg20[%c25_241, %c0_242] : memref<288x128xbf16, #tpu.memory_space<vmem>>, vector<192x128xbf16>
    %c2_243 = arith.constant 2 : index
    %c0_244 = arith.constant 0 : index
    %c0_245 = arith.constant 0 : index
    %525 = vector.load %arg13[%c2_243, %c0_244, %c0_245] : memref<9x128x128xbf16, #tpu.memory_space<vmem>>, vector<1x128x128xbf16>
    %526 = vector.shape_cast %525 : vector<1x128x128xbf16> to vector<128x128xbf16>
    %cst_246 = arith.constant dense<0.000000e+00> : vector<192x128xf32>
    %527 = tpu.matmul %524, %526, %cst_246 {dimension_numbers = #tpu.dot_dimension_numbers<[1], [0], [0], [1], [0, 0, 1, 1], [], []>} : vector<192x128xbf16>, vector<128x128xbf16>, vector<192x128xf32> -> vector<192x128xf32>
    %528 = arith.addf %523, %527 : vector<192x128xf32>
    %c47_247 = arith.constant 47 : index
    %c0_248 = arith.constant 0 : index
    %529 = vector.load %arg20[%c47_247, %c0_248] : memref<288x128xbf16, #tpu.memory_space<vmem>>, vector<192x128xbf16>
    %c3_249 = arith.constant 3 : index
    %c0_250 = arith.constant 0 : index
    %c0_251 = arith.constant 0 : index
    %530 = vector.load %arg13[%c3_249, %c0_250, %c0_251] : memref<9x128x128xbf16, #tpu.memory_space<vmem>>, vector<1x128x128xbf16>
    %531 = vector.shape_cast %530 : vector<1x128x128xbf16> to vector<128x128xbf16>
    %cst_252 = arith.constant dense<0.000000e+00> : vector<192x128xf32>
    %532 = tpu.matmul %529, %531, %cst_252 {dimension_numbers = #tpu.dot_dimension_numbers<[1], [0], [0], [1], [0, 0, 1, 1], [], []>} : vector<192x128xbf16>, vector<128x128xbf16>, vector<192x128xf32> -> vector<192x128xf32>
    %533 = arith.addf %528, %532 : vector<192x128xf32>
    %c48_253 = arith.constant 48 : index
    %c0_254 = arith.constant 0 : index
    %534 = vector.load %arg20[%c48_253, %c0_254] : memref<288x128xbf16, #tpu.memory_space<vmem>>, vector<192x128xbf16>
    %c4_255 = arith.constant 4 : index
    %c0_256 = arith.constant 0 : index
    %c0_257 = arith.constant 0 : index
    %535 = vector.load %arg13[%c4_255, %c0_256, %c0_257] : memref<9x128x128xbf16, #tpu.memory_space<vmem>>, vector<1x128x128xbf16>
    %536 = vector.shape_cast %535 : vector<1x128x128xbf16> to vector<128x128xbf16>
    %cst_258 = arith.constant dense<0.000000e+00> : vector<192x128xf32>
    %537 = tpu.matmul %534, %536, %cst_258 {dimension_numbers = #tpu.dot_dimension_numbers<[1], [0], [0], [1], [0, 0, 1, 1], [], []>} : vector<192x128xbf16>, vector<128x128xbf16>, vector<192x128xf32> -> vector<192x128xf32>
    %538 = arith.addf %533, %537 : vector<192x128xf32>
    %c49_259 = arith.constant 49 : index
    %c0_260 = arith.constant 0 : index
    %539 = vector.load %arg20[%c49_259, %c0_260] : memref<288x128xbf16, #tpu.memory_space<vmem>>, vector<192x128xbf16>
    %c5_261 = arith.constant 5 : index
    %c0_262 = arith.constant 0 : index
    %c0_263 = arith.constant 0 : index
    %540 = vector.load %arg13[%c5_261, %c0_262, %c0_263] : memref<9x128x128xbf16, #tpu.memory_space<vmem>>, vector<1x128x128xbf16>
    %541 = vector.shape_cast %540 : vector<1x128x128xbf16> to vector<128x128xbf16>
    %cst_264 = arith.constant dense<0.000000e+00> : vector<192x128xf32>
    %542 = tpu.matmul %539, %541, %cst_264 {dimension_numbers = #tpu.dot_dimension_numbers<[1], [0], [0], [1], [0, 0, 1, 1], [], []>} : vector<192x128xbf16>, vector<128x128xbf16>, vector<192x128xf32> -> vector<192x128xf32>
    %543 = arith.addf %538, %542 : vector<192x128xf32>
    %c71_265 = arith.constant 71 : index
    %c0_266 = arith.constant 0 : index
    %544 = vector.load %arg20[%c71_265, %c0_266] : memref<288x128xbf16, #tpu.memory_space<vmem>>, vector<192x128xbf16>
    %c6_267 = arith.constant 6 : index
    %c0_268 = arith.constant 0 : index
    %c0_269 = arith.constant 0 : index
    %545 = vector.load %arg13[%c6_267, %c0_268, %c0_269] : memref<9x128x128xbf16, #tpu.memory_space<vmem>>, vector<1x128x128xbf16>
    %546 = vector.shape_cast %545 : vector<1x128x128xbf16> to vector<128x128xbf16>
    %cst_270 = arith.constant dense<0.000000e+00> : vector<192x128xf32>
    %547 = tpu.matmul %544, %546, %cst_270 {dimension_numbers = #tpu.dot_dimension_numbers<[1], [0], [0], [1], [0, 0, 1, 1], [], []>} : vector<192x128xbf16>, vector<128x128xbf16>, vector<192x128xf32> -> vector<192x128xf32>
    %548 = arith.addf %543, %547 : vector<192x128xf32>
    %c72_271 = arith.constant 72 : index
    %c0_272 = arith.constant 0 : index
    %549 = vector.load %arg20[%c72_271, %c0_272] : memref<288x128xbf16, #tpu.memory_space<vmem>>, vector<192x128xbf16>
    %c7_273 = arith.constant 7 : index
    %c0_274 = arith.constant 0 : index
    %c0_275 = arith.constant 0 : index
    %550 = vector.load %arg13[%c7_273, %c0_274, %c0_275] : memref<9x128x128xbf16, #tpu.memory_space<vmem>>, vector<1x128x128xbf16>
    %551 = vector.shape_cast %550 : vector<1x128x128xbf16> to vector<128x128xbf16>
    %cst_276 = arith.constant dense<0.000000e+00> : vector<192x128xf32>
    %552 = tpu.matmul %549, %551, %cst_276 {dimension_numbers = #tpu.dot_dimension_numbers<[1], [0], [0], [1], [0, 0, 1, 1], [], []>} : vector<192x128xbf16>, vector<128x128xbf16>, vector<192x128xf32> -> vector<192x128xf32>
    %553 = arith.addf %548, %552 : vector<192x128xf32>
    %c73_277 = arith.constant 73 : index
    %c0_278 = arith.constant 0 : index
    %554 = vector.load %arg20[%c73_277, %c0_278] : memref<288x128xbf16, #tpu.memory_space<vmem>>, vector<192x128xbf16>
    %c8_279 = arith.constant 8 : index
    %c0_280 = arith.constant 0 : index
    %c0_281 = arith.constant 0 : index
    %555 = vector.load %arg13[%c8_279, %c0_280, %c0_281] : memref<9x128x128xbf16, #tpu.memory_space<vmem>>, vector<1x128x128xbf16>
    %556 = vector.shape_cast %555 : vector<1x128x128xbf16> to vector<128x128xbf16>
    %cst_282 = arith.constant dense<0.000000e+00> : vector<192x128xf32>
    %557 = tpu.matmul %554, %556, %cst_282 {dimension_numbers = #tpu.dot_dimension_numbers<[1], [0], [0], [1], [0, 0, 1, 1], [], []>} : vector<192x128xbf16>, vector<128x128xbf16>, vector<192x128xf32> -> vector<192x128xf32>
    %558 = arith.addf %553, %557 : vector<192x128xf32>
    %c0_283 = arith.constant 0 : index
    %c0_284 = arith.constant 0 : index
    %c0_285 = arith.constant 0 : index
    %559 = vector.load %arg15[%c0_283, %c0_284, %c0_285] : memref<1x192x128xf32, #tpu.memory_space<vmem>>, vector<1x192x128xf32>
    %560 = vector.shape_cast %559 : vector<1x192x128xf32> to vector<192x128xf32>
    %561 = vector.shape_cast %558 : vector<192x128xf32> to vector<1x192x128xf32>
    tpu.vector_store %arg15[%c0_283, %c0_284, %c0_285], %561 {strides = array<i32>} : memref<1x192x128xf32, #tpu.memory_space<vmem>>, vector<1x192x128xf32>,
    return
  }
  func.func @transform_2(%arg0: i32, %arg1: i32, %arg2: memref<20xi32, #tpu.memory_space<smem>>, %arg3: memref<20xi32, #tpu.memory_space<smem>>, %arg4: memref<20xf32, #tpu.memory_space<smem>>, %arg5: memref<20xf32, #tpu.memory_space<smem>>, %arg6: memref<2xi32, #tpu.memory_space<smem>>) -> (i32, i32) {
    %c0_i32 = arith.constant 0 : i32
    %c0_i32_0 = arith.constant 0 : i32
    %c0_i32_1 = arith.constant 0 : i32
    return %c0_i32, %c0_i32_0 : i32, i32
  }
  func.func @transform_3(%arg0: i32, %arg1: i32, %arg2: memref<20xi32, #tpu.memory_space<smem>>, %arg3: memref<20xi32, #tpu.memory_space<smem>>, %arg4: memref<20xf32, #tpu.memory_space<smem>>, %arg5: memref<20xf32, #tpu.memory_space<smem>>, %arg6: memref<2xi32, #tpu.memory_space<smem>>) -> (i32, i32) {
    %c0_i32 = arith.constant 0 : i32
    %c0_i32_0 = arith.constant 0 : i32
    %c0_i32_1 = arith.constant 0 : i32
    return %c0_i32, %c0_i32_0 : i32, i32
  }
  func.func @transform_4(%arg0: i32, %arg1: i32, %arg2: memref<20xi32, #tpu.memory_space<smem>>, %arg3: memref<20xi32, #tpu.memory_space<smem>>, %arg4: memref<20xf32, #tpu.memory_space<smem>>, %arg5: memref<20xf32, #tpu.memory_space<smem>>, %arg6: memref<2xi32, #tpu.memory_space<smem>>) -> (i32, i32, i32) {
    %c0_i32 = arith.constant 0 : i32
    %c0_i32_0 = arith.constant 0 : i32
    %c0_i32_1 = arith.constant 0 : i32
    %c0_i32_2 = arith.constant 0 : i32
    return %c0_i32, %c0_i32_0, %c0_i32_1 : i32, i32, i32
  }
  func.func @transform_5(%arg0: i32, %arg1: i32, %arg2: memref<20xi32, #tpu.memory_space<smem>>, %arg3: memref<20xi32, #tpu.memory_space<smem>>, %arg4: memref<20xf32, #tpu.memory_space<smem>>, %arg5: memref<20xf32, #tpu.memory_space<smem>>, %arg6: memref<2xi32, #tpu.memory_space<smem>>) -> (i32, i32) {
    %c0_i32 = arith.constant 0 : i32
    %c0_i32_0 = arith.constant 0 : i32
    %c0_i32_1 = arith.constant 0 : i32
    return %c0_i32, %c0_i32_0 : i32, i32
  }
  func.func @transform_6(%arg0: i32, %arg1: i32, %arg2: memref<20xi32, #tpu.memory_space<smem>>, %arg3: memref<20xi32, #tpu.memory_space<smem>>, %arg4: memref<20xf32, #tpu.memory_space<smem>>, %arg5: memref<20xf32, #tpu.memory_space<smem>>, %arg6: memref<2xi32, #tpu.memory_space<smem>>) -> (i32, i32, i32) {
    %c0_i32 = arith.constant 0 : i32
    %c0_i32_0 = arith.constant 0 : i32
    %c0_i32_1 = arith.constant 0 : i32
    %c0_i32_2 = arith.constant 0 : i32
    return %c0_i32, %c0_i32_0, %c0_i32_1 : i32, i32, i32
  }
  func.func @transform_7(%arg0: i32, %arg1: i32, %arg2: memref<20xi32, #tpu.memory_space<smem>>, %arg3: memref<20xi32, #tpu.memory_space<smem>>, %arg4: memref<20xf32, #tpu.memory_space<smem>>, %arg5: memref<20xf32, #tpu.memory_space<smem>>, %arg6: memref<2xi32, #tpu.memory_space<smem>>) -> (i32, i32) {
    %c0_i32 = arith.constant 0 : i32
    %c0_i32_0 = arith.constant 0 : i32
    %c0_i32_1 = arith.constant 0 : i32
    return %c0_i32, %c0_i32_0 : i32, i32
  }
  func.func @transform_8(%arg0: i32, %arg1: i32, %arg2: memref<20xi32, #tpu.memory_space<smem>>, %arg3: memref<20xi32, #tpu.memory_space<smem>>, %arg4: memref<20xf32, #tpu.memory_space<smem>>, %arg5: memref<20xf32, #tpu.memory_space<smem>>, %arg6: memref<2xi32, #tpu.memory_space<smem>>) -> (i32, i32, i32) {
    %c0_i32 = arith.constant 0 : i32
    %c0_i32_0 = arith.constant 0 : i32
    return %arg0, %arg1, %c0_i32 : i32, i32, i32
  }
}

</mosaic_0001>

<llo_original>
// kernel: tpu_custom_call.1
$region0: #{tpu_custom_call.1}
  #allocation0 [shape = 'u32[]', space=smem, size = 0x4, offset = 0x4, fixed_abs, tag = 'smem constant byte address 0x4 - core index']
  #allocation1 [shape = 'u32[144,128]{1,0:T(1,128)}', space=vmem, size = 0x12000, scoped, tag = 'internal scratch']
  #allocation2 [shape = 'bf16[48,128]{1,0:T(8,128)(2,1)}', space=vmem, size = 0x3000, scoped, tag = 'scratch operand']
  #allocation3 [shape = 'bf16[288,128]{1,0:T(8,128)(2,1)}', space=vmem, size = 0x12000, scoped, tag = 'scratch operand']
  #allocation4 [shape = 'bf16[144,128]{1,0:T(8,128)(2,1)}', space=vmem, size = 0x9000, scoped, tag = 'scratch operand']
  #allocation5 [shape = 'bf16[336,128]{1,0:T(8,128)(2,1)}', space=vmem, size = 0x15000, scoped, tag = 'scratch operand']
  #allocation6 [shape = 'bf16[288,128]{1,0:T(8,128)(2,1)}', space=vmem, size = 0x12000, scoped, tag = 'scratch operand']
  #allocation7 [shape = 's32[2]{0}', space=sflag, size = 0x8, scoped, tag = 'scratch operand']
  #allocation8 [shape = 's32[1]{0}', space=sflag, size = 0x4, scoped, tag = 'scoped memory for tpu_custom_call.1']
  #allocation9 [shape = 'u8[512]{0}', space=smem, size = 0x200, scoped, tag = 'prefetched SMEM operand 0']
  #allocation10 [shape = 'u8[512]{0}', space=smem, size = 0x200, scoped, tag = 'prefetched SMEM operand 1']
  #allocation11 [shape = 'u8[512]{0}', space=smem, size = 0x200, scoped, tag = 'prefetched SMEM operand 2']
  #allocation12 [shape = 'u8[512]{0}', space=smem, size = 0x200, scoped, tag = 'prefetched SMEM operand 3']
  #allocation13 [shape = 'u8[512]{0}', space=smem, size = 0x200, scoped, tag = 'prefetched SMEM operand 4']
  #allocation20 [shape = 's32[]', space=sflag, size = 0x4, offset = 0, fixed_abs, tag = 'sflag constant byte address 0x0 - dummy sync flag']
  #allocation21 [shape = 's32[]', space=sflag, size = 0x4, offset = 0, fixed_abs, tag = 'sflag constant byte address 0x0 - dummy sync flag']
  #allocation22 [shape = 's32[]', space=sflag, size = 0x4, offset = 0, fixed_abs, tag = 'sflag constant byte address 0x0 - dummy sync flag']
  #allocation23 [shape = 'u32[]', space=smem, size = 0x4, offset = 0x44, fixed_abs, tag = 'smem constant byte address 0x44 - assertion arg 0']
  #allocation24 [shape = 'u32[]', space=smem, size = 0x4, offset = 0x48, fixed_abs, tag = 'smem constant byte address 0x48 - assertion arg 1']
  %s0 = inlined_call_operand.vmem [shape: s32[20], index: 0, kind: input, shape index: {}]
  %s1 = inlined_call_operand.vmem [shape: s32[20], index: 1, kind: input, shape index: {}]
  %s2 = inlined_call_operand.vmem [shape: f32[20], index: 2, kind: input, shape index: {}]
  %s3 = inlined_call_operand.vmem [shape: f32[20], index: 3, kind: input, shape index: {}]
  %s4 = inlined_call_operand.vmem [shape: s32[2], index: 4, kind: input, shape index: {}]
  %s5 = inlined_call_operand.vmem [shape: bf16[2,64,128], index: 5, kind: input, shape index: {}]
  %s6 = inlined_call_operand.hbm [shape: bf16[2,480,128], index: 6, kind: input, shape index: {}]
  %s7 = inlined_call_operand.vmem [shape: bf16[24,8], index: 7, kind: input, shape index: {}]
  %s8 = inlined_call_operand.vmem [shape: bf16[128,128], index: 8, kind: input, shape index: {}]
  %s9 = inlined_call_operand.hbm [shape: bf16[9,128,128], index: 9, kind: input, shape index: {}]
  %s10 = inlined_call_operand.vmem [shape: f32[1,128], index: 10, kind: input, shape index: {}]
  %s11 = inlined_call_operand.hbm [shape: bf16[9,128,128], index: 11, kind: input, shape index: {}]
  %s12 = inlined_call_operand.vmem [shape: f32[240,1], index: 12, kind: input, shape index: {}]
  %s13 = inlined_call_operand.hbm [shape: f32[2,384,128], index: 13, kind: output, shape index: {}]
  %s14 = sld [smem:[#allocation0]]
  $region103: #{tpu_custom_call.1} parent=0
    _
  %s16 = ssub.s32 1, %s14
  %s17 = scalar_select 0, %s16, %s14
  %s18 = sshll.u32 %s0, 4
  %s19 = int_to_ptr.vmem [resolvable:$true] %s18
  %21 = dma.vmem_to_smem %s19, 16, [#allocation9], [#allocation8]
  %s22 = sshll.u32 %s1, 4
  %s23 = int_to_ptr.vmem [resolvable:$true] %s22
  %25 = dma.vmem_to_smem %s23, 16, [#allocation10], [#allocation8]
  %s26 = sshll.u32 %s2, 4
  %s27 = int_to_ptr.vmem [resolvable:$true] %s26
  %29 = dma.vmem_to_smem %s27, 16, [#allocation11], [#allocation8]
  %s30 = sshll.u32 %s3, 4
  %s31 = int_to_ptr.vmem [resolvable:$true] %s30
  %33 = dma.vmem_to_smem %s31, 16, [#allocation12], [#allocation8]
  %s34 = sshll.u32 %s4, 4
  %s35 = int_to_ptr.vmem [resolvable:$true] %s34
  %37 = dma.vmem_to_smem %s35, 16, [#allocation13], [#allocation8]
  %38 = dma.done [#allocation8], 80
  %39 = sfence
  $region1: #{tpu_custom_call.1} parent=0
    #allocation14 [shape = 'u8[294912]{0}', space=vmem, size = 0x48000, scoped, tag = 'input window, operand 9, single buffered']
    #allocation15 [shape = 's32[2]{0}', space=sflag, size = 0x8, scoped, tag = 'scoped memory for tpu_custom_call.1']
    #allocation16 [shape = 's32[2]{0}', space=sflag, size = 0x8, scoped, tag = 'scoped memory for tpu_custom_call.1']
    #allocation17 [shape = 'u8[294912]{0}', space=vmem, size = 0x48000, scoped, tag = 'input window, operand 11, single buffered']
    #allocation18 [shape = 's32[1]{0}', space=sflag, size = 0x4, scoped, tag = 'scoped memory for tpu_custom_call.1']
    #allocation19 [shape = 'u8[196608]{0}', space=vmem, size = 0x30000, scoped, tag = 'output window, operand 0']
    %40 = vsyncpa [#allocation15], 0
    %41 = vsyncpa [#allocation18], 0
    %42 = vsyncpa [#allocation16], 0
    %s43 = scalar_lea.sflag [#allocation16], 1
    %44 = vsyncpa %s43, 0
    loop: start=0, step=1, limit=6
    $region2: #{tpu_custom_call.1} parent=1 // loop_pre_header
      _
    $region3: #{tpu_custom_call.1} parent=1 // loop_header
      %s46 = sphi 0, %s50
      %p47 = scmp.ge.s32.totalorder %s46, 6
      %s53 = sphi 0, %s65
      %s54 = sphi 0, %s61
      %s55 = sphi 0, %s53
      %s56 = sphi 0, %s54
      %s57 = sphi 0, %s55
      %s58 = sphi 0, %s56
      %s66 = sphi 0, %s66
      %s68 = sphi 0, %s66
      %s69 = sphi 0, %s68
      %s83 = sphi 0, %s69
      %s87 = sphi 0, %s87
      %s89 = sphi 0, %s87
      %s90 = sphi 0, %s89
      %s104 = sphi 0, %s90
      %s108 = sphi 0, %s108
      %s110 = sphi 0, %s108
      %s111 = sphi 0, %s110
      %s125 = sphi 0, %s111
      %s129 = sphi 0, %s129
      %s131 = sphi 0, %s129
      %s132 = sphi 0, %s131
      %s146 = sphi 0, %s132
      %s150 = sphi 0, %s150
      %s152 = sphi 0, %s150
      %s153 = sphi 0, %s152
      %s167 = sphi 0, %s153
      %s171 = sphi 0, %s171
      %s173 = sphi 0, %s171
      %s174 = sphi 0, %s173
      %s188 = sphi 0, %s174
      %s196 = sphi 0, %s198
      %s199 = sphi 0, %s196
      %s200 = sphi 0, %s199
      %s216 = sphi 0, %s200
    $region4: #{tpu_custom_call.1} parent=1 // loop_header_branch
      %49 = sbr.rel (%p47) target = $region8
    $region5: #{tpu_custom_call.1} parent=1 // loop_body
      %s51 = ssub.s32 %s46, 1
      %s52 = ssub.s32 %s46, 2
      %s59 = sadd.s32 1, %s54
      %p60 = scmp.ge.s32.totalorder %s59, 2
      %s61 = scalar_select %p60, 0, %s59
      %s62 = sadd.s32 1, %s53
      %s63 = scalar_select %p60, %s62, %s53
      %p64 = scmp.ge.s32.totalorder %s63, 2
      %s65 = scalar_select %p64, 0, %s63
      %s67 = sadd.s32 %s66, 1
      %p70 = scmp.eq.s32.totalorder %s46, 3
      %p71 = scmp.ne.s32.totalorder %s66, %s68
      %p72 = scmp.eq.s32.totalorder %s46, 0
      %p73 = por %p71, %p72
      %p74 = scmp.ne.s32.totalorder %s66, %s68
      %p75 = scmp.eq.s32.totalorder %s51, 3
      %p76 = por %p74, %p75
      %p77 = scmp.ne.s32.totalorder %s68, %s69
      %p78 = scmp.eq.s32.totalorder %s51, 0
      %p79 = por %p77, %p78
      %p80 = scmp.ne.s32.totalorder %s68, %s69
      %p81 = scmp.eq.s32.totalorder %s52, 3
      %p82 = por %p80, %p81
      %p84 = scmp.ne.s32.totalorder %s69, %s83
      %p85 = scmp.eq.s32.totalorder %s52, 0
      %p86 = por %p84, %p85
      %s88 = sadd.s32 %s87, 1
      %p91 = scmp.eq.s32.totalorder %s46, 3
      %p92 = scmp.ne.s32.totalorder %s87, %s89
      %p93 = scmp.eq.s32.totalorder %s46, 0
      %p94 = por %p92, %p93
      %p95 = scmp.ne.s32.totalorder %s87, %s89
      %p96 = scmp.eq.s32.totalorder %s51, 3
      %p97 = por %p95, %p96
      %p98 = scmp.ne.s32.totalorder %s89, %s90
      %p99 = scmp.eq.s32.totalorder %s51, 0
      %p100 = por %p98, %p99
      %p101 = scmp.ne.s32.totalorder %s89, %s90
      %p102 = scmp.eq.s32.totalorder %s52, 3
      %p103 = por %p101, %p102
      %p105 = scmp.ne.s32.totalorder %s90, %s104
      %p106 = scmp.eq.s32.totalorder %s52, 0
      %p107 = por %p105, %p106
      %s109 = sadd.s32 %s108, 1
      %p112 = scmp.eq.s32.totalorder %s46, 3
      %p113 = scmp.ne.s32.totalorder %s108, %s110
      %p114 = scmp.eq.s32.totalorder %s46, 0
      %p115 = por %p113, %p114
      %p116 = scmp.ne.s32.totalorder %s108, %s110
      %p117 = scmp.eq.s32.totalorder %s51, 3
      %p118 = por %p116, %p117
      %p119 = scmp.ne.s32.totalorder %s110, %s111
      %p120 = scmp.eq.s32.totalorder %s51, 0
      %p121 = por %p119, %p120
      %p122 = scmp.ne.s32.totalorder %s110, %s111
      %p123 = scmp.eq.s32.totalorder %s52, 3
      %p124 = por %p122, %p123
      %p126 = scmp.ne.s32.totalorder %s111, %s125
      %p127 = scmp.eq.s32.totalorder %s52, 0
      %p128 = por %p126, %p127
      %s130 = sadd.s32 %s129, 1
      %p133 = scmp.eq.s32.totalorder %s46, 3
      %p134 = scmp.ne.s32.totalorder %s129, %s131
      %p135 = scmp.eq.s32.totalorder %s46, 0
      %p136 = por %p134, %p135
      %p137 = scmp.ne.s32.totalorder %s129, %s131
      %p138 = scmp.eq.s32.totalorder %s51, 3
      %p139 = por %p137, %p138
      %p140 = scmp.ne.s32.totalorder %s131, %s132
      %p141 = scmp.eq.s32.totalorder %s51, 0
      %p142 = por %p140, %p141
      %p143 = scmp.ne.s32.totalorder %s131, %s132
      %p144 = scmp.eq.s32.totalorder %s52, 3
      %p145 = por %p143, %p144
      %p147 = scmp.ne.s32.totalorder %s132, %s146
      %p148 = scmp.eq.s32.totalorder %s52, 0
      %p149 = por %p147, %p148
      %s151 = sadd.s32 %s150, 1
      %p154 = scmp.eq.s32.totalorder %s46, 3
      %p155 = scmp.ne.s32.totalorder %s150, %s152
      %p156 = scmp.eq.s32.totalorder %s46, 0
      %p157 = por %p155, %p156
      %p158 = scmp.ne.s32.totalorder %s150, %s152
      %p159 = scmp.eq.s32.totalorder %s51, 3
      %p160 = por %p158, %p159
      %p161 = scmp.ne.s32.totalorder %s152, %s153
      %p162 = scmp.eq.s32.totalorder %s51, 0
      %p163 = por %p161, %p162
      %p164 = scmp.ne.s32.totalorder %s152, %s153
      %p165 = scmp.eq.s32.totalorder %s52, 3
      %p166 = por %p164, %p165
      %p168 = scmp.ne.s32.totalorder %s153, %s167
      %p169 = scmp.eq.s32.totalorder %s52, 0
      %p170 = por %p168, %p169
      %s172 = sadd.s32 %s171, 1
      %p175 = scmp.eq.s32.totalorder %s46, 3
      %p176 = scmp.ne.s32.totalorder %s171, %s173
      %p177 = scmp.eq.s32.totalorder %s46, 0
      %p178 = por %p176, %p177
      %p179 = scmp.ne.s32.totalorder %s171, %s173
      %p180 = scmp.eq.s32.totalorder %s51, 3
      %p181 = por %p179, %p180
      %p182 = scmp.ne.s32.totalorder %s173, %s174
      %p183 = scmp.eq.s32.totalorder %s51, 0
      %p184 = por %p182, %p183
      %p185 = scmp.ne.s32.totalorder %s173, %s174
      %p186 = scmp.eq.s32.totalorder %s52, 3
      %p187 = por %p185, %p186
      %p189 = scmp.ne.s32.totalorder %s174, %s188
      %p190 = scmp.eq.s32.totalorder %s52, 0
      %p191 = por %p189, %p190
      %s192 = ssub.s32 %s53, %s65
      %s193 = ssub.s32 %s54, %s61
      %s194 = sor.u32 %s192, %s193
      %p195 = scmp.eq.s32.totalorder %s194, 0
      %s197 = sadd.s32 %s196, 1
      %s198 = scalar_select %p195, %s196, %s197
      %p201 = pneg %p195
      %p202 = scmp.eq.s32.totalorder %s46, 3
      %p203 = por %p201, %p202
      %p204 = scmp.ne.s32.totalorder %s196, %s199
      %p205 = scmp.eq.s32.totalorder %s46, 0
      %p206 = por %p204, %p205
      %p207 = scmp.ne.s32.totalorder %s196, %s199
      %p208 = scmp.eq.s32.totalorder %s51, 3
      %p209 = por %p207, %p208
      %p210 = scmp.ne.s32.totalorder %s199, %s200
      %p211 = scmp.eq.s32.totalorder %s51, 0
      %p212 = por %p210, %p211
      %p213 = scmp.ne.s32.totalorder %s199, %s200
      %p214 = scmp.eq.s32.totalorder %s52, 3
      %p215 = por %p213, %p214
      %p217 = scmp.ne.s32.totalorder %s200, %s216
      %p218 = scmp.eq.s32.totalorder %s52, 0
      %p219 = por %p217, %p218
      %p220 = scmp.le.s32.totalorder 1, %s46
      %p221 = scmp.lt.s32.totalorder %s46, 5
      %p222 = pnand %p220, %p221
      %p223 = pneg %p222
      // Predicated region
      $region9: #{tpu_custom_call.1} parent=5 // pred_check
        _
      $region10: #{tpu_custom_call.1} parent=5 // pred_check_branch
        %225 = sbr.rel (%p222) target = $region12
      $region11: #{tpu_custom_call.1} parent=5 // pred_region
        %s226 = ssub.s32 %s46, 1
        // Predicated region
        $region13: #{tpu_custom_call.1} parent=11 // pred_check
          %p227 = pneg %p79
        $region14: #{tpu_custom_call.1} parent=11 // pred_check_branch
          %229 = sbr.rel (%p227) target = $region16
        $region15: #{tpu_custom_call.1} parent=11 // pred_region
          _
        $region16: #{tpu_custom_call.1} parent=11 // pred_fallthru
          _
        // Predicated region
        $region17: #{tpu_custom_call.1} parent=11 // pred_check
          %p230 = pneg %p100
        $region18: #{tpu_custom_call.1} parent=11 // pred_check_branch
          %232 = sbr.rel (%p230) target = $region20
        $region19: #{tpu_custom_call.1} parent=11 // pred_region
          _
        $region20: #{tpu_custom_call.1} parent=11 // pred_fallthru
          _
        // Predicated region
        $region21: #{tpu_custom_call.1} parent=11 // pred_check
          %p233 = pneg %p121
        $region22: #{tpu_custom_call.1} parent=11 // pred_check_branch
          %235 = sbr.rel (%p233) target = $region24
        $region23: #{tpu_custom_call.1} parent=11 // pred_region
          %s237 = ssub.s32 9216, 9216
          %238 = vsyncadd [#allocation15], %s237
          %s239 = sshll.u32 [#allocation14], 4
          %s240 = int_to_ptr.vmem [resolvable:$true] %s239
          %245 = dma.hbm_to_vmem [thread:$0]  %s9, 9216, %s240, [#allocation15], 64, 64, 4
        $region24: #{tpu_custom_call.1} parent=11 // pred_fallthru
          _
        // Predicated region
        $region25: #{tpu_custom_call.1} parent=11 // pred_check
          %p246 = pneg %p142
        $region26: #{tpu_custom_call.1} parent=11 // pred_check_branch
          %248 = sbr.rel (%p246) target = $region28
        $region27: #{tpu_custom_call.1} parent=11 // pred_region
          _
        $region28: #{tpu_custom_call.1} parent=11 // pred_fallthru
          _
        // Predicated region
        $region29: #{tpu_custom_call.1} parent=11 // pred_check
          %p249 = pneg %p163
        $region30: #{tpu_custom_call.1} parent=11 // pred_check_branch
          %251 = sbr.rel (%p249) target = $region32
        $region31: #{tpu_custom_call.1} parent=11 // pred_region
          %s253 = ssub.s32 9216, 9216
          %254 = vsyncadd [#allocation18], %s253
          %s255 = sshll.u32 [#allocation17], 4
          %s256 = int_to_ptr.vmem [resolvable:$true] %s255
          %261 = dma.hbm_to_vmem [thread:$0]  %s11, 9216, %s256, [#allocation18], 64, 64, 4
        $region32: #{tpu_custom_call.1} parent=11 // pred_fallthru
          _
        // Predicated region
        $region33: #{tpu_custom_call.1} parent=11 // pred_check
          %p262 = pneg %p184
        $region34: #{tpu_custom_call.1} parent=11 // pred_check_branch
          %264 = sbr.rel (%p262) target = $region36
        $region35: #{tpu_custom_call.1} parent=11 // pred_region
          _
        $region36: #{tpu_custom_call.1} parent=11 // pred_fallthru
          _
      $region12: #{tpu_custom_call.1} parent=5 // pred_fallthru
        _
      %p265 = scmp.lt.s32.totalorder %s46, 4
      // Predicated region
      $region37: #{tpu_custom_call.1} parent=5 // pred_check
        %p266 = pneg %p265
      $region38: #{tpu_custom_call.1} parent=5 // pred_check_branch
        %268 = sbr.rel (%p266) target = $region40
      $region39: #{tpu_custom_call.1} parent=5 // pred_region
        _
      $region40: #{tpu_custom_call.1} parent=5 // pred_fallthru
        _
      %p269 = scmp.le.s32.totalorder 1, %s46
      %p270 = scmp.lt.s32.totalorder %s46, 5
      %p271 = pnand %p269, %p270
      %p272 = pneg %p271
      // Predicated region
      $region41: #{tpu_custom_call.1} parent=5 // pred_check
        _
      $region42: #{tpu_custom_call.1} parent=5 // pred_check_branch
        %274 = sbr.rel (%p271) target = $region44
      $region43: #{tpu_custom_call.1} parent=5 // pred_region
        %s275 = ssub.s32 %s46, 1
        // Predicated region
        $region45: #{tpu_custom_call.1} parent=43 // pred_check
          %p276 = pneg %p121
        $region46: #{tpu_custom_call.1} parent=43 // pred_check_branch
          %278 = sbr.rel (%p276) target = $region48
        $region47: #{tpu_custom_call.1} parent=43 // pred_region
          %279 = dma.done [#allocation15], 9216
        $region48: #{tpu_custom_call.1} parent=43 // pred_fallthru
          _
        // Predicated region
        $region49: #{tpu_custom_call.1} parent=43 // pred_check
          %p280 = pneg %p163
        $region50: #{tpu_custom_call.1} parent=43 // pred_check_branch
          %282 = sbr.rel (%p280) target = $region52
        $region51: #{tpu_custom_call.1} parent=43 // pred_region
          %283 = dma.done [#allocation18], 9216
        $region52: #{tpu_custom_call.1} parent=43 // pred_fallthru
          _
        %p284 = pneg %p79
        %p285 = pneg %p76
        %p286 = pneg %p100
        %p287 = pneg %p97
        %p288 = pneg %p121
        %p289 = pneg %p118
        %p290 = pneg %p142
        %p291 = pneg %p139
        %p292 = pneg %p163
        %p293 = pneg %p160
        %p294 = pneg %p184
        %p295 = pneg %p181
        %p296 = pneg %p212
        %p297 = pneg %p209
        %s298 = sand.u32 %s199, 1
        %s299 = scalar_lea.sflag [#allocation16], %s298
        %s300 = sand.u32 %s199, 1
        %s301 = smul.addr %s300, 192
        %s302 = scalar_lea.vmem [#allocation19], %s301
        %s303 = smul.u32 24, %s56
        %s305 = smul.u32 %s56, 8
        %s306 = sld [smem:[#allocation13 + %s56]]
        %s307 = smul.u32 %s306, 8
        %s308 = sshra.s32 %s307, 3
        %s309 = sand.u32 %s307, 7
        %s310 = smul.u32 %s55, 8
        %s311 = sadd.s32 %s308, %s310
        %s312 = smul.addr %s311, 4
        %s313 = scalar_lea.vmem %s5, %s312
        %p315 = scmp.lt.u32.totalorder 24, 8
        %p316 = pneg %p315
        // Predicated region
        $region53: #{tpu_custom_call.1} parent=43 // pred_check
          _
        $region54: #{tpu_custom_call.1} parent=43 // pred_check_branch
          %318 = sbr.rel (%p315) target = $region56
        $region55: #{tpu_custom_call.1} parent=43 // pred_region
          %s334 = sand.u32 24, 7
          %p335 = scmp.eq.s32.totalorder %s334, 0
          // Predicated region
          $region68: #{tpu_custom_call.1} parent=55 // pred_check
            %p336 = pneg %p335
          $region69: #{tpu_custom_call.1} parent=55 // pred_check_branch
            %338 = sbr.rel (%p336) target = $region71
          $region70: #{tpu_custom_call.1} parent=55 // pred_region
            loop: start=0, step=1, limit=1
            $region72: #{tpu_custom_call.1} parent=70 // loop_pre_header
              _
            $region73: #{tpu_custom_call.1} parent=70 // loop_header
              %s340 = sphi 0, %s344
              %p341 = scmp.ge.s32.totalorder %s340, 1
              %s345 = sphi %s313, %s313
              %s346 = sphi [#allocation2], [#allocation2]
            $region74: #{tpu_custom_call.1} parent=70 // loop_header_branch
              %343 = sbr.rel (%p341) target = $region78
            $region75: #{tpu_custom_call.1} parent=70 // loop_body
              %v347 = vld [vmem:[%s345] sm:$0xff]
              %348 = vst [vmem:[%s346] sm:$0xff] %v347
              %v349 = vld [vmem:[%s345 + $0x8] sm:$0xff]
              %350 = vst [vmem:[%s346 + $0x8] sm:$0xff] %v349
              %v351 = vld [vmem:[%s345 + $0x10] sm:$0xff]
              %352 = vst [vmem:[%s346 + $0x10] sm:$0xff] %v351
            $region76: #{tpu_custom_call.1} parent=70 // loop_footer
              %s344 = sadd.s32 1, %s340
            $region77: #{tpu_custom_call.1} parent=70 // loop_footer_branch
              %339 = sbr.rel target = $region73
            $region78: #{tpu_custom_call.1} parent=70 // loop_exit
              _
          $region71: #{tpu_custom_call.1} parent=55 // pred_fallthru
            _
          %p353 = pneg %p335
          // Predicated region
          $region79: #{tpu_custom_call.1} parent=55 // pred_check
            _
          $region80: #{tpu_custom_call.1} parent=55 // pred_check_branch
            %355 = sbr.rel (%p335) target = $region82
          $region81: #{tpu_custom_call.1} parent=55 // pred_region
            %s356 = sand.u32 24, 7
          $region82: #{tpu_custom_call.1} parent=55 // pred_fallthru
            _
        $region56: #{tpu_custom_call.1} parent=43 // pred_fallthru
          _
        // Predicated region
        $region57: #{tpu_custom_call.1} parent=43 // pred_check
          %p319 = pneg %p315
        $region58: #{tpu_custom_call.1} parent=43 // pred_check_branch
          %321 = sbr.rel (%p319) target = $region60
        $region59: #{tpu_custom_call.1} parent=43 // pred_region
          %s322 = sshll.u32 1, 24
          %s323 = ssub.s32 %s322, 1
          loop: start=0, step=1, limit=1
          $region61: #{tpu_custom_call.1} parent=59 // loop_pre_header
            _
          $region62: #{tpu_custom_call.1} parent=59 // loop_header
            %s325 = sphi 0, %s329
            %p326 = scmp.ge.s32.totalorder %s325, 1
            %s330 = sphi %s313, %s313
            %s331 = sphi [#allocation2], [#allocation2]
          $region63: #{tpu_custom_call.1} parent=59 // loop_header_branch
            %328 = sbr.rel (%p326) target = $region67
          $region64: #{tpu_custom_call.1} parent=59 // loop_body
            %v332 = vld [vmem:[%s330] sm:%s323]
            %333 = vst [vmem:[%s331] sm:%s323] %v332
          $region65: #{tpu_custom_call.1} parent=59 // loop_footer
            %s329 = sadd.s32 1, %s325
          $region66: #{tpu_custom_call.1} parent=59 // loop_footer_branch
            %324 = sbr.rel target = $region62
          $region67: #{tpu_custom_call.1} parent=59 // loop_exit
            _
        $region60: #{tpu_custom_call.1} parent=43 // pred_fallthru
          _
        // Predicated region
        $region83: #{tpu_custom_call.1} parent=43 // pred_check
          _
        $region84: #{tpu_custom_call.1} parent=43 // pred_check_branch
          %359 = sbr.rel (0) target = $region86
        $region85: #{tpu_custom_call.1} parent=43 // pred_region
          %360 = vsyncadd [#allocation7], 384
        $region86: #{tpu_custom_call.1} parent=43 // pred_fallthru
          _
        %s361 = smul.u32 %s56, 192
        %s362 = sshra.s32 %s361, 3
        %s363 = sand.u32 %s361, 7
        %s364 = smul.u32 %s55, 60
        %s365 = sadd.s32 %s362, %s364
        %s366 = smul.addr %s365, 64
        %s367 = scalar_lea.hbm %s6, %s366
        %s368 = scalar_lea.sflag [#allocation7], 1
        // Predicated region
        $region87: #{tpu_custom_call.1} parent=43 // pred_check
          _
        $region88: #{tpu_custom_call.1} parent=43 // pred_check_branch
          %370 = sbr.rel target = $region90
        $region89: #{tpu_custom_call.1} parent=43 // pred_region
          %371 = sst [smem:[#allocation23]] [#allocation22]
          %372 = sst [smem:[#allocation24]] [#allocation21]
        $region90: #{tpu_custom_call.1} parent=43 // pred_fallthru
          _
        %374 = shalt.err (0)
        %s376 = sshll.u32 [#allocation3], 4
        %s377 = int_to_ptr.vmem [resolvable:$true] %s376
        %379 = dma.hbm_to_vmem [thread:$0]  %s367, 2304, %s377, %s368
        %380 = vst [vmem:[#allocation5] sm:$0xf] 0
        %381 = vst [vmem:[#allocation5 + $0x4] sm:$0xf] 0
        %382 = vst [vmem:[#allocation5 + $0x8] sm:$0xf] 0
        %383 = vst [vmem:[#allocation5 + $0x9c] sm:$0xf] 0
        %384 = vst [vmem:[#allocation5 + $0xa0] sm:$0xf] 0
        %385 = vst [vmem:[#allocation5 + $0xa4] sm:$0xf] 0
        %386 = vst [vmem:[#allocation6] sm:$0xf] 0
        %387 = vst [vmem:[#allocation6 + $0x4] sm:$0xf] 0
        %388 = vst [vmem:[#allocation6 + $0x8] sm:$0xf] 0
        %389 = vst [vmem:[#allocation6 + $0x84] sm:$0xf] 0
        %390 = vst [vmem:[#allocation6 + $0x88] sm:$0xf] 0
        %391 = vst [vmem:[#allocation6 + $0x8c] sm:$0xf] 0
        %s392 = smul.u32 4, 6
        %s393 = smul.u32 %s392, 1
        %s394 = sshll.u32 %s393, 4
        %395 = dma.done [#allocation7], %s394
        %v396 = vld [vmem:[%s7] sm:$0xf]
        %v397 = vld [vmem:[%s7 + $0x4] sm:$0xf]
        %v398 = vld [vmem:[%s7 + $0x8] sm:$0xf]
        %v399 = vld [vmem:[#allocation2] sm:$0xf]
        %v403 = vunpack.c.l.b16 %v396
        %v404 = vunpack.c.l.b16 %v397
        %v405 = vunpack.c.l.b16 %v398
        %v406 = vpack.c.b16 %v404, %v403
        %v407 = vpack.c.b16 %v405, %v405
        %vm408 = vcmask 64512
        %v410 = vsel %vm408, %v406, 0
        %v413 = vsel %vm408, %v407, 0
        %vm415 = vcmask 1043456
        %v417 = vsel %vm415, %v399, 0
        %419 = vmatprep.subr.bf16.mxu0 0
        %420 = vmatpush1.bf16.msra.mxu0 0
        %421 = vmatprep.subr.bf16.mxu0 0
        %422 = vmatpush1.bf16.msra.mxu0 0
        %423 = vmatprep.subr.bf16.mxu0 0
        %424 = vmatpush1.bf16.msra.mxu0 0
        %425 = vmatprep.subr.bf16.mxu0 0
        %426 = vmatpush1.bf16.msra.mxu0 0
        %427 = vmatprep.subr.bf16.mxu0 0
        %428 = vmatpush1.bf16.msra.mxu0 0
        %429 = vmatprep.subr.bf16.mxu0 0
        %430 = vmatpush1.bf16.msra.mxu0 0
        %431 = vmatprep.subr.bf16.mxu0 0
        %432 = vmatpush1.bf16.msra.mxu0 0
        %433 = vmatprep.subr.bf16.mxu0 0
        %434 = vmatpush1.bf16.msra.mxu0 %v417
        %435 = vmatprep.subr.bf16.mxu0 0
        %436 = vmatpush2.bf16.msra.mxu0 0
        %437 = vmatprep.subr.bf16.mxu0 0
        %438 = vmatpush2.bf16.msra.mxu0 0
        %439 = vmatprep.subr.bf16.mxu0 0
        %440 = vmatpush2.bf16.msra.mxu0 0
        %441 = vmatprep.subr.bf16.mxu0 0
        %442 = vmatpush2.bf16.msra.mxu0 0
        %443 = vmatprep.subr.bf16.mxu0 0
        %444 = vmatpush2.bf16.msra.mxu0 0
        %445 = vmatprep.subr.bf16.mxu0 0
        %446 = vmatpush2.bf16.msra.mxu0 0
        %447 = vmatprep.subr.bf16.mxu0 0
        %448 = vmatpush2.bf16.msra.mxu0 0
        %449 = vmatprep.subr.bf16.mxu0 0
        %450 = vmatpush2.bf16.msra.mxu0 0
        %451 = vmatprep.mubr.bf16.mxu0 0
        %452 = vmatmul.mubr.bf16.gmra.mxu0 %v410
        %v453 = vpop.f32.mrf.mxu0
        %v454 = vadd.f32 0.0, %v453
        %v455 = vpop.f32.mrf.mxu0
        %v456 = vpop.f32.mrf.mxu0
        %v457 = vadd.f32 0.0, %v456
        %v458 = vpop.f32.mrf.mxu0
        %459 = vmatprep.mubr.bf16.mxu0 0
        %460 = vmatmul.mubr.bf16.gmra.mxu0 %v413
        %v461 = vpop.f32.mrf.mxu0
        %v462 = vadd.f32 0.0, %v461
        %v463 = vpop.f32.mrf.mxu0
        %v464 = vpop.f32.mrf.mxu0
        %v465 = vpop.f32.mrf.mxu0
        %466 = vdwg.mxu0
        %v467 = vpack.c.bf16 %v457, %v454
        %v468 = vpack.c.bf16 %v462, %v462
        %v471 = vunpack.c.l.b16 %v467
        %v472 = vunpack.c.h.b16 %v467
        %v473 = vunpack.c.l.b16 %v468
        %v474 = vpack.c.b16 %v471, %v471
        %v475 = vpack.c.b16 %v472, %v472
        %v476 = vpack.c.b16 %v473, %v473
        %480 = vst [vmem:[#allocation4] sm:$0xf] %v474
        %481 = vst [vmem:[#allocation4 + $0x4] sm:$0xf] %v475
        %482 = vst [vmem:[#allocation4 + $0x8] sm:$0xf] %v476
        %v483 = vld [vmem:[%s7] sm:$0xf]
        %v484 = vld [vmem:[%s7 + $0x4] sm:$0xf]
        %v485 = vld [vmem:[%s7 + $0x8] sm:$0xf]
        %v486 = vld [vmem:[#allocation2 + $0x4] sm:$0xf]
        %v490 = vunpack.c.l.b16 %v483
        %v491 = vunpack.c.l.b16 %v484
        %v492 = vunpack.c.l.b16 %v485
        %v493 = vpack.c.b16 %v491, %v490
        %v494 = vpack.c.b16 %v492, %v492
        %v496 = vsel %vm408, %v493, 0
        %v499 = vsel %vm408, %v494, 0
        %v502 = vsel %vm415, %v486, 0
        %504 = vmatprep.subr.bf16.mxu0 0
        %505 = vmatpush1.bf16.msra.mxu0 0
        %506 = vmatprep.subr.bf16.mxu0 0
        %507 = vmatpush1.bf16.msra.mxu0 0
        %508 = vmatprep.subr.bf16.mxu0 0
        %509 = vmatpush1.bf16.msra.mxu0 0
        %510 = vmatprep.subr.bf16.mxu0 0
        %511 = vmatpush1.bf16.msra.mxu0 0
        %512 = vmatprep.subr.bf16.mxu0 0
        %513 = vmatpush1.bf16.msra.mxu0 0
        %514 = vmatprep.subr.bf16.mxu0 0
        %515 = vmatpush1.bf16.msra.mxu0 0
        %516 = vmatprep.subr.bf16.mxu0 0
        %517 = vmatpush1.bf16.msra.mxu0 0
        %518 = vmatprep.subr.bf16.mxu0 0
        %519 = vmatpush1.bf16.msra.mxu0 %v502
        %520 = vmatprep.subr.bf16.mxu0 0
        %521 = vmatpush2.bf16.msra.mxu0 0
        %522 = vmatprep.subr.bf16.mxu0 0
        %523 = vmatpush2.bf16.msra.mxu0 0
        %524 = vmatprep.subr.bf16.mxu0 0
        %525 = vmatpush2.bf16.msra.mxu0 0
        %526 = vmatprep.subr.bf16.mxu0 0
        %527 = vmatpush2.bf16.msra.mxu0 0
        %528 = vmatprep.subr.bf16.mxu0 0
        %529 = vmatpush2.bf16.msra.mxu0 0
        %530 = vmatprep.subr.bf16.mxu0 0
        %531 = vmatpush2.bf16.msra.mxu0 0
        %532 = vmatprep.subr.bf16.mxu0 0
        %533 = vmatpush2.bf16.msra.mxu0 0
        %534 = vmatprep.subr.bf16.mxu0 0
        %535 = vmatpush2.bf16.msra.mxu0 0
        %536 = vmatprep.mubr.bf16.mxu0 0
        %537 = vmatmul.mubr.bf16.gmra.mxu0 %v496
        %v538 = vpop.f32.mrf.mxu0
        %v539 = vadd.f32 0.0, %v538
        %v540 = vpop.f32.mrf.mxu0
        %v541 = vpop.f32.mrf.mxu0
        %v542 = vadd.f32 0.0, %v541
        %v543 = vpop.f32.mrf.mxu0
        %544 = vmatprep.mubr.bf16.mxu0 0
        %545 = vmatmul.mubr.bf16.gmra.mxu0 %v499
        %v546 = vpop.f32.mrf.mxu0
        %v547 = vadd.f32 0.0, %v546
        %v548 = vpop.f32.mrf.mxu0
        %v549 = vpop.f32.mrf.mxu0
        %v550 = vpop.f32.mrf.mxu0
        %551 = vdwg.mxu0
        %v552 = vpack.c.bf16 %v542, %v539
        %v553 = vpack.c.bf16 %v547, %v547
        %v556 = vunpack.c.l.b16 %v552
        %v557 = vunpack.c.h.b16 %v552
        %v558 = vunpack.c.l.b16 %v553
        %v559 = vpack.c.b16 %v556, %v556
        %v560 = vpack.c.b16 %v557, %v557
        %v561 = vpack.c.b16 %v558, %v558
        %565 = vst [vmem:[#allocation4 + $0xc] sm:$0xf] %v559
        %566 = vst [vmem:[#allocation4 + $0x10] sm:$0xf] %v560
        %567 = vst [vmem:[#allocation4 + $0x14] sm:$0xf] %v561
        %v568 = vld [vmem:[%s7] sm:$0xf]
        %v569 = vld [vmem:[%s7 + $0x4] sm:$0xf]
        %v570 = vld [vmem:[%s7 + $0x8] sm:$0xf]
        %v571 = vld [vmem:[#allocation2 + $0x8] sm:$0xf]
        %v575 = vunpack.c.l.b16 %v568
        %v576 = vunpack.c.l.b16 %v569
        %v577 = vunpack.c.l.b16 %v570
        %v578 = vpack.c.b16 %v576, %v575
        %v579 = vpack.c.b16 %v577, %v577
        %v581 = vsel %vm408, %v578, 0
        %v584 = vsel %vm408, %v579, 0
        %v587 = vsel %vm415, %v571, 0
        %589 = vmatprep.subr.bf16.mxu0 0
        %590 = vmatpush1.bf16.msra.mxu0 0
        %591 = vmatprep.subr.bf16.mxu0 0
        %592 = vmatpush1.bf16.msra.mxu0 0
        %593 = vmatprep.subr.bf16.mxu0 0
        %594 = vmatpush1.bf16.msra.mxu0 0
        %595 = vmatprep.subr.bf16.mxu0 0
        %596 = vmatpush1.bf16.msra.mxu0 0
        %597 = vmatprep.subr.bf16.mxu0 0
        %598 = vmatpush1.bf16.msra.mxu0 0
        %599 = vmatprep.subr.bf16.mxu0 0
        %600 = vmatpush1.bf16.msra.mxu0 0
        %601 = vmatprep.subr.bf16.mxu0 0
        %602 = vmatpush1.bf16.msra.mxu0 0
        %603 = vmatprep.subr.bf16.mxu0 0
        %604 = vmatpush1.bf16.msra.mxu0 %v587
        %605 = vmatprep.subr.bf16.mxu0 0
        %606 = vmatpush2.bf16.msra.mxu0 0
        %607 = vmatprep.subr.bf16.mxu0 0
        %608 = vmatpush2.bf16.msra.mxu0 0
        %609 = vmatprep.subr.bf16.mxu0 0
        %610 = vmatpush2.bf16.msra.mxu0 0
        %611 = vmatprep.subr.bf16.mxu0 0
        %612 = vmatpush2.bf16.msra.mxu0 0
        %613 = vmatprep.subr.bf16.mxu0 0
        %614 = vmatpush2.bf16.msra.mxu0 0
        %615 = vmatprep.subr.bf16.mxu0 0
        %616 = vmatpush2.bf16.msra.mxu0 0
        %617 = vmatprep.subr.bf16.mxu0 0
        %618 = vmatpush2.bf16.msra.mxu0 0
        %619 = vmatprep.subr.bf16.mxu0 0
        %620 = vmatpush2.bf16.msra.mxu0 0
        %621 = vmatprep.mubr.bf16.mxu0 0
        %622 = vmatmul.mubr.bf16.gmra.mxu0 %v581
        %v623 = vpop.f32.mrf.mxu0
        %v624 = vadd.f32 0.0, %v623
        %v625 = vpop.f32.mrf.mxu0
        %v626 = vpop.f32.mrf.mxu0
        %v627 = vadd.f32 0.0, %v626
        %v628 = vpop.f32.mrf.mxu0
        %629 = vmatprep.mubr.bf16.mxu0 0
        %630 = vmatmul.mubr.bf16.gmra.mxu0 %v584
        %v631 = vpop.f32.mrf.mxu0
        %v632 = vadd.f32 0.0, %v631
        %v633 = vpop.f32.mrf.mxu0
        %v634 = vpop.f32.mrf.mxu0
        %v635 = vpop.f32.mrf.mxu0
        %636 = vdwg.mxu0
        %v637 = vpack.c.bf16 %v627, %v624
        %v638 = vpack.c.bf16 %v632, %v632
        %v641 = vunpack.c.l.b16 %v637
        %v642 = vunpack.c.h.b16 %v637
        %v643 = vunpack.c.l.b16 %v638
        %v644 = vpack.c.b16 %v641, %v641
        %v645 = vpack.c.b16 %v642, %v642
        %v646 = vpack.c.b16 %v643, %v643
        %650 = vst [vmem:[#allocation4 + $0x18] sm:$0xf] %v644
        %651 = vst [vmem:[#allocation4 + $0x1c] sm:$0xf] %v645
        %652 = vst [vmem:[#allocation4 + $0x20] sm:$0xf] %v646
        %v653 = vld [vmem:[%s7] sm:$0xf]
        %v654 = vld [vmem:[%s7 + $0x4] sm:$0xf]
        %v655 = vld [vmem:[%s7 + $0x8] sm:$0xf]
        %v656 = vld [vmem:[#allocation2 + $0xc] sm:$0xf]
        %v660 = vunpack.c.l.b16 %v653
        %v661 = vunpack.c.l.b16 %v654
        %v662 = vunpack.c.l.b16 %v655
        %v663 = vpack.c.b16 %v661, %v660
        %v664 = vpack.c.b16 %v662, %v662
        %v666 = vsel %vm408, %v663, 0
        %v669 = vsel %vm408, %v664, 0
        %v672 = vsel %vm415, %v656, 0
        %674 = vmatprep.subr.bf16.mxu0 0
        %675 = vmatpush1.bf16.msra.mxu0 0
        %676 = vmatprep.subr.bf16.mxu0 0
        %677 = vmatpush1.bf16.msra.mxu0 0
        %678 = vmatprep.subr.bf16.mxu0 0
        %679 = vmatpush1.bf16.msra.mxu0 0
        %680 = vmatprep.subr.bf16.mxu0 0
        %681 = vmatpush1.bf16.msra.mxu0 0
        %682 = vmatprep.subr.bf16.mxu0 0
        %683 = vmatpush1.bf16.msra.mxu0 0
        %684 = vmatprep.subr.bf16.mxu0 0
        %685 = vmatpush1.bf16.msra.mxu0 0
        %686 = vmatprep.subr.bf16.mxu0 0
        %687 = vmatpush1.bf16.msra.mxu0 0
        %688 = vmatprep.subr.bf16.mxu0 0
        %689 = vmatpush1.bf16.msra.mxu0 %v672
        %690 = vmatprep.subr.bf16.mxu0 0
        %691 = vmatpush2.bf16.msra.mxu0 0
        %692 = vmatprep.subr.bf16.mxu0 0
        %693 = vmatpush2.bf16.msra.mxu0 0
        %694 = vmatprep.subr.bf16.mxu0 0
        %695 = vmatpush2.bf16.msra.mxu0 0
        %696 = vmatprep.subr.bf16.mxu0 0
        %697 = vmatpush2.bf16.msra.mxu0 0
        %698 = vmatprep.subr.bf16.mxu0 0
        %699 = vmatpush2.bf16.msra.mxu0 0
        %700 = vmatprep.subr.bf16.mxu0 0
        %701 = vmatpush2.bf16.msra.mxu0 0
        %702 = vmatprep.subr.bf16.mxu0 0
        %703 = vmatpush2.bf16.msra.mxu0 0
        %704 = vmatprep.subr.bf16.mxu0 0
        %705 = vmatpush2.bf16.msra.mxu0 0
        %706 = vmatprep.mubr.bf16.mxu0 0
        %707 = vmatmul.mubr.bf16.gmra.mxu0 %v666
        %v708 = vpop.f32.mrf.mxu0
        %v709 = vadd.f32 0.0, %v708
        %v710 = vpop.f32.mrf.mxu0
        %v711 = vpop.f32.mrf.mxu0
        %v712 = vadd.f32 0.0, %v711
        %v713 = vpop.f32.mrf.mxu0
        %714 = vmatprep.mubr.bf16.mxu0 0
        %715 = vmatmul.mubr.bf16.gmra.mxu0 %v669
        %v716 = vpop.f32.mrf.mxu0
        %v717 = vadd.f32 0.0, %v716
        %v718 = vpop.f32.mrf.mxu0
        %v719 = vpop.f32.mrf.mxu0
        %v720 = vpop.f32.mrf.mxu0
        %721 = vdwg.mxu0
        %v722 = vpack.c.bf16 %v712, %v709
        %v723 = vpack.c.bf16 %v717, %v717
        %v726 = vunpack.c.l.b16 %v722
        %v727 = vunpack.c.h.b16 %v722
        %v728 = vunpack.c.l.b16 %v723
        %v729 = vpack.c.b16 %v726, %v726
        %v730 = vpack.c.b16 %v727, %v727
        %v731 = vpack.c.b16 %v728, %v728
        %735 = vst [vmem:[#allocation4 + $0x24] sm:$0xf] %v729
        %736 = vst [vmem:[#allocation4 + $0x28] sm:$0xf] %v730
        %737 = vst [vmem:[#allocation4 + $0x2c] sm:$0xf] %v731
        %v738 = vld [vmem:[%s7] sm:$0xf]
        %v739 = vld [vmem:[%s7 + $0x4] sm:$0xf]
        %v740 = vld [vmem:[%s7 + $0x8] sm:$0xf]
        %v741 = vld [vmem:[#allocation2 + $0x10] sm:$0xf]
        %v745 = vunpack.c.l.b16 %v738
        %v746 = vunpack.c.l.b16 %v739
        %v747 = vunpack.c.l.b16 %v740
        %v748 = vpack.c.b16 %v746, %v745
        %v749 = vpack.c.b16 %v747, %v747
        %v751 = vsel %vm408, %v748, 0
        %v754 = vsel %vm408, %v749, 0
        %v757 = vsel %vm415, %v741, 0
        %759 = vmatprep.subr.bf16.mxu0 0
        %760 = vmatpush1.bf16.msra.mxu0 0
        %761 = vmatprep.subr.bf16.mxu0 0
        %762 = vmatpush1.bf16.msra.mxu0 0
        %763 = vmatprep.subr.bf16.mxu0 0
        %764 = vmatpush1.bf16.msra.mxu0 0
        %765 = vmatprep.subr.bf16.mxu0 0
        %766 = vmatpush1.bf16.msra.mxu0 0
        %767 = vmatprep.subr.bf16.mxu0 0
        %768 = vmatpush1.bf16.msra.mxu0 0
        %769 = vmatprep.subr.bf16.mxu0 0
        %770 = vmatpush1.bf16.msra.mxu0 0
        %771 = vmatprep.subr.bf16.mxu0 0
        %772 = vmatpush1.bf16.msra.mxu0 0
        %773 = vmatprep.subr.bf16.mxu0 0
        %774 = vmatpush1.bf16.msra.mxu0 %v757
        %775 = vmatprep.subr.bf16.mxu0 0
        %776 = vmatpush2.bf16.msra.mxu0 0
        %777 = vmatprep.subr.bf16.mxu0 0
        %778 = vmatpush2.bf16.msra.mxu0 0
        %779 = vmatprep.subr.bf16.mxu0 0
        %780 = vmatpush2.bf16.msra.mxu0 0
        %781 = vmatprep.subr.bf16.mxu0 0
        %782 = vmatpush2.bf16.msra.mxu0 0
        %783 = vmatprep.subr.bf16.mxu0 0
        %784 = vmatpush2.bf16.msra.mxu0 0
        %785 = vmatprep.subr.bf16.mxu0 0
        %786 = vmatpush2.bf16.msra.mxu0 0
        %787 = vmatprep.subr.bf16.mxu0 0
        %788 = vmatpush2.bf16.msra.mxu0 0
        %789 = vmatprep.subr.bf16.mxu0 0
        %790 = vmatpush2.bf16.msra.mxu0 0
        %791 = vmatprep.mubr.bf16.mxu0 0
        %792 = vmatmul.mubr.bf16.gmra.mxu0 %v751
        %v793 = vpop.f32.mrf.mxu0
        %v794 = vadd.f32 0.0, %v793
        %v795 = vpop.f32.mrf.mxu0
        %v796 = vpop.f32.mrf.mxu0
        %v797 = vadd.f32 0.0, %v796
        %v798 = vpop.f32.mrf.mxu0
        %799 = vmatprep.mubr.bf16.mxu0 0
        %800 = vmatmul.mubr.bf16.gmra.mxu0 %v754
        %v801 = vpop.f32.mrf.mxu0
        %v802 = vadd.f32 0.0, %v801
        %v803 = vpop.f32.mrf.mxu0
        %v804 = vpop.f32.mrf.mxu0
        %v805 = vpop.f32.mrf.mxu0
        %806 = vdwg.mxu0
        %v807 = vpack.c.bf16 %v797, %v794
        %v808 = vpack.c.bf16 %v802, %v802
        %v811 = vunpack.c.l.b16 %v807
        %v812 = vunpack.c.h.b16 %v807
        %v813 = vunpack.c.l.b16 %v808
        %v814 = vpack.c.b16 %v811, %v811
        %v815 = vpack.c.b16 %v812, %v812
        %v816 = vpack.c.b16 %v813, %v813
        %820 = vst [vmem:[#allocation4 + $0x30] sm:$0xf] %v814
        %821 = vst [vmem:[#allocation4 + $0x34] sm:$0xf] %v815
        %822 = vst [vmem:[#allocation4 + $0x38] sm:$0xf] %v816
        %v823 = vld [vmem:[%s7] sm:$0xf]
        %v824 = vld [vmem:[%s7 + $0x4] sm:$0xf]
        %v825 = vld [vmem:[%s7 + $0x8] sm:$0xf]
        %v826 = vld [vmem:[#allocation2 + $0x14] sm:$0xf]
        %v830 = vunpack.c.l.b16 %v823
        %v831 = vunpack.c.l.b16 %v824
        %v832 = vunpack.c.l.b16 %v825
        %v833 = vpack.c.b16 %v831, %v830
        %v834 = vpack.c.b16 %v832, %v832
        %v836 = vsel %vm408, %v833, 0
        %v839 = vsel %vm408, %v834, 0
        %v842 = vsel %vm415, %v826, 0
        %844 = vmatprep.subr.bf16.mxu0 0
        %845 = vmatpush1.bf16.msra.mxu0 0
        %846 = vmatprep.subr.bf16.mxu0 0
        %847 = vmatpush1.bf16.msra.mxu0 0
        %848 = vmatprep.subr.bf16.mxu0 0
        %849 = vmatpush1.bf16.msra.mxu0 0
        %850 = vmatprep.subr.bf16.mxu0 0
        %851 = vmatpush1.bf16.msra.mxu0 0
        %852 = vmatprep.subr.bf16.mxu0 0
        %853 = vmatpush1.bf16.msra.mxu0 0
        %854 = vmatprep.subr.bf16.mxu0 0
        %855 = vmatpush1.bf16.msra.mxu0 0
        %856 = vmatprep.subr.bf16.mxu0 0
        %857 = vmatpush1.bf16.msra.mxu0 0
        %858 = vmatprep.subr.bf16.mxu0 0
        %859 = vmatpush1.bf16.msra.mxu0 %v842
        %860 = vmatprep.subr.bf16.mxu0 0
        %861 = vmatpush2.bf16.msra.mxu0 0
        %862 = vmatprep.subr.bf16.mxu0 0
        %863 = vmatpush2.bf16.msra.mxu0 0
        %864 = vmatprep.subr.bf16.mxu0 0
        %865 = vmatpush2.bf16.msra.mxu0 0
        %866 = vmatprep.subr.bf16.mxu0 0
        %867 = vmatpush2.bf16.msra.mxu0 0
        %868 = vmatprep.subr.bf16.mxu0 0
        %869 = vmatpush2.bf16.msra.mxu0 0
        %870 = vmatprep.subr.bf16.mxu0 0
        %871 = vmatpush2.bf16.msra.mxu0 0
        %872 = vmatprep.subr.bf16.mxu0 0
        %873 = vmatpush2.bf16.msra.mxu0 0
        %874 = vmatprep.subr.bf16.mxu0 0
        %875 = vmatpush2.bf16.msra.mxu0 0
        %876 = vmatprep.mubr.bf16.mxu0 0
        %877 = vmatmul.mubr.bf16.gmra.mxu0 %v836
        %v878 = vpop.f32.mrf.mxu0
        %v879 = vadd.f32 0.0, %v878
        %v880 = vpop.f32.mrf.mxu0
        %v881 = vpop.f32.mrf.mxu0
        %v882 = vadd.f32 0.0, %v881
        %v883 = vpop.f32.mrf.mxu0
        %884 = vmatprep.mubr.bf16.mxu0 0
        %885 = vmatmul.mubr.bf16.gmra.mxu0 %v839
        %v886 = vpop.f32.mrf.mxu0
        %v887 = vadd.f32 0.0, %v886
        %v888 = vpop.f32.mrf.mxu0
        %v889 = vpop.f32.mrf.mxu0
        %v890 = vpop.f32.mrf.mxu0
        %891 = vdwg.mxu0
        %v892 = vpack.c.bf16 %v882, %v879
        %v893 = vpack.c.bf16 %v887, %v887
        %v896 = vunpack.c.l.b16 %v892
        %v897 = vunpack.c.h.b16 %v892
        %v898 = vunpack.c.l.b16 %v893
        %v899 = vpack.c.b16 %v896, %v896
        %v900 = vpack.c.b16 %v897, %v897
        %v901 = vpack.c.b16 %v898, %v898
        %905 = vst [vmem:[#allocation4 + $0x3c] sm:$0xf] %v899
        %906 = vst [vmem:[#allocation4 + $0x40] sm:$0xf] %v900
        %907 = vst [vmem:[#allocation4 + $0x44] sm:$0xf] %v901
        %s908 = smul.u32 4, 36
        %s909 = smul.u32 %s908, 1
        %s910 = sshll.u32 %s909, 4
        %911 = dma.done %s368, %s910
        %s912 = sld [smem:[#allocation9 + %s305]]
        %s913 = ssub.s32 %s912, %s306
        %s914 = smul.u32 %s913, 24
        %s915 = sld [smem:[#allocation10 + %s305]]
        %s916 = ssub.s32 %s915, %s306
        %s917 = smul.u32 %s916, 24
        %s918 = sshra.s32 %s914, 3
        %s919 = sand.u32 %s914, 7
        %s920 = smul.addr %s918, 4
        %s921 = scalar_lea.vmem [#allocation4], %s920
        %v922 = vld [vmem:[%s921] sm:$0xf]
        %v923 = vld [vmem:[%s921 + $0x4] sm:$0xf]
        %v924 = vld [vmem:[%s921 + $0x8] sm:$0xf]
        %v925 = vunpack.c.l.bf16 %v922
        %v926 = vunpack.c.l.bf16 %v923
        %v927 = vunpack.c.l.bf16 %v924
        %s928 = sld [smem:[#allocation11 + %s305]]
        %v929 = vstv %s928
        %v930 = vmul.f32 %v925, %v929
        %v931 = vmul.f32 %v926, %v929
        %v932 = vmul.f32 %v927, %v929
        %s933 = sshra.s32 %s917, 3
        %s934 = sand.u32 %s917, 7
        %s935 = smul.addr %s933, 4
        %s936 = scalar_lea.vmem [#allocation4], %s935
        %v937 = vld [vmem:[%s936] sm:$0xf]
        %v938 = vld [vmem:[%s936 + $0x4] sm:$0xf]
        %v939 = vld [vmem:[%s936 + $0x8] sm:$0xf]
        %v940 = vunpack.c.l.bf16 %v937
        %v941 = vunpack.c.l.bf16 %v938
        %v942 = vunpack.c.l.bf16 %v939
        %s943 = sld [smem:[#allocation12 + %s305]]
        %v944 = vstv %s943
        %v945 = vmul.f32 %v940, %v944
        %v946 = vmul.f32 %v941, %v944
        %v947 = vmul.f32 %v942, %v944
        %v948 = vadd.f32 %v930, %v945
        %v949 = vadd.f32 %v931, %v946
        %v950 = vadd.f32 %v932, %v947
        %v951 = vld [vmem:[#allocation3] sm:$0xf]
        %v952 = vld [vmem:[#allocation3 + $0x4] sm:$0xf]
        %v953 = vld [vmem:[#allocation3 + $0x8] sm:$0xf]
        %v954 = vld [vmem:[%s8] sm:$0xf]
        %v955 = vld [vmem:[%s8 + $0x4] sm:$0xf]
        %v956 = vld [vmem:[%s8 + $0x8] sm:$0xf]
        %v957 = vld [vmem:[%s8 + $0xc] sm:$0xf]
        %v958 = vld [vmem:[%s8 + $0x10] sm:$0xf]
        %v959 = vld [vmem:[%s8 + $0x14] sm:$0xf]
        %v960 = vld [vmem:[%s8 + $0x18] sm:$0xf]
        %v961 = vld [vmem:[%s8 + $0x1c] sm:$0xf]
        %v962 = vld [vmem:[%s8 + $0x20] sm:$0xf]
        %v963 = vld [vmem:[%s8 + $0x24] sm:$0xf]
        %v964 = vld [vmem:[%s8 + $0x28] sm:$0xf]
        %v965 = vld [vmem:[%s8 + $0x2c] sm:$0xf]
        %v966 = vld [vmem:[%s8 + $0x30] sm:$0xf]
        %v967 = vld [vmem:[%s8 + $0x34] sm:$0xf]
        %v968 = vld [vmem:[%s8 + $0x38] sm:$0xf]
        %v969 = vld [vmem:[%s8 + $0x3c] sm:$0xf]
        %v973 = vunpack.c.l.b16 %v951
        %v974 = vunpack.c.l.b16 %v952
        %v975 = vunpack.c.l.b16 %v953
        %v976 = vpack.c.b16 %v974, %v973
        %v977 = vpack.c.b16 %v975, %v975
        %v996 = vunpack.c.l.b16 %v954
        %v997 = vunpack.c.l.b16 %v955
        %v998 = vunpack.c.l.b16 %v956
        %v999 = vunpack.c.l.b16 %v957
        %v1000 = vunpack.c.l.b16 %v958
        %v1001 = vunpack.c.l.b16 %v959
        %v1002 = vunpack.c.l.b16 %v960
        %v1003 = vunpack.c.l.b16 %v961
        %v1004 = vunpack.c.l.b16 %v962
        %v1005 = vunpack.c.l.b16 %v963
        %v1006 = vunpack.c.l.b16 %v964
        %v1007 = vunpack.c.l.b16 %v965
        %v1008 = vunpack.c.l.b16 %v966
        %v1009 = vunpack.c.l.b16 %v967
        %v1010 = vunpack.c.l.b16 %v968
        %v1011 = vunpack.c.l.b16 %v969
        %v1012 = vpack.c.b16 %v997, %v996
        %v1013 = vpack.c.b16 %v999, %v998
        %v1014 = vpack.c.b16 %v1001, %v1000
        %v1015 = vpack.c.b16 %v1003, %v1002
        %v1016 = vpack.c.b16 %v1005, %v1004
        %v1017 = vpack.c.b16 %v1007, %v1006
        %v1018 = vpack.c.b16 %v1009, %v1008
        %v1019 = vpack.c.b16 %v1011, %v1010
        %1028 = vmatprep.subr.bf16.mxu0 0
        %1029 = vmatpush1.bf16.msra.mxu0 %v1019
        %1030 = vmatprep.subr.bf16.mxu0 0
        %1031 = vmatpush1.bf16.msra.mxu0 %v1018
        %1032 = vmatprep.subr.bf16.mxu0 0
        %1033 = vmatpush1.bf16.msra.mxu0 %v1017
        %1034 = vmatprep.subr.bf16.mxu0 0
        %1035 = vmatpush1.bf16.msra.mxu0 %v1016
        %1036 = vmatprep.subr.bf16.mxu0 0
        %1037 = vmatpush1.bf16.msra.mxu0 %v1015
        %1038 = vmatprep.subr.bf16.mxu0 0
        %1039 = vmatpush1.bf16.msra.mxu0 %v1014
        %1040 = vmatprep.subr.bf16.mxu0 0
        %1041 = vmatpush1.bf16.msra.mxu0 %v1013
        %1042 = vmatprep.subr.bf16.mxu0 0
        %1043 = vmatpush1.bf16.msra.mxu0 %v1012
        %1044 = vmatprep.subr.bf16.mxu0 0
        %1045 = vmatpush2.bf16.msra.mxu0 0
        %1046 = vmatprep.subr.bf16.mxu0 0
        %1047 = vmatpush2.bf16.msra.mxu0 0
        %1048 = vmatprep.subr.bf16.mxu0 0
        %1049 = vmatpush2.bf16.msra.mxu0 0
        %1050 = vmatprep.subr.bf16.mxu0 0
        %1051 = vmatpush2.bf16.msra.mxu0 0
        %1052 = vmatprep.subr.bf16.mxu0 0
        %1053 = vmatpush2.bf16.msra.mxu0 0
        %1054 = vmatprep.subr.bf16.mxu0 0
        %1055 = vmatpush2.bf16.msra.mxu0 0
        %1056 = vmatprep.subr.bf16.mxu0 0
        %1057 = vmatpush2.bf16.msra.mxu0 0
        %1058 = vmatprep.subr.bf16.mxu0 0
        %1059 = vmatpush2.bf16.msra.mxu0 0
        %1060 = vmatprep.mubr.bf16.mxu0 0
        %1061 = vmatmul.mubr.bf16.gmra.mxu0 %v976
        %v1062 = vpop.f32.mrf.mxu0
        %v1063 = vadd.f32 0.0, %v1062
        %v1064 = vpop.f32.mrf.mxu0
        %v1065 = vpop.f32.mrf.mxu0
        %v1066 = vadd.f32 0.0, %v1065
        %v1067 = vpop.f32.mrf.mxu0
        %1068 = vmatprep.mubr.bf16.mxu0 0
        %1069 = vmatmul.mubr.bf16.gmra.mxu0 %v977
        %v1070 = vpop.f32.mrf.mxu0
        %v1071 = vadd.f32 0.0, %v1070
        %v1072 = vpop.f32.mrf.mxu0
        %v1073 = vpop.f32.mrf.mxu0
        %v1074 = vpop.f32.mrf.mxu0
        %1075 = vdwg.mxu0
        %v1076 = vadd.f32 %v948, %v1063
        %v1077 = vadd.f32 %v949, %v1066
        %v1078 = vadd.f32 %v950, %v1071
        %v1079 = vpack.c.bf16 %v1077, %v1076
        %v1080 = vpack.c.bf16 %v1078, %v1078
        %v1083 = vunpack.c.l.b16 %v1079
        %v1084 = vunpack.c.h.b16 %v1079
        %v1085 = vunpack.c.l.b16 %v1080
        %v1086 = vpack.c.b16 %v1083, %v1083
        %v1087 = vpack.c.b16 %v1084, %v1084
        %v1088 = vpack.c.b16 %v1085, %v1085
        %1092 = vst [vmem:[#allocation5 + $0xc] sm:$0xf] %v1086
        %1093 = vst [vmem:[#allocation5 + $0x10] sm:$0xf] %v1087
        %1094 = vst [vmem:[#allocation5 + $0x14] sm:$0xf] %v1088
        %s1095 = sadd.s32 %s305, 1
        %s1096 = sld [smem:[#allocation9 + %s1095]]
        %s1097 = ssub.s32 %s1096, %s306
        %s1098 = smul.u32 %s1097, 24
        %s1099 = sld [smem:[#allocation10 + %s1095]]
        %s1100 = ssub.s32 %s1099, %s306
        %s1101 = smul.u32 %s1100, 24
        %s1102 = sshra.s32 %s1098, 3
        %s1103 = sand.u32 %s1098, 7
        %s1104 = smul.addr %s1102, 4
        %s1105 = scalar_lea.vmem [#allocation4], %s1104
        %v1106 = vld [vmem:[%s1105] sm:$0xf]
        %v1107 = vld [vmem:[%s1105 + $0x4] sm:$0xf]
        %v1108 = vld [vmem:[%s1105 + $0x8] sm:$0xf]
        %v1109 = vunpack.c.l.bf16 %v1106
        %v1110 = vunpack.c.l.bf16 %v1107
        %v1111 = vunpack.c.l.bf16 %v1108
        %s1112 = sld [smem:[#allocation11 + %s1095]]
        %v1113 = vstv %s1112
        %v1114 = vmul.f32 %v1109, %v1113
        %v1115 = vmul.f32 %v1110, %v1113
        %v1116 = vmul.f32 %v1111, %v1113
        %s1117 = sshra.s32 %s1101, 3
        %s1118 = sand.u32 %s1101, 7
        %s1119 = smul.addr %s1117, 4
        %s1120 = scalar_lea.vmem [#allocation4], %s1119
        %v1121 = vld [vmem:[%s1120] sm:$0xf]
        %v1122 = vld [vmem:[%s1120 + $0x4] sm:$0xf]
        %v1123 = vld [vmem:[%s1120 + $0x8] sm:$0xf]
        %v1124 = vunpack.c.l.bf16 %v1121
        %v1125 = vunpack.c.l.bf16 %v1122
        %v1126 = vunpack.c.l.bf16 %v1123
        %s1127 = sld [smem:[#allocation12 + %s1095]]
        %v1128 = vstv %s1127
        %v1129 = vmul.f32 %v1124, %v1128
        %v1130 = vmul.f32 %v1125, %v1128
        %v1131 = vmul.f32 %v1126, %v1128
        %v1132 = vadd.f32 %v1114, %v1129
        %v1133 = vadd.f32 %v1115, %v1130
        %v1134 = vadd.f32 %v1116, %v1131
        %v1135 = vld [vmem:[#allocation3 + $0xc] sm:$0xf]
        %v1136 = vld [vmem:[#allocation3 + $0x10] sm:$0xf]
        %v1137 = vld [vmem:[#allocation3 + $0x14] sm:$0xf]
        %v1138 = vld [vmem:[%s8] sm:$0xf]
        %v1139 = vld [vmem:[%s8 + $0x4] sm:$0xf]
        %v1140 = vld [vmem:[%s8 + $0x8] sm:$0xf]
        %v1141 = vld [vmem:[%s8 + $0xc] sm:$0xf]
        %v1142 = vld [vmem:[%s8 + $0x10] sm:$0xf]
        %v1143 = vld [vmem:[%s8 + $0x14] sm:$0xf]
        %v1144 = vld [vmem:[%s8 + $0x18] sm:$0xf]
        %v1145 = vld [vmem:[%s8 + $0x1c] sm:$0xf]
        %v1146 = vld [vmem:[%s8 + $0x20] sm:$0xf]
        %v1147 = vld [vmem:[%s8 + $0x24] sm:$0xf]
        %v1148 = vld [vmem:[%s8 + $0x28] sm:$0xf]
        %v1149 = vld [vmem:[%s8 + $0x2c] sm:$0xf]
        %v1150 = vld [vmem:[%s8 + $0x30] sm:$0xf]
        %v1151 = vld [vmem:[%s8 + $0x34] sm:$0xf]
        %v1152 = vld [vmem:[%s8 + $0x38] sm:$0xf]
        %v1153 = vld [vmem:[%s8 + $0x3c] sm:$0xf]
        %v1157 = vunpack.c.l.b16 %v1135
        %v1158 = vunpack.c.l.b16 %v1136
        %v1159 = vunpack.c.l.b16 %v1137
        %v1160 = vpack.c.b16 %v1158, %v1157
        %v1161 = vpack.c.b16 %v1159, %v1159
        %v1180 = vunpack.c.l.b16 %v1138
        %v1181 = vunpack.c.l.b16 %v1139
        %v1182 = vunpack.c.l.b16 %v1140
        %v1183 = vunpack.c.l.b16 %v1141
        %v1184 = vunpack.c.l.b16 %v1142
        %v1185 = vunpack.c.l.b16 %v1143
        %v1186 = vunpack.c.l.b16 %v1144
        %v1187 = vunpack.c.l.b16 %v1145
        %v1188 = vunpack.c.l.b16 %v1146
        %v1189 = vunpack.c.l.b16 %v1147
        %v1190 = vunpack.c.l.b16 %v1148
        %v1191 = vunpack.c.l.b16 %v1149
        %v1192 = vunpack.c.l.b16 %v1150
        %v1193 = vunpack.c.l.b16 %v1151
        %v1194 = vunpack.c.l.b16 %v1152
        %v1195 = vunpack.c.l.b16 %v1153
        %v1196 = vpack.c.b16 %v1181, %v1180
        %v1197 = vpack.c.b16 %v1183, %v1182
        %v1198 = vpack.c.b16 %v1185, %v1184
        %v1199 = vpack.c.b16 %v1187, %v1186
        %v1200 = vpack.c.b16 %v1189, %v1188
        %v1201 = vpack.c.b16 %v1191, %v1190
        %v1202 = vpack.c.b16 %v1193, %v1192
        %v1203 = vpack.c.b16 %v1195, %v1194
        %1212 = vmatprep.subr.bf16.mxu0 0
        %1213 = vmatpush1.bf16.msra.mxu0 %v1203
        %1214 = vmatprep.subr.bf16.mxu0 0
        %1215 = vmatpush1.bf16.msra.mxu0 %v1202
        %1216 = vmatprep.subr.bf16.mxu0 0
        %1217 = vmatpush1.bf16.msra.mxu0 %v1201
        %1218 = vmatprep.subr.bf16.mxu0 0
        %1219 = vmatpush1.bf16.msra.mxu0 %v1200
        %1220 = vmatprep.subr.bf16.mxu0 0
        %1221 = vmatpush1.bf16.msra.mxu0 %v1199
        %1222 = vmatprep.subr.bf16.mxu0 0
        %1223 = vmatpush1.bf16.msra.mxu0 %v1198
        %1224 = vmatprep.subr.bf16.mxu0 0
        %1225 = vmatpush1.bf16.msra.mxu0 %v1197
        %1226 = vmatprep.subr.bf16.mxu0 0
        %1227 = vmatpush1.bf16.msra.mxu0 %v1196
        %1228 = vmatprep.subr.bf16.mxu0 0
        %1229 = vmatpush2.bf16.msra.mxu0 0
        %1230 = vmatprep.subr.bf16.mxu0 0
        %1231 = vmatpush2.bf16.msra.mxu0 0
        %1232 = vmatprep.subr.bf16.mxu0 0
        %1233 = vmatpush2.bf16.msra.mxu0 0
        %1234 = vmatprep.subr.bf16.mxu0 0
        %1235 = vmatpush2.bf16.msra.mxu0 0
        %1236 = vmatprep.subr.bf16.mxu0 0
        %1237 = vmatpush2.bf16.msra.mxu0 0
        %1238 = vmatprep.subr.bf16.mxu0 0
        %1239 = vmatpush2.bf16.msra.mxu0 0
        %1240 = vmatprep.subr.bf16.mxu0 0
        %1241 = vmatpush2.bf16.msra.mxu0 0
        %1242 = vmatprep.subr.bf16.mxu0 0
        %1243 = vmatpush2.bf16.msra.mxu0 0
        %1244 = vmatprep.mubr.bf16.mxu0 0
        %1245 = vmatmul.mubr.bf16.gmra.mxu0 %v1160
        %v1246 = vpop.f32.mrf.mxu0
        %v1247 = vadd.f32 0.0, %v1246
        %v1248 = vpop.f32.mrf.mxu0
        %v1249 = vpop.f32.mrf.mxu0
        %v1250 = vadd.f32 0.0, %v1249
        %v1251 = vpop.f32.mrf.mxu0
        %1252 = vmatprep.mubr.bf16.mxu0 0
        %1253 = vmatmul.mubr.bf16.gmra.mxu0 %v1161
        %v1254 = vpop.f32.mrf.mxu0
        %v1255 = vadd.f32 0.0, %v1254
        %v1256 = vpop.f32.mrf.mxu0
        %v1257 = vpop.f32.mrf.mxu0
        %v1258 = vpop.f32.mrf.mxu0
        %1259 = vdwg.mxu0
        %v1260 = vadd.f32 %v1132, %v1247
        %v1261 = vadd.f32 %v1133, %v1250
        %v1262 = vadd.f32 %v1134, %v1255
        %v1263 = vpack.c.bf16 %v1261, %v1260
        %v1264 = vpack.c.bf16 %v1262, %v1262
        %v1267 = vunpack.c.l.b16 %v1263
        %v1268 = vunpack.c.h.b16 %v1263
        %v1269 = vunpack.c.l.b16 %v1264
        %v1270 = vpack.c.b16 %v1267, %v1267
        %v1271 = vpack.c.b16 %v1268, %v1268
        %v1272 = vpack.c.b16 %v1269, %v1269
        %1276 = vst [vmem:[#allocation5 + $0x18] sm:$0xf] %v1270
        %1277 = vst [vmem:[#allocation5 + $0x1c] sm:$0xf] %v1271
        %1278 = vst [vmem:[#allocation5 + $0x20] sm:$0xf] %v1272
        %s1279 = sadd.s32 %s305, 2
        %s1280 = sld [smem:[#allocation9 + %s1279]]
        %s1281 = ssub.s32 %s1280, %s306
        %s1282 = smul.u32 %s1281, 24
        %s1283 = sld [smem:[#allocation10 + %s1279]]
        %s1284 = ssub.s32 %s1283, %s306
        %s1285 = smul.u32 %s1284, 24
        %s1286 = sshra.s32 %s1282, 3
        %s1287 = sand.u32 %s1282, 7
        %s1288 = smul.addr %s1286, 4
        %s1289 = scalar_lea.vmem [#allocation4], %s1288
        %v1290 = vld [vmem:[%s1289] sm:$0xf]
        %v1291 = vld [vmem:[%s1289 + $0x4] sm:$0xf]
        %v1292 = vld [vmem:[%s1289 + $0x8] sm:$0xf]
        %v1293 = vunpack.c.l.bf16 %v1290
        %v1294 = vunpack.c.l.bf16 %v1291
        %v1295 = vunpack.c.l.bf16 %v1292
        %s1296 = sld [smem:[#allocation11 + %s1279]]
        %v1297 = vstv %s1296
        %v1298 = vmul.f32 %v1293, %v1297
        %v1299 = vmul.f32 %v1294, %v1297
        %v1300 = vmul.f32 %v1295, %v1297
        %s1301 = sshra.s32 %s1285, 3
        %s1302 = sand.u32 %s1285, 7
        %s1303 = smul.addr %s1301, 4
        %s1304 = scalar_lea.vmem [#allocation4], %s1303
        %v1305 = vld [vmem:[%s1304] sm:$0xf]
        %v1306 = vld [vmem:[%s1304 + $0x4] sm:$0xf]
        %v1307 = vld [vmem:[%s1304 + $0x8] sm:$0xf]
        %v1308 = vunpack.c.l.bf16 %v1305
        %v1309 = vunpack.c.l.bf16 %v1306
        %v1310 = vunpack.c.l.bf16 %v1307
        %s1311 = sld [smem:[#allocation12 + %s1279]]
        %v1312 = vstv %s1311
        %v1313 = vmul.f32 %v1308, %v1312
        %v1314 = vmul.f32 %v1309, %v1312
        %v1315 = vmul.f32 %v1310, %v1312
        %v1316 = vadd.f32 %v1298, %v1313
        %v1317 = vadd.f32 %v1299, %v1314
        %v1318 = vadd.f32 %v1300, %v1315
        %v1319 = vld [vmem:[#allocation3 + $0x18] sm:$0xf]
        %v1320 = vld [vmem:[#allocation3 + $0x1c] sm:$0xf]
        %v1321 = vld [vmem:[#allocation3 + $0x20] sm:$0xf]
        %v1322 = vld [vmem:[%s8] sm:$0xf]
        %v1323 = vld [vmem:[%s8 + $0x4] sm:$0xf]
        %v1324 = vld [vmem:[%s8 + $0x8] sm:$0xf]
        %v1325 = vld [vmem:[%s8 + $0xc] sm:$0xf]
        %v1326 = vld [vmem:[%s8 + $0x10] sm:$0xf]
        %v1327 = vld [vmem:[%s8 + $0x14] sm:$0xf]
        %v1328 = vld [vmem:[%s8 + $0x18] sm:$0xf]
        %v1329 = vld [vmem:[%s8 + $0x1c] sm:$0xf]
        %v1330 = vld [vmem:[%s8 + $0x20] sm:$0xf]
        %v1331 = vld [vmem:[%s8 + $0x24] sm:$0xf]
        %v1332 = vld [vmem:[%s8 + $0x28] sm:$0xf]
        %v1333 = vld [vmem:[%s8 + $0x2c] sm:$0xf]
        %v1334 = vld [vmem:[%s8 + $0x30] sm:$0xf]
        %v1335 = vld [vmem:[%s8 + $0x34] sm:$0xf]
        %v1336 = vld [vmem:[%s8 + $0x38] sm:$0xf]
        %v1337 = vld [vmem:[%s8 + $0x3c] sm:$0xf]
        %v1341 = vunpack.c.l.b16 %v1319
        %v1342 = vunpack.c.l.b16 %v1320
        %v1343 = vunpack.c.l.b16 %v1321
        %v1344 = vpack.c.b16 %v1342, %v1341
        %v1345 = vpack.c.b16 %v1343, %v1343
        %v1364 = vunpack.c.l.b16 %v1322
        %v1365 = vunpack.c.l.b16 %v1323
        %v1366 = vunpack.c.l.b16 %v1324
        %v1367 = vunpack.c.l.b16 %v1325
        %v1368 = vunpack.c.l.b16 %v1326
        %v1369 = vunpack.c.l.b16 %v1327
        %v1370 = vunpack.c.l.b16 %v1328
        %v1371 = vunpack.c.l.b16 %v1329
        %v1372 = vunpack.c.l.b16 %v1330
        %v1373 = vunpack.c.l.b16 %v1331
        %v1374 = vunpack.c.l.b16 %v1332
        %v1375 = vunpack.c.l.b16 %v1333
        %v1376 = vunpack.c.l.b16 %v1334
        %v1377 = vunpack.c.l.b16 %v1335
        %v1378 = vunpack.c.l.b16 %v1336
        %v1379 = vunpack.c.l.b16 %v1337
        %v1380 = vpack.c.b16 %v1365, %v1364
        %v1381 = vpack.c.b16 %v1367, %v1366
        %v1382 = vpack.c.b16 %v1369, %v1368
        %v1383 = vpack.c.b16 %v1371, %v1370
        %v1384 = vpack.c.b16 %v1373, %v1372
        %v1385 = vpack.c.b16 %v1375, %v1374
        %v1386 = vpack.c.b16 %v1377, %v1376
        %v1387 = vpack.c.b16 %v1379, %v1378
        %1396 = vmatprep.subr.bf16.mxu0 0
        %1397 = vmatpush1.bf16.msra.mxu0 %v1387
        %1398 = vmatprep.subr.bf16.mxu0 0
        %1399 = vmatpush1.bf16.msra.mxu0 %v1386
        %1400 = vmatprep.subr.bf16.mxu0 0
        %1401 = vmatpush1.bf16.msra.mxu0 %v1385
        %1402 = vmatprep.subr.bf16.mxu0 0
        %1403 = vmatpush1.bf16.msra.mxu0 %v1384
        %1404 = vmatprep.subr.bf16.mxu0 0
        %1405 = vmatpush1.bf16.msra.mxu0 %v1383
        %1406 = vmatprep.subr.bf16.mxu0 0
        %1407 = vmatpush1.bf16.msra.mxu0 %v1382
        %1408 = vmatprep.subr.bf16.mxu0 0
        %1409 = vmatpush1.bf16.msra.mxu0 %v1381
        %1410 = vmatprep.subr.bf16.mxu0 0
        %1411 = vmatpush1.bf16.msra.mxu0 %v1380
        %1412 = vmatprep.subr.bf16.mxu0 0
        %1413 = vmatpush2.bf16.msra.mxu0 0
        %1414 = vmatprep.subr.bf16.mxu0 0
        %1415 = vmatpush2.bf16.msra.mxu0 0
        %1416 = vmatprep.subr.bf16.mxu0 0
        %1417 = vmatpush2.bf16.msra.mxu0 0
        %1418 = vmatprep.subr.bf16.mxu0 0
        %1419 = vmatpush2.bf16.msra.mxu0 0
        %1420 = vmatprep.subr.bf16.mxu0 0
        %1421 = vmatpush2.bf16.msra.mxu0 0
        %1422 = vmatprep.subr.bf16.mxu0 0
        %1423 = vmatpush2.bf16.msra.mxu0 0
        %1424 = vmatprep.subr.bf16.mxu0 0
        %1425 = vmatpush2.bf16.msra.mxu0 0
        %1426 = vmatprep.subr.bf16.mxu0 0
        %1427 = vmatpush2.bf16.msra.mxu0 0
        %1428 = vmatprep.mubr.bf16.mxu0 0
        %1429 = vmatmul.mubr.bf16.gmra.mxu0 %v1344
        %v1430 = vpop.f32.mrf.mxu0
        %v1431 = vadd.f32 0.0, %v1430
        %v1432 = vpop.f32.mrf.mxu0
        %v1433 = vpop.f32.mrf.mxu0
        %v1434 = vadd.f32 0.0, %v1433
        %v1435 = vpop.f32.mrf.mxu0
        %1436 = vmatprep.mubr.bf16.mxu0 0
        %1437 = vmatmul.mubr.bf16.gmra.mxu0 %v1345
        %v1438 = vpop.f32.mrf.mxu0
        %v1439 = vadd.f32 0.0, %v1438
        %v1440 = vpop.f32.mrf.mxu0
        %v1441 = vpop.f32.mrf.mxu0
        %v1442 = vpop.f32.mrf.mxu0
        %1443 = vdwg.mxu0
        %v1444 = vadd.f32 %v1316, %v1431
        %v1445 = vadd.f32 %v1317, %v1434
        %v1446 = vadd.f32 %v1318, %v1439
        %v1447 = vpack.c.bf16 %v1445, %v1444
        %v1448 = vpack.c.bf16 %v1446, %v1446
        %v1451 = vunpack.c.l.b16 %v1447
        %v1452 = vunpack.c.h.b16 %v1447
        %v1453 = vunpack.c.l.b16 %v1448
        %v1454 = vpack.c.b16 %v1451, %v1451
        %v1455 = vpack.c.b16 %v1452, %v1452
        %v1456 = vpack.c.b16 %v1453, %v1453
        %1460 = vst [vmem:[#allocation5 + $0x24] sm:$0xf] %v1454
        %1461 = vst [vmem:[#allocation5 + $0x28] sm:$0xf] %v1455
        %1462 = vst [vmem:[#allocation5 + $0x2c] sm:$0xf] %v1456
        %s1463 = sadd.s32 %s305, 3
        %s1464 = sld [smem:[#allocation9 + %s1463]]
        %s1465 = ssub.s32 %s1464, %s306
        %s1466 = smul.u32 %s1465, 24
        %s1467 = sld [smem:[#allocation10 + %s1463]]
        %s1468 = ssub.s32 %s1467, %s306
        %s1469 = smul.u32 %s1468, 24
        %s1470 = sshra.s32 %s1466, 3
        %s1471 = sand.u32 %s1466, 7
        %s1472 = smul.addr %s1470, 4
        %s1473 = scalar_lea.vmem [#allocation4], %s1472
        %v1474 = vld [vmem:[%s1473] sm:$0xf]
        %v1475 = vld [vmem:[%s1473 + $0x4] sm:$0xf]
        %v1476 = vld [vmem:[%s1473 + $0x8] sm:$0xf]
        %v1477 = vunpack.c.l.bf16 %v1474
        %v1478 = vunpack.c.l.bf16 %v1475
        %v1479 = vunpack.c.l.bf16 %v1476
        %s1480 = sld [smem:[#allocation11 + %s1463]]
        %v1481 = vstv %s1480
        %v1482 = vmul.f32 %v1477, %v1481
        %v1483 = vmul.f32 %v1478, %v1481
        %v1484 = vmul.f32 %v1479, %v1481
        %s1485 = sshra.s32 %s1469, 3
        %s1486 = sand.u32 %s1469, 7
        %s1487 = smul.addr %s1485, 4
        %s1488 = scalar_lea.vmem [#allocation4], %s1487
        %v1489 = vld [vmem:[%s1488] sm:$0xf]
        %v1490 = vld [vmem:[%s1488 + $0x4] sm:$0xf]
        %v1491 = vld [vmem:[%s1488 + $0x8] sm:$0xf]
        %v1492 = vunpack.c.l.bf16 %v1489
        %v1493 = vunpack.c.l.bf16 %v1490
        %v1494 = vunpack.c.l.bf16 %v1491
        %s1495 = sld [smem:[#allocation12 + %s1463]]
        %v1496 = vstv %s1495
        %v1497 = vmul.f32 %v1492, %v1496
        %v1498 = vmul.f32 %v1493, %v1496
        %v1499 = vmul.f32 %v1494, %v1496
        %v1500 = vadd.f32 %v1482, %v1497
        %v1501 = vadd.f32 %v1483, %v1498
        %v1502 = vadd.f32 %v1484, %v1499
        %v1503 = vld [vmem:[#allocation3 + $0x24] sm:$0xf]
        %v1504 = vld [vmem:[#allocation3 + $0x28] sm:$0xf]
        %v1505 = vld [vmem:[#allocation3 + $0x2c] sm:$0xf]
        %v1506 = vld [vmem:[%s8] sm:$0xf]
        %v1507 = vld [vmem:[%s8 + $0x4] sm:$0xf]
        %v1508 = vld [vmem:[%s8 + $0x8] sm:$0xf]
        %v1509 = vld [vmem:[%s8 + $0xc] sm:$0xf]
        %v1510 = vld [vmem:[%s8 + $0x10] sm:$0xf]
        %v1511 = vld [vmem:[%s8 + $0x14] sm:$0xf]
        %v1512 = vld [vmem:[%s8 + $0x18] sm:$0xf]
        %v1513 = vld [vmem:[%s8 + $0x1c] sm:$0xf]
        %v1514 = vld [vmem:[%s8 + $0x20] sm:$0xf]
        %v1515 = vld [vmem:[%s8 + $0x24] sm:$0xf]
        %v1516 = vld [vmem:[%s8 + $0x28] sm:$0xf]
        %v1517 = vld [vmem:[%s8 + $0x2c] sm:$0xf]
        %v1518 = vld [vmem:[%s8 + $0x30] sm:$0xf]
        %v1519 = vld [vmem:[%s8 + $0x34] sm:$0xf]
        %v1520 = vld [vmem:[%s8 + $0x38] sm:$0xf]
        %v1521 = vld [vmem:[%s8 + $0x3c] sm:$0xf]
        %v1525 = vunpack.c.l.b16 %v1503
        %v1526 = vunpack.c.l.b16 %v1504
        %v1527 = vunpack.c.l.b16 %v1505
        %v1528 = vpack.c.b16 %v1526, %v1525
        %v1529 = vpack.c.b16 %v1527, %v1527
        %v1548 = vunpack.c.l.b16 %v1506
        %v1549 = vunpack.c.l.b16 %v1507
        %v1550 = vunpack.c.l.b16 %v1508
        %v1551 = vunpack.c.l.b16 %v1509
        %v1552 = vunpack.c.l.b16 %v1510
        %v1553 = vunpack.c.l.b16 %v1511
        %v1554 = vunpack.c.l.b16 %v1512
        %v1555 = vunpack.c.l.b16 %v1513
        %v1556 = vunpack.c.l.b16 %v1514
        %v1557 = vunpack.c.l.b16 %v1515
        %v1558 = vunpack.c.l.b16 %v1516
        %v1559 = vunpack.c.l.b16 %v1517
        %v1560 = vunpack.c.l.b16 %v1518
        %v1561 = vunpack.c.l.b16 %v1519
        %v1562 = vunpack.c.l.b16 %v1520
        %v1563 = vunpack.c.l.b16 %v1521
        %v1564 = vpack.c.b16 %v1549, %v1548
        %v1565 = vpack.c.b16 %v1551, %v1550
        %v1566 = vpack.c.b16 %v1553, %v1552
        %v1567 = vpack.c.b16 %v1555, %v1554
        %v1568 = vpack.c.b16 %v1557, %v1556
        %v1569 = vpack.c.b16 %v1559, %v1558
        %v1570 = vpack.c.b16 %v1561, %v1560
        %v1571 = vpack.c.b16 %v1563, %v1562
        %1580 = vmatprep.subr.bf16.mxu0 0
        %1581 = vmatpush1.bf16.msra.mxu0 %v1571
        %1582 = vmatprep.subr.bf16.mxu0 0
        %1583 = vmatpush1.bf16.msra.mxu0 %v1570
        %1584 = vmatprep.subr.bf16.mxu0 0
        %1585 = vmatpush1.bf16.msra.mxu0 %v1569
        %1586 = vmatprep.subr.bf16.mxu0 0
        %1587 = vmatpush1.bf16.msra.mxu0 %v1568
        %1588 = vmatprep.subr.bf16.mxu0 0
        %1589 = vmatpush1.bf16.msra.mxu0 %v1567
        %1590 = vmatprep.subr.bf16.mxu0 0
        %1591 = vmatpush1.bf16.msra.mxu0 %v1566
        %1592 = vmatprep.subr.bf16.mxu0 0
        %1593 = vmatpush1.bf16.msra.mxu0 %v1565
        %1594 = vmatprep.subr.bf16.mxu0 0
        %1595 = vmatpush1.bf16.msra.mxu0 %v1564
        %1596 = vmatprep.subr.bf16.mxu0 0
        %1597 = vmatpush2.bf16.msra.mxu0 0
        %1598 = vmatprep.subr.bf16.mxu0 0
        %1599 = vmatpush2.bf16.msra.mxu0 0
        %1600 = vmatprep.subr.bf16.mxu0 0
        %1601 = vmatpush2.bf16.msra.mxu0 0
        %1602 = vmatprep.subr.bf16.mxu0 0
        %1603 = vmatpush2.bf16.msra.mxu0 0
        %1604 = vmatprep.subr.bf16.mxu0 0
        %1605 = vmatpush2.bf16.msra.mxu0 0
        %1606 = vmatprep.subr.bf16.mxu0 0
        %1607 = vmatpush2.bf16.msra.mxu0 0
        %1608 = vmatprep.subr.bf16.mxu0 0
        %1609 = vmatpush2.bf16.msra.mxu0 0
        %1610 = vmatprep.subr.bf16.mxu0 0
        %1611 = vmatpush2.bf16.msra.mxu0 0
        %1612 = vmatprep.mubr.bf16.mxu0 0
        %1613 = vmatmul.mubr.bf16.gmra.mxu0 %v1528
        %v1614 = vpop.f32.mrf.mxu0
        %v1615 = vadd.f32 0.0, %v1614
        %v1616 = vpop.f32.mrf.mxu0
        %v1617 = vpop.f32.mrf.mxu0
        %v1618 = vadd.f32 0.0, %v1617
        %v1619 = vpop.f32.mrf.mxu0
        %1620 = vmatprep.mubr.bf16.mxu0 0
        %1621 = vmatmul.mubr.bf16.gmra.mxu0 %v1529
        %v1622 = vpop.f32.mrf.mxu0
        %v1623 = vadd.f32 0.0, %v1622
        %v1624 = vpop.f32.mrf.mxu0
        %v1625 = vpop.f32.mrf.mxu0
        %v1626 = vpop.f32.mrf.mxu0
        %1627 = vdwg.mxu0
        %v1628 = vadd.f32 %v1500, %v1615
        %v1629 = vadd.f32 %v1501, %v1618
        %v1630 = vadd.f32 %v1502, %v1623
        %v1631 = vpack.c.bf16 %v1629, %v1628
        %v1632 = vpack.c.bf16 %v1630, %v1630
        %v1635 = vunpack.c.l.b16 %v1631
        %v1636 = vunpack.c.h.b16 %v1631
        %v1637 = vunpack.c.l.b16 %v1632
        %v1638 = vpack.c.b16 %v1635, %v1635
        %v1639 = vpack.c.b16 %v1636, %v1636
        %v1640 = vpack.c.b16 %v1637, %v1637
        %1644 = vst [vmem:[#allocation5 + $0x30] sm:$0xf] %v1638
        %1645 = vst [vmem:[#allocation5 + $0x34] sm:$0xf] %v1639
        %1646 = vst [vmem:[#allocation5 + $0x38] sm:$0xf] %v1640
        %s1647 = sadd.s32 %s305, 4
        %s1648 = sld [smem:[#allocation9 + %s1647]]
        %s1649 = ssub.s32 %s1648, %s306
        %s1650 = smul.u32 %s1649, 24
        %s1651 = sld [smem:[#allocation10 + %s1647]]
        %s1652 = ssub.s32 %s1651, %s306
        %s1653 = smul.u32 %s1652, 24
        %s1654 = sshra.s32 %s1650, 3
        %s1655 = sand.u32 %s1650, 7
        %s1656 = smul.addr %s1654, 4
        %s1657 = scalar_lea.vmem [#allocation4], %s1656
        %v1658 = vld [vmem:[%s1657] sm:$0xf]
        %v1659 = vld [vmem:[%s1657 + $0x4] sm:$0xf]
        %v1660 = vld [vmem:[%s1657 + $0x8] sm:$0xf]
        %v1661 = vunpack.c.l.bf16 %v1658
        %v1662 = vunpack.c.l.bf16 %v1659
        %v1663 = vunpack.c.l.bf16 %v1660
        %s1664 = sld [smem:[#allocation11 + %s1647]]
        %v1665 = vstv %s1664
        %v1666 = vmul.f32 %v1661, %v1665
        %v1667 = vmul.f32 %v1662, %v1665
        %v1668 = vmul.f32 %v1663, %v1665
        %s1669 = sshra.s32 %s1653, 3
        %s1670 = sand.u32 %s1653, 7
        %s1671 = smul.addr %s1669, 4
        %s1672 = scalar_lea.vmem [#allocation4], %s1671
        %v1673 = vld [vmem:[%s1672] sm:$0xf]
        %v1674 = vld [vmem:[%s1672 + $0x4] sm:$0xf]
        %v1675 = vld [vmem:[%s1672 + $0x8] sm:$0xf]
        %v1676 = vunpack.c.l.bf16 %v1673
        %v1677 = vunpack.c.l.bf16 %v1674
        %v1678 = vunpack.c.l.bf16 %v1675
        %s1679 = sld [smem:[#allocation12 + %s1647]]
        %v1680 = vstv %s1679
        %v1681 = vmul.f32 %v1676, %v1680
        %v1682 = vmul.f32 %v1677, %v1680
        %v1683 = vmul.f32 %v1678, %v1680
        %v1684 = vadd.f32 %v1666, %v1681
        %v1685 = vadd.f32 %v1667, %v1682
        %v1686 = vadd.f32 %v1668, %v1683
        %v1687 = vld [vmem:[#allocation3 + $0x30] sm:$0xf]
        %v1688 = vld [vmem:[#allocation3 + $0x34] sm:$0xf]
        %v1689 = vld [vmem:[#allocation3 + $0x38] sm:$0xf]
        %v1690 = vld [vmem:[%s8] sm:$0xf]
        %v1691 = vld [vmem:[%s8 + $0x4] sm:$0xf]
        %v1692 = vld [vmem:[%s8 + $0x8] sm:$0xf]
        %v1693 = vld [vmem:[%s8 + $0xc] sm:$0xf]
        %v1694 = vld [vmem:[%s8 + $0x10] sm:$0xf]
        %v1695 = vld [vmem:[%s8 + $0x14] sm:$0xf]
        %v1696 = vld [vmem:[%s8 + $0x18] sm:$0xf]
        %v1697 = vld [vmem:[%s8 + $0x1c] sm:$0xf]
        %v1698 = vld [vmem:[%s8 + $0x20] sm:$0xf]
        %v1699 = vld [vmem:[%s8 + $0x24] sm:$0xf]
        %v1700 = vld [vmem:[%s8 + $0x28] sm:$0xf]
        %v1701 = vld [vmem:[%s8 + $0x2c] sm:$0xf]
        %v1702 = vld [vmem:[%s8 + $0x30] sm:$0xf]
        %v1703 = vld [vmem:[%s8 + $0x34] sm:$0xf]
        %v1704 = vld [vmem:[%s8 + $0x38] sm:$0xf]
        %v1705 = vld [vmem:[%s8 + $0x3c] sm:$0xf]
        %v1709 = vunpack.c.l.b16 %v1687
        %v1710 = vunpack.c.l.b16 %v1688
        %v1711 = vunpack.c.l.b16 %v1689
        %v1712 = vpack.c.b16 %v1710, %v1709
        %v1713 = vpack.c.b16 %v1711, %v1711
        %v1732 = vunpack.c.l.b16 %v1690
        %v1733 = vunpack.c.l.b16 %v1691
        %v1734 = vunpack.c.l.b16 %v1692
        %v1735 = vunpack.c.l.b16 %v1693
        %v1736 = vunpack.c.l.b16 %v1694
        %v1737 = vunpack.c.l.b16 %v1695
        %v1738 = vunpack.c.l.b16 %v1696
        %v1739 = vunpack.c.l.b16 %v1697
        %v1740 = vunpack.c.l.b16 %v1698
        %v1741 = vunpack.c.l.b16 %v1699
        %v1742 = vunpack.c.l.b16 %v1700
        %v1743 = vunpack.c.l.b16 %v1701
        %v1744 = vunpack.c.l.b16 %v1702
        %v1745 = vunpack.c.l.b16 %v1703
        %v1746 = vunpack.c.l.b16 %v1704
        %v1747 = vunpack.c.l.b16 %v1705
        %v1748 = vpack.c.b16 %v1733, %v1732
        %v1749 = vpack.c.b16 %v1735, %v1734
        %v1750 = vpack.c.b16 %v1737, %v1736
        %v1751 = vpack.c.b16 %v1739, %v1738
        %v1752 = vpack.c.b16 %v1741, %v1740
        %v1753 = vpack.c.b16 %v1743, %v1742
        %v1754 = vpack.c.b16 %v1745, %v1744
        %v1755 = vpack.c.b16 %v1747, %v1746
        %1764 = vmatprep.subr.bf16.mxu0 0
        %1765 = vmatpush1.bf16.msra.mxu0 %v1755
        %1766 = vmatprep.subr.bf16.mxu0 0
        %1767 = vmatpush1.bf16.msra.mxu0 %v1754
        %1768 = vmatprep.subr.bf16.mxu0 0
        %1769 = vmatpush1.bf16.msra.mxu0 %v1753
        %1770 = vmatprep.subr.bf16.mxu0 0
        %1771 = vmatpush1.bf16.msra.mxu0 %v1752
        %1772 = vmatprep.subr.bf16.mxu0 0
        %1773 = vmatpush1.bf16.msra.mxu0 %v1751
        %1774 = vmatprep.subr.bf16.mxu0 0
        %1775 = vmatpush1.bf16.msra.mxu0 %v1750
        %1776 = vmatprep.subr.bf16.mxu0 0
        %1777 = vmatpush1.bf16.msra.mxu0 %v1749
        %1778 = vmatprep.subr.bf16.mxu0 0
        %1779 = vmatpush1.bf16.msra.mxu0 %v1748
        %1780 = vmatprep.subr.bf16.mxu0 0
        %1781 = vmatpush2.bf16.msra.mxu0 0
        %1782 = vmatprep.subr.bf16.mxu0 0
        %1783 = vmatpush2.bf16.msra.mxu0 0
        %1784 = vmatprep.subr.bf16.mxu0 0
        %1785 = vmatpush2.bf16.msra.mxu0 0
        %1786 = vmatprep.subr.bf16.mxu0 0
        %1787 = vmatpush2.bf16.msra.mxu0 0
        %1788 = vmatprep.subr.bf16.mxu0 0
        %1789 = vmatpush2.bf16.msra.mxu0 0
        %1790 = vmatprep.subr.bf16.mxu0 0
        %1791 = vmatpush2.bf16.msra.mxu0 0
        %1792 = vmatprep.subr.bf16.mxu0 0
        %1793 = vmatpush2.bf16.msra.mxu0 0
        %1794 = vmatprep.subr.bf16.mxu0 0
        %1795 = vmatpush2.bf16.msra.mxu0 0
        %1796 = vmatprep.mubr.bf16.mxu0 0
        %1797 = vmatmul.mubr.bf16.gmra.mxu0 %v1712
        %v1798 = vpop.f32.mrf.mxu0
        %v1799 = vadd.f32 0.0, %v1798
        %v1800 = vpop.f32.mrf.mxu0
        %v1801 = vpop.f32.mrf.mxu0
        %v1802 = vadd.f32 0.0, %v1801
        %v1803 = vpop.f32.mrf.mxu0
        %1804 = vmatprep.mubr.bf16.mxu0 0
        %1805 = vmatmul.mubr.bf16.gmra.mxu0 %v1713
        %v1806 = vpop.f32.mrf.mxu0
        %v1807 = vadd.f32 0.0, %v1806
        %v1808 = vpop.f32.mrf.mxu0
        %v1809 = vpop.f32.mrf.mxu0
        %v1810 = vpop.f32.mrf.mxu0
        %1811 = vdwg.mxu0
        %v1812 = vadd.f32 %v1684, %v1799
        %v1813 = vadd.f32 %v1685, %v1802
        %v1814 = vadd.f32 %v1686, %v1807
        %v1815 = vpack.c.bf16 %v1813, %v1812
        %v1816 = vpack.c.bf16 %v1814, %v1814
        %v1819 = vunpack.c.l.b16 %v1815
        %v1820 = vunpack.c.h.b16 %v1815
        %v1821 = vunpack.c.l.b16 %v1816
        %v1822 = vpack.c.b16 %v1819, %v1819
        %v1823 = vpack.c.b16 %v1820, %v1820
        %v1824 = vpack.c.b16 %v1821, %v1821
        %1828 = vst [vmem:[#allocation5 + $0x3c] sm:$0xf] %v1822
        %1829 = vst [vmem:[#allocation5 + $0x40] sm:$0xf] %v1823
        %1830 = vst [vmem:[#allocation5 + $0x44] sm:$0xf] %v1824
        %s1831 = sadd.s32 %s305, 5
        %s1832 = sld [smem:[#allocation9 + %s1831]]
        %s1833 = ssub.s32 %s1832, %s306
        %s1834 = smul.u32 %s1833, 24
        %s1835 = sld [smem:[#allocation10 + %s1831]]
        %s1836 = ssub.s32 %s1835, %s306
        %s1837 = smul.u32 %s1836, 24
        %s1838 = sshra.s32 %s1834, 3
        %s1839 = sand.u32 %s1834, 7
        %s1840 = smul.addr %s1838, 4
        %s1841 = scalar_lea.vmem [#allocation4], %s1840
        %v1842 = vld [vmem:[%s1841] sm:$0xf]
        %v1843 = vld [vmem:[%s1841 + $0x4] sm:$0xf]
        %v1844 = vld [vmem:[%s1841 + $0x8] sm:$0xf]
        %v1845 = vunpack.c.l.bf16 %v1842
        %v1846 = vunpack.c.l.bf16 %v1843
        %v1847 = vunpack.c.l.bf16 %v1844
        %s1848 = sld [smem:[#allocation11 + %s1831]]
        %v1849 = vstv %s1848
        %v1850 = vmul.f32 %v1845, %v1849
        %v1851 = vmul.f32 %v1846, %v1849
        %v1852 = vmul.f32 %v1847, %v1849
        %s1853 = sshra.s32 %s1837, 3
        %s1854 = sand.u32 %s1837, 7
        %s1855 = smul.addr %s1853, 4
        %s1856 = scalar_lea.vmem [#allocation4], %s1855
        %v1857 = vld [vmem:[%s1856] sm:$0xf]
        %v1858 = vld [vmem:[%s1856 + $0x4] sm:$0xf]
        %v1859 = vld [vmem:[%s1856 + $0x8] sm:$0xf]
        %v1860 = vunpack.c.l.bf16 %v1857
        %v1861 = vunpack.c.l.bf16 %v1858
        %v1862 = vunpack.c.l.bf16 %v1859
        %s1863 = sld [smem:[#allocation12 + %s1831]]
        %v1864 = vstv %s1863
        %v1865 = vmul.f32 %v1860, %v1864
        %v1866 = vmul.f32 %v1861, %v1864
        %v1867 = vmul.f32 %v1862, %v1864
        %v1868 = vadd.f32 %v1850, %v1865
        %v1869 = vadd.f32 %v1851, %v1866
        %v1870 = vadd.f32 %v1852, %v1867
        %v1871 = vld [vmem:[#allocation3 + $0x3c] sm:$0xf]
        %v1872 = vld [vmem:[#allocation3 + $0x40] sm:$0xf]
        %v1873 = vld [vmem:[#allocation3 + $0x44] sm:$0xf]
        %v1874 = vld [vmem:[%s8] sm:$0xf]
        %v1875 = vld [vmem:[%s8 + $0x4] sm:$0xf]
        %v1876 = vld [vmem:[%s8 + $0x8] sm:$0xf]
        %v1877 = vld [vmem:[%s8 + $0xc] sm:$0xf]
        %v1878 = vld [vmem:[%s8 + $0x10] sm:$0xf]
        %v1879 = vld [vmem:[%s8 + $0x14] sm:$0xf]
        %v1880 = vld [vmem:[%s8 + $0x18] sm:$0xf]
        %v1881 = vld [vmem:[%s8 + $0x1c] sm:$0xf]
        %v1882 = vld [vmem:[%s8 + $0x20] sm:$0xf]
        %v1883 = vld [vmem:[%s8 + $0x24] sm:$0xf]
        %v1884 = vld [vmem:[%s8 + $0x28] sm:$0xf]
        %v1885 = vld [vmem:[%s8 + $0x2c] sm:$0xf]
        %v1886 = vld [vmem:[%s8 + $0x30] sm:$0xf]
        %v1887 = vld [vmem:[%s8 + $0x34] sm:$0xf]
        %v1888 = vld [vmem:[%s8 + $0x38] sm:$0xf]
        %v1889 = vld [vmem:[%s8 + $0x3c] sm:$0xf]
        %v1893 = vunpack.c.l.b16 %v1871
        %v1894 = vunpack.c.l.b16 %v1872
        %v1895 = vunpack.c.l.b16 %v1873
        %v1896 = vpack.c.b16 %v1894, %v1893
        %v1897 = vpack.c.b16 %v1895, %v1895
        %v1916 = vunpack.c.l.b16 %v1874
        %v1917 = vunpack.c.l.b16 %v1875
        %v1918 = vunpack.c.l.b16 %v1876
        %v1919 = vunpack.c.l.b16 %v1877
        %v1920 = vunpack.c.l.b16 %v1878
        %v1921 = vunpack.c.l.b16 %v1879
        %v1922 = vunpack.c.l.b16 %v1880
        %v1923 = vunpack.c.l.b16 %v1881
        %v1924 = vunpack.c.l.b16 %v1882
        %v1925 = vunpack.c.l.b16 %v1883
        %v1926 = vunpack.c.l.b16 %v1884
        %v1927 = vunpack.c.l.b16 %v1885
        %v1928 = vunpack.c.l.b16 %v1886
        %v1929 = vunpack.c.l.b16 %v1887
        %v1930 = vunpack.c.l.b16 %v1888
        %v1931 = vunpack.c.l.b16 %v1889
        %v1932 = vpack.c.b16 %v1917, %v1916
        %v1933 = vpack.c.b16 %v1919, %v1918
        %v1934 = vpack.c.b16 %v1921, %v1920
        %v1935 = vpack.c.b16 %v1923, %v1922
        %v1936 = vpack.c.b16 %v1925, %v1924
        %v1937 = vpack.c.b16 %v1927, %v1926
        %v1938 = vpack.c.b16 %v1929, %v1928
        %v1939 = vpack.c.b16 %v1931, %v1930
        %1948 = vmatprep.subr.bf16.mxu0 0
        %1949 = vmatpush1.bf16.msra.mxu0 %v1939
        %1950 = vmatprep.subr.bf16.mxu0 0
        %1951 = vmatpush1.bf16.msra.mxu0 %v1938
        %1952 = vmatprep.subr.bf16.mxu0 0
        %1953 = vmatpush1.bf16.msra.mxu0 %v1937
        %1954 = vmatprep.subr.bf16.mxu0 0
        %1955 = vmatpush1.bf16.msra.mxu0 %v1936
        %1956 = vmatprep.subr.bf16.mxu0 0
        %1957 = vmatpush1.bf16.msra.mxu0 %v1935
        %1958 = vmatprep.subr.bf16.mxu0 0
        %1959 = vmatpush1.bf16.msra.mxu0 %v1934
        %1960 = vmatprep.subr.bf16.mxu0 0
        %1961 = vmatpush1.bf16.msra.mxu0 %v1933
        %1962 = vmatprep.subr.bf16.mxu0 0
        %1963 = vmatpush1.bf16.msra.mxu0 %v1932
        %1964 = vmatprep.subr.bf16.mxu0 0
        %1965 = vmatpush2.bf16.msra.mxu0 0
        %1966 = vmatprep.subr.bf16.mxu0 0
        %1967 = vmatpush2.bf16.msra.mxu0 0
        %1968 = vmatprep.subr.bf16.mxu0 0
        %1969 = vmatpush2.bf16.msra.mxu0 0
        %1970 = vmatprep.subr.bf16.mxu0 0
        %1971 = vmatpush2.bf16.msra.mxu0 0
        %1972 = vmatprep.subr.bf16.mxu0 0
        %1973 = vmatpush2.bf16.msra.mxu0 0
        %1974 = vmatprep.subr.bf16.mxu0 0
        %1975 = vmatpush2.bf16.msra.mxu0 0
        %1976 = vmatprep.subr.bf16.mxu0 0
        %1977 = vmatpush2.bf16.msra.mxu0 0
        %1978 = vmatprep.subr.bf16.mxu0 0
        %1979 = vmatpush2.bf16.msra.mxu0 0
        %1980 = vmatprep.mubr.bf16.mxu0 0
        %1981 = vmatmul.mubr.bf16.gmra.mxu0 %v1896
        %v1982 = vpop.f32.mrf.mxu0
        %v1983 = vadd.f32 0.0, %v1982
        %v1984 = vpop.f32.mrf.mxu0
        %v1985 = vpop.f32.mrf.mxu0
        %v1986 = vadd.f32 0.0, %v1985
        %v1987 = vpop.f32.mrf.mxu0
        %1988 = vmatprep.mubr.bf16.mxu0 0
        %1989 = vmatmul.mubr.bf16.gmra.mxu0 %v1897
        %v1990 = vpop.f32.mrf.mxu0
        %v1991 = vadd.f32 0.0, %v1990
        %v1992 = vpop.f32.mrf.mxu0
        %v1993 = vpop.f32.mrf.mxu0
        %v1994 = vpop.f32.mrf.mxu0
        %1995 = vdwg.mxu0
        %v1996 = vadd.f32 %v1868, %v1983
        %v1997 = vadd.f32 %v1869, %v1986
        %v1998 = vadd.f32 %v1870, %v1991
        %v1999 = vpack.c.bf16 %v1997, %v1996
        %v2000 = vpack.c.bf16 %v1998, %v1998
        %v2003 = vunpack.c.l.b16 %v1999
        %v2004 = vunpack.c.h.b16 %v1999
        %v2005 = vunpack.c.l.b16 %v2000
        %v2006 = vpack.c.b16 %v2003, %v2003
        %v2007 = vpack.c.b16 %v2004, %v2004
        %v2008 = vpack.c.b16 %v2005, %v2005
        %2012 = vst [vmem:[#allocation5 + $0x48] sm:$0xf] %v2006
        %2013 = vst [vmem:[#allocation5 + $0x4c] sm:$0xf] %v2007
        %2014 = vst [vmem:[#allocation5 + $0x50] sm:$0xf] %v2008
        %s2015 = sadd.s32 %s305, 6
        %s2016 = sld [smem:[#allocation9 + %s2015]]
        %s2017 = ssub.s32 %s2016, %s306
        %s2018 = smul.u32 %s2017, 24
        %s2019 = sld [smem:[#allocation10 + %s2015]]
        %s2020 = ssub.s32 %s2019, %s306
        %s2021 = smul.u32 %s2020, 24
        %s2022 = sshra.s32 %s2018, 3
        %s2023 = sand.u32 %s2018, 7
        %s2024 = smul.addr %s2022, 4
        %s2025 = scalar_lea.vmem [#allocation4], %s2024
        %v2026 = vld [vmem:[%s2025] sm:$0xf]
        %v2027 = vld [vmem:[%s2025 + $0x4] sm:$0xf]
        %v2028 = vld [vmem:[%s2025 + $0x8] sm:$0xf]
        %v2029 = vunpack.c.l.bf16 %v2026
        %v2030 = vunpack.c.l.bf16 %v2027
        %v2031 = vunpack.c.l.bf16 %v2028
        %s2032 = sld [smem:[#allocation11 + %s2015]]
        %v2033 = vstv %s2032
        %v2034 = vmul.f32 %v2029, %v2033
        %v2035 = vmul.f32 %v2030, %v2033
        %v2036 = vmul.f32 %v2031, %v2033
        %s2037 = sshra.s32 %s2021, 3
        %s2038 = sand.u32 %s2021, 7
        %s2039 = smul.addr %s2037, 4
        %s2040 = scalar_lea.vmem [#allocation4], %s2039
        %v2041 = vld [vmem:[%s2040] sm:$0xf]
        %v2042 = vld [vmem:[%s2040 + $0x4] sm:$0xf]
        %v2043 = vld [vmem:[%s2040 + $0x8] sm:$0xf]
        %v2044 = vunpack.c.l.bf16 %v2041
        %v2045 = vunpack.c.l.bf16 %v2042
        %v2046 = vunpack.c.l.bf16 %v2043
        %s2047 = sld [smem:[#allocation12 + %s2015]]
        %v2048 = vstv %s2047
        %v2049 = vmul.f32 %v2044, %v2048
        %v2050 = vmul.f32 %v2045, %v2048
        %v2051 = vmul.f32 %v2046, %v2048
        %v2052 = vadd.f32 %v2034, %v2049
        %v2053 = vadd.f32 %v2035, %v2050
        %v2054 = vadd.f32 %v2036, %v2051
        %v2055 = vld [vmem:[#allocation3 + $0x48] sm:$0xf]
        %v2056 = vld [vmem:[#allocation3 + $0x4c] sm:$0xf]
        %v2057 = vld [vmem:[#allocation3 + $0x50] sm:$0xf]
        %v2058 = vld [vmem:[%s8] sm:$0xf]
        %v2059 = vld [vmem:[%s8 + $0x4] sm:$0xf]
        %v2060 = vld [vmem:[%s8 + $0x8] sm:$0xf]
        %v2061 = vld [vmem:[%s8 + $0xc] sm:$0xf]
        %v2062 = vld [vmem:[%s8 + $0x10] sm:$0xf]
        %v2063 = vld [vmem:[%s8 + $0x14] sm:$0xf]
        %v2064 = vld [vmem:[%s8 + $0x18] sm:$0xf]
        %v2065 = vld [vmem:[%s8 + $0x1c] sm:$0xf]
        %v2066 = vld [vmem:[%s8 + $0x20] sm:$0xf]
        %v2067 = vld [vmem:[%s8 + $0x24] sm:$0xf]
        %v2068 = vld [vmem:[%s8 + $0x28] sm:$0xf]
        %v2069 = vld [vmem:[%s8 + $0x2c] sm:$0xf]
        %v2070 = vld [vmem:[%s8 + $0x30] sm:$0xf]
        %v2071 = vld [vmem:[%s8 + $0x34] sm:$0xf]
        %v2072 = vld [vmem:[%s8 + $0x38] sm:$0xf]
        %v2073 = vld [vmem:[%s8 + $0x3c] sm:$0xf]
        %v2077 = vunpack.c.l.b16 %v2055
        %v2078 = vunpack.c.l.b16 %v2056
        %v2079 = vunpack.c.l.b16 %v2057
        %v2080 = vpack.c.b16 %v2078, %v2077
        %v2081 = vpack.c.b16 %v2079, %v2079
        %v2100 = vunpack.c.l.b16 %v2058
        %v2101 = vunpack.c.l.b16 %v2059
        %v2102 = vunpack.c.l.b16 %v2060
        %v2103 = vunpack.c.l.b16 %v2061
        %v2104 = vunpack.c.l.b16 %v2062
        %v2105 = vunpack.c.l.b16 %v2063
        %v2106 = vunpack.c.l.b16 %v2064
        %v2107 = vunpack.c.l.b16 %v2065
        %v2108 = vunpack.c.l.b16 %v2066
        %v2109 = vunpack.c.l.b16 %v2067
        %v2110 = vunpack.c.l.b16 %v2068
        %v2111 = vunpack.c.l.b16 %v2069
        %v2112 = vunpack.c.l.b16 %v2070
        %v2113 = vunpack.c.l.b16 %v2071
        %v2114 = vunpack.c.l.b16 %v2072
        %v2115 = vunpack.c.l.b16 %v2073
        %v2116 = vpack.c.b16 %v2101, %v2100
        %v2117 = vpack.c.b16 %v2103, %v2102
        %v2118 = vpack.c.b16 %v2105, %v2104
        %v2119 = vpack.c.b16 %v2107, %v2106
        %v2120 = vpack.c.b16 %v2109, %v2108
        %v2121 = vpack.c.b16 %v2111, %v2110
        %v2122 = vpack.c.b16 %v2113, %v2112
        %v2123 = vpack.c.b16 %v2115, %v2114
        %2132 = vmatprep.subr.bf16.mxu0 0
        %2133 = vmatpush1.bf16.msra.mxu0 %v2123
        %2134 = vmatprep.subr.bf16.mxu0 0
        %2135 = vmatpush1.bf16.msra.mxu0 %v2122
        %2136 = vmatprep.subr.bf16.mxu0 0
        %2137 = vmatpush1.bf16.msra.mxu0 %v2121
        %2138 = vmatprep.subr.bf16.mxu0 0
        %2139 = vmatpush1.bf16.msra.mxu0 %v2120
        %2140 = vmatprep.subr.bf16.mxu0 0
        %2141 = vmatpush1.bf16.msra.mxu0 %v2119
        %2142 = vmatprep.subr.bf16.mxu0 0
        %2143 = vmatpush1.bf16.msra.mxu0 %v2118
        %2144 = vmatprep.subr.bf16.mxu0 0
        %2145 = vmatpush1.bf16.msra.mxu0 %v2117
        %2146 = vmatprep.subr.bf16.mxu0 0
        %2147 = vmatpush1.bf16.msra.mxu0 %v2116
        %2148 = vmatprep.subr.bf16.mxu0 0
        %2149 = vmatpush2.bf16.msra.mxu0 0
        %2150 = vmatprep.subr.bf16.mxu0 0
        %2151 = vmatpush2.bf16.msra.mxu0 0
        %2152 = vmatprep.subr.bf16.mxu0 0
        %2153 = vmatpush2.bf16.msra.mxu0 0
        %2154 = vmatprep.subr.bf16.mxu0 0
        %2155 = vmatpush2.bf16.msra.mxu0 0
        %2156 = vmatprep.subr.bf16.mxu0 0
        %2157 = vmatpush2.bf16.msra.mxu0 0
        %2158 = vmatprep.subr.bf16.mxu0 0
        %2159 = vmatpush2.bf16.msra.mxu0 0
        %2160 = vmatprep.subr.bf16.mxu0 0
        %2161 = vmatpush2.bf16.msra.mxu0 0
        %2162 = vmatprep.subr.bf16.mxu0 0
        %2163 = vmatpush2.bf16.msra.mxu0 0
        %2164 = vmatprep.mubr.bf16.mxu0 0
        %2165 = vmatmul.mubr.bf16.gmra.mxu0 %v2080
        %v2166 = vpop.f32.mrf.mxu0
        %v2167 = vadd.f32 0.0, %v2166
        %v2168 = vpop.f32.mrf.mxu0
        %v2169 = vpop.f32.mrf.mxu0
        %v2170 = vadd.f32 0.0, %v2169
        %v2171 = vpop.f32.mrf.mxu0
        %2172 = vmatprep.mubr.bf16.mxu0 0
        %2173 = vmatmul.mubr.bf16.gmra.mxu0 %v2081
        %v2174 = vpop.f32.mrf.mxu0
        %v2175 = vadd.f32 0.0, %v2174
        %v2176 = vpop.f32.mrf.mxu0
        %v2177 = vpop.f32.mrf.mxu0
        %v2178 = vpop.f32.mrf.mxu0
        %2179 = vdwg.mxu0
        %v2180 = vadd.f32 %v2052, %v2167
        %v2181 = vadd.f32 %v2053, %v2170
        %v2182 = vadd.f32 %v2054, %v2175
        %v2183 = vpack.c.bf16 %v2181, %v2180
        %v2184 = vpack.c.bf16 %v2182, %v2182
        %v2187 = vunpack.c.l.b16 %v2183
        %v2188 = vunpack.c.h.b16 %v2183
        %v2189 = vunpack.c.l.b16 %v2184
        %v2190 = vpack.c.b16 %v2187, %v2187
        %v2191 = vpack.c.b16 %v2188, %v2188
        %v2192 = vpack.c.b16 %v2189, %v2189
        %2196 = vst [vmem:[#allocation5 + $0x54] sm:$0xf] %v2190
        %2197 = vst [vmem:[#allocation5 + $0x58] sm:$0xf] %v2191
        %2198 = vst [vmem:[#allocation5 + $0x5c] sm:$0xf] %v2192
        %s2199 = sadd.s32 %s305, 7
        %s2200 = sld [smem:[#allocation9 + %s2199]]
        %s2201 = ssub.s32 %s2200, %s306
        %s2202 = smul.u32 %s2201, 24
        %s2203 = sld [smem:[#allocation10 + %s2199]]
        %s2204 = ssub.s32 %s2203, %s306
        %s2205 = smul.u32 %s2204, 24
        %s2206 = sshra.s32 %s2202, 3
        %s2207 = sand.u32 %s2202, 7
        %s2208 = smul.addr %s2206, 4
        %s2209 = scalar_lea.vmem [#allocation4], %s2208
        %v2210 = vld [vmem:[%s2209] sm:$0xf]
        %v2211 = vld [vmem:[%s2209 + $0x4] sm:$0xf]
        %v2212 = vld [vmem:[%s2209 + $0x8] sm:$0xf]
        %v2213 = vunpack.c.l.bf16 %v2210
        %v2214 = vunpack.c.l.bf16 %v2211
        %v2215 = vunpack.c.l.bf16 %v2212
        %s2216 = sld [smem:[#allocation11 + %s2199]]
        %v2217 = vstv %s2216
        %v2218 = vmul.f32 %v2213, %v2217
        %v2219 = vmul.f32 %v2214, %v2217
        %v2220 = vmul.f32 %v2215, %v2217
        %s2221 = sshra.s32 %s2205, 3
        %s2222 = sand.u32 %s2205, 7
        %s2223 = smul.addr %s2221, 4
        %s2224 = scalar_lea.vmem [#allocation4], %s2223
        %v2225 = vld [vmem:[%s2224] sm:$0xf]
        %v2226 = vld [vmem:[%s2224 + $0x4] sm:$0xf]
        %v2227 = vld [vmem:[%s2224 + $0x8] sm:$0xf]
        %v2228 = vunpack.c.l.bf16 %v2225
        %v2229 = vunpack.c.l.bf16 %v2226
        %v2230 = vunpack.c.l.bf16 %v2227
        %s2231 = sld [smem:[#allocation12 + %s2199]]
        %v2232 = vstv %s2231
        %v2233 = vmul.f32 %v2228, %v2232
        %v2234 = vmul.f32 %v2229, %v2232
        %v2235 = vmul.f32 %v2230, %v2232
        %v2236 = vadd.f32 %v2218, %v2233
        %v2237 = vadd.f32 %v2219, %v2234
        %v2238 = vadd.f32 %v2220, %v2235
        %v2239 = vld [vmem:[#allocation3 + $0x54] sm:$0xf]
        %v2240 = vld [vmem:[#allocation3 + $0x58] sm:$0xf]
        %v2241 = vld [vmem:[#allocation3 + $0x5c] sm:$0xf]
        %v2242 = vld [vmem:[%s8] sm:$0xf]
        %v2243 = vld [vmem:[%s8 + $0x4] sm:$0xf]
        %v2244 = vld [vmem:[%s8 + $0x8] sm:$0xf]
        %v2245 = vld [vmem:[%s8 + $0xc] sm:$0xf]
        %v2246 = vld [vmem:[%s8 + $0x10] sm:$0xf]
        %v2247 = vld [vmem:[%s8 + $0x14] sm:$0xf]
        %v2248 = vld [vmem:[%s8 + $0x18] sm:$0xf]
        %v2249 = vld [vmem:[%s8 + $0x1c] sm:$0xf]
        %v2250 = vld [vmem:[%s8 + $0x20] sm:$0xf]
        %v2251 = vld [vmem:[%s8 + $0x24] sm:$0xf]
        %v2252 = vld [vmem:[%s8 + $0x28] sm:$0xf]
        %v2253 = vld [vmem:[%s8 + $0x2c] sm:$0xf]
        %v2254 = vld [vmem:[%s8 + $0x30] sm:$0xf]
        %v2255 = vld [vmem:[%s8 + $0x34] sm:$0xf]
        %v2256 = vld [vmem:[%s8 + $0x38] sm:$0xf]
        %v2257 = vld [vmem:[%s8 + $0x3c] sm:$0xf]
        %v2261 = vunpack.c.l.b16 %v2239
        %v2262 = vunpack.c.l.b16 %v2240
        %v2263 = vunpack.c.l.b16 %v2241
        %v2264 = vpack.c.b16 %v2262, %v2261
        %v2265 = vpack.c.b16 %v2263, %v2263
        %v2284 = vunpack.c.l.b16 %v2242
        %v2285 = vunpack.c.l.b16 %v2243
        %v2286 = vunpack.c.l.b16 %v2244
        %v2287 = vunpack.c.l.b16 %v2245
        %v2288 = vunpack.c.l.b16 %v2246
        %v2289 = vunpack.c.l.b16 %v2247
        %v2290 = vunpack.c.l.b16 %v2248
        %v2291 = vunpack.c.l.b16 %v2249
        %v2292 = vunpack.c.l.b16 %v2250
        %v2293 = vunpack.c.l.b16 %v2251
        %v2294 = vunpack.c.l.b16 %v2252
        %v2295 = vunpack.c.l.b16 %v2253
        %v2296 = vunpack.c.l.b16 %v2254
        %v2297 = vunpack.c.l.b16 %v2255
        %v2298 = vunpack.c.l.b16 %v2256
        %v2299 = vunpack.c.l.b16 %v2257
        %v2300 = vpack.c.b16 %v2285, %v2284
        %v2301 = vpack.c.b16 %v2287, %v2286
        %v2302 = vpack.c.b16 %v2289, %v2288
        %v2303 = vpack.c.b16 %v2291, %v2290
        %v2304 = vpack.c.b16 %v2293, %v2292
        %v2305 = vpack.c.b16 %v2295, %v2294
        %v2306 = vpack.c.b16 %v2297, %v2296
        %v2307 = vpack.c.b16 %v2299, %v2298
        %2316 = vmatprep.subr.bf16.mxu0 0
        %2317 = vmatpush1.bf16.msra.mxu0 %v2307
        %2318 = vmatprep.subr.bf16.mxu0 0
        %2319 = vmatpush1.bf16.msra.mxu0 %v2306
        %2320 = vmatprep.subr.bf16.mxu0 0
        %2321 = vmatpush1.bf16.msra.mxu0 %v2305
        %2322 = vmatprep.subr.bf16.mxu0 0
        %2323 = vmatpush1.bf16.msra.mxu0 %v2304
        %2324 = vmatprep.subr.bf16.mxu0 0
        %2325 = vmatpush1.bf16.msra.mxu0 %v2303
        %2326 = vmatprep.subr.bf16.mxu0 0
        %2327 = vmatpush1.bf16.msra.mxu0 %v2302
        %2328 = vmatprep.subr.bf16.mxu0 0
        %2329 = vmatpush1.bf16.msra.mxu0 %v2301
        %2330 = vmatprep.subr.bf16.mxu0 0
        %2331 = vmatpush1.bf16.msra.mxu0 %v2300
        %2332 = vmatprep.subr.bf16.mxu0 0
        %2333 = vmatpush2.bf16.msra.mxu0 0
        %2334 = vmatprep.subr.bf16.mxu0 0
        %2335 = vmatpush2.bf16.msra.mxu0 0
        %2336 = vmatprep.subr.bf16.mxu0 0
        %2337 = vmatpush2.bf16.msra.mxu0 0
        %2338 = vmatprep.subr.bf16.mxu0 0
        %2339 = vmatpush2.bf16.msra.mxu0 0
        %2340 = vmatprep.subr.bf16.mxu0 0
        %2341 = vmatpush2.bf16.msra.mxu0 0
        %2342 = vmatprep.subr.bf16.mxu0 0
        %2343 = vmatpush2.bf16.msra.mxu0 0
        %2344 = vmatprep.subr.bf16.mxu0 0
        %2345 = vmatpush2.bf16.msra.mxu0 0
        %2346 = vmatprep.subr.bf16.mxu0 0
        %2347 = vmatpush2.bf16.msra.mxu0 0
        %2348 = vmatprep.mubr.bf16.mxu0 0
        %2349 = vmatmul.mubr.bf16.gmra.mxu0 %v2264
        %v2350 = vpop.f32.mrf.mxu0
        %v2351 = vadd.f32 0.0, %v2350
        %v2352 = vpop.f32.mrf.mxu0
        %v2353 = vpop.f32.mrf.mxu0
        %v2354 = vadd.f32 0.0, %v2353
        %v2355 = vpop.f32.mrf.mxu0
        %2356 = vmatprep.mubr.bf16.mxu0 0
        %2357 = vmatmul.mubr.bf16.gmra.mxu0 %v2265
        %v2358 = vpop.f32.mrf.mxu0
        %v2359 = vadd.f32 0.0, %v2358
        %v2360 = vpop.f32.mrf.mxu0
        %v2361 = vpop.f32.mrf.mxu0
        %v2362 = vpop.f32.mrf.mxu0
        %2363 = vdwg.mxu0
        %v2364 = vadd.f32 %v2236, %v2351
        %v2365 = vadd.f32 %v2237, %v2354
        %v2366 = vadd.f32 %v2238, %v2359
        %v2367 = vpack.c.bf16 %v2365, %v2364
        %v2368 = vpack.c.bf16 %v2366, %v2366
        %v2371 = vunpack.c.l.b16 %v2367
        %v2372 = vunpack.c.h.b16 %v2367
        %v2373 = vunpack.c.l.b16 %v2368
        %v2374 = vpack.c.b16 %v2371, %v2371
        %v2375 = vpack.c.b16 %v2372, %v2372
        %v2376 = vpack.c.b16 %v2373, %v2373
        %2380 = vst [vmem:[#allocation5 + $0x60] sm:$0xf] %v2374
        %2381 = vst [vmem:[#allocation5 + $0x64] sm:$0xf] %v2375
        %2382 = vst [vmem:[#allocation5 + $0x68] sm:$0xf] %v2376
        %s2383 = sadd.s32 %s305, 8
        %s2384 = sld [smem:[#allocation9 + %s2383]]
        %s2385 = ssub.s32 %s2384, %s306
        %s2386 = smul.u32 %s2385, 24
        %s2387 = sld [smem:[#allocation10 + %s2383]]
        %s2388 = ssub.s32 %s2387, %s306
        %s2389 = smul.u32 %s2388, 24
        %s2390 = sshra.s32 %s2386, 3
        %s2391 = sand.u32 %s2386, 7
        %s2392 = smul.addr %s2390, 4
        %s2393 = scalar_lea.vmem [#allocation4], %s2392
        %v2394 = vld [vmem:[%s2393] sm:$0xf]
        %v2395 = vld [vmem:[%s2393 + $0x4] sm:$0xf]
        %v2396 = vld [vmem:[%s2393 + $0x8] sm:$0xf]
        %v2397 = vunpack.c.l.bf16 %v2394
        %v2398 = vunpack.c.l.bf16 %v2395
        %v2399 = vunpack.c.l.bf16 %v2396
        %s2400 = sld [smem:[#allocation11 + %s2383]]
        %v2401 = vstv %s2400
        %v2402 = vmul.f32 %v2397, %v2401
        %v2403 = vmul.f32 %v2398, %v2401
        %v2404 = vmul.f32 %v2399, %v2401
        %s2405 = sshra.s32 %s2389, 3
        %s2406 = sand.u32 %s2389, 7
        %s2407 = smul.addr %s2405, 4
        %s2408 = scalar_lea.vmem [#allocation4], %s2407
        %v2409 = vld [vmem:[%s2408] sm:$0xf]
        %v2410 = vld [vmem:[%s2408 + $0x4] sm:$0xf]
        %v2411 = vld [vmem:[%s2408 + $0x8] sm:$0xf]
        %v2412 = vunpack.c.l.bf16 %v2409
        %v2413 = vunpack.c.l.bf16 %v2410
        %v2414 = vunpack.c.l.bf16 %v2411
        %s2415 = sld [smem:[#allocation12 + %s2383]]
        %v2416 = vstv %s2415
        %v2417 = vmul.f32 %v2412, %v2416
        %v2418 = vmul.f32 %v2413, %v2416
        %v2419 = vmul.f32 %v2414, %v2416
        %v2420 = vadd.f32 %v2402, %v2417
        %v2421 = vadd.f32 %v2403, %v2418
        %v2422 = vadd.f32 %v2404, %v2419
        %v2423 = vld [vmem:[#allocation3 + $0x60] sm:$0xf]
        %v2424 = vld [vmem:[#allocation3 + $0x64] sm:$0xf]
        %v2425 = vld [vmem:[#allocation3 + $0x68] sm:$0xf]
        %v2426 = vld [vmem:[%s8] sm:$0xf]
        %v2427 = vld [vmem:[%s8 + $0x4] sm:$0xf]
        %v2428 = vld [vmem:[%s8 + $0x8] sm:$0xf]
        %v2429 = vld [vmem:[%s8 + $0xc] sm:$0xf]
        %v2430 = vld [vmem:[%s8 + $0x10] sm:$0xf]
        %v2431 = vld [vmem:[%s8 + $0x14] sm:$0xf]
        %v2432 = vld [vmem:[%s8 + $0x18] sm:$0xf]
        %v2433 = vld [vmem:[%s8 + $0x1c] sm:$0xf]
        %v2434 = vld [vmem:[%s8 + $0x20] sm:$0xf]
        %v2435 = vld [vmem:[%s8 + $0x24] sm:$0xf]
        %v2436 = vld [vmem:[%s8 + $0x28] sm:$0xf]
        %v2437 = vld [vmem:[%s8 + $0x2c] sm:$0xf]
        %v2438 = vld [vmem:[%s8 + $0x30] sm:$0xf]
        %v2439 = vld [vmem:[%s8 + $0x34] sm:$0xf]
        %v2440 = vld [vmem:[%s8 + $0x38] sm:$0xf]
        %v2441 = vld [vmem:[%s8 + $0x3c] sm:$0xf]
        %v2445 = vunpack.c.l.b16 %v2423
        %v2446 = vunpack.c.l.b16 %v2424
        %v2447 = vunpack.c.l.b16 %v2425
        %v2448 = vpack.c.b16 %v2446, %v2445
        %v2449 = vpack.c.b16 %v2447, %v2447
        %v2468 = vunpack.c.l.b16 %v2426
        %v2469 = vunpack.c.l.b16 %v2427
        %v2470 = vunpack.c.l.b16 %v2428
        %v2471 = vunpack.c.l.b16 %v2429
        %v2472 = vunpack.c.l.b16 %v2430
        %v2473 = vunpack.c.l.b16 %v2431
        %v2474 = vunpack.c.l.b16 %v2432
        %v2475 = vunpack.c.l.b16 %v2433
        %v2476 = vunpack.c.l.b16 %v2434
        %v2477 = vunpack.c.l.b16 %v2435
        %v2478 = vunpack.c.l.b16 %v2436
        %v2479 = vunpack.c.l.b16 %v2437
        %v2480 = vunpack.c.l.b16 %v2438
        %v2481 = vunpack.c.l.b16 %v2439
        %v2482 = vunpack.c.l.b16 %v2440
        %v2483 = vunpack.c.l.b16 %v2441
        %v2484 = vpack.c.b16 %v2469, %v2468
        %v2485 = vpack.c.b16 %v2471, %v2470
        %v2486 = vpack.c.b16 %v2473, %v2472
        %v2487 = vpack.c.b16 %v2475, %v2474
        %v2488 = vpack.c.b16 %v2477, %v2476
        %v2489 = vpack.c.b16 %v2479, %v2478
        %v2490 = vpack.c.b16 %v2481, %v2480
        %v2491 = vpack.c.b16 %v2483, %v2482
        %2500 = vmatprep.subr.bf16.mxu0 0
        %2501 = vmatpush1.bf16.msra.mxu0 %v2491
        %2502 = vmatprep.subr.bf16.mxu0 0
        %2503 = vmatpush1.bf16.msra.mxu0 %v2490
        %2504 = vmatprep.subr.bf16.mxu0 0
        %2505 = vmatpush1.bf16.msra.mxu0 %v2489
        %2506 = vmatprep.subr.bf16.mxu0 0
        %2507 = vmatpush1.bf16.msra.mxu0 %v2488
        %2508 = vmatprep.subr.bf16.mxu0 0
        %2509 = vmatpush1.bf16.msra.mxu0 %v2487
        %2510 = vmatprep.subr.bf16.mxu0 0
        %2511 = vmatpush1.bf16.msra.mxu0 %v2486
        %2512 = vmatprep.subr.bf16.mxu0 0
        %2513 = vmatpush1.bf16.msra.mxu0 %v2485
        %2514 = vmatprep.subr.bf16.mxu0 0
        %2515 = vmatpush1.bf16.msra.mxu0 %v2484
        %2516 = vmatprep.subr.bf16.mxu0 0
        %2517 = vmatpush2.bf16.msra.mxu0 0
        %2518 = vmatprep.subr.bf16.mxu0 0
        %2519 = vmatpush2.bf16.msra.mxu0 0
        %2520 = vmatprep.subr.bf16.mxu0 0
        %2521 = vmatpush2.bf16.msra.mxu0 0
        %2522 = vmatprep.subr.bf16.mxu0 0
        %2523 = vmatpush2.bf16.msra.mxu0 0
        %2524 = vmatprep.subr.bf16.mxu0 0
        %2525 = vmatpush2.bf16.msra.mxu0 0
        %2526 = vmatprep.subr.bf16.mxu0 0
        %2527 = vmatpush2.bf16.msra.mxu0 0
        %2528 = vmatprep.subr.bf16.mxu0 0
        %2529 = vmatpush2.bf16.msra.mxu0 0
        %2530 = vmatprep.subr.bf16.mxu0 0
        %2531 = vmatpush2.bf16.msra.mxu0 0
        %2532 = vmatprep.mubr.bf16.mxu0 0
        %2533 = vmatmul.mubr.bf16.gmra.mxu0 %v2448
        %v2534 = vpop.f32.mrf.mxu0
        %v2535 = vadd.f32 0.0, %v2534
        %v2536 = vpop.f32.mrf.mxu0
        %v2537 = vpop.f32.mrf.mxu0
        %v2538 = vadd.f32 0.0, %v2537
        %v2539 = vpop.f32.mrf.mxu0
        %2540 = vmatprep.mubr.bf16.mxu0 0
        %2541 = vmatmul.mubr.bf16.gmra.mxu0 %v2449
        %v2542 = vpop.f32.mrf.mxu0
        %v2543 = vadd.f32 0.0, %v2542
        %v2544 = vpop.f32.mrf.mxu0
        %v2545 = vpop.f32.mrf.mxu0
        %v2546 = vpop.f32.mrf.mxu0
        %2547 = vdwg.mxu0
        %v2548 = vadd.f32 %v2420, %v2535
        %v2549 = vadd.f32 %v2421, %v2538
        %v2550 = vadd.f32 %v2422, %v2543
        %v2551 = vpack.c.bf16 %v2549, %v2548
        %v2552 = vpack.c.bf16 %v2550, %v2550
        %v2555 = vunpack.c.l.b16 %v2551
        %v2556 = vunpack.c.h.b16 %v2551
        %v2557 = vunpack.c.l.b16 %v2552
        %v2558 = vpack.c.b16 %v2555, %v2555
        %v2559 = vpack.c.b16 %v2556, %v2556
        %v2560 = vpack.c.b16 %v2557, %v2557
        %2564 = vst [vmem:[#allocation5 + $0x6c] sm:$0xf] %v2558
        %2565 = vst [vmem:[#allocation5 + $0x70] sm:$0xf] %v2559
        %2566 = vst [vmem:[#allocation5 + $0x74] sm:$0xf] %v2560
        %s2567 = sadd.s32 %s305, 9
        %s2568 = sld [smem:[#allocation9 + %s2567]]
        %s2569 = ssub.s32 %s2568, %s306
        %s2570 = smul.u32 %s2569, 24
        %s2571 = sld [smem:[#allocation10 + %s2567]]
        %s2572 = ssub.s32 %s2571, %s306
        %s2573 = smul.u32 %s2572, 24
        %s2574 = sshra.s32 %s2570, 3
        %s2575 = sand.u32 %s2570, 7
        %s2576 = smul.addr %s2574, 4
        %s2577 = scalar_lea.vmem [#allocation4], %s2576
        %v2578 = vld [vmem:[%s2577] sm:$0xf]
        %v2579 = vld [vmem:[%s2577 + $0x4] sm:$0xf]
        %v2580 = vld [vmem:[%s2577 + $0x8] sm:$0xf]
        %v2581 = vunpack.c.l.bf16 %v2578
        %v2582 = vunpack.c.l.bf16 %v2579
        %v2583 = vunpack.c.l.bf16 %v2580
        %s2584 = sld [smem:[#allocation11 + %s2567]]
        %v2585 = vstv %s2584
        %v2586 = vmul.f32 %v2581, %v2585
        %v2587 = vmul.f32 %v2582, %v2585
        %v2588 = vmul.f32 %v2583, %v2585
        %s2589 = sshra.s32 %s2573, 3
        %s2590 = sand.u32 %s2573, 7
        %s2591 = smul.addr %s2589, 4
        %s2592 = scalar_lea.vmem [#allocation4], %s2591
        %v2593 = vld [vmem:[%s2592] sm:$0xf]
        %v2594 = vld [vmem:[%s2592 + $0x4] sm:$0xf]
        %v2595 = vld [vmem:[%s2592 + $0x8] sm:$0xf]
        %v2596 = vunpack.c.l.bf16 %v2593
        %v2597 = vunpack.c.l.bf16 %v2594
        %v2598 = vunpack.c.l.bf16 %v2595
        %s2599 = sld [smem:[#allocation12 + %s2567]]
        %v2600 = vstv %s2599
        %v2601 = vmul.f32 %v2596, %v2600
        %v2602 = vmul.f32 %v2597, %v2600
        %v2603 = vmul.f32 %v2598, %v2600
        %v2604 = vadd.f32 %v2586, %v2601
        %v2605 = vadd.f32 %v2587, %v2602
        %v2606 = vadd.f32 %v2588, %v2603
        %v2607 = vld [vmem:[#allocation3 + $0x6c] sm:$0xf]
        %v2608 = vld [vmem:[#allocation3 + $0x70] sm:$0xf]
        %v2609 = vld [vmem:[#allocation3 + $0x74] sm:$0xf]
        %v2610 = vld [vmem:[%s8] sm:$0xf]
        %v2611 = vld [vmem:[%s8 + $0x4] sm:$0xf]
        %v2612 = vld [vmem:[%s8 + $0x8] sm:$0xf]
        %v2613 = vld [vmem:[%s8 + $0xc] sm:$0xf]
        %v2614 = vld [vmem:[%s8 + $0x10] sm:$0xf]
        %v2615 = vld [vmem:[%s8 + $0x14] sm:$0xf]
        %v2616 = vld [vmem:[%s8 + $0x18] sm:$0xf]
        %v2617 = vld [vmem:[%s8 + $0x1c] sm:$0xf]
        %v2618 = vld [vmem:[%s8 + $0x20] sm:$0xf]
        %v2619 = vld [vmem:[%s8 + $0x24] sm:$0xf]
        %v2620 = vld [vmem:[%s8 + $0x28] sm:$0xf]
        %v2621 = vld [vmem:[%s8 + $0x2c] sm:$0xf]
        %v2622 = vld [vmem:[%s8 + $0x30] sm:$0xf]
        %v2623 = vld [vmem:[%s8 + $0x34] sm:$0xf]
        %v2624 = vld [vmem:[%s8 + $0x38] sm:$0xf]
        %v2625 = vld [vmem:[%s8 + $0x3c] sm:$0xf]
        %v2629 = vunpack.c.l.b16 %v2607
        %v2630 = vunpack.c.l.b16 %v2608
        %v2631 = vunpack.c.l.b16 %v2609
        %v2632 = vpack.c.b16 %v2630, %v2629
        %v2633 = vpack.c.b16 %v2631, %v2631
        %v2652 = vunpack.c.l.b16 %v2610
        %v2653 = vunpack.c.l.b16 %v2611
        %v2654 = vunpack.c.l.b16 %v2612
        %v2655 = vunpack.c.l.b16 %v2613
        %v2656 = vunpack.c.l.b16 %v2614
        %v2657 = vunpack.c.l.b16 %v2615
        %v2658 = vunpack.c.l.b16 %v2616
        %v2659 = vunpack.c.l.b16 %v2617
        %v2660 = vunpack.c.l.b16 %v2618
        %v2661 = vunpack.c.l.b16 %v2619
        %v2662 = vunpack.c.l.b16 %v2620
        %v2663 = vunpack.c.l.b16 %v2621
        %v2664 = vunpack.c.l.b16 %v2622
        %v2665 = vunpack.c.l.b16 %v2623
        %v2666 = vunpack.c.l.b16 %v2624
        %v2667 = vunpack.c.l.b16 %v2625
        %v2668 = vpack.c.b16 %v2653, %v2652
        %v2669 = vpack.c.b16 %v2655, %v2654
        %v2670 = vpack.c.b16 %v2657, %v2656
        %v2671 = vpack.c.b16 %v2659, %v2658
        %v2672 = vpack.c.b16 %v2661, %v2660
        %v2673 = vpack.c.b16 %v2663, %v2662
        %v2674 = vpack.c.b16 %v2665, %v2664
        %v2675 = vpack.c.b16 %v2667, %v2666
        %2684 = vmatprep.subr.bf16.mxu0 0
        %2685 = vmatpush1.bf16.msra.mxu0 %v2675
        %2686 = vmatprep.subr.bf16.mxu0 0
        %2687 = vmatpush1.bf16.msra.mxu0 %v2674
        %2688 = vmatprep.subr.bf16.mxu0 0
        %2689 = vmatpush1.bf16.msra.mxu0 %v2673
        %2690 = vmatprep.subr.bf16.mxu0 0
        %2691 = vmatpush1.bf16.msra.mxu0 %v2672
        %2692 = vmatprep.subr.bf16.mxu0 0
        %2693 = vmatpush1.bf16.msra.mxu0 %v2671
        %2694 = vmatprep.subr.bf16.mxu0 0
        %2695 = vmatpush1.bf16.msra.mxu0 %v2670
        %2696 = vmatprep.subr.bf16.mxu0 0
        %2697 = vmatpush1.bf16.msra.mxu0 %v2669
        %2698 = vmatprep.subr.bf16.mxu0 0
        %2699 = vmatpush1.bf16.msra.mxu0 %v2668
        %2700 = vmatprep.subr.bf16.mxu0 0
        %2701 = vmatpush2.bf16.msra.mxu0 0
        %2702 = vmatprep.subr.bf16.mxu0 0
        %2703 = vmatpush2.bf16.msra.mxu0 0
        %2704 = vmatprep.subr.bf16.mxu0 0
        %2705 = vmatpush2.bf16.msra.mxu0 0
        %2706 = vmatprep.subr.bf16.mxu0 0
        %2707 = vmatpush2.bf16.msra.mxu0 0
        %2708 = vmatprep.subr.bf16.mxu0 0
        %2709 = vmatpush2.bf16.msra.mxu0 0
        %2710 = vmatprep.subr.bf16.mxu0 0
        %2711 = vmatpush2.bf16.msra.mxu0 0
        %2712 = vmatprep.subr.bf16.mxu0 0
        %2713 = vmatpush2.bf16.msra.mxu0 0
        %2714 = vmatprep.subr.bf16.mxu0 0
        %2715 = vmatpush2.bf16.msra.mxu0 0
        %2716 = vmatprep.mubr.bf16.mxu0 0
        %2717 = vmatmul.mubr.bf16.gmra.mxu0 %v2632
        %v2718 = vpop.f32.mrf.mxu0
        %v2719 = vadd.f32 0.0, %v2718
        %v2720 = vpop.f32.mrf.mxu0
        %v2721 = vpop.f32.mrf.mxu0
        %v2722 = vadd.f32 0.0, %v2721
        %v2723 = vpop.f32.mrf.mxu0
        %2724 = vmatprep.mubr.bf16.mxu0 0
        %2725 = vmatmul.mubr.bf16.gmra.mxu0 %v2633
        %v2726 = vpop.f32.mrf.mxu0
        %v2727 = vadd.f32 0.0, %v2726
        %v2728 = vpop.f32.mrf.mxu0
        %v2729 = vpop.f32.mrf.mxu0
        %v2730 = vpop.f32.mrf.mxu0
        %2731 = vdwg.mxu0
        %v2732 = vadd.f32 %v2604, %v2719
        %v2733 = vadd.f32 %v2605, %v2722
        %v2734 = vadd.f32 %v2606, %v2727
        %v2735 = vpack.c.bf16 %v2733, %v2732
        %v2736 = vpack.c.bf16 %v2734, %v2734
        %v2739 = vunpack.c.l.b16 %v2735
        %v2740 = vunpack.c.h.b16 %v2735
        %v2741 = vunpack.c.l.b16 %v2736
        %v2742 = vpack.c.b16 %v2739, %v2739
        %v2743 = vpack.c.b16 %v2740, %v2740
        %v2744 = vpack.c.b16 %v2741, %v2741
        %2748 = vst [vmem:[#allocation5 + $0x78] sm:$0xf] %v2742
        %2749 = vst [vmem:[#allocation5 + $0x7c] sm:$0xf] %v2743
        %2750 = vst [vmem:[#allocation5 + $0x80] sm:$0xf] %v2744
        %s2751 = sadd.s32 %s305, 10
        %s2752 = sld [smem:[#allocation9 + %s2751]]
        %s2753 = ssub.s32 %s2752, %s306
        %s2754 = smul.u32 %s2753, 24
        %s2755 = sld [smem:[#allocation10 + %s2751]]
        %s2756 = ssub.s32 %s2755, %s306
        %s2757 = smul.u32 %s2756, 24
        %s2758 = sshra.s32 %s2754, 3
        %s2759 = sand.u32 %s2754, 7
        %s2760 = smul.addr %s2758, 4
        %s2761 = scalar_lea.vmem [#allocation4], %s2760
        %v2762 = vld [vmem:[%s2761] sm:$0xf]
        %v2763 = vld [vmem:[%s2761 + $0x4] sm:$0xf]
        %v2764 = vld [vmem:[%s2761 + $0x8] sm:$0xf]
        %v2765 = vunpack.c.l.bf16 %v2762
        %v2766 = vunpack.c.l.bf16 %v2763
        %v2767 = vunpack.c.l.bf16 %v2764
        %s2768 = sld [smem:[#allocation11 + %s2751]]
        %v2769 = vstv %s2768
        %v2770 = vmul.f32 %v2765, %v2769
        %v2771 = vmul.f32 %v2766, %v2769
        %v2772 = vmul.f32 %v2767, %v2769
        %s2773 = sshra.s32 %s2757, 3
        %s2774 = sand.u32 %s2757, 7
        %s2775 = smul.addr %s2773, 4
        %s2776 = scalar_lea.vmem [#allocation4], %s2775
        %v2777 = vld [vmem:[%s2776] sm:$0xf]
        %v2778 = vld [vmem:[%s2776 + $0x4] sm:$0xf]
        %v2779 = vld [vmem:[%s2776 + $0x8] sm:$0xf]
        %v2780 = vunpack.c.l.bf16 %v2777
        %v2781 = vunpack.c.l.bf16 %v2778
        %v2782 = vunpack.c.l.bf16 %v2779
        %s2783 = sld [smem:[#allocation12 + %s2751]]
        %v2784 = vstv %s2783
        %v2785 = vmul.f32 %v2780, %v2784
        %v2786 = vmul.f32 %v2781, %v2784
        %v2787 = vmul.f32 %v2782, %v2784
        %v2788 = vadd.f32 %v2770, %v2785
        %v2789 = vadd.f32 %v2771, %v2786
        %v2790 = vadd.f32 %v2772, %v2787
        %v2791 = vld [vmem:[#allocation3 + $0x78] sm:$0xf]
        %v2792 = vld [vmem:[#allocation3 + $0x7c] sm:$0xf]
        %v2793 = vld [vmem:[#allocation3 + $0x80] sm:$0xf]
        %v2794 = vld [vmem:[%s8] sm:$0xf]
        %v2795 = vld [vmem:[%s8 + $0x4] sm:$0xf]
        %v2796 = vld [vmem:[%s8 + $0x8] sm:$0xf]
        %v2797 = vld [vmem:[%s8 + $0xc] sm:$0xf]
        %v2798 = vld [vmem:[%s8 + $0x10] sm:$0xf]
        %v2799 = vld [vmem:[%s8 + $0x14] sm:$0xf]
        %v2800 = vld [vmem:[%s8 + $0x18] sm:$0xf]
        %v2801 = vld [vmem:[%s8 + $0x1c] sm:$0xf]
        %v2802 = vld [vmem:[%s8 + $0x20] sm:$0xf]
        %v2803 = vld [vmem:[%s8 + $0x24] sm:$0xf]
        %v2804 = vld [vmem:[%s8 + $0x28] sm:$0xf]
        %v2805 = vld [vmem:[%s8 + $0x2c] sm:$0xf]
        %v2806 = vld [vmem:[%s8 + $0x30] sm:$0xf]
        %v2807 = vld [vmem:[%s8 + $0x34] sm:$0xf]
        %v2808 = vld [vmem:[%s8 + $0x38] sm:$0xf]
        %v2809 = vld [vmem:[%s8 + $0x3c] sm:$0xf]
        %v2813 = vunpack.c.l.b16 %v2791
        %v2814 = vunpack.c.l.b16 %v2792
        %v2815 = vunpack.c.l.b16 %v2793
        %v2816 = vpack.c.b16 %v2814, %v2813
        %v2817 = vpack.c.b16 %v2815, %v2815
        %v2836 = vunpack.c.l.b16 %v2794
        %v2837 = vunpack.c.l.b16 %v2795
        %v2838 = vunpack.c.l.b16 %v2796
        %v2839 = vunpack.c.l.b16 %v2797
        %v2840 = vunpack.c.l.b16 %v2798
        %v2841 = vunpack.c.l.b16 %v2799
        %v2842 = vunpack.c.l.b16 %v2800
        %v2843 = vunpack.c.l.b16 %v2801
        %v2844 = vunpack.c.l.b16 %v2802
        %v2845 = vunpack.c.l.b16 %v2803
        %v2846 = vunpack.c.l.b16 %v2804
        %v2847 = vunpack.c.l.b16 %v2805
        %v2848 = vunpack.c.l.b16 %v2806
        %v2849 = vunpack.c.l.b16 %v2807
        %v2850 = vunpack.c.l.b16 %v2808
        %v2851 = vunpack.c.l.b16 %v2809
        %v2852 = vpack.c.b16 %v2837, %v2836
        %v2853 = vpack.c.b16 %v2839, %v2838
        %v2854 = vpack.c.b16 %v2841, %v2840
        %v2855 = vpack.c.b16 %v2843, %v2842
        %v2856 = vpack.c.b16 %v2845, %v2844
        %v2857 = vpack.c.b16 %v2847, %v2846
        %v2858 = vpack.c.b16 %v2849, %v2848
        %v2859 = vpack.c.b16 %v2851, %v2850
        %2868 = vmatprep.subr.bf16.mxu0 0
        %2869 = vmatpush1.bf16.msra.mxu0 %v2859
        %2870 = vmatprep.subr.bf16.mxu0 0
        %2871 = vmatpush1.bf16.msra.mxu0 %v2858
        %2872 = vmatprep.subr.bf16.mxu0 0
        %2873 = vmatpush1.bf16.msra.mxu0 %v2857
        %2874 = vmatprep.subr.bf16.mxu0 0
        %2875 = vmatpush1.bf16.msra.mxu0 %v2856
        %2876 = vmatprep.subr.bf16.mxu0 0
        %2877 = vmatpush1.bf16.msra.mxu0 %v2855
        %2878 = vmatprep.subr.bf16.mxu0 0
        %2879 = vmatpush1.bf16.msra.mxu0 %v2854
        %2880 = vmatprep.subr.bf16.mxu0 0
        %2881 = vmatpush1.bf16.msra.mxu0 %v2853
        %2882 = vmatprep.subr.bf16.mxu0 0
        %2883 = vmatpush1.bf16.msra.mxu0 %v2852
        %2884 = vmatprep.subr.bf16.mxu0 0
        %2885 = vmatpush2.bf16.msra.mxu0 0
        %2886 = vmatprep.subr.bf16.mxu0 0
        %2887 = vmatpush2.bf16.msra.mxu0 0
        %2888 = vmatprep.subr.bf16.mxu0 0
        %2889 = vmatpush2.bf16.msra.mxu0 0
        %2890 = vmatprep.subr.bf16.mxu0 0
        %2891 = vmatpush2.bf16.msra.mxu0 0
        %2892 = vmatprep.subr.bf16.mxu0 0
        %2893 = vmatpush2.bf16.msra.mxu0 0
        %2894 = vmatprep.subr.bf16.mxu0 0
        %2895 = vmatpush2.bf16.msra.mxu0 0
        %2896 = vmatprep.subr.bf16.mxu0 0
        %2897 = vmatpush2.bf16.msra.mxu0 0
        %2898 = vmatprep.subr.bf16.mxu0 0
        %2899 = vmatpush2.bf16.msra.mxu0 0
        %2900 = vmatprep.mubr.bf16.mxu0 0
        %2901 = vmatmul.mubr.bf16.gmra.mxu0 %v2816
        %v2902 = vpop.f32.mrf.mxu0
        %v2903 = vadd.f32 0.0, %v2902
        %v2904 = vpop.f32.mrf.mxu0
        %v2905 = vpop.f32.mrf.mxu0
        %v2906 = vadd.f32 0.0, %v2905
        %v2907 = vpop.f32.mrf.mxu0
        %2908 = vmatprep.mubr.bf16.mxu0 0
        %2909 = vmatmul.mubr.bf16.gmra.mxu0 %v2817
        %v2910 = vpop.f32.mrf.mxu0
        %v2911 = vadd.f32 0.0, %v2910
        %v2912 = vpop.f32.mrf.mxu0
        %v2913 = vpop.f32.mrf.mxu0
        %v2914 = vpop.f32.mrf.mxu0
        %2915 = vdwg.mxu0
        %v2916 = vadd.f32 %v2788, %v2903
        %v2917 = vadd.f32 %v2789, %v2906
        %v2918 = vadd.f32 %v2790, %v2911
        %v2919 = vpack.c.bf16 %v2917, %v2916
        %v2920 = vpack.c.bf16 %v2918, %v2918
        %v2923 = vunpack.c.l.b16 %v2919
        %v2924 = vunpack.c.h.b16 %v2919
        %v2925 = vunpack.c.l.b16 %v2920
        %v2926 = vpack.c.b16 %v2923, %v2923
        %v2927 = vpack.c.b16 %v2924, %v2924
        %v2928 = vpack.c.b16 %v2925, %v2925
        %2932 = vst [vmem:[#allocation5 + $0x84] sm:$0xf] %v2926
        %2933 = vst [vmem:[#allocation5 + $0x88] sm:$0xf] %v2927
        %2934 = vst [vmem:[#allocation5 + $0x8c] sm:$0xf] %v2928
        %s2935 = sadd.s32 %s305, 11
        %s2936 = sld [smem:[#allocation9 + %s2935]]
        %s2937 = ssub.s32 %s2936, %s306
        %s2938 = smul.u32 %s2937, 24
        %s2939 = sld [smem:[#allocation10 + %s2935]]
        %s2940 = ssub.s32 %s2939, %s306
        %s2941 = smul.u32 %s2940, 24
        %s2942 = sshra.s32 %s2938, 3
        %s2943 = sand.u32 %s2938, 7
        %s2944 = smul.addr %s2942, 4
        %s2945 = scalar_lea.vmem [#allocation4], %s2944
        %v2946 = vld [vmem:[%s2945] sm:$0xf]
        %v2947 = vld [vmem:[%s2945 + $0x4] sm:$0xf]
        %v2948 = vld [vmem:[%s2945 + $0x8] sm:$0xf]
        %v2949 = vunpack.c.l.bf16 %v2946
        %v2950 = vunpack.c.l.bf16 %v2947
        %v2951 = vunpack.c.l.bf16 %v2948
        %s2952 = sld [smem:[#allocation11 + %s2935]]
        %v2953 = vstv %s2952
        %v2954 = vmul.f32 %v2949, %v2953
        %v2955 = vmul.f32 %v2950, %v2953
        %v2956 = vmul.f32 %v2951, %v2953
        %s2957 = sshra.s32 %s2941, 3
        %s2958 = sand.u32 %s2941, 7
        %s2959 = smul.addr %s2957, 4
        %s2960 = scalar_lea.vmem [#allocation4], %s2959
        %v2961 = vld [vmem:[%s2960] sm:$0xf]
        %v2962 = vld [vmem:[%s2960 + $0x4] sm:$0xf]
        %v2963 = vld [vmem:[%s2960 + $0x8] sm:$0xf]
        %v2964 = vunpack.c.l.bf16 %v2961
        %v2965 = vunpack.c.l.bf16 %v2962
        %v2966 = vunpack.c.l.bf16 %v2963
        %s2967 = sld [smem:[#allocation12 + %s2935]]
        %v2968 = vstv %s2967
        %v2969 = vmul.f32 %v2964, %v2968
        %v2970 = vmul.f32 %v2965, %v2968
        %v2971 = vmul.f32 %v2966, %v2968
        %v2972 = vadd.f32 %v2954, %v2969
        %v2973 = vadd.f32 %v2955, %v2970
        %v2974 = vadd.f32 %v2956, %v2971
        %v2975 = vld [vmem:[#allocation3 + $0x84] sm:$0xf]
        %v2976 = vld [vmem:[#allocation3 + $0x88] sm:$0xf]
        %v2977 = vld [vmem:[#allocation3 + $0x8c] sm:$0xf]
        %v2978 = vld [vmem:[%s8] sm:$0xf]
        %v2979 = vld [vmem:[%s8 + $0x4] sm:$0xf]
        %v2980 = vld [vmem:[%s8 + $0x8] sm:$0xf]
        %v2981 = vld [vmem:[%s8 + $0xc] sm:$0xf]
        %v2982 = vld [vmem:[%s8 + $0x10] sm:$0xf]
        %v2983 = vld [vmem:[%s8 + $0x14] sm:$0xf]
        %v2984 = vld [vmem:[%s8 + $0x18] sm:$0xf]
        %v2985 = vld [vmem:[%s8 + $0x1c] sm:$0xf]
        %v2986 = vld [vmem:[%s8 + $0x20] sm:$0xf]
        %v2987 = vld [vmem:[%s8 + $0x24] sm:$0xf]
        %v2988 = vld [vmem:[%s8 + $0x28] sm:$0xf]
        %v2989 = vld [vmem:[%s8 + $0x2c] sm:$0xf]
        %v2990 = vld [vmem:[%s8 + $0x30] sm:$0xf]
        %v2991 = vld [vmem:[%s8 + $0x34] sm:$0xf]
        %v2992 = vld [vmem:[%s8 + $0x38] sm:$0xf]
        %v2993 = vld [vmem:[%s8 + $0x3c] sm:$0xf]
        %v2997 = vunpack.c.l.b16 %v2975
        %v2998 = vunpack.c.l.b16 %v2976
        %v2999 = vunpack.c.l.b16 %v2977
        %v3000 = vpack.c.b16 %v2998, %v2997
        %v3001 = vpack.c.b16 %v2999, %v2999
        %v3020 = vunpack.c.l.b16 %v2978
        %v3021 = vunpack.c.l.b16 %v2979
        %v3022 = vunpack.c.l.b16 %v2980
        %v3023 = vunpack.c.l.b16 %v2981
        %v3024 = vunpack.c.l.b16 %v2982
        %v3025 = vunpack.c.l.b16 %v2983
        %v3026 = vunpack.c.l.b16 %v2984
        %v3027 = vunpack.c.l.b16 %v2985
        %v3028 = vunpack.c.l.b16 %v2986
        %v3029 = vunpack.c.l.b16 %v2987
        %v3030 = vunpack.c.l.b16 %v2988
        %v3031 = vunpack.c.l.b16 %v2989
        %v3032 = vunpack.c.l.b16 %v2990
        %v3033 = vunpack.c.l.b16 %v2991
        %v3034 = vunpack.c.l.b16 %v2992
        %v3035 = vunpack.c.l.b16 %v2993
        %v3036 = vpack.c.b16 %v3021, %v3020
        %v3037 = vpack.c.b16 %v3023, %v3022
        %v3038 = vpack.c.b16 %v3025, %v3024
        %v3039 = vpack.c.b16 %v3027, %v3026
        %v3040 = vpack.c.b16 %v3029, %v3028
        %v3041 = vpack.c.b16 %v3031, %v3030
        %v3042 = vpack.c.b16 %v3033, %v3032
        %v3043 = vpack.c.b16 %v3035, %v3034
        %3052 = vmatprep.subr.bf16.mxu0 0
        %3053 = vmatpush1.bf16.msra.mxu0 %v3043
        %3054 = vmatprep.subr.bf16.mxu0 0
        %3055 = vmatpush1.bf16.msra.mxu0 %v3042
        %3056 = vmatprep.subr.bf16.mxu0 0
        %3057 = vmatpush1.bf16.msra.mxu0 %v3041
        %3058 = vmatprep.subr.bf16.mxu0 0
        %3059 = vmatpush1.bf16.msra.mxu0 %v3040
        %3060 = vmatprep.subr.bf16.mxu0 0
        %3061 = vmatpush1.bf16.msra.mxu0 %v3039
        %3062 = vmatprep.subr.bf16.mxu0 0
        %3063 = vmatpush1.bf16.msra.mxu0 %v3038
        %3064 = vmatprep.subr.bf16.mxu0 0
        %3065 = vmatpush1.bf16.msra.mxu0 %v3037
        %3066 = vmatprep.subr.bf16.mxu0 0
        %3067 = vmatpush1.bf16.msra.mxu0 %v3036
        %3068 = vmatprep.subr.bf16.mxu0 0
        %3069 = vmatpush2.bf16.msra.mxu0 0
        %3070 = vmatprep.subr.bf16.mxu0 0
        %3071 = vmatpush2.bf16.msra.mxu0 0
        %3072 = vmatprep.subr.bf16.mxu0 0
        %3073 = vmatpush2.bf16.msra.mxu0 0
        %3074 = vmatprep.subr.bf16.mxu0 0
        %3075 = vmatpush2.bf16.msra.mxu0 0
        %3076 = vmatprep.subr.bf16.mxu0 0
        %3077 = vmatpush2.bf16.msra.mxu0 0
        %3078 = vmatprep.subr.bf16.mxu0 0
        %3079 = vmatpush2.bf16.msra.mxu0 0
        %3080 = vmatprep.subr.bf16.mxu0 0
        %3081 = vmatpush2.bf16.msra.mxu0 0
        %3082 = vmatprep.subr.bf16.mxu0 0
        %3083 = vmatpush2.bf16.msra.mxu0 0
        %3084 = vmatprep.mubr.bf16.mxu0 0
        %3085 = vmatmul.mubr.bf16.gmra.mxu0 %v3000
        %v3086 = vpop.f32.mrf.mxu0
        %v3087 = vadd.f32 0.0, %v3086
        %v3088 = vpop.f32.mrf.mxu0
        %v3089 = vpop.f32.mrf.mxu0
        %v3090 = vadd.f32 0.0, %v3089
        %v3091 = vpop.f32.mrf.mxu0
        %3092 = vmatprep.mubr.bf16.mxu0 0
        %3093 = vmatmul.mubr.bf16.gmra.mxu0 %v3001
        %v3094 = vpop.f32.mrf.mxu0
        %v3095 = vadd.f32 0.0, %v3094
        %v3096 = vpop.f32.mrf.mxu0
        %v3097 = vpop.f32.mrf.mxu0
        %v3098 = vpop.f32.mrf.mxu0
        %3099 = vdwg.mxu0
        %v3100 = vadd.f32 %v2972, %v3087
        %v3101 = vadd.f32 %v2973, %v3090
        %v3102 = vadd.f32 %v2974, %v3095
        %v3103 = vpack.c.bf16 %v3101, %v3100
        %v3104 = vpack.c.bf16 %v3102, %v3102
        %v3107 = vunpack.c.l.b16 %v3103
        %v3108 = vunpack.c.h.b16 %v3103
        %v3109 = vunpack.c.l.b16 %v3104
        %v3110 = vpack.c.b16 %v3107, %v3107
        %v3111 = vpack.c.b16 %v3108, %v3108
        %v3112 = vpack.c.b16 %v3109, %v3109
        %3116 = vst [vmem:[#allocation5 + $0x90] sm:$0xf] %v3110
        %3117 = vst [vmem:[#allocation5 + $0x94] sm:$0xf] %v3111
        %3118 = vst [vmem:[#allocation5 + $0x98] sm:$0xf] %v3112
        %v3119 = vld [vmem:[#allocation5 + $0x8] sm:$0x8]
        %v3120 = vld [vmem:[#allocation5 + $0xc] sm:$0xf]
        %v3121 = vld [vmem:[#allocation5 + $0x10] sm:$0xf]
        %v3122 = vld [vmem:[#allocation5 + $0x14] sm:$0xf]
        %v3123 = vld [vmem:[#allocation5 + $0x18] sm:$0xf]
        %v3124 = vld [vmem:[#allocation5 + $0x1c] sm:$0xf]
        %v3125 = vld [vmem:[#allocation5 + $0x20] sm:$0xf]
        %v3126 = vld [vmem:[#allocation5 + $0x24] sm:$0xf]
        %v3127 = vld [vmem:[#allocation5 + $0x28] sm:$0xf]
        %v3128 = vld [vmem:[#allocation5 + $0x2c] sm:$0xf]
        %v3129 = vld [vmem:[#allocation5 + $0x30] sm:$0xf]
        %v3130 = vld [vmem:[#allocation5 + $0x34] sm:$0xf]
        %v3131 = vld [vmem:[#allocation5 + $0x38] sm:$0xf]
        %v3132 = vld [vmem:[#allocation5 + $0x3c] sm:$0xf]
        %v3133 = vld [vmem:[#allocation5 + $0x40] sm:$0xf]
        %v3134 = vld [vmem:[#allocation5 + $0x44] sm:$0xf]
        %v3135 = vld [vmem:[#allocation5 + $0x48] sm:$0xf]
        %v3136 = vld [vmem:[#allocation5 + $0x4c] sm:$0xf]
        %v3137 = vld [vmem:[#allocation5 + $0x50] sm:$0xf]
        %v3138 = vld [vmem:[#allocation5 + $0x54] sm:$0xf]
        %v3139 = vld [vmem:[#allocation5 + $0x58] sm:$0xf]
        %v3140 = vld [vmem:[#allocation5 + $0x5c] sm:$0xf]
        %v3141 = vld [vmem:[#allocation5 + $0x60] sm:$0xf]
        %v3142 = vld [vmem:[#allocation5 + $0x64] sm:$0xf]
        %v3143 = vld [vmem:[#allocation5 + $0x68] sm:$0xf]
        %v3144 = vld [vmem:[#allocation5 + $0x6c] sm:$0xf]
        %v3145 = vld [vmem:[#allocation5 + $0x70] sm:$0xf]
        %v3146 = vld [vmem:[#allocation5 + $0x74] sm:$0xf]
        %v3147 = vld [vmem:[#allocation5 + $0x78] sm:$0xf]
        %v3148 = vld [vmem:[#allocation5 + $0x7c] sm:$0xf]
        %v3149 = vld [vmem:[#allocation5 + $0x80] sm:$0xf]
        %v3150 = vld [vmem:[#allocation14] sm:$0xf]
        %v3151 = vld [vmem:[#allocation14 + $0x4] sm:$0xf]
        %v3152 = vld [vmem:[#allocation14 + $0x8] sm:$0xf]
        %v3153 = vld [vmem:[#allocation14 + $0xc] sm:$0xf]
        %v3154 = vld [vmem:[#allocation14 + $0x10] sm:$0xf]
        %v3155 = vld [vmem:[#allocation14 + $0x14] sm:$0xf]
        %v3156 = vld [vmem:[#allocation14 + $0x18] sm:$0xf]
        %v3157 = vld [vmem:[#allocation14 + $0x1c] sm:$0xf]
        %v3158 = vld [vmem:[#allocation14 + $0x20] sm:$0xf]
        %v3159 = vld [vmem:[#allocation14 + $0x24] sm:$0xf]
        %v3160 = vld [vmem:[#allocation14 + $0x28] sm:$0xf]
        %v3161 = vld [vmem:[#allocation14 + $0x2c] sm:$0xf]
        %v3162 = vld [vmem:[#allocation14 + $0x30] sm:$0xf]
        %v3163 = vld [vmem:[#allocation14 + $0x34] sm:$0xf]
        %v3164 = vld [vmem:[#allocation14 + $0x38] sm:$0xf]
        %v3165 = vld [vmem:[#allocation14 + $0x3c] sm:$0xf]
        %s3166 = scalar_lea.vmem [#allocation14], 64
        %v3167 = vld [vmem:[%s3166] sm:$0xf]
        %v3168 = vld [vmem:[%s3166 + $0x4] sm:$0xf]
        %v3169 = vld [vmem:[%s3166 + $0x8] sm:$0xf]
        %v3170 = vld [vmem:[%s3166 + $0xc] sm:$0xf]
        %v3171 = vld [vmem:[%s3166 + $0x10] sm:$0xf]
        %v3172 = vld [vmem:[%s3166 + $0x14] sm:$0xf]
        %v3173 = vld [vmem:[%s3166 + $0x18] sm:$0xf]
        %v3174 = vld [vmem:[%s3166 + $0x1c] sm:$0xf]
        %v3175 = vld [vmem:[%s3166 + $0x20] sm:$0xf]
        %v3176 = vld [vmem:[%s3166 + $0x24] sm:$0xf]
        %v3177 = vld [vmem:[%s3166 + $0x28] sm:$0xf]
        %v3178 = vld [vmem:[%s3166 + $0x2c] sm:$0xf]
        %v3179 = vld [vmem:[%s3166 + $0x30] sm:$0xf]
        %v3180 = vld [vmem:[%s3166 + $0x34] sm:$0xf]
        %v3181 = vld [vmem:[%s3166 + $0x38] sm:$0xf]
        %v3182 = vld [vmem:[%s3166 + $0x3c] sm:$0xf]
        %v3213 = vunpack.c.l.b16 %v3120
        %v3214 = vunpack.c.l.b16 %v3121
        %v3215 = vunpack.c.l.b16 %v3122
        %v3216 = vunpack.c.l.b16 %v3123
        %v3217 = vunpack.c.l.b16 %v3124
        %v3218 = vunpack.c.l.b16 %v3125
        %v3219 = vunpack.c.l.b16 %v3126
        %v3220 = vunpack.c.l.b16 %v3127
        %v3221 = vunpack.c.l.b16 %v3128
        %v3222 = vunpack.c.l.b16 %v3129
        %v3223 = vunpack.c.l.b16 %v3130
        %v3224 = vunpack.c.l.b16 %v3131
        %v3225 = vunpack.c.l.b16 %v3132
        %v3226 = vunpack.c.l.b16 %v3133
        %v3227 = vunpack.c.l.b16 %v3134
        %v3228 = vunpack.c.l.b16 %v3135
        %v3229 = vunpack.c.l.b16 %v3136
        %v3230 = vunpack.c.l.b16 %v3137
        %v3231 = vunpack.c.l.b16 %v3138
        %v3232 = vunpack.c.l.b16 %v3139
        %v3233 = vunpack.c.l.b16 %v3140
        %v3234 = vunpack.c.l.b16 %v3141
        %v3235 = vunpack.c.l.b16 %v3142
        %v3236 = vunpack.c.l.b16 %v3143
        %v3237 = vunpack.c.l.b16 %v3144
        %v3238 = vunpack.c.l.b16 %v3145
        %v3239 = vunpack.c.l.b16 %v3146
        %v3240 = vunpack.c.l.b16 %v3147
        %v3241 = vunpack.c.l.b16 %v3148
        %v3242 = vunpack.c.l.b16 %v3149
        %v3243 = vpack.c.b16 %v3214, %v3213
        %v3244 = vpack.c.b16 %v3216, %v3215
        %v3245 = vpack.c.b16 %v3218, %v3217
        %v3246 = vpack.c.b16 %v3220, %v3219
        %v3247 = vpack.c.b16 %v3222, %v3221
        %v3248 = vpack.c.b16 %v3224, %v3223
        %v3249 = vpack.c.b16 %v3226, %v3225
        %v3250 = vpack.c.b16 %v3228, %v3227
        %v3251 = vpack.c.b16 %v3230, %v3229
        %v3252 = vpack.c.b16 %v3232, %v3231
        %v3253 = vpack.c.b16 %v3234, %v3233
        %v3254 = vpack.c.b16 %v3236, %v3235
        %v3255 = vpack.c.b16 %v3238, %v3237
        %v3256 = vpack.c.b16 %v3240, %v3239
        %v3257 = vpack.c.b16 %v3242, %v3241
        %v3289 = vunpack.c.l.b16 %v3167
        %v3290 = vunpack.c.l.b16 %v3168
        %v3291 = vunpack.c.l.b16 %v3169
        %v3292 = vunpack.c.l.b16 %v3170
        %v3293 = vunpack.c.l.b16 %v3171
        %v3294 = vunpack.c.l.b16 %v3172
        %v3295 = vunpack.c.l.b16 %v3173
        %v3296 = vunpack.c.l.b16 %v3174
        %v3297 = vunpack.c.l.b16 %v3175
        %v3298 = vunpack.c.l.b16 %v3176
        %v3299 = vunpack.c.l.b16 %v3177
        %v3300 = vunpack.c.l.b16 %v3178
        %v3301 = vunpack.c.l.b16 %v3179
        %v3302 = vunpack.c.l.b16 %v3180
        %v3303 = vunpack.c.l.b16 %v3181
        %v3304 = vunpack.c.l.b16 %v3182
        %v3305 = vpack.c.b16 %v3290, %v3289
        %v3306 = vpack.c.b16 %v3292, %v3291
        %v3307 = vpack.c.b16 %v3294, %v3293
        %v3308 = vpack.c.b16 %v3296, %v3295
        %v3309 = vpack.c.b16 %v3298, %v3297
        %v3310 = vpack.c.b16 %v3300, %v3299
        %v3311 = vpack.c.b16 %v3302, %v3301
        %v3312 = vpack.c.b16 %v3304, %v3303
        %3321 = vmatprep.subr.bf16.mxu0 0
        %3322 = vmatpush1.bf16.msra.mxu0 %v3312
        %3323 = vmatprep.subr.bf16.mxu0 0
        %3324 = vmatpush1.bf16.msra.mxu0 %v3311
        %3325 = vmatprep.subr.bf16.mxu0 0
        %3326 = vmatpush1.bf16.msra.mxu0 %v3310
        %3327 = vmatprep.subr.bf16.mxu0 0
        %3328 = vmatpush1.bf16.msra.mxu0 %v3309
        %3329 = vmatprep.subr.bf16.mxu0 0
        %3330 = vmatpush1.bf16.msra.mxu0 %v3308
        %3331 = vmatprep.subr.bf16.mxu0 0
        %3332 = vmatpush1.bf16.msra.mxu0 %v3307
        %3333 = vmatprep.subr.bf16.mxu0 0
        %3334 = vmatpush1.bf16.msra.mxu0 %v3306
        %3335 = vmatprep.subr.bf16.mxu0 0
        %3336 = vmatpush1.bf16.msra.mxu0 %v3305
        %3337 = vmatprep.subr.bf16.mxu0 0
        %3338 = vmatpush2.bf16.msra.mxu0 0
        %3339 = vmatprep.subr.bf16.mxu0 0
        %3340 = vmatpush2.bf16.msra.mxu0 0
        %3341 = vmatprep.subr.bf16.mxu0 0
        %3342 = vmatpush2.bf16.msra.mxu0 0
        %3343 = vmatprep.subr.bf16.mxu0 0
        %3344 = vmatpush2.bf16.msra.mxu0 0
        %3345 = vmatprep.subr.bf16.mxu0 0
        %3346 = vmatpush2.bf16.msra.mxu0 0
        %3347 = vmatprep.subr.bf16.mxu0 0
        %3348 = vmatpush2.bf16.msra.mxu0 0
        %3349 = vmatprep.subr.bf16.mxu0 0
        %3350 = vmatpush2.bf16.msra.mxu0 0
        %3351 = vmatprep.subr.bf16.mxu0 0
        %3352 = vmatpush2.bf16.msra.mxu0 0
        %3353 = vmatprep.mubr.bf16.mxu0 0
        %3354 = vmatmul.mubr.bf16.gmra.mxu0 %v3243
        %v3355 = vpop.f32.mrf.mxu0
        %v3356 = vadd.f32 0.0, %v3355
        %v3357 = vpop.f32.mrf.mxu0
        %v3358 = vpop.f32.mrf.mxu0
        %v3359 = vadd.f32 0.0, %v3358
        %v3360 = vpop.f32.mrf.mxu0
        %3361 = vmatprep.mubr.bf16.mxu0 0
        %3362 = vmatmul.mubr.bf16.gmra.mxu0 %v3244
        %v3363 = vpop.f32.mrf.mxu0
        %v3364 = vadd.f32 0.0, %v3363
        %v3365 = vpop.f32.mrf.mxu0
        %v3366 = vpop.f32.mrf.mxu0
        %v3367 = vadd.f32 0.0, %v3366
        %v3368 = vpop.f32.mrf.mxu0
        %3369 = vmatprep.mubr.bf16.mxu0 0
        %3370 = vmatmul.mubr.bf16.gmra.mxu0 %v3245
        %v3371 = vpop.f32.mrf.mxu0
        %v3372 = vadd.f32 0.0, %v3371
        %v3373 = vpop.f32.mrf.mxu0
        %v3374 = vpop.f32.mrf.mxu0
        %v3375 = vadd.f32 0.0, %v3374
        %v3376 = vpop.f32.mrf.mxu0
        %3377 = vmatprep.mubr.bf16.mxu0 0
        %3378 = vmatmul.mubr.bf16.gmra.mxu0 %v3246
        %v3379 = vpop.f32.mrf.mxu0
        %v3380 = vadd.f32 0.0, %v3379
        %v3381 = vpop.f32.mrf.mxu0
        %v3382 = vpop.f32.mrf.mxu0
        %v3383 = vadd.f32 0.0, %v3382
        %v3384 = vpop.f32.mrf.mxu0
        %3385 = vmatprep.mubr.bf16.mxu0 0
        %3386 = vmatmul.mubr.bf16.gmra.mxu0 %v3247
        %v3387 = vpop.f32.mrf.mxu0
        %v3388 = vadd.f32 0.0, %v3387
        %v3389 = vpop.f32.mrf.mxu0
        %v3390 = vpop.f32.mrf.mxu0
        %v3391 = vadd.f32 0.0, %v3390
        %v3392 = vpop.f32.mrf.mxu0
        %3393 = vmatprep.mubr.bf16.mxu0 0
        %3394 = vmatmul.mubr.bf16.gmra.mxu0 %v3248
        %v3395 = vpop.f32.mrf.mxu0
        %v3396 = vadd.f32 0.0, %v3395
        %v3397 = vpop.f32.mrf.mxu0
        %v3398 = vpop.f32.mrf.mxu0
        %v3399 = vadd.f32 0.0, %v3398
        %v3400 = vpop.f32.mrf.mxu0
        %3401 = vmatprep.mubr.bf16.mxu0 0
        %3402 = vmatmul.mubr.bf16.gmra.mxu0 %v3249
        %v3403 = vpop.f32.mrf.mxu0
        %v3404 = vadd.f32 0.0, %v3403
        %v3405 = vpop.f32.mrf.mxu0
        %v3406 = vpop.f32.mrf.mxu0
        %v3407 = vadd.f32 0.0, %v3406
        %v3408 = vpop.f32.mrf.mxu0
        %3409 = vmatprep.mubr.bf16.mxu0 0
        %3410 = vmatmul.mubr.bf16.gmra.mxu0 %v3250
        %v3411 = vpop.f32.mrf.mxu0
        %v3412 = vadd.f32 0.0, %v3411
        %v3413 = vpop.f32.mrf.mxu0
        %v3414 = vpop.f32.mrf.mxu0
        %v3415 = vadd.f32 0.0, %v3414
        %v3416 = vpop.f32.mrf.mxu0
        %3417 = vmatprep.mubr.bf16.mxu0 0
        %3418 = vmatmul.mubr.bf16.gmra.mxu0 %v3251
        %v3419 = vpop.f32.mrf.mxu0
        %v3420 = vadd.f32 0.0, %v3419
        %v3421 = vpop.f32.mrf.mxu0
        %v3422 = vpop.f32.mrf.mxu0
        %v3423 = vadd.f32 0.0, %v3422
        %v3424 = vpop.f32.mrf.mxu0
        %3425 = vmatprep.mubr.bf16.mxu0 0
        %3426 = vmatmul.mubr.bf16.gmra.mxu0 %v3252
        %v3427 = vpop.f32.mrf.mxu0
        %v3428 = vadd.f32 0.0, %v3427
        %v3429 = vpop.f32.mrf.mxu0
        %v3430 = vpop.f32.mrf.mxu0
        %v3431 = vadd.f32 0.0, %v3430
        %v3432 = vpop.f32.mrf.mxu0
        %3433 = vmatprep.mubr.bf16.mxu0 0
        %3434 = vmatmul.mubr.bf16.gmra.mxu0 %v3253
        %v3435 = vpop.f32.mrf.mxu0
        %v3436 = vadd.f32 0.0, %v3435
        %v3437 = vpop.f32.mrf.mxu0
        %v3438 = vpop.f32.mrf.mxu0
        %v3439 = vadd.f32 0.0, %v3438
        %v3440 = vpop.f32.mrf.mxu0
        %3441 = vmatprep.mubr.bf16.mxu0 0
        %3442 = vmatmul.mubr.bf16.gmra.mxu0 %v3254
        %v3443 = vpop.f32.mrf.mxu0
        %v3444 = vadd.f32 0.0, %v3443
        %v3445 = vpop.f32.mrf.mxu0
        %v3446 = vpop.f32.mrf.mxu0
        %v3447 = vadd.f32 0.0, %v3446
        %v3448 = vpop.f32.mrf.mxu0
        %3449 = vmatprep.mubr.bf16.mxu0 0
        %3450 = vmatmul.mubr.bf16.gmra.mxu0 %v3255
        %v3451 = vpop.f32.mrf.mxu0
        %v3452 = vadd.f32 0.0, %v3451
        %v3453 = vpop.f32.mrf.mxu0
        %v3454 = vpop.f32.mrf.mxu0
        %v3455 = vadd.f32 0.0, %v3454
        %v3456 = vpop.f32.mrf.mxu0
        %3457 = vmatprep.mubr.bf16.mxu0 0
        %3458 = vmatmul.mubr.bf16.gmra.mxu0 %v3256
        %v3459 = vpop.f32.mrf.mxu0
        %v3460 = vadd.f32 0.0, %v3459
        %v3461 = vpop.f32.mrf.mxu0
        %v3462 = vpop.f32.mrf.mxu0
        %v3463 = vadd.f32 0.0, %v3462
        %v3464 = vpop.f32.mrf.mxu0
        %3465 = vmatprep.mubr.bf16.mxu0 0
        %3466 = vmatmul.mubr.bf16.gmra.mxu0 %v3257
        %v3467 = vpop.f32.mrf.mxu0
        %v3468 = vadd.f32 0.0, %v3467
        %v3469 = vpop.f32.mrf.mxu0
        %v3470 = vpop.f32.mrf.mxu0
        %v3471 = vadd.f32 0.0, %v3470
        %v3472 = vpop.f32.mrf.mxu0
        %3473 = vdwg.mxu0
        %v3475 = vunpack.c.l.b16 %v3119
        %v3476 = vpack.c.b16 %v3213, %v3475
        %v3477 = vpack.c.b16 %v3215, %v3214
        %v3478 = vpack.c.b16 %v3217, %v3216
        %v3479 = vpack.c.b16 %v3219, %v3218
        %v3480 = vpack.c.b16 %v3221, %v3220
        %v3481 = vpack.c.b16 %v3223, %v3222
        %v3482 = vpack.c.b16 %v3225, %v3224
        %v3483 = vpack.c.b16 %v3227, %v3226
        %v3484 = vpack.c.b16 %v3229, %v3228
        %v3485 = vpack.c.b16 %v3231, %v3230
        %v3486 = vpack.c.b16 %v3233, %v3232
        %v3487 = vpack.c.b16 %v3235, %v3234
        %v3488 = vpack.c.b16 %v3237, %v3236
        %v3489 = vpack.c.b16 %v3239, %v3238
        %v3490 = vpack.c.b16 %v3241, %v3240
        %v3491 = vpack.c.b16 %v3242, %v3242
        %vm3492 = vsmask.f32 4352
        %v3494 = vshrl.u32 %v3476, 16
        %v3496 = vrot.slane %v3494, 3
        %v3497 = vshll.u32 %v3476, 16
        %v3499 = vrot.slane %v3497, 4
        %v3500 = vor.u32 %v3496, %v3499
        %v3502 = vshrl.u32 %v3477, 16
        %v3504 = vrot.slane %v3502, 3
        %v3505 = vshll.u32 %v3477, 16
        %v3507 = vrot.slane %v3505, 4
        %v3508 = vor.u32 %v3504, %v3507
        %v3509 = vsel %vm3492, %v3500, %v3508
        %v3511 = vshrl.u32 %v3478, 16
        %v3513 = vrot.slane %v3511, 3
        %v3514 = vshll.u32 %v3478, 16
        %v3516 = vrot.slane %v3514, 4
        %v3517 = vor.u32 %v3513, %v3516
        %v3518 = vsel %vm3492, %v3508, %v3517
        %v3520 = vshrl.u32 %v3479, 16
        %v3522 = vrot.slane %v3520, 3
        %v3523 = vshll.u32 %v3479, 16
        %v3525 = vrot.slane %v3523, 4
        %v3526 = vor.u32 %v3522, %v3525
        %v3527 = vsel %vm3492, %v3517, %v3526
        %v3529 = vshrl.u32 %v3480, 16
        %v3531 = vrot.slane %v3529, 3
        %v3532 = vshll.u32 %v3480, 16
        %v3534 = vrot.slane %v3532, 4
        %v3535 = vor.u32 %v3531, %v3534
        %v3536 = vsel %vm3492, %v3526, %v3535
        %v3538 = vshrl.u32 %v3481, 16
        %v3540 = vrot.slane %v3538, 3
        %v3541 = vshll.u32 %v3481, 16
        %v3543 = vrot.slane %v3541, 4
        %v3544 = vor.u32 %v3540, %v3543
        %v3545 = vsel %vm3492, %v3535, %v3544
        %v3547 = vshrl.u32 %v3482, 16
        %v3549 = vrot.slane %v3547, 3
        %v3550 = vshll.u32 %v3482, 16
        %v3552 = vrot.slane %v3550, 4
        %v3553 = vor.u32 %v3549, %v3552
        %v3554 = vsel %vm3492, %v3544, %v3553
        %v3556 = vshrl.u32 %v3483, 16
        %v3558 = vrot.slane %v3556, 3
        %v3559 = vshll.u32 %v3483, 16
        %v3561 = vrot.slane %v3559, 4
        %v3562 = vor.u32 %v3558, %v3561
        %v3563 = vsel %vm3492, %v3553, %v3562
        %v3565 = vshrl.u32 %v3484, 16
        %v3567 = vrot.slane %v3565, 3
        %v3568 = vshll.u32 %v3484, 16
        %v3570 = vrot.slane %v3568, 4
        %v3571 = vor.u32 %v3567, %v3570
        %v3572 = vsel %vm3492, %v3562, %v3571
        %v3574 = vshrl.u32 %v3485, 16
        %v3576 = vrot.slane %v3574, 3
        %v3577 = vshll.u32 %v3485, 16
        %v3579 = vrot.slane %v3577, 4
        %v3580 = vor.u32 %v3576, %v3579
        %v3581 = vsel %vm3492, %v3571, %v3580
        %v3583 = vshrl.u32 %v3486, 16
        %v3585 = vrot.slane %v3583, 3
        %v3586 = vshll.u32 %v3486, 16
        %v3588 = vrot.slane %v3586, 4
        %v3589 = vor.u32 %v3585, %v3588
        %v3590 = vsel %vm3492, %v3580, %v3589
        %v3592 = vshrl.u32 %v3487, 16
        %v3594 = vrot.slane %v3592, 3
        %v3595 = vshll.u32 %v3487, 16
        %v3597 = vrot.slane %v3595, 4
        %v3598 = vor.u32 %v3594, %v3597
        %v3599 = vsel %vm3492, %v3589, %v3598
        %v3601 = vshrl.u32 %v3488, 16
        %v3603 = vrot.slane %v3601, 3
        %v3604 = vshll.u32 %v3488, 16
        %v3606 = vrot.slane %v3604, 4
        %v3607 = vor.u32 %v3603, %v3606
        %v3608 = vsel %vm3492, %v3598, %v3607
        %v3610 = vshrl.u32 %v3489, 16
        %v3612 = vrot.slane %v3610, 3
        %v3613 = vshll.u32 %v3489, 16
        %v3615 = vrot.slane %v3613, 4
        %v3616 = vor.u32 %v3612, %v3615
        %v3617 = vsel %vm3492, %v3607, %v3616
        %v3619 = vshrl.u32 %v3490, 16
        %v3621 = vrot.slane %v3619, 3
        %v3622 = vshll.u32 %v3490, 16
        %v3624 = vrot.slane %v3622, 4
        %v3625 = vor.u32 %v3621, %v3624
        %v3626 = vsel %vm3492, %v3616, %v3625
        %v3628 = vshrl.u32 %v3491, 16
        %v3630 = vrot.slane %v3628, 3
        %v3631 = vshll.u32 %v3491, 16
        %v3633 = vrot.slane %v3631, 4
        %v3634 = vor.u32 %v3630, %v3633
        %v3635 = vsel %vm3492, %v3625, %v3634
        %v3667 = vunpack.c.l.b16 %v3150
        %v3668 = vunpack.c.l.b16 %v3151
        %v3669 = vunpack.c.l.b16 %v3152
        %v3670 = vunpack.c.l.b16 %v3153
        %v3671 = vunpack.c.l.b16 %v3154
        %v3672 = vunpack.c.l.b16 %v3155
        %v3673 = vunpack.c.l.b16 %v3156
        %v3674 = vunpack.c.l.b16 %v3157
        %v3675 = vunpack.c.l.b16 %v3158
        %v3676 = vunpack.c.l.b16 %v3159
        %v3677 = vunpack.c.l.b16 %v3160
        %v3678 = vunpack.c.l.b16 %v3161
        %v3679 = vunpack.c.l.b16 %v3162
        %v3680 = vunpack.c.l.b16 %v3163
        %v3681 = vunpack.c.l.b16 %v3164
        %v3682 = vunpack.c.l.b16 %v3165
        %v3683 = vpack.c.b16 %v3668, %v3667
        %v3684 = vpack.c.b16 %v3670, %v3669
        %v3685 = vpack.c.b16 %v3672, %v3671
        %v3686 = vpack.c.b16 %v3674, %v3673
        %v3687 = vpack.c.b16 %v3676, %v3675
        %v3688 = vpack.c.b16 %v3678, %v3677
        %v3689 = vpack.c.b16 %v3680, %v3679
        %v3690 = vpack.c.b16 %v3682, %v3681
        %3699 = vmatprep.subr.bf16.mxu0 0
        %3700 = vmatpush1.bf16.msra.mxu0 %v3690
        %3701 = vmatprep.subr.bf16.mxu0 0
        %3702 = vmatpush1.bf16.msra.mxu0 %v3689
        %3703 = vmatprep.subr.bf16.mxu0 0
        %3704 = vmatpush1.bf16.msra.mxu0 %v3688
        %3705 = vmatprep.subr.bf16.mxu0 0
        %3706 = vmatpush1.bf16.msra.mxu0 %v3687
        %3707 = vmatprep.subr.bf16.mxu0 0
        %3708 = vmatpush1.bf16.msra.mxu0 %v3686
        %3709 = vmatprep.subr.bf16.mxu0 0
        %3710 = vmatpush1.bf16.msra.mxu0 %v3685
        %3711 = vmatprep.subr.bf16.mxu0 0
        %3712 = vmatpush1.bf16.msra.mxu0 %v3684
        %3713 = vmatprep.subr.bf16.mxu0 0
        %3714 = vmatpush1.bf16.msra.mxu0 %v3683
        %3715 = vmatprep.subr.bf16.mxu0 0
        %3716 = vmatpush2.bf16.msra.mxu0 0
        %3717 = vmatprep.subr.bf16.mxu0 0
        %3718 = vmatpush2.bf16.msra.mxu0 0
        %3719 = vmatprep.subr.bf16.mxu0 0
        %3720 = vmatpush2.bf16.msra.mxu0 0
        %3721 = vmatprep.subr.bf16.mxu0 0
        %3722 = vmatpush2.bf16.msra.mxu0 0
        %3723 = vmatprep.subr.bf16.mxu0 0
        %3724 = vmatpush2.bf16.msra.mxu0 0
        %3725 = vmatprep.subr.bf16.mxu0 0
        %3726 = vmatpush2.bf16.msra.mxu0 0
        %3727 = vmatprep.subr.bf16.mxu0 0
        %3728 = vmatpush2.bf16.msra.mxu0 0
        %3729 = vmatprep.subr.bf16.mxu0 0
        %3730 = vmatpush2.bf16.msra.mxu0 0
        %3731 = vmatprep.mubr.bf16.mxu0 0
        %3732 = vmatmul.mubr.bf16.gmra.mxu0 %v3509
        %v3733 = vpop.f32.mrf.mxu0
        %v3734 = vadd.f32 %v3356, %v3733
        %v3735 = vpop.f32.mrf.mxu0
        %v3736 = vpop.f32.mrf.mxu0
        %v3737 = vadd.f32 %v3359, %v3736
        %v3738 = vpop.f32.mrf.mxu0
        %3739 = vmatprep.mubr.bf16.mxu0 0
        %3740 = vmatmul.mubr.bf16.gmra.mxu0 %v3518
        %v3741 = vpop.f32.mrf.mxu0
        %v3742 = vadd.f32 %v3364, %v3741
        %v3743 = vpop.f32.mrf.mxu0
        %v3744 = vpop.f32.mrf.mxu0
        %v3745 = vadd.f32 %v3367, %v3744
        %v3746 = vpop.f32.mrf.mxu0
        %3747 = vmatprep.mubr.bf16.mxu0 0
        %3748 = vmatmul.mubr.bf16.gmra.mxu0 %v3527
        %v3749 = vpop.f32.mrf.mxu0
        %v3750 = vadd.f32 %v3372, %v3749
        %v3751 = vpop.f32.mrf.mxu0
        %v3752 = vpop.f32.mrf.mxu0
        %v3753 = vadd.f32 %v3375, %v3752
        %v3754 = vpop.f32.mrf.mxu0
        %3755 = vmatprep.mubr.bf16.mxu0 0
        %3756 = vmatmul.mubr.bf16.gmra.mxu0 %v3536
        %v3757 = vpop.f32.mrf.mxu0
        %v3758 = vadd.f32 %v3380, %v3757
        %v3759 = vpop.f32.mrf.mxu0
        %v3760 = vpop.f32.mrf.mxu0
        %v3761 = vadd.f32 %v3383, %v3760
        %v3762 = vpop.f32.mrf.mxu0
        %3763 = vmatprep.mubr.bf16.mxu0 0
        %3764 = vmatmul.mubr.bf16.gmra.mxu0 %v3545
        %v3765 = vpop.f32.mrf.mxu0
        %v3766 = vadd.f32 %v3388, %v3765
        %v3767 = vpop.f32.mrf.mxu0
        %v3768 = vpop.f32.mrf.mxu0
        %v3769 = vadd.f32 %v3391, %v3768
        %v3770 = vpop.f32.mrf.mxu0
        %3771 = vmatprep.mubr.bf16.mxu0 0
        %3772 = vmatmul.mubr.bf16.gmra.mxu0 %v3554
        %v3773 = vpop.f32.mrf.mxu0
        %v3774 = vadd.f32 %v3396, %v3773
        %v3775 = vpop.f32.mrf.mxu0
        %v3776 = vpop.f32.mrf.mxu0
        %v3777 = vadd.f32 %v3399, %v3776
        %v3778 = vpop.f32.mrf.mxu0
        %3779 = vmatprep.mubr.bf16.mxu0 0
        %3780 = vmatmul.mubr.bf16.gmra.mxu0 %v3563
        %v3781 = vpop.f32.mrf.mxu0
        %v3782 = vadd.f32 %v3404, %v3781
        %v3783 = vpop.f32.mrf.mxu0
        %v3784 = vpop.f32.mrf.mxu0
        %v3785 = vadd.f32 %v3407, %v3784
        %v3786 = vpop.f32.mrf.mxu0
        %3787 = vmatprep.mubr.bf16.mxu0 0
        %3788 = vmatmul.mubr.bf16.gmra.mxu0 %v3572
        %v3789 = vpop.f32.mrf.mxu0
        %v3790 = vadd.f32 %v3412, %v3789
        %v3791 = vpop.f32.mrf.mxu0
        %v3792 = vpop.f32.mrf.mxu0
        %v3793 = vadd.f32 %v3415, %v3792
        %v3794 = vpop.f32.mrf.mxu0
        %3795 = vmatprep.mubr.bf16.mxu0 0
        %3796 = vmatmul.mubr.bf16.gmra.mxu0 %v3581
        %v3797 = vpop.f32.mrf.mxu0
        %v3798 = vadd.f32 %v3420, %v3797
        %v3799 = vpop.f32.mrf.mxu0
        %v3800 = vpop.f32.mrf.mxu0
        %v3801 = vadd.f32 %v3423, %v3800
        %v3802 = vpop.f32.mrf.mxu0
        %3803 = vmatprep.mubr.bf16.mxu0 0
        %3804 = vmatmul.mubr.bf16.gmra.mxu0 %v3590
        %v3805 = vpop.f32.mrf.mxu0
        %v3806 = vadd.f32 %v3428, %v3805
        %v3807 = vpop.f32.mrf.mxu0
        %v3808 = vpop.f32.mrf.mxu0
        %v3809 = vadd.f32 %v3431, %v3808
        %v3810 = vpop.f32.mrf.mxu0
        %3811 = vmatprep.mubr.bf16.mxu0 0
        %3812 = vmatmul.mubr.bf16.gmra.mxu0 %v3599
        %v3813 = vpop.f32.mrf.mxu0
        %v3814 = vadd.f32 %v3436, %v3813
        %v3815 = vpop.f32.mrf.mxu0
        %v3816 = vpop.f32.mrf.mxu0
        %v3817 = vadd.f32 %v3439, %v3816
        %v3818 = vpop.f32.mrf.mxu0
        %3819 = vmatprep.mubr.bf16.mxu0 0
        %3820 = vmatmul.mubr.bf16.gmra.mxu0 %v3608
        %v3821 = vpop.f32.mrf.mxu0
        %v3822 = vadd.f32 %v3444, %v3821
        %v3823 = vpop.f32.mrf.mxu0
        %v3824 = vpop.f32.mrf.mxu0
        %v3825 = vadd.f32 %v3447, %v3824
        %v3826 = vpop.f32.mrf.mxu0
        %3827 = vmatprep.mubr.bf16.mxu0 0
        %3828 = vmatmul.mubr.bf16.gmra.mxu0 %v3617
        %v3829 = vpop.f32.mrf.mxu0
        %v3830 = vadd.f32 %v3452, %v3829
        %v3831 = vpop.f32.mrf.mxu0
        %v3832 = vpop.f32.mrf.mxu0
        %v3833 = vadd.f32 %v3455, %v3832
        %v3834 = vpop.f32.mrf.mxu0
        %3835 = vmatprep.mubr.bf16.mxu0 0
        %3836 = vmatmul.mubr.bf16.gmra.mxu0 %v3626
        %v3837 = vpop.f32.mrf.mxu0
        %v3838 = vadd.f32 %v3460, %v3837
        %v3839 = vpop.f32.mrf.mxu0
        %v3840 = vpop.f32.mrf.mxu0
        %v3841 = vadd.f32 %v3463, %v3840
        %v3842 = vpop.f32.mrf.mxu0
        %3843 = vmatprep.mubr.bf16.mxu0 0
        %3844 = vmatmul.mubr.bf16.gmra.mxu0 %v3635
        %v3845 = vpop.f32.mrf.mxu0
        %v3846 = vadd.f32 %v3468, %v3845
        %v3847 = vpop.f32.mrf.mxu0
        %v3848 = vpop.f32.mrf.mxu0
        %v3849 = vadd.f32 %v3471, %v3848
        %v3850 = vpop.f32.mrf.mxu0
        %3851 = vdwg.mxu0
        %v3852 = vld [vmem:[#allocation5 + $0xc] sm:$0xf]
        %v3853 = vld [vmem:[#allocation5 + $0x10] sm:$0xf]
        %v3854 = vld [vmem:[#allocation5 + $0x14] sm:$0xf]
        %v3855 = vld [vmem:[#allocation5 + $0x18] sm:$0xf]
        %v3856 = vld [vmem:[#allocation5 + $0x1c] sm:$0xf]
        %v3857 = vld [vmem:[#allocation5 + $0x20] sm:$0xf]
        %v3858 = vld [vmem:[#allocation5 + $0x24] sm:$0xf]
        %v3859 = vld [vmem:[#allocation5 + $0x28] sm:$0xf]
        %v3860 = vld [vmem:[#allocation5 + $0x2c] sm:$0xf]
        %v3861 = vld [vmem:[#allocation5 + $0x30] sm:$0xf]
        %v3862 = vld [vmem:[#allocation5 + $0x34] sm:$0xf]
        %v3863 = vld [vmem:[#allocation5 + $0x38] sm:$0xf]
        %v3864 = vld [vmem:[#allocation5 + $0x3c] sm:$0xf]
        %v3865 = vld [vmem:[#allocation5 + $0x40] sm:$0xf]
        %v3866 = vld [vmem:[#allocation5 + $0x44] sm:$0xf]
        %v3867 = vld [vmem:[#allocation5 + $0x48] sm:$0xf]
        %v3868 = vld [vmem:[#allocation5 + $0x4c] sm:$0xf]
        %v3869 = vld [vmem:[#allocation5 + $0x50] sm:$0xf]
        %v3870 = vld [vmem:[#allocation5 + $0x54] sm:$0xf]
        %v3871 = vld [vmem:[#allocation5 + $0x58] sm:$0xf]
        %v3872 = vld [vmem:[#allocation5 + $0x5c] sm:$0xf]
        %v3873 = vld [vmem:[#allocation5 + $0x60] sm:$0xf]
        %v3874 = vld [vmem:[#allocation5 + $0x64] sm:$0xf]
        %v3875 = vld [vmem:[#allocation5 + $0x68] sm:$0xf]
        %v3876 = vld [vmem:[#allocation5 + $0x6c] sm:$0xf]
        %v3877 = vld [vmem:[#allocation5 + $0x70] sm:$0xf]
        %v3878 = vld [vmem:[#allocation5 + $0x74] sm:$0xf]
        %v3879 = vld [vmem:[#allocation5 + $0x78] sm:$0xf]
        %v3880 = vld [vmem:[#allocation5 + $0x7c] sm:$0xf]
        %v3881 = vld [vmem:[#allocation5 + $0x80] sm:$0xf]
        %v3882 = vld [vmem:[#allocation5 + $0x84] sm:$0x1]
        %s3883 = scalar_lea.vmem [#allocation14], 128
        %v3884 = vld [vmem:[%s3883] sm:$0xf]
        %v3885 = vld [vmem:[%s3883 + $0x4] sm:$0xf]
        %v3886 = vld [vmem:[%s3883 + $0x8] sm:$0xf]
        %v3887 = vld [vmem:[%s3883 + $0xc] sm:$0xf]
        %v3888 = vld [vmem:[%s3883 + $0x10] sm:$0xf]
        %v3889 = vld [vmem:[%s3883 + $0x14] sm:$0xf]
        %v3890 = vld [vmem:[%s3883 + $0x18] sm:$0xf]
        %v3891 = vld [vmem:[%s3883 + $0x1c] sm:$0xf]
        %v3892 = vld [vmem:[%s3883 + $0x20] sm:$0xf]
        %v3893 = vld [vmem:[%s3883 + $0x24] sm:$0xf]
        %v3894 = vld [vmem:[%s3883 + $0x28] sm:$0xf]
        %v3895 = vld [vmem:[%s3883 + $0x2c] sm:$0xf]
        %v3896 = vld [vmem:[%s3883 + $0x30] sm:$0xf]
        %v3897 = vld [vmem:[%s3883 + $0x34] sm:$0xf]
        %v3898 = vld [vmem:[%s3883 + $0x38] sm:$0xf]
        %v3899 = vld [vmem:[%s3883 + $0x3c] sm:$0xf]
        %v3931 = vunpack.c.l.b16 %v3852
        %v3932 = vunpack.c.l.b16 %v3853
        %v3933 = vunpack.c.l.b16 %v3854
        %v3934 = vunpack.c.l.b16 %v3855
        %v3935 = vunpack.c.l.b16 %v3856
        %v3936 = vunpack.c.l.b16 %v3857
        %v3937 = vunpack.c.l.b16 %v3858
        %v3938 = vunpack.c.l.b16 %v3859
        %v3939 = vunpack.c.l.b16 %v3860
        %v3940 = vunpack.c.l.b16 %v3861
        %v3941 = vunpack.c.l.b16 %v3862
        %v3942 = vunpack.c.l.b16 %v3863
        %v3943 = vunpack.c.l.b16 %v3864
        %v3944 = vunpack.c.l.b16 %v3865
        %v3945 = vunpack.c.l.b16 %v3866
        %v3946 = vunpack.c.l.b16 %v3867
        %v3947 = vunpack.c.l.b16 %v3868
        %v3948 = vunpack.c.l.b16 %v3869
        %v3949 = vunpack.c.l.b16 %v3870
        %v3950 = vunpack.c.l.b16 %v3871
        %v3951 = vunpack.c.l.b16 %v3872
        %v3952 = vunpack.c.l.b16 %v3873
        %v3953 = vunpack.c.l.b16 %v3874
        %v3954 = vunpack.c.l.b16 %v3875
        %v3955 = vunpack.c.l.b16 %v3876
        %v3956 = vunpack.c.l.b16 %v3877
        %v3957 = vunpack.c.l.b16 %v3878
        %v3958 = vunpack.c.l.b16 %v3879
        %v3959 = vunpack.c.l.b16 %v3880
        %v3960 = vunpack.c.l.b16 %v3881
        %v3961 = vunpack.c.l.b16 %v3882
        %v3962 = vpack.c.b16 %v3932, %v3931
        %v3963 = vpack.c.b16 %v3934, %v3933
        %v3964 = vpack.c.b16 %v3936, %v3935
        %v3965 = vpack.c.b16 %v3938, %v3937
        %v3966 = vpack.c.b16 %v3940, %v3939
        %v3967 = vpack.c.b16 %v3942, %v3941
        %v3968 = vpack.c.b16 %v3944, %v3943
        %v3969 = vpack.c.b16 %v3946, %v3945
        %v3970 = vpack.c.b16 %v3948, %v3947
        %v3971 = vpack.c.b16 %v3950, %v3949
        %v3972 = vpack.c.b16 %v3952, %v3951
        %v3973 = vpack.c.b16 %v3954, %v3953
        %v3974 = vpack.c.b16 %v3956, %v3955
        %v3975 = vpack.c.b16 %v3958, %v3957
        %v3976 = vpack.c.b16 %v3960, %v3959
        %v3977 = vpack.c.b16 %v3961, %v3961
        %vm3978 = vsmask.f32 7424
        %v3980 = vshrl.u32 %v3962, 16
        %v3982 = vshll.u32 %v3962, 16
        %v3984 = vrot.slane %v3982, 1
        %v3985 = vor.u32 %v3980, %v3984
        %v3987 = vshll.u32 %v3963, 16
        %v3989 = vrot.slane %v3987, 1
        %v3990 = vsel %vm3978, %v3985, %v3989
        %v3991 = vshrl.u32 %v3963, 16
        %v3993 = vor.u32 %v3991, %v3989
        %v3995 = vshll.u32 %v3964, 16
        %v3997 = vrot.slane %v3995, 1
        %v3998 = vsel %vm3978, %v3993, %v3997
        %v3999 = vshrl.u32 %v3964, 16
        %v4001 = vor.u32 %v3999, %v3997
        %v4003 = vshll.u32 %v3965, 16
        %v4005 = vrot.slane %v4003, 1
        %v4006 = vsel %vm3978, %v4001, %v4005
        %v4007 = vshrl.u32 %v3965, 16
        %v4009 = vor.u32 %v4007, %v4005
        %v4011 = vshll.u32 %v3966, 16
        %v4013 = vrot.slane %v4011, 1
        %v4014 = vsel %vm3978, %v4009, %v4013
        %v4015 = vshrl.u32 %v3966, 16
        %v4017 = vor.u32 %v4015, %v4013
        %v4019 = vshll.u32 %v3967, 16
        %v4021 = vrot.slane %v4019, 1
        %v4022 = vsel %vm3978, %v4017, %v4021
        %v4023 = vshrl.u32 %v3967, 16
        %v4025 = vor.u32 %v4023, %v4021
        %v4027 = vshll.u32 %v3968, 16
        %v4029 = vrot.slane %v4027, 1
        %v4030 = vsel %vm3978, %v4025, %v4029
        %v4031 = vshrl.u32 %v3968, 16
        %v4033 = vor.u32 %v4031, %v4029
        %v4035 = vshll.u32 %v3969, 16
        %v4037 = vrot.slane %v4035, 1
        %v4038 = vsel %vm3978, %v4033, %v4037
        %v4039 = vshrl.u32 %v3969, 16
        %v4041 = vor.u32 %v4039, %v4037
        %v4043 = vshll.u32 %v3970, 16
        %v4045 = vrot.slane %v4043, 1
        %v4046 = vsel %vm3978, %v4041, %v4045
        %v4047 = vshrl.u32 %v3970, 16
        %v4049 = vor.u32 %v4047, %v4045
        %v4051 = vshll.u32 %v3971, 16
        %v4053 = vrot.slane %v4051, 1
        %v4054 = vsel %vm3978, %v4049, %v4053
        %v4055 = vshrl.u32 %v3971, 16
        %v4057 = vor.u32 %v4055, %v4053
        %v4059 = vshll.u32 %v3972, 16
        %v4061 = vrot.slane %v4059, 1
        %v4062 = vsel %vm3978, %v4057, %v4061
        %v4063 = vshrl.u32 %v3972, 16
        %v4065 = vor.u32 %v4063, %v4061
        %v4067 = vshll.u32 %v3973, 16
        %v4069 = vrot.slane %v4067, 1
        %v4070 = vsel %vm3978, %v4065, %v4069
        %v4071 = vshrl.u32 %v3973, 16
        %v4073 = vor.u32 %v4071, %v4069
        %v4075 = vshll.u32 %v3974, 16
        %v4077 = vrot.slane %v4075, 1
        %v4078 = vsel %vm3978, %v4073, %v4077
        %v4079 = vshrl.u32 %v3974, 16
        %v4081 = vor.u32 %v4079, %v4077
        %v4083 = vshll.u32 %v3975, 16
        %v4085 = vrot.slane %v4083, 1
        %v4086 = vsel %vm3978, %v4081, %v4085
        %v4087 = vshrl.u32 %v3975, 16
        %v4089 = vor.u32 %v4087, %v4085
        %v4091 = vshll.u32 %v3976, 16
        %v4093 = vrot.slane %v4091, 1
        %v4094 = vsel %vm3978, %v4089, %v4093
        %v4095 = vshrl.u32 %v3976, 16
        %v4097 = vor.u32 %v4095, %v4093
        %v4099 = vshll.u32 %v3977, 16
        %v4101 = vrot.slane %v4099, 1
        %v4102 = vsel %vm3978, %v4097, %v4101
        %v4134 = vunpack.c.l.b16 %v3884
        %v4135 = vunpack.c.l.b16 %v3885
        %v4136 = vunpack.c.l.b16 %v3886
        %v4137 = vunpack.c.l.b16 %v3887
        %v4138 = vunpack.c.l.b16 %v3888
        %v4139 = vunpack.c.l.b16 %v3889
        %v4140 = vunpack.c.l.b16 %v3890
        %v4141 = vunpack.c.l.b16 %v3891
        %v4142 = vunpack.c.l.b16 %v3892
        %v4143 = vunpack.c.l.b16 %v3893
        %v4144 = vunpack.c.l.b16 %v3894
        %v4145 = vunpack.c.l.b16 %v3895
        %v4146 = vunpack.c.l.b16 %v3896
        %v4147 = vunpack.c.l.b16 %v3897
        %v4148 = vunpack.c.l.b16 %v3898
        %v4149 = vunpack.c.l.b16 %v3899
        %v4150 = vpack.c.b16 %v4135, %v4134
        %v4151 = vpack.c.b16 %v4137, %v4136
        %v4152 = vpack.c.b16 %v4139, %v4138
        %v4153 = vpack.c.b16 %v4141, %v4140
        %v4154 = vpack.c.b16 %v4143, %v4142
        %v4155 = vpack.c.b16 %v4145, %v4144
        %v4156 = vpack.c.b16 %v4147, %v4146
        %v4157 = vpack.c.b16 %v4149, %v4148
        %4166 = vmatprep.subr.bf16.mxu0 0
        %4167 = vmatpush1.bf16.msra.mxu0 %v4157
        %4168 = vmatprep.subr.bf16.mxu0 0
        %4169 = vmatpush1.bf16.msra.mxu0 %v4156
        %4170 = vmatprep.subr.bf16.mxu0 0
        %4171 = vmatpush1.bf16.msra.mxu0 %v4155
        %4172 = vmatprep.subr.bf16.mxu0 0
        %4173 = vmatpush1.bf16.msra.mxu0 %v4154
        %4174 = vmatprep.subr.bf16.mxu0 0
        %4175 = vmatpush1.bf16.msra.mxu0 %v4153
        %4176 = vmatprep.subr.bf16.mxu0 0
        %4177 = vmatpush1.bf16.msra.mxu0 %v4152
        %4178 = vmatprep.subr.bf16.mxu0 0
        %4179 = vmatpush1.bf16.msra.mxu0 %v4151
        %4180 = vmatprep.subr.bf16.mxu0 0
        %4181 = vmatpush1.bf16.msra.mxu0 %v4150
        %4182 = vmatprep.subr.bf16.mxu0 0
        %4183 = vmatpush2.bf16.msra.mxu0 0
        %4184 = vmatprep.subr.bf16.mxu0 0
        %4185 = vmatpush2.bf16.msra.mxu0 0
        %4186 = vmatprep.subr.bf16.mxu0 0
        %4187 = vmatpush2.bf16.msra.mxu0 0
        %4188 = vmatprep.subr.bf16.mxu0 0
        %4189 = vmatpush2.bf16.msra.mxu0 0
        %4190 = vmatprep.subr.bf16.mxu0 0
        %4191 = vmatpush2.bf16.msra.mxu0 0
        %4192 = vmatprep.subr.bf16.mxu0 0
        %4193 = vmatpush2.bf16.msra.mxu0 0
        %4194 = vmatprep.subr.bf16.mxu0 0
        %4195 = vmatpush2.bf16.msra.mxu0 0
        %4196 = vmatprep.subr.bf16.mxu0 0
        %4197 = vmatpush2.bf16.msra.mxu0 0
        %4198 = vmatprep.mubr.bf16.mxu0 0
        %4199 = vmatmul.mubr.bf16.gmra.mxu0 %v3990
        %v4200 = vpop.f32.mrf.mxu0
        %v4201 = vadd.f32 0.0, %v4200
        %v4202 = vpop.f32.mrf.mxu0
        %v4203 = vpop.f32.mrf.mxu0
        %v4204 = vadd.f32 0.0, %v4203
        %v4205 = vpop.f32.mrf.mxu0
        %4206 = vmatprep.mubr.bf16.mxu0 0
        %4207 = vmatmul.mubr.bf16.gmra.mxu0 %v3998
        %v4208 = vpop.f32.mrf.mxu0
        %v4209 = vadd.f32 0.0, %v4208
        %v4210 = vpop.f32.mrf.mxu0
        %v4211 = vpop.f32.mrf.mxu0
        %v4212 = vadd.f32 0.0, %v4211
        %v4213 = vpop.f32.mrf.mxu0
        %4214 = vmatprep.mubr.bf16.mxu0 0
        %4215 = vmatmul.mubr.bf16.gmra.mxu0 %v4006
        %v4216 = vpop.f32.mrf.mxu0
        %v4217 = vadd.f32 0.0, %v4216
        %v4218 = vpop.f32.mrf.mxu0
        %v4219 = vpop.f32.mrf.mxu0
        %v4220 = vadd.f32 0.0, %v4219
        %v4221 = vpop.f32.mrf.mxu0
        %4222 = vmatprep.mubr.bf16.mxu0 0
        %4223 = vmatmul.mubr.bf16.gmra.mxu0 %v4014
        %v4224 = vpop.f32.mrf.mxu0
        %v4225 = vadd.f32 0.0, %v4224
        %v4226 = vpop.f32.mrf.mxu0
        %v4227 = vpop.f32.mrf.mxu0
        %v4228 = vadd.f32 0.0, %v4227
        %v4229 = vpop.f32.mrf.mxu0
        %4230 = vmatprep.mubr.bf16.mxu0 0
        %4231 = vmatmul.mubr.bf16.gmra.mxu0 %v4022
        %v4232 = vpop.f32.mrf.mxu0
        %v4233 = vadd.f32 0.0, %v4232
        %v4234 = vpop.f32.mrf.mxu0
        %v4235 = vpop.f32.mrf.mxu0
        %v4236 = vadd.f32 0.0, %v4235
        %v4237 = vpop.f32.mrf.mxu0
        %4238 = vmatprep.mubr.bf16.mxu0 0
        %4239 = vmatmul.mubr.bf16.gmra.mxu0 %v4030
        %v4240 = vpop.f32.mrf.mxu0
        %v4241 = vadd.f32 0.0, %v4240
        %v4242 = vpop.f32.mrf.mxu0
        %v4243 = vpop.f32.mrf.mxu0
        %v4244 = vadd.f32 0.0, %v4243
        %v4245 = vpop.f32.mrf.mxu0
        %4246 = vmatprep.mubr.bf16.mxu0 0
        %4247 = vmatmul.mubr.bf16.gmra.mxu0 %v4038
        %v4248 = vpop.f32.mrf.mxu0
        %v4249 = vadd.f32 0.0, %v4248
        %v4250 = vpop.f32.mrf.mxu0
        %v4251 = vpop.f32.mrf.mxu0
        %v4252 = vadd.f32 0.0, %v4251
        %v4253 = vpop.f32.mrf.mxu0
        %4254 = vmatprep.mubr.bf16.mxu0 0
        %4255 = vmatmul.mubr.bf16.gmra.mxu0 %v4046
        %v4256 = vpop.f32.mrf.mxu0
        %v4257 = vadd.f32 0.0, %v4256
        %v4258 = vpop.f32.mrf.mxu0
        %v4259 = vpop.f32.mrf.mxu0
        %v4260 = vadd.f32 0.0, %v4259
        %v4261 = vpop.f32.mrf.mxu0
        %4262 = vmatprep.mubr.bf16.mxu0 0
        %4263 = vmatmul.mubr.bf16.gmra.mxu0 %v4054
        %v4264 = vpop.f32.mrf.mxu0
        %v4265 = vadd.f32 0.0, %v4264
        %v4266 = vpop.f32.mrf.mxu0
        %v4267 = vpop.f32.mrf.mxu0
        %v4268 = vadd.f32 0.0, %v4267
        %v4269 = vpop.f32.mrf.mxu0
        %4270 = vmatprep.mubr.bf16.mxu0 0
        %4271 = vmatmul.mubr.bf16.gmra.mxu0 %v4062
        %v4272 = vpop.f32.mrf.mxu0
        %v4273 = vadd.f32 0.0, %v4272
        %v4274 = vpop.f32.mrf.mxu0
        %v4275 = vpop.f32.mrf.mxu0
        %v4276 = vadd.f32 0.0, %v4275
        %v4277 = vpop.f32.mrf.mxu0
        %4278 = vmatprep.mubr.bf16.mxu0 0
        %4279 = vmatmul.mubr.bf16.gmra.mxu0 %v4070
        %v4280 = vpop.f32.mrf.mxu0
        %v4281 = vadd.f32 0.0, %v4280
        %v4282 = vpop.f32.mrf.mxu0
        %v4283 = vpop.f32.mrf.mxu0
        %v4284 = vadd.f32 0.0, %v4283
        %v4285 = vpop.f32.mrf.mxu0
        %4286 = vmatprep.mubr.bf16.mxu0 0
        %4287 = vmatmul.mubr.bf16.gmra.mxu0 %v4078
        %v4288 = vpop.f32.mrf.mxu0
        %v4289 = vadd.f32 0.0, %v4288
        %v4290 = vpop.f32.mrf.mxu0
        %v4291 = vpop.f32.mrf.mxu0
        %v4292 = vadd.f32 0.0, %v4291
        %v4293 = vpop.f32.mrf.mxu0
        %4294 = vmatprep.mubr.bf16.mxu0 0
        %4295 = vmatmul.mubr.bf16.gmra.mxu0 %v4086
        %v4296 = vpop.f32.mrf.mxu0
        %v4297 = vadd.f32 0.0, %v4296
        %v4298 = vpop.f32.mrf.mxu0
        %v4299 = vpop.f32.mrf.mxu0
        %v4300 = vadd.f32 0.0, %v4299
        %v4301 = vpop.f32.mrf.mxu0
        %4302 = vmatprep.mubr.bf16.mxu0 0
        %4303 = vmatmul.mubr.bf16.gmra.mxu0 %v4094
        %v4304 = vpop.f32.mrf.mxu0
        %v4305 = vadd.f32 0.0, %v4304
        %v4306 = vpop.f32.mrf.mxu0
        %v4307 = vpop.f32.mrf.mxu0
        %v4308 = vadd.f32 0.0, %v4307
        %v4309 = vpop.f32.mrf.mxu0
        %4310 = vmatprep.mubr.bf16.mxu0 0
        %4311 = vmatmul.mubr.bf16.gmra.mxu0 %v4102
        %v4312 = vpop.f32.mrf.mxu0
        %v4313 = vadd.f32 0.0, %v4312
        %v4314 = vpop.f32.mrf.mxu0
        %v4315 = vpop.f32.mrf.mxu0
        %v4316 = vadd.f32 0.0, %v4315
        %v4317 = vpop.f32.mrf.mxu0
        %4318 = vdwg.mxu0
        %v4319 = vadd.f32 %v3734, %v4201
        %v4320 = vadd.f32 %v3737, %v4204
        %v4321 = vadd.f32 %v3742, %v4209
        %v4322 = vadd.f32 %v3745, %v4212
        %v4323 = vadd.f32 %v3750, %v4217
        %v4324 = vadd.f32 %v3753, %v4220
        %v4325 = vadd.f32 %v3758, %v4225
        %v4326 = vadd.f32 %v3761, %v4228
        %v4327 = vadd.f32 %v3766, %v4233
        %v4328 = vadd.f32 %v3769, %v4236
        %v4329 = vadd.f32 %v3774, %v4241
        %v4330 = vadd.f32 %v3777, %v4244
        %v4331 = vadd.f32 %v3782, %v4249
        %v4332 = vadd.f32 %v3785, %v4252
        %v4333 = vadd.f32 %v3790, %v4257
        %v4334 = vadd.f32 %v3793, %v4260
        %v4335 = vadd.f32 %v3798, %v4265
        %v4336 = vadd.f32 %v3801, %v4268
        %v4337 = vadd.f32 %v3806, %v4273
        %v4338 = vadd.f32 %v3809, %v4276
        %v4339 = vadd.f32 %v3814, %v4281
        %v4340 = vadd.f32 %v3817, %v4284
        %v4341 = vadd.f32 %v3822, %v4289
        %v4342 = vadd.f32 %v3825, %v4292
        %v4343 = vadd.f32 %v3830, %v4297
        %v4344 = vadd.f32 %v3833, %v4300
        %v4345 = vadd.f32 %v3838, %v4305
        %v4346 = vadd.f32 %v3841, %v4308
        %v4347 = vadd.f32 %v3846, %v4313
        %v4348 = vadd.f32 %v3849, %v4316
        %v4349 = vld [vmem:[#allocation5 + $0x14] sm:$0x8]
        %v4350 = vld [vmem:[#allocation5 + $0x18] sm:$0xf]
        %v4351 = vld [vmem:[#allocation5 + $0x1c] sm:$0xf]
        %v4352 = vld [vmem:[#allocation5 + $0x20] sm:$0xf]
        %v4353 = vld [vmem:[#allocation5 + $0x24] sm:$0xf]
        %v4354 = vld [vmem:[#allocation5 + $0x28] sm:$0xf]
        %v4355 = vld [vmem:[#allocation5 + $0x2c] sm:$0xf]
        %v4356 = vld [vmem:[#allocation5 + $0x30] sm:$0xf]
        %v4357 = vld [vmem:[#allocation5 + $0x34] sm:$0xf]
        %v4358 = vld [vmem:[#allocation5 + $0x38] sm:$0xf]
        %v4359 = vld [vmem:[#allocation5 + $0x3c] sm:$0xf]
        %v4360 = vld [vmem:[#allocation5 + $0x40] sm:$0xf]
        %v4361 = vld [vmem:[#allocation5 + $0x44] sm:$0xf]
        %v4362 = vld [vmem:[#allocation5 + $0x48] sm:$0xf]
        %v4363 = vld [vmem:[#allocation5 + $0x4c] sm:$0xf]
        %v4364 = vld [vmem:[#allocation5 + $0x50] sm:$0xf]
        %v4365 = vld [vmem:[#allocation5 + $0x54] sm:$0xf]
        %v4366 = vld [vmem:[#allocation5 + $0x58] sm:$0xf]
        %v4367 = vld [vmem:[#allocation5 + $0x5c] sm:$0xf]
        %v4368 = vld [vmem:[#allocation5 + $0x60] sm:$0xf]
        %v4369 = vld [vmem:[#allocation5 + $0x64] sm:$0xf]
        %v4370 = vld [vmem:[#allocation5 + $0x68] sm:$0xf]
        %v4371 = vld [vmem:[#allocation5 + $0x6c] sm:$0xf]
        %v4372 = vld [vmem:[#allocation5 + $0x70] sm:$0xf]
        %v4373 = vld [vmem:[#allocation5 + $0x74] sm:$0xf]
        %v4374 = vld [vmem:[#allocation5 + $0x78] sm:$0xf]
        %v4375 = vld [vmem:[#allocation5 + $0x7c] sm:$0xf]
        %v4376 = vld [vmem:[#allocation5 + $0x80] sm:$0xf]
        %v4377 = vld [vmem:[#allocation5 + $0x84] sm:$0xf]
        %v4378 = vld [vmem:[#allocation5 + $0x88] sm:$0xf]
        %v4379 = vld [vmem:[#allocation5 + $0x8c] sm:$0xf]
        %s4380 = scalar_lea.vmem [#allocation14], 192
        %v4381 = vld [vmem:[%s4380] sm:$0xf]
        %v4382 = vld [vmem:[%s4380 + $0x4] sm:$0xf]
        %v4383 = vld [vmem:[%s4380 + $0x8] sm:$0xf]
        %v4384 = vld [vmem:[%s4380 + $0xc] sm:$0xf]
        %v4385 = vld [vmem:[%s4380 + $0x10] sm:$0xf]
        %v4386 = vld [vmem:[%s4380 + $0x14] sm:$0xf]
        %v4387 = vld [vmem:[%s4380 + $0x18] sm:$0xf]
        %v4388 = vld [vmem:[%s4380 + $0x1c] sm:$0xf]
        %v4389 = vld [vmem:[%s4380 + $0x20] sm:$0xf]
        %v4390 = vld [vmem:[%s4380 + $0x24] sm:$0xf]
        %v4391 = vld [vmem:[%s4380 + $0x28] sm:$0xf]
        %v4392 = vld [vmem:[%s4380 + $0x2c] sm:$0xf]
        %v4393 = vld [vmem:[%s4380 + $0x30] sm:$0xf]
        %v4394 = vld [vmem:[%s4380 + $0x34] sm:$0xf]
        %v4395 = vld [vmem:[%s4380 + $0x38] sm:$0xf]
        %v4396 = vld [vmem:[%s4380 + $0x3c] sm:$0xf]
        %v4428 = vunpack.c.l.b16 %v4349
        %v4429 = vunpack.c.l.b16 %v4350
        %v4430 = vunpack.c.l.b16 %v4351
        %v4431 = vunpack.c.l.b16 %v4352
        %v4432 = vunpack.c.l.b16 %v4353
        %v4433 = vunpack.c.l.b16 %v4354
        %v4434 = vunpack.c.l.b16 %v4355
        %v4435 = vunpack.c.l.b16 %v4356
        %v4436 = vunpack.c.l.b16 %v4357
        %v4437 = vunpack.c.l.b16 %v4358
        %v4438 = vunpack.c.l.b16 %v4359
        %v4439 = vunpack.c.l.b16 %v4360
        %v4440 = vunpack.c.l.b16 %v4361
        %v4441 = vunpack.c.l.b16 %v4362
        %v4442 = vunpack.c.l.b16 %v4363
        %v4443 = vunpack.c.l.b16 %v4364
        %v4444 = vunpack.c.l.b16 %v4365
        %v4445 = vunpack.c.l.b16 %v4366
        %v4446 = vunpack.c.l.b16 %v4367
        %v4447 = vunpack.c.l.b16 %v4368
        %v4448 = vunpack.c.l.b16 %v4369
        %v4449 = vunpack.c.l.b16 %v4370
        %v4450 = vunpack.c.l.b16 %v4371
        %v4451 = vunpack.c.l.b16 %v4372
        %v4452 = vunpack.c.l.b16 %v4373
        %v4453 = vunpack.c.l.b16 %v4374
        %v4454 = vunpack.c.l.b16 %v4375
        %v4455 = vunpack.c.l.b16 %v4376
        %v4456 = vunpack.c.l.b16 %v4377
        %v4457 = vunpack.c.l.b16 %v4378
        %v4458 = vunpack.c.l.b16 %v4379
        %v4459 = vpack.c.b16 %v4429, %v4428
        %v4460 = vpack.c.b16 %v4431, %v4430
        %v4461 = vpack.c.b16 %v4433, %v4432
        %v4462 = vpack.c.b16 %v4435, %v4434
        %v4463 = vpack.c.b16 %v4437, %v4436
        %v4464 = vpack.c.b16 %v4439, %v4438
        %v4465 = vpack.c.b16 %v4441, %v4440
        %v4466 = vpack.c.b16 %v4443, %v4442
        %v4467 = vpack.c.b16 %v4445, %v4444
        %v4468 = vpack.c.b16 %v4447, %v4446
        %v4469 = vpack.c.b16 %v4449, %v4448
        %v4470 = vpack.c.b16 %v4451, %v4450
        %v4471 = vpack.c.b16 %v4453, %v4452
        %v4472 = vpack.c.b16 %v4455, %v4454
        %v4473 = vpack.c.b16 %v4457, %v4456
        %v4474 = vpack.c.b16 %v4458, %v4458
        %v4476 = vshrl.u32 %v4459, 16
        %v4478 = vrot.slane %v4476, 3
        %v4479 = vshll.u32 %v4459, 16
        %v4481 = vrot.slane %v4479, 4
        %v4482 = vor.u32 %v4478, %v4481
        %v4484 = vshrl.u32 %v4460, 16
        %v4486 = vrot.slane %v4484, 3
        %v4487 = vshll.u32 %v4460, 16
        %v4489 = vrot.slane %v4487, 4
        %v4490 = vor.u32 %v4486, %v4489
        %v4491 = vsel %vm3492, %v4482, %v4490
        %v4493 = vshrl.u32 %v4461, 16
        %v4495 = vrot.slane %v4493, 3
        %v4496 = vshll.u32 %v4461, 16
        %v4498 = vrot.slane %v4496, 4
        %v4499 = vor.u32 %v4495, %v4498
        %v4500 = vsel %vm3492, %v4490, %v4499
        %v4502 = vshrl.u32 %v4462, 16
        %v4504 = vrot.slane %v4502, 3
        %v4505 = vshll.u32 %v4462, 16
        %v4507 = vrot.slane %v4505, 4
        %v4508 = vor.u32 %v4504, %v4507
        %v4509 = vsel %vm3492, %v4499, %v4508
        %v4511 = vshrl.u32 %v4463, 16
        %v4513 = vrot.slane %v4511, 3
        %v4514 = vshll.u32 %v4463, 16
        %v4516 = vrot.slane %v4514, 4
        %v4517 = vor.u32 %v4513, %v4516
        %v4518 = vsel %vm3492, %v4508, %v4517
        %v4520 = vshrl.u32 %v4464, 16
        %v4522 = vrot.slane %v4520, 3
        %v4523 = vshll.u32 %v4464, 16
        %v4525 = vrot.slane %v4523, 4
        %v4526 = vor.u32 %v4522, %v4525
        %v4527 = vsel %vm3492, %v4517, %v4526
        %v4529 = vshrl.u32 %v4465, 16
        %v4531 = vrot.slane %v4529, 3
        %v4532 = vshll.u32 %v4465, 16
        %v4534 = vrot.slane %v4532, 4
        %v4535 = vor.u32 %v4531, %v4534
        %v4536 = vsel %vm3492, %v4526, %v4535
        %v4538 = vshrl.u32 %v4466, 16
        %v4540 = vrot.slane %v4538, 3
        %v4541 = vshll.u32 %v4466, 16
        %v4543 = vrot.slane %v4541, 4
        %v4544 = vor.u32 %v4540, %v4543
        %v4545 = vsel %vm3492, %v4535, %v4544
        %v4547 = vshrl.u32 %v4467, 16
        %v4549 = vrot.slane %v4547, 3
        %v4550 = vshll.u32 %v4467, 16
        %v4552 = vrot.slane %v4550, 4
        %v4553 = vor.u32 %v4549, %v4552
        %v4554 = vsel %vm3492, %v4544, %v4553
        %v4556 = vshrl.u32 %v4468, 16
        %v4558 = vrot.slane %v4556, 3
        %v4559 = vshll.u32 %v4468, 16
        %v4561 = vrot.slane %v4559, 4
        %v4562 = vor.u32 %v4558, %v4561
        %v4563 = vsel %vm3492, %v4553, %v4562
        %v4565 = vshrl.u32 %v4469, 16
        %v4567 = vrot.slane %v4565, 3
        %v4568 = vshll.u32 %v4469, 16
        %v4570 = vrot.slane %v4568, 4
        %v4571 = vor.u32 %v4567, %v4570
        %v4572 = vsel %vm3492, %v4562, %v4571
        %v4574 = vshrl.u32 %v4470, 16
        %v4576 = vrot.slane %v4574, 3
        %v4577 = vshll.u32 %v4470, 16
        %v4579 = vrot.slane %v4577, 4
        %v4580 = vor.u32 %v4576, %v4579
        %v4581 = vsel %vm3492, %v4571, %v4580
        %v4583 = vshrl.u32 %v4471, 16
        %v4585 = vrot.slane %v4583, 3
        %v4586 = vshll.u32 %v4471, 16
        %v4588 = vrot.slane %v4586, 4
        %v4589 = vor.u32 %v4585, %v4588
        %v4590 = vsel %vm3492, %v4580, %v4589
        %v4592 = vshrl.u32 %v4472, 16
        %v4594 = vrot.slane %v4592, 3
        %v4595 = vshll.u32 %v4472, 16
        %v4597 = vrot.slane %v4595, 4
        %v4598 = vor.u32 %v4594, %v4597
        %v4599 = vsel %vm3492, %v4589, %v4598
        %v4601 = vshrl.u32 %v4473, 16
        %v4603 = vrot.slane %v4601, 3
        %v4604 = vshll.u32 %v4473, 16
        %v4606 = vrot.slane %v4604, 4
        %v4607 = vor.u32 %v4603, %v4606
        %v4608 = vsel %vm3492, %v4598, %v4607
        %v4610 = vshrl.u32 %v4474, 16
        %v4612 = vrot.slane %v4610, 3
        %v4613 = vshll.u32 %v4474, 16
        %v4615 = vrot.slane %v4613, 4
        %v4616 = vor.u32 %v4612, %v4615
        %v4617 = vsel %vm3492, %v4607, %v4616
        %v4649 = vunpack.c.l.b16 %v4381
        %v4650 = vunpack.c.l.b16 %v4382
        %v4651 = vunpack.c.l.b16 %v4383
        %v4652 = vunpack.c.l.b16 %v4384
        %v4653 = vunpack.c.l.b16 %v4385
        %v4654 = vunpack.c.l.b16 %v4386
        %v4655 = vunpack.c.l.b16 %v4387
        %v4656 = vunpack.c.l.b16 %v4388
        %v4657 = vunpack.c.l.b16 %v4389
        %v4658 = vunpack.c.l.b16 %v4390
        %v4659 = vunpack.c.l.b16 %v4391
        %v4660 = vunpack.c.l.b16 %v4392
        %v4661 = vunpack.c.l.b16 %v4393
        %v4662 = vunpack.c.l.b16 %v4394
        %v4663 = vunpack.c.l.b16 %v4395
        %v4664 = vunpack.c.l.b16 %v4396
        %v4665 = vpack.c.b16 %v4650, %v4649
        %v4666 = vpack.c.b16 %v4652, %v4651
        %v4667 = vpack.c.b16 %v4654, %v4653
        %v4668 = vpack.c.b16 %v4656, %v4655
        %v4669 = vpack.c.b16 %v4658, %v4657
        %v4670 = vpack.c.b16 %v4660, %v4659
        %v4671 = vpack.c.b16 %v4662, %v4661
        %v4672 = vpack.c.b16 %v4664, %v4663
        %4681 = vmatprep.subr.bf16.mxu0 0
        %4682 = vmatpush1.bf16.msra.mxu0 %v4672
        %4683 = vmatprep.subr.bf16.mxu0 0
        %4684 = vmatpush1.bf16.msra.mxu0 %v4671
        %4685 = vmatprep.subr.bf16.mxu0 0
        %4686 = vmatpush1.bf16.msra.mxu0 %v4670
        %4687 = vmatprep.subr.bf16.mxu0 0
        %4688 = vmatpush1.bf16.msra.mxu0 %v4669
        %4689 = vmatprep.subr.bf16.mxu0 0
        %4690 = vmatpush1.bf16.msra.mxu0 %v4668
        %4691 = vmatprep.subr.bf16.mxu0 0
        %4692 = vmatpush1.bf16.msra.mxu0 %v4667
        %4693 = vmatprep.subr.bf16.mxu0 0
        %4694 = vmatpush1.bf16.msra.mxu0 %v4666
        %4695 = vmatprep.subr.bf16.mxu0 0
        %4696 = vmatpush1.bf16.msra.mxu0 %v4665
        %4697 = vmatprep.subr.bf16.mxu0 0
        %4698 = vmatpush2.bf16.msra.mxu0 0
        %4699 = vmatprep.subr.bf16.mxu0 0
        %4700 = vmatpush2.bf16.msra.mxu0 0
        %4701 = vmatprep.subr.bf16.mxu0 0
        %4702 = vmatpush2.bf16.msra.mxu0 0
        %4703 = vmatprep.subr.bf16.mxu0 0
        %4704 = vmatpush2.bf16.msra.mxu0 0
        %4705 = vmatprep.subr.bf16.mxu0 0
        %4706 = vmatpush2.bf16.msra.mxu0 0
        %4707 = vmatprep.subr.bf16.mxu0 0
        %4708 = vmatpush2.bf16.msra.mxu0 0
        %4709 = vmatprep.subr.bf16.mxu0 0
        %4710 = vmatpush2.bf16.msra.mxu0 0
        %4711 = vmatprep.subr.bf16.mxu0 0
        %4712 = vmatpush2.bf16.msra.mxu0 0
        %4713 = vmatprep.mubr.bf16.mxu0 0
        %4714 = vmatmul.mubr.bf16.gmra.mxu0 %v4491
        %v4715 = vpop.f32.mrf.mxu0
        %v4716 = vadd.f32 0.0, %v4715
        %v4717 = vpop.f32.mrf.mxu0
        %v4718 = vpop.f32.mrf.mxu0
        %v4719 = vadd.f32 0.0, %v4718
        %v4720 = vpop.f32.mrf.mxu0
        %4721 = vmatprep.mubr.bf16.mxu0 0
        %4722 = vmatmul.mubr.bf16.gmra.mxu0 %v4500
        %v4723 = vpop.f32.mrf.mxu0
        %v4724 = vadd.f32 0.0, %v4723
        %v4725 = vpop.f32.mrf.mxu0
        %v4726 = vpop.f32.mrf.mxu0
        %v4727 = vadd.f32 0.0, %v4726
        %v4728 = vpop.f32.mrf.mxu0
        %4729 = vmatprep.mubr.bf16.mxu0 0
        %4730 = vmatmul.mubr.bf16.gmra.mxu0 %v4509
        %v4731 = vpop.f32.mrf.mxu0
        %v4732 = vadd.f32 0.0, %v4731
        %v4733 = vpop.f32.mrf.mxu0
        %v4734 = vpop.f32.mrf.mxu0
        %v4735 = vadd.f32 0.0, %v4734
        %v4736 = vpop.f32.mrf.mxu0
        %4737 = vmatprep.mubr.bf16.mxu0 0
        %4738 = vmatmul.mubr.bf16.gmra.mxu0 %v4518
        %v4739 = vpop.f32.mrf.mxu0
        %v4740 = vadd.f32 0.0, %v4739
        %v4741 = vpop.f32.mrf.mxu0
        %v4742 = vpop.f32.mrf.mxu0
        %v4743 = vadd.f32 0.0, %v4742
        %v4744 = vpop.f32.mrf.mxu0
        %4745 = vmatprep.mubr.bf16.mxu0 0
        %4746 = vmatmul.mubr.bf16.gmra.mxu0 %v4527
        %v4747 = vpop.f32.mrf.mxu0
        %v4748 = vadd.f32 0.0, %v4747
        %v4749 = vpop.f32.mrf.mxu0
        %v4750 = vpop.f32.mrf.mxu0
        %v4751 = vadd.f32 0.0, %v4750
        %v4752 = vpop.f32.mrf.mxu0
        %4753 = vmatprep.mubr.bf16.mxu0 0
        %4754 = vmatmul.mubr.bf16.gmra.mxu0 %v4536
        %v4755 = vpop.f32.mrf.mxu0
        %v4756 = vadd.f32 0.0, %v4755
        %v4757 = vpop.f32.mrf.mxu0
        %v4758 = vpop.f32.mrf.mxu0
        %v4759 = vadd.f32 0.0, %v4758
        %v4760 = vpop.f32.mrf.mxu0
        %4761 = vmatprep.mubr.bf16.mxu0 0
        %4762 = vmatmul.mubr.bf16.gmra.mxu0 %v4545
        %v4763 = vpop.f32.mrf.mxu0
        %v4764 = vadd.f32 0.0, %v4763
        %v4765 = vpop.f32.mrf.mxu0
        %v4766 = vpop.f32.mrf.mxu0
        %v4767 = vadd.f32 0.0, %v4766
        %v4768 = vpop.f32.mrf.mxu0
        %4769 = vmatprep.mubr.bf16.mxu0 0
        %4770 = vmatmul.mubr.bf16.gmra.mxu0 %v4554
        %v4771 = vpop.f32.mrf.mxu0
        %v4772 = vadd.f32 0.0, %v4771
        %v4773 = vpop.f32.mrf.mxu0
        %v4774 = vpop.f32.mrf.mxu0
        %v4775 = vadd.f32 0.0, %v4774
        %v4776 = vpop.f32.mrf.mxu0
        %4777 = vmatprep.mubr.bf16.mxu0 0
        %4778 = vmatmul.mubr.bf16.gmra.mxu0 %v4563
        %v4779 = vpop.f32.mrf.mxu0
        %v4780 = vadd.f32 0.0, %v4779
        %v4781 = vpop.f32.mrf.mxu0
        %v4782 = vpop.f32.mrf.mxu0
        %v4783 = vadd.f32 0.0, %v4782
        %v4784 = vpop.f32.mrf.mxu0
        %4785 = vmatprep.mubr.bf16.mxu0 0
        %4786 = vmatmul.mubr.bf16.gmra.mxu0 %v4572
        %v4787 = vpop.f32.mrf.mxu0
        %v4788 = vadd.f32 0.0, %v4787
        %v4789 = vpop.f32.mrf.mxu0
        %v4790 = vpop.f32.mrf.mxu0
        %v4791 = vadd.f32 0.0, %v4790
        %v4792 = vpop.f32.mrf.mxu0
        %4793 = vmatprep.mubr.bf16.mxu0 0
        %4794 = vmatmul.mubr.bf16.gmra.mxu0 %v4581
        %v4795 = vpop.f32.mrf.mxu0
        %v4796 = vadd.f32 0.0, %v4795
        %v4797 = vpop.f32.mrf.mxu0
        %v4798 = vpop.f32.mrf.mxu0
        %v4799 = vadd.f32 0.0, %v4798
        %v4800 = vpop.f32.mrf.mxu0
        %4801 = vmatprep.mubr.bf16.mxu0 0
        %4802 = vmatmul.mubr.bf16.gmra.mxu0 %v4590
        %v4803 = vpop.f32.mrf.mxu0
        %v4804 = vadd.f32 0.0, %v4803
        %v4805 = vpop.f32.mrf.mxu0
        %v4806 = vpop.f32.mrf.mxu0
        %v4807 = vadd.f32 0.0, %v4806
        %v4808 = vpop.f32.mrf.mxu0
        %4809 = vmatprep.mubr.bf16.mxu0 0
        %4810 = vmatmul.mubr.bf16.gmra.mxu0 %v4599
        %v4811 = vpop.f32.mrf.mxu0
        %v4812 = vadd.f32 0.0, %v4811
        %v4813 = vpop.f32.mrf.mxu0
        %v4814 = vpop.f32.mrf.mxu0
        %v4815 = vadd.f32 0.0, %v4814
        %v4816 = vpop.f32.mrf.mxu0
        %4817 = vmatprep.mubr.bf16.mxu0 0
        %4818 = vmatmul.mubr.bf16.gmra.mxu0 %v4608
        %v4819 = vpop.f32.mrf.mxu0
        %v4820 = vadd.f32 0.0, %v4819
        %v4821 = vpop.f32.mrf.mxu0
        %v4822 = vpop.f32.mrf.mxu0
        %v4823 = vadd.f32 0.0, %v4822
        %v4824 = vpop.f32.mrf.mxu0
        %4825 = vmatprep.mubr.bf16.mxu0 0
        %4826 = vmatmul.mubr.bf16.gmra.mxu0 %v4617
        %v4827 = vpop.f32.mrf.mxu0
        %v4828 = vadd.f32 0.0, %v4827
        %v4829 = vpop.f32.mrf.mxu0
        %v4830 = vpop.f32.mrf.mxu0
        %v4831 = vadd.f32 0.0, %v4830
        %v4832 = vpop.f32.mrf.mxu0
        %4833 = vdwg.mxu0
        %v4834 = vadd.f32 %v4319, %v4716
        %v4835 = vadd.f32 %v4320, %v4719
        %v4836 = vadd.f32 %v4321, %v4724
        %v4837 = vadd.f32 %v4322, %v4727
        %v4838 = vadd.f32 %v4323, %v4732
        %v4839 = vadd.f32 %v4324, %v4735
        %v4840 = vadd.f32 %v4325, %v4740
        %v4841 = vadd.f32 %v4326, %v4743
        %v4842 = vadd.f32 %v4327, %v4748
        %v4843 = vadd.f32 %v4328, %v4751
        %v4844 = vadd.f32 %v4329, %v4756
        %v4845 = vadd.f32 %v4330, %v4759
        %v4846 = vadd.f32 %v4331, %v4764
        %v4847 = vadd.f32 %v4332, %v4767
        %v4848 = vadd.f32 %v4333, %v4772
        %v4849 = vadd.f32 %v4334, %v4775
        %v4850 = vadd.f32 %v4335, %v4780
        %v4851 = vadd.f32 %v4336, %v4783
        %v4852 = vadd.f32 %v4337, %v4788
        %v4853 = vadd.f32 %v4338, %v4791
        %v4854 = vadd.f32 %v4339, %v4796
        %v4855 = vadd.f32 %v4340, %v4799
        %v4856 = vadd.f32 %v4341, %v4804
        %v4857 = vadd.f32 %v4342, %v4807
        %v4858 = vadd.f32 %v4343, %v4812
        %v4859 = vadd.f32 %v4344, %v4815
        %v4860 = vadd.f32 %v4345, %v4820
        %v4861 = vadd.f32 %v4346, %v4823
        %v4862 = vadd.f32 %v4347, %v4828
        %v4863 = vadd.f32 %v4348, %v4831
        %s4864 = scalar_lea.vmem [#allocation14], 256
        %v4865 = vld [vmem:[%s4864] sm:$0xf]
        %v4866 = vld [vmem:[%s4864 + $0x4] sm:$0xf]
        %v4867 = vld [vmem:[%s4864 + $0x8] sm:$0xf]
        %v4868 = vld [vmem:[%s4864 + $0xc] sm:$0xf]
        %v4869 = vld [vmem:[%s4864 + $0x10] sm:$0xf]
        %v4870 = vld [vmem:[%s4864 + $0x14] sm:$0xf]
        %v4871 = vld [vmem:[%s4864 + $0x18] sm:$0xf]
        %v4872 = vld [vmem:[%s4864 + $0x1c] sm:$0xf]
        %v4873 = vld [vmem:[%s4864 + $0x20] sm:$0xf]
        %v4874 = vld [vmem:[%s4864 + $0x24] sm:$0xf]
        %v4875 = vld [vmem:[%s4864 + $0x28] sm:$0xf]
        %v4876 = vld [vmem:[%s4864 + $0x2c] sm:$0xf]
        %v4877 = vld [vmem:[%s4864 + $0x30] sm:$0xf]
        %v4878 = vld [vmem:[%s4864 + $0x34] sm:$0xf]
        %v4879 = vld [vmem:[%s4864 + $0x38] sm:$0xf]
        %v4880 = vld [vmem:[%s4864 + $0x3c] sm:$0xf]
        %v4881 = vpack.c.b16 %v4430, %v4429
        %v4882 = vpack.c.b16 %v4432, %v4431
        %v4883 = vpack.c.b16 %v4434, %v4433
        %v4884 = vpack.c.b16 %v4436, %v4435
        %v4885 = vpack.c.b16 %v4438, %v4437
        %v4886 = vpack.c.b16 %v4440, %v4439
        %v4887 = vpack.c.b16 %v4442, %v4441
        %v4888 = vpack.c.b16 %v4444, %v4443
        %v4889 = vpack.c.b16 %v4446, %v4445
        %v4890 = vpack.c.b16 %v4448, %v4447
        %v4891 = vpack.c.b16 %v4450, %v4449
        %v4892 = vpack.c.b16 %v4452, %v4451
        %v4893 = vpack.c.b16 %v4454, %v4453
        %v4894 = vpack.c.b16 %v4456, %v4455
        %v4895 = vpack.c.b16 %v4458, %v4457
        %v4927 = vunpack.c.l.b16 %v4865
        %v4928 = vunpack.c.l.b16 %v4866
        %v4929 = vunpack.c.l.b16 %v4867
        %v4930 = vunpack.c.l.b16 %v4868
        %v4931 = vunpack.c.l.b16 %v4869
        %v4932 = vunpack.c.l.b16 %v4870
        %v4933 = vunpack.c.l.b16 %v4871
        %v4934 = vunpack.c.l.b16 %v4872
        %v4935 = vunpack.c.l.b16 %v4873
        %v4936 = vunpack.c.l.b16 %v4874
        %v4937 = vunpack.c.l.b16 %v4875
        %v4938 = vunpack.c.l.b16 %v4876
        %v4939 = vunpack.c.l.b16 %v4877
        %v4940 = vunpack.c.l.b16 %v4878
        %v4941 = vunpack.c.l.b16 %v4879
        %v4942 = vunpack.c.l.b16 %v4880
        %v4943 = vpack.c.b16 %v4928, %v4927
        %v4944 = vpack.c.b16 %v4930, %v4929
        %v4945 = vpack.c.b16 %v4932, %v4931
        %v4946 = vpack.c.b16 %v4934, %v4933
        %v4947 = vpack.c.b16 %v4936, %v4935
        %v4948 = vpack.c.b16 %v4938, %v4937
        %v4949 = vpack.c.b16 %v4940, %v4939
        %v4950 = vpack.c.b16 %v4942, %v4941
        %4959 = vmatprep.subr.bf16.mxu0 0
        %4960 = vmatpush1.bf16.msra.mxu0 %v4950
        %4961 = vmatprep.subr.bf16.mxu0 0
        %4962 = vmatpush1.bf16.msra.mxu0 %v4949
        %4963 = vmatprep.subr.bf16.mxu0 0
        %4964 = vmatpush1.bf16.msra.mxu0 %v4948
        %4965 = vmatprep.subr.bf16.mxu0 0
        %4966 = vmatpush1.bf16.msra.mxu0 %v4947
        %4967 = vmatprep.subr.bf16.mxu0 0
        %4968 = vmatpush1.bf16.msra.mxu0 %v4946
        %4969 = vmatprep.subr.bf16.mxu0 0
        %4970 = vmatpush1.bf16.msra.mxu0 %v4945
        %4971 = vmatprep.subr.bf16.mxu0 0
        %4972 = vmatpush1.bf16.msra.mxu0 %v4944
        %4973 = vmatprep.subr.bf16.mxu0 0
        %4974 = vmatpush1.bf16.msra.mxu0 %v4943
        %4975 = vmatprep.subr.bf16.mxu0 0
        %4976 = vmatpush2.bf16.msra.mxu0 0
        %4977 = vmatprep.subr.bf16.mxu0 0
        %4978 = vmatpush2.bf16.msra.mxu0 0
        %4979 = vmatprep.subr.bf16.mxu0 0
        %4980 = vmatpush2.bf16.msra.mxu0 0
        %4981 = vmatprep.subr.bf16.mxu0 0
        %4982 = vmatpush2.bf16.msra.mxu0 0
        %4983 = vmatprep.subr.bf16.mxu0 0
        %4984 = vmatpush2.bf16.msra.mxu0 0
        %4985 = vmatprep.subr.bf16.mxu0 0
        %4986 = vmatpush2.bf16.msra.mxu0 0
        %4987 = vmatprep.subr.bf16.mxu0 0
        %4988 = vmatpush2.bf16.msra.mxu0 0
        %4989 = vmatprep.subr.bf16.mxu0 0
        %4990 = vmatpush2.bf16.msra.mxu0 0
        %4991 = vmatprep.mubr.bf16.mxu0 0
        %4992 = vmatmul.mubr.bf16.gmra.mxu0 %v4881
        %v4993 = vpop.f32.mrf.mxu0
        %v4994 = vadd.f32 0.0, %v4993
        %v4995 = vpop.f32.mrf.mxu0
        %v4996 = vpop.f32.mrf.mxu0
        %v4997 = vadd.f32 0.0, %v4996
        %v4998 = vpop.f32.mrf.mxu0
        %4999 = vmatprep.mubr.bf16.mxu0 0
        %5000 = vmatmul.mubr.bf16.gmra.mxu0 %v4882
        %v5001 = vpop.f32.mrf.mxu0
        %v5002 = vadd.f32 0.0, %v5001
        %v5003 = vpop.f32.mrf.mxu0
        %v5004 = vpop.f32.mrf.mxu0
        %v5005 = vadd.f32 0.0, %v5004
        %v5006 = vpop.f32.mrf.mxu0
        %5007 = vmatprep.mubr.bf16.mxu0 0
        %5008 = vmatmul.mubr.bf16.gmra.mxu0 %v4883
        %v5009 = vpop.f32.mrf.mxu0
        %v5010 = vadd.f32 0.0, %v5009
        %v5011 = vpop.f32.mrf.mxu0
        %v5012 = vpop.f32.mrf.mxu0
        %v5013 = vadd.f32 0.0, %v5012
        %v5014 = vpop.f32.mrf.mxu0
        %5015 = vmatprep.mubr.bf16.mxu0 0
        %5016 = vmatmul.mubr.bf16.gmra.mxu0 %v4884
        %v5017 = vpop.f32.mrf.mxu0
        %v5018 = vadd.f32 0.0, %v5017
        %v5019 = vpop.f32.mrf.mxu0
        %v5020 = vpop.f32.mrf.mxu0
        %v5021 = vadd.f32 0.0, %v5020
        %v5022 = vpop.f32.mrf.mxu0
        %5023 = vmatprep.mubr.bf16.mxu0 0
        %5024 = vmatmul.mubr.bf16.gmra.mxu0 %v4885
        %v5025 = vpop.f32.mrf.mxu0
        %v5026 = vadd.f32 0.0, %v5025
        %v5027 = vpop.f32.mrf.mxu0
        %v5028 = vpop.f32.mrf.mxu0
        %v5029 = vadd.f32 0.0, %v5028
        %v5030 = vpop.f32.mrf.mxu0
        %5031 = vmatprep.mubr.bf16.mxu0 0
        %5032 = vmatmul.mubr.bf16.gmra.mxu0 %v4886
        %v5033 = vpop.f32.mrf.mxu0
        %v5034 = vadd.f32 0.0, %v5033
        %v5035 = vpop.f32.mrf.mxu0
        %v5036 = vpop.f32.mrf.mxu0
        %v5037 = vadd.f32 0.0, %v5036
        %v5038 = vpop.f32.mrf.mxu0
        %5039 = vmatprep.mubr.bf16.mxu0 0
        %5040 = vmatmul.mubr.bf16.gmra.mxu0 %v4887
        %v5041 = vpop.f32.mrf.mxu0
        %v5042 = vadd.f32 0.0, %v5041
        %v5043 = vpop.f32.mrf.mxu0
        %v5044 = vpop.f32.mrf.mxu0
        %v5045 = vadd.f32 0.0, %v5044
        %v5046 = vpop.f32.mrf.mxu0
        %5047 = vmatprep.mubr.bf16.mxu0 0
        %5048 = vmatmul.mubr.bf16.gmra.mxu0 %v4888
        %v5049 = vpop.f32.mrf.mxu0
        %v5050 = vadd.f32 0.0, %v5049
        %v5051 = vpop.f32.mrf.mxu0
        %v5052 = vpop.f32.mrf.mxu0
        %v5053 = vadd.f32 0.0, %v5052
        %v5054 = vpop.f32.mrf.mxu0
        %5055 = vmatprep.mubr.bf16.mxu0 0
        %5056 = vmatmul.mubr.bf16.gmra.mxu0 %v4889
        %v5057 = vpop.f32.mrf.mxu0
        %v5058 = vadd.f32 0.0, %v5057
        %v5059 = vpop.f32.mrf.mxu0
        %v5060 = vpop.f32.mrf.mxu0
        %v5061 = vadd.f32 0.0, %v5060
        %v5062 = vpop.f32.mrf.mxu0
        %5063 = vmatprep.mubr.bf16.mxu0 0
        %5064 = vmatmul.mubr.bf16.gmra.mxu0 %v4890
        %v5065 = vpop.f32.mrf.mxu0
        %v5066 = vadd.f32 0.0, %v5065
        %v5067 = vpop.f32.mrf.mxu0
        %v5068 = vpop.f32.mrf.mxu0
        %v5069 = vadd.f32 0.0, %v5068
        %v5070 = vpop.f32.mrf.mxu0
        %5071 = vmatprep.mubr.bf16.mxu0 0
        %5072 = vmatmul.mubr.bf16.gmra.mxu0 %v4891
        %v5073 = vpop.f32.mrf.mxu0
        %v5074 = vadd.f32 0.0, %v5073
        %v5075 = vpop.f32.mrf.mxu0
        %v5076 = vpop.f32.mrf.mxu0
        %v5077 = vadd.f32 0.0, %v5076
        %v5078 = vpop.f32.mrf.mxu0
        %5079 = vmatprep.mubr.bf16.mxu0 0
        %5080 = vmatmul.mubr.bf16.gmra.mxu0 %v4892
        %v5081 = vpop.f32.mrf.mxu0
        %v5082 = vadd.f32 0.0, %v5081
        %v5083 = vpop.f32.mrf.mxu0
        %v5084 = vpop.f32.mrf.mxu0
        %v5085 = vadd.f32 0.0, %v5084
        %v5086 = vpop.f32.mrf.mxu0
        %5087 = vmatprep.mubr.bf16.mxu0 0
        %5088 = vmatmul.mubr.bf16.gmra.mxu0 %v4893
        %v5089 = vpop.f32.mrf.mxu0
        %v5090 = vadd.f32 0.0, %v5089
        %v5091 = vpop.f32.mrf.mxu0
        %v5092 = vpop.f32.mrf.mxu0
        %v5093 = vadd.f32 0.0, %v5092
        %v5094 = vpop.f32.mrf.mxu0
        %5095 = vmatprep.mubr.bf16.mxu0 0
        %5096 = vmatmul.mubr.bf16.gmra.mxu0 %v4894
        %v5097 = vpop.f32.mrf.mxu0
        %v5098 = vadd.f32 0.0, %v5097
        %v5099 = vpop.f32.mrf.mxu0
        %v5100 = vpop.f32.mrf.mxu0
        %v5101 = vadd.f32 0.0, %v5100
        %v5102 = vpop.f32.mrf.mxu0
        %5103 = vmatprep.mubr.bf16.mxu0 0
        %5104 = vmatmul.mubr.bf16.gmra.mxu0 %v4895
        %v5105 = vpop.f32.mrf.mxu0
        %v5106 = vadd.f32 0.0, %v5105
        %v5107 = vpop.f32.mrf.mxu0
        %v5108 = vpop.f32.mrf.mxu0
        %v5109 = vadd.f32 0.0, %v5108
        %v5110 = vpop.f32.mrf.mxu0
        %5111 = vdwg.mxu0
        %v5112 = vadd.f32 %v4834, %v4994
        %v5113 = vadd.f32 %v4835, %v4997
        %v5114 = vadd.f32 %v4836, %v5002
        %v5115 = vadd.f32 %v4837, %v5005
        %v5116 = vadd.f32 %v4838, %v5010
        %v5117 = vadd.f32 %v4839, %v5013
        %v5118 = vadd.f32 %v4840, %v5018
        %v5119 = vadd.f32 %v4841, %v5021
        %v5120 = vadd.f32 %v4842, %v5026
        %v5121 = vadd.f32 %v4843, %v5029
        %v5122 = vadd.f32 %v4844, %v5034
        %v5123 = vadd.f32 %v4845, %v5037
        %v5124 = vadd.f32 %v4846, %v5042
        %v5125 = vadd.f32 %v4847, %v5045
        %v5126 = vadd.f32 %v4848, %v5050
        %v5127 = vadd.f32 %v4849, %v5053
        %v5128 = vadd.f32 %v4850, %v5058
        %v5129 = vadd.f32 %v4851, %v5061
        %v5130 = vadd.f32 %v4852, %v5066
        %v5131 = vadd.f32 %v4853, %v5069
        %v5132 = vadd.f32 %v4854, %v5074
        %v5133 = vadd.f32 %v4855, %v5077
        %v5134 = vadd.f32 %v4856, %v5082
        %v5135 = vadd.f32 %v4857, %v5085
        %v5136 = vadd.f32 %v4858, %v5090
        %v5137 = vadd.f32 %v4859, %v5093
        %v5138 = vadd.f32 %v4860, %v5098
        %v5139 = vadd.f32 %v4861, %v5101
        %v5140 = vadd.f32 %v4862, %v5106
        %v5141 = vadd.f32 %v4863, %v5109
        %v5142 = vld [vmem:[#allocation5 + $0x18] sm:$0xf]
        %v5143 = vld [vmem:[#allocation5 + $0x1c] sm:$0xf]
        %v5144 = vld [vmem:[#allocation5 + $0x20] sm:$0xf]
        %v5145 = vld [vmem:[#allocation5 + $0x24] sm:$0xf]
        %v5146 = vld [vmem:[#allocation5 + $0x28] sm:$0xf]
        %v5147 = vld [vmem:[#allocation5 + $0x2c] sm:$0xf]
        %v5148 = vld [vmem:[#allocation5 + $0x30] sm:$0xf]
        %v5149 = vld [vmem:[#allocation5 + $0x34] sm:$0xf]
        %v5150 = vld [vmem:[#allocation5 + $0x38] sm:$0xf]
        %v5151 = vld [vmem:[#allocation5 + $0x3c] sm:$0xf]
        %v5152 = vld [vmem:[#allocation5 + $0x40] sm:$0xf]
        %v5153 = vld [vmem:[#allocation5 + $0x44] sm:$0xf]
        %v5154 = vld [vmem:[#allocation5 + $0x48] sm:$0xf]
        %v5155 = vld [vmem:[#allocation5 + $0x4c] sm:$0xf]
        %v5156 = vld [vmem:[#allocation5 + $0x50] sm:$0xf]
        %v5157 = vld [vmem:[#allocation5 + $0x54] sm:$0xf]
        %v5158 = vld [vmem:[#allocation5 + $0x58] sm:$0xf]
        %v5159 = vld [vmem:[#allocation5 + $0x5c] sm:$0xf]
        %v5160 = vld [vmem:[#allocation5 + $0x60] sm:$0xf]
        %v5161 = vld [vmem:[#allocation5 + $0x64] sm:$0xf]
        %v5162 = vld [vmem:[#allocation5 + $0x68] sm:$0xf]
        %v5163 = vld [vmem:[#allocation5 + $0x6c] sm:$0xf]
        %v5164 = vld [vmem:[#allocation5 + $0x70] sm:$0xf]
        %v5165 = vld [vmem:[#allocation5 + $0x74] sm:$0xf]
        %v5166 = vld [vmem:[#allocation5 + $0x78] sm:$0xf]
        %v5167 = vld [vmem:[#allocation5 + $0x7c] sm:$0xf]
        %v5168 = vld [vmem:[#allocation5 + $0x80] sm:$0xf]
        %v5169 = vld [vmem:[#allocation5 + $0x84] sm:$0xf]
        %v5170 = vld [vmem:[#allocation5 + $0x88] sm:$0xf]
        %v5171 = vld [vmem:[#allocation5 + $0x8c] sm:$0xf]
        %v5172 = vld [vmem:[#allocation5 + $0x90] sm:$0x1]
        %s5173 = scalar_lea.vmem [#allocation14], 320
        %v5174 = vld [vmem:[%s5173] sm:$0xf]
        %v5175 = vld [vmem:[%s5173 + $0x4] sm:$0xf]
        %v5176 = vld [vmem:[%s5173 + $0x8] sm:$0xf]
        %v5177 = vld [vmem:[%s5173 + $0xc] sm:$0xf]
        %v5178 = vld [vmem:[%s5173 + $0x10] sm:$0xf]
        %v5179 = vld [vmem:[%s5173 + $0x14] sm:$0xf]
        %v5180 = vld [vmem:[%s5173 + $0x18] sm:$0xf]
        %v5181 = vld [vmem:[%s5173 + $0x1c] sm:$0xf]
        %v5182 = vld [vmem:[%s5173 + $0x20] sm:$0xf]
        %v5183 = vld [vmem:[%s5173 + $0x24] sm:$0xf]
        %v5184 = vld [vmem:[%s5173 + $0x28] sm:$0xf]
        %v5185 = vld [vmem:[%s5173 + $0x2c] sm:$0xf]
        %v5186 = vld [vmem:[%s5173 + $0x30] sm:$0xf]
        %v5187 = vld [vmem:[%s5173 + $0x34] sm:$0xf]
        %v5188 = vld [vmem:[%s5173 + $0x38] sm:$0xf]
        %v5189 = vld [vmem:[%s5173 + $0x3c] sm:$0xf]
        %v5221 = vunpack.c.l.b16 %v5142
        %v5222 = vunpack.c.l.b16 %v5143
        %v5223 = vunpack.c.l.b16 %v5144
        %v5224 = vunpack.c.l.b16 %v5145
        %v5225 = vunpack.c.l.b16 %v5146
        %v5226 = vunpack.c.l.b16 %v5147
        %v5227 = vunpack.c.l.b16 %v5148
        %v5228 = vunpack.c.l.b16 %v5149
        %v5229 = vunpack.c.l.b16 %v5150
        %v5230 = vunpack.c.l.b16 %v5151
        %v5231 = vunpack.c.l.b16 %v5152
        %v5232 = vunpack.c.l.b16 %v5153
        %v5233 = vunpack.c.l.b16 %v5154
        %v5234 = vunpack.c.l.b16 %v5155
        %v5235 = vunpack.c.l.b16 %v5156
        %v5236 = vunpack.c.l.b16 %v5157
        %v5237 = vunpack.c.l.b16 %v5158
        %v5238 = vunpack.c.l.b16 %v5159
        %v5239 = vunpack.c.l.b16 %v5160
        %v5240 = vunpack.c.l.b16 %v5161
        %v5241 = vunpack.c.l.b16 %v5162
        %v5242 = vunpack.c.l.b16 %v5163
        %v5243 = vunpack.c.l.b16 %v5164
        %v5244 = vunpack.c.l.b16 %v5165
        %v5245 = vunpack.c.l.b16 %v5166
        %v5246 = vunpack.c.l.b16 %v5167
        %v5247 = vunpack.c.l.b16 %v5168
        %v5248 = vunpack.c.l.b16 %v5169
        %v5249 = vunpack.c.l.b16 %v5170
        %v5250 = vunpack.c.l.b16 %v5171
        %v5251 = vunpack.c.l.b16 %v5172
        %v5252 = vpack.c.b16 %v5222, %v5221
        %v5253 = vpack.c.b16 %v5224, %v5223
        %v5254 = vpack.c.b16 %v5226, %v5225
        %v5255 = vpack.c.b16 %v5228, %v5227
        %v5256 = vpack.c.b16 %v5230, %v5229
        %v5257 = vpack.c.b16 %v5232, %v5231
        %v5258 = vpack.c.b16 %v5234, %v5233
        %v5259 = vpack.c.b16 %v5236, %v5235
        %v5260 = vpack.c.b16 %v5238, %v5237
        %v5261 = vpack.c.b16 %v5240, %v5239
        %v5262 = vpack.c.b16 %v5242, %v5241
        %v5263 = vpack.c.b16 %v5244, %v5243
        %v5264 = vpack.c.b16 %v5246, %v5245
        %v5265 = vpack.c.b16 %v5248, %v5247
        %v5266 = vpack.c.b16 %v5250, %v5249
        %v5267 = vpack.c.b16 %v5251, %v5251
        %v5269 = vshrl.u32 %v5252, 16
        %v5271 = vshll.u32 %v5252, 16
        %v5273 = vrot.slane %v5271, 1
        %v5274 = vor.u32 %v5269, %v5273
        %v5276 = vshll.u32 %v5253, 16
        %v5278 = vrot.slane %v5276, 1
        %v5279 = vsel %vm3978, %v5274, %v5278
        %v5280 = vshrl.u32 %v5253, 16
        %v5282 = vor.u32 %v5280, %v5278
        %v5284 = vshll.u32 %v5254, 16
        %v5286 = vrot.slane %v5284, 1
        %v5287 = vsel %vm3978, %v5282, %v5286
        %v5288 = vshrl.u32 %v5254, 16
        %v5290 = vor.u32 %v5288, %v5286
        %v5292 = vshll.u32 %v5255, 16
        %v5294 = vrot.slane %v5292, 1
        %v5295 = vsel %vm3978, %v5290, %v5294
        %v5296 = vshrl.u32 %v5255, 16
        %v5298 = vor.u32 %v5296, %v5294
        %v5300 = vshll.u32 %v5256, 16
        %v5302 = vrot.slane %v5300, 1
        %v5303 = vsel %vm3978, %v5298, %v5302
        %v5304 = vshrl.u32 %v5256, 16
        %v5306 = vor.u32 %v5304, %v5302
        %v5308 = vshll.u32 %v5257, 16
        %v5310 = vrot.slane %v5308, 1
        %v5311 = vsel %vm3978, %v5306, %v5310
        %v5312 = vshrl.u32 %v5257, 16
        %v5314 = vor.u32 %v5312, %v5310
        %v5316 = vshll.u32 %v5258, 16
        %v5318 = vrot.slane %v5316, 1
        %v5319 = vsel %vm3978, %v5314, %v5318
        %v5320 = vshrl.u32 %v5258, 16
        %v5322 = vor.u32 %v5320, %v5318
        %v5324 = vshll.u32 %v5259, 16
        %v5326 = vrot.slane %v5324, 1
        %v5327 = vsel %vm3978, %v5322, %v5326
        %v5328 = vshrl.u32 %v5259, 16
        %v5330 = vor.u32 %v5328, %v5326
        %v5332 = vshll.u32 %v5260, 16
        %v5334 = vrot.slane %v5332, 1
        %v5335 = vsel %vm3978, %v5330, %v5334
        %v5336 = vshrl.u32 %v5260, 16
        %v5338 = vor.u32 %v5336, %v5334
        %v5340 = vshll.u32 %v5261, 16
        %v5342 = vrot.slane %v5340, 1
        %v5343 = vsel %vm3978, %v5338, %v5342
        %v5344 = vshrl.u32 %v5261, 16
        %v5346 = vor.u32 %v5344, %v5342
        %v5348 = vshll.u32 %v5262, 16
        %v5350 = vrot.slane %v5348, 1
        %v5351 = vsel %vm3978, %v5346, %v5350
        %v5352 = vshrl.u32 %v5262, 16
        %v5354 = vor.u32 %v5352, %v5350
        %v5356 = vshll.u32 %v5263, 16
        %v5358 = vrot.slane %v5356, 1
        %v5359 = vsel %vm3978, %v5354, %v5358
        %v5360 = vshrl.u32 %v5263, 16
        %v5362 = vor.u32 %v5360, %v5358
        %v5364 = vshll.u32 %v5264, 16
        %v5366 = vrot.slane %v5364, 1
        %v5367 = vsel %vm3978, %v5362, %v5366
        %v5368 = vshrl.u32 %v5264, 16
        %v5370 = vor.u32 %v5368, %v5366
        %v5372 = vshll.u32 %v5265, 16
        %v5374 = vrot.slane %v5372, 1
        %v5375 = vsel %vm3978, %v5370, %v5374
        %v5376 = vshrl.u32 %v5265, 16
        %v5378 = vor.u32 %v5376, %v5374
        %v5380 = vshll.u32 %v5266, 16
        %v5382 = vrot.slane %v5380, 1
        %v5383 = vsel %vm3978, %v5378, %v5382
        %v5384 = vshrl.u32 %v5266, 16
        %v5386 = vor.u32 %v5384, %v5382
        %v5388 = vshll.u32 %v5267, 16
        %v5390 = vrot.slane %v5388, 1
        %v5391 = vsel %vm3978, %v5386, %v5390
        %v5423 = vunpack.c.l.b16 %v5174
        %v5424 = vunpack.c.l.b16 %v5175
        %v5425 = vunpack.c.l.b16 %v5176
        %v5426 = vunpack.c.l.b16 %v5177
        %v5427 = vunpack.c.l.b16 %v5178
        %v5428 = vunpack.c.l.b16 %v5179
        %v5429 = vunpack.c.l.b16 %v5180
        %v5430 = vunpack.c.l.b16 %v5181
        %v5431 = vunpack.c.l.b16 %v5182
        %v5432 = vunpack.c.l.b16 %v5183
        %v5433 = vunpack.c.l.b16 %v5184
        %v5434 = vunpack.c.l.b16 %v5185
        %v5435 = vunpack.c.l.b16 %v5186
        %v5436 = vunpack.c.l.b16 %v5187
        %v5437 = vunpack.c.l.b16 %v5188
        %v5438 = vunpack.c.l.b16 %v5189
        %v5439 = vpack.c.b16 %v5424, %v5423
        %v5440 = vpack.c.b16 %v5426, %v5425
        %v5441 = vpack.c.b16 %v5428, %v5427
        %v5442 = vpack.c.b16 %v5430, %v5429
        %v5443 = vpack.c.b16 %v5432, %v5431
        %v5444 = vpack.c.b16 %v5434, %v5433
        %v5445 = vpack.c.b16 %v5436, %v5435
        %v5446 = vpack.c.b16 %v5438, %v5437
        %5455 = vmatprep.subr.bf16.mxu0 0
        %5456 = vmatpush1.bf16.msra.mxu0 %v5446
        %5457 = vmatprep.subr.bf16.mxu0 0
        %5458 = vmatpush1.bf16.msra.mxu0 %v5445
        %5459 = vmatprep.subr.bf16.mxu0 0
        %5460 = vmatpush1.bf16.msra.mxu0 %v5444
        %5461 = vmatprep.subr.bf16.mxu0 0
        %5462 = vmatpush1.bf16.msra.mxu0 %v5443
        %5463 = vmatprep.subr.bf16.mxu0 0
        %5464 = vmatpush1.bf16.msra.mxu0 %v5442
        %5465 = vmatprep.subr.bf16.mxu0 0
        %5466 = vmatpush1.bf16.msra.mxu0 %v5441
        %5467 = vmatprep.subr.bf16.mxu0 0
        %5468 = vmatpush1.bf16.msra.mxu0 %v5440
        %5469 = vmatprep.subr.bf16.mxu0 0
        %5470 = vmatpush1.bf16.msra.mxu0 %v5439
        %5471 = vmatprep.subr.bf16.mxu0 0
        %5472 = vmatpush2.bf16.msra.mxu0 0
        %5473 = vmatprep.subr.bf16.mxu0 0
        %5474 = vmatpush2.bf16.msra.mxu0 0
        %5475 = vmatprep.subr.bf16.mxu0 0
        %5476 = vmatpush2.bf16.msra.mxu0 0
        %5477 = vmatprep.subr.bf16.mxu0 0
        %5478 = vmatpush2.bf16.msra.mxu0 0
        %5479 = vmatprep.subr.bf16.mxu0 0
        %5480 = vmatpush2.bf16.msra.mxu0 0
        %5481 = vmatprep.subr.bf16.mxu0 0
        %5482 = vmatpush2.bf16.msra.mxu0 0
        %5483 = vmatprep.subr.bf16.mxu0 0
        %5484 = vmatpush2.bf16.msra.mxu0 0
        %5485 = vmatprep.subr.bf16.mxu0 0
        %5486 = vmatpush2.bf16.msra.mxu0 0
        %5487 = vmatprep.mubr.bf16.mxu0 0
        %5488 = vmatmul.mubr.bf16.gmra.mxu0 %v5279
        %v5489 = vpop.f32.mrf.mxu0
        %v5490 = vadd.f32 0.0, %v5489
        %v5491 = vpop.f32.mrf.mxu0
        %v5492 = vpop.f32.mrf.mxu0
        %v5493 = vadd.f32 0.0, %v5492
        %v5494 = vpop.f32.mrf.mxu0
        %5495 = vmatprep.mubr.bf16.mxu0 0
        %5496 = vmatmul.mubr.bf16.gmra.mxu0 %v5287
        %v5497 = vpop.f32.mrf.mxu0
        %v5498 = vadd.f32 0.0, %v5497
        %v5499 = vpop.f32.mrf.mxu0
        %v5500 = vpop.f32.mrf.mxu0
        %v5501 = vadd.f32 0.0, %v5500
        %v5502 = vpop.f32.mrf.mxu0
        %5503 = vmatprep.mubr.bf16.mxu0 0
        %5504 = vmatmul.mubr.bf16.gmra.mxu0 %v5295
        %v5505 = vpop.f32.mrf.mxu0
        %v5506 = vadd.f32 0.0, %v5505
        %v5507 = vpop.f32.mrf.mxu0
        %v5508 = vpop.f32.mrf.mxu0
        %v5509 = vadd.f32 0.0, %v5508
        %v5510 = vpop.f32.mrf.mxu0
        %5511 = vmatprep.mubr.bf16.mxu0 0
        %5512 = vmatmul.mubr.bf16.gmra.mxu0 %v5303
        %v5513 = vpop.f32.mrf.mxu0
        %v5514 = vadd.f32 0.0, %v5513
        %v5515 = vpop.f32.mrf.mxu0
        %v5516 = vpop.f32.mrf.mxu0
        %v5517 = vadd.f32 0.0, %v5516
        %v5518 = vpop.f32.mrf.mxu0
        %5519 = vmatprep.mubr.bf16.mxu0 0
        %5520 = vmatmul.mubr.bf16.gmra.mxu0 %v5311
        %v5521 = vpop.f32.mrf.mxu0
        %v5522 = vadd.f32 0.0, %v5521
        %v5523 = vpop.f32.mrf.mxu0
        %v5524 = vpop.f32.mrf.mxu0
        %v5525 = vadd.f32 0.0, %v5524
        %v5526 = vpop.f32.mrf.mxu0
        %5527 = vmatprep.mubr.bf16.mxu0 0
        %5528 = vmatmul.mubr.bf16.gmra.mxu0 %v5319
        %v5529 = vpop.f32.mrf.mxu0
        %v5530 = vadd.f32 0.0, %v5529
        %v5531 = vpop.f32.mrf.mxu0
        %v5532 = vpop.f32.mrf.mxu0
        %v5533 = vadd.f32 0.0, %v5532
        %v5534 = vpop.f32.mrf.mxu0
        %5535 = vmatprep.mubr.bf16.mxu0 0
        %5536 = vmatmul.mubr.bf16.gmra.mxu0 %v5327
        %v5537 = vpop.f32.mrf.mxu0
        %v5538 = vadd.f32 0.0, %v5537
        %v5539 = vpop.f32.mrf.mxu0
        %v5540 = vpop.f32.mrf.mxu0
        %v5541 = vadd.f32 0.0, %v5540
        %v5542 = vpop.f32.mrf.mxu0
        %5543 = vmatprep.mubr.bf16.mxu0 0
        %5544 = vmatmul.mubr.bf16.gmra.mxu0 %v5335
        %v5545 = vpop.f32.mrf.mxu0
        %v5546 = vadd.f32 0.0, %v5545
        %v5547 = vpop.f32.mrf.mxu0
        %v5548 = vpop.f32.mrf.mxu0
        %v5549 = vadd.f32 0.0, %v5548
        %v5550 = vpop.f32.mrf.mxu0
        %5551 = vmatprep.mubr.bf16.mxu0 0
        %5552 = vmatmul.mubr.bf16.gmra.mxu0 %v5343
        %v5553 = vpop.f32.mrf.mxu0
        %v5554 = vadd.f32 0.0, %v5553
        %v5555 = vpop.f32.mrf.mxu0
        %v5556 = vpop.f32.mrf.mxu0
        %v5557 = vadd.f32 0.0, %v5556
        %v5558 = vpop.f32.mrf.mxu0
        %5559 = vmatprep.mubr.bf16.mxu0 0
        %5560 = vmatmul.mubr.bf16.gmra.mxu0 %v5351
        %v5561 = vpop.f32.mrf.mxu0
        %v5562 = vadd.f32 0.0, %v5561
        %v5563 = vpop.f32.mrf.mxu0
        %v5564 = vpop.f32.mrf.mxu0
        %v5565 = vadd.f32 0.0, %v5564
        %v5566 = vpop.f32.mrf.mxu0
        %5567 = vmatprep.mubr.bf16.mxu0 0
        %5568 = vmatmul.mubr.bf16.gmra.mxu0 %v5359
        %v5569 = vpop.f32.mrf.mxu0
        %v5570 = vadd.f32 0.0, %v5569
        %v5571 = vpop.f32.mrf.mxu0
        %v5572 = vpop.f32.mrf.mxu0
        %v5573 = vadd.f32 0.0, %v5572
        %v5574 = vpop.f32.mrf.mxu0
        %5575 = vmatprep.mubr.bf16.mxu0 0
        %5576 = vmatmul.mubr.bf16.gmra.mxu0 %v5367
        %v5577 = vpop.f32.mrf.mxu0
        %v5578 = vadd.f32 0.0, %v5577
        %v5579 = vpop.f32.mrf.mxu0
        %v5580 = vpop.f32.mrf.mxu0
        %v5581 = vadd.f32 0.0, %v5580
        %v5582 = vpop.f32.mrf.mxu0
        %5583 = vmatprep.mubr.bf16.mxu0 0
        %5584 = vmatmul.mubr.bf16.gmra.mxu0 %v5375
        %v5585 = vpop.f32.mrf.mxu0
        %v5586 = vadd.f32 0.0, %v5585
        %v5587 = vpop.f32.mrf.mxu0
        %v5588 = vpop.f32.mrf.mxu0
        %v5589 = vadd.f32 0.0, %v5588
        %v5590 = vpop.f32.mrf.mxu0
        %5591 = vmatprep.mubr.bf16.mxu0 0
        %5592 = vmatmul.mubr.bf16.gmra.mxu0 %v5383
        %v5593 = vpop.f32.mrf.mxu0
        %v5594 = vadd.f32 0.0, %v5593
        %v5595 = vpop.f32.mrf.mxu0
        %v5596 = vpop.f32.mrf.mxu0
        %v5597 = vadd.f32 0.0, %v5596
        %v5598 = vpop.f32.mrf.mxu0
        %5599 = vmatprep.mubr.bf16.mxu0 0
        %5600 = vmatmul.mubr.bf16.gmra.mxu0 %v5391
        %v5601 = vpop.f32.mrf.mxu0
        %v5602 = vadd.f32 0.0, %v5601
        %v5603 = vpop.f32.mrf.mxu0
        %v5604 = vpop.f32.mrf.mxu0
        %v5605 = vadd.f32 0.0, %v5604
        %v5606 = vpop.f32.mrf.mxu0
        %5607 = vdwg.mxu0
        %v5608 = vadd.f32 %v5112, %v5490
        %v5609 = vadd.f32 %v5113, %v5493
        %v5610 = vadd.f32 %v5114, %v5498
        %v5611 = vadd.f32 %v5115, %v5501
        %v5612 = vadd.f32 %v5116, %v5506
        %v5613 = vadd.f32 %v5117, %v5509
        %v5614 = vadd.f32 %v5118, %v5514
        %v5615 = vadd.f32 %v5119, %v5517
        %v5616 = vadd.f32 %v5120, %v5522
        %v5617 = vadd.f32 %v5121, %v5525
        %v5618 = vadd.f32 %v5122, %v5530
        %v5619 = vadd.f32 %v5123, %v5533
        %v5620 = vadd.f32 %v5124, %v5538
        %v5621 = vadd.f32 %v5125, %v5541
        %v5622 = vadd.f32 %v5126, %v5546
        %v5623 = vadd.f32 %v5127, %v5549
        %v5624 = vadd.f32 %v5128, %v5554
        %v5625 = vadd.f32 %v5129, %v5557
        %v5626 = vadd.f32 %v5130, %v5562
        %v5627 = vadd.f32 %v5131, %v5565
        %v5628 = vadd.f32 %v5132, %v5570
        %v5629 = vadd.f32 %v5133, %v5573
        %v5630 = vadd.f32 %v5134, %v5578
        %v5631 = vadd.f32 %v5135, %v5581
        %v5632 = vadd.f32 %v5136, %v5586
        %v5633 = vadd.f32 %v5137, %v5589
        %v5634 = vadd.f32 %v5138, %v5594
        %v5635 = vadd.f32 %v5139, %v5597
        %v5636 = vadd.f32 %v5140, %v5602
        %v5637 = vadd.f32 %v5141, %v5605
        %v5638 = vld [vmem:[#allocation5 + $0x20] sm:$0x8]
        %v5639 = vld [vmem:[#allocation5 + $0x24] sm:$0xf]
        %v5640 = vld [vmem:[#allocation5 + $0x28] sm:$0xf]
        %v5641 = vld [vmem:[#allocation5 + $0x2c] sm:$0xf]
        %v5642 = vld [vmem:[#allocation5 + $0x30] sm:$0xf]
        %v5643 = vld [vmem:[#allocation5 + $0x34] sm:$0xf]
        %v5644 = vld [vmem:[#allocation5 + $0x38] sm:$0xf]
        %v5645 = vld [vmem:[#allocation5 + $0x3c] sm:$0xf]
        %v5646 = vld [vmem:[#allocation5 + $0x40] sm:$0xf]
        %v5647 = vld [vmem:[#allocation5 + $0x44] sm:$0xf]
        %v5648 = vld [vmem:[#allocation5 + $0x48] sm:$0xf]
        %v5649 = vld [vmem:[#allocation5 + $0x4c] sm:$0xf]
        %v5650 = vld [vmem:[#allocation5 + $0x50] sm:$0xf]
        %v5651 = vld [vmem:[#allocation5 + $0x54] sm:$0xf]
        %v5652 = vld [vmem:[#allocation5 + $0x58] sm:$0xf]
        %v5653 = vld [vmem:[#allocation5 + $0x5c] sm:$0xf]
        %v5654 = vld [vmem:[#allocation5 + $0x60] sm:$0xf]
        %v5655 = vld [vmem:[#allocation5 + $0x64] sm:$0xf]
        %v5656 = vld [vmem:[#allocation5 + $0x68] sm:$0xf]
        %v5657 = vld [vmem:[#allocation5 + $0x6c] sm:$0xf]
        %v5658 = vld [vmem:[#allocation5 + $0x70] sm:$0xf]
        %v5659 = vld [vmem:[#allocation5 + $0x74] sm:$0xf]
        %v5660 = vld [vmem:[#allocation5 + $0x78] sm:$0xf]
        %v5661 = vld [vmem:[#allocation5 + $0x7c] sm:$0xf]
        %v5662 = vld [vmem:[#allocation5 + $0x80] sm:$0xf]
        %v5663 = vld [vmem:[#allocation5 + $0x84] sm:$0xf]
        %v5664 = vld [vmem:[#allocation5 + $0x88] sm:$0xf]
        %v5665 = vld [vmem:[#allocation5 + $0x8c] sm:$0xf]
        %v5666 = vld [vmem:[#allocation5 + $0x90] sm:$0xf]
        %v5667 = vld [vmem:[#allocation5 + $0x94] sm:$0xf]
        %v5668 = vld [vmem:[#allocation5 + $0x98] sm:$0xf]
        %s5669 = scalar_lea.vmem [#allocation14], 384
        %v5670 = vld [vmem:[%s5669] sm:$0xf]
        %v5671 = vld [vmem:[%s5669 + $0x4] sm:$0xf]
        %v5672 = vld [vmem:[%s5669 + $0x8] sm:$0xf]
        %v5673 = vld [vmem:[%s5669 + $0xc] sm:$0xf]
        %v5674 = vld [vmem:[%s5669 + $0x10] sm:$0xf]
        %v5675 = vld [vmem:[%s5669 + $0x14] sm:$0xf]
        %v5676 = vld [vmem:[%s5669 + $0x18] sm:$0xf]
        %v5677 = vld [vmem:[%s5669 + $0x1c] sm:$0xf]
        %v5678 = vld [vmem:[%s5669 + $0x20] sm:$0xf]
        %v5679 = vld [vmem:[%s5669 + $0x24] sm:$0xf]
        %v5680 = vld [vmem:[%s5669 + $0x28] sm:$0xf]
        %v5681 = vld [vmem:[%s5669 + $0x2c] sm:$0xf]
        %v5682 = vld [vmem:[%s5669 + $0x30] sm:$0xf]
        %v5683 = vld [vmem:[%s5669 + $0x34] sm:$0xf]
        %v5684 = vld [vmem:[%s5669 + $0x38] sm:$0xf]
        %v5685 = vld [vmem:[%s5669 + $0x3c] sm:$0xf]
        %v5717 = vunpack.c.l.b16 %v5638
        %v5718 = vunpack.c.l.b16 %v5639
        %v5719 = vunpack.c.l.b16 %v5640
        %v5720 = vunpack.c.l.b16 %v5641
        %v5721 = vunpack.c.l.b16 %v5642
        %v5722 = vunpack.c.l.b16 %v5643
        %v5723 = vunpack.c.l.b16 %v5644
        %v5724 = vunpack.c.l.b16 %v5645
        %v5725 = vunpack.c.l.b16 %v5646
        %v5726 = vunpack.c.l.b16 %v5647
        %v5727 = vunpack.c.l.b16 %v5648
        %v5728 = vunpack.c.l.b16 %v5649
        %v5729 = vunpack.c.l.b16 %v5650
        %v5730 = vunpack.c.l.b16 %v5651
        %v5731 = vunpack.c.l.b16 %v5652
        %v5732 = vunpack.c.l.b16 %v5653
        %v5733 = vunpack.c.l.b16 %v5654
        %v5734 = vunpack.c.l.b16 %v5655
        %v5735 = vunpack.c.l.b16 %v5656
        %v5736 = vunpack.c.l.b16 %v5657
        %v5737 = vunpack.c.l.b16 %v5658
        %v5738 = vunpack.c.l.b16 %v5659
        %v5739 = vunpack.c.l.b16 %v5660
        %v5740 = vunpack.c.l.b16 %v5661
        %v5741 = vunpack.c.l.b16 %v5662
        %v5742 = vunpack.c.l.b16 %v5663
        %v5743 = vunpack.c.l.b16 %v5664
        %v5744 = vunpack.c.l.b16 %v5665
        %v5745 = vunpack.c.l.b16 %v5666
        %v5746 = vunpack.c.l.b16 %v5667
        %v5747 = vunpack.c.l.b16 %v5668
        %v5748 = vpack.c.b16 %v5718, %v5717
        %v5749 = vpack.c.b16 %v5720, %v5719
        %v5750 = vpack.c.b16 %v5722, %v5721
        %v5751 = vpack.c.b16 %v5724, %v5723
        %v5752 = vpack.c.b16 %v5726, %v5725
        %v5753 = vpack.c.b16 %v5728, %v5727
        %v5754 = vpack.c.b16 %v5730, %v5729
        %v5755 = vpack.c.b16 %v5732, %v5731
        %v5756 = vpack.c.b16 %v5734, %v5733
        %v5757 = vpack.c.b16 %v5736, %v5735
        %v5758 = vpack.c.b16 %v5738, %v5737
        %v5759 = vpack.c.b16 %v5740, %v5739
        %v5760 = vpack.c.b16 %v5742, %v5741
        %v5761 = vpack.c.b16 %v5744, %v5743
        %v5762 = vpack.c.b16 %v5746, %v5745
        %v5763 = vpack.c.b16 %v5747, %v5747
        %v5765 = vshrl.u32 %v5748, 16
        %v5767 = vrot.slane %v5765, 3
        %v5768 = vshll.u32 %v5748, 16
        %v5770 = vrot.slane %v5768, 4
        %v5771 = vor.u32 %v5767, %v5770
        %v5773 = vshrl.u32 %v5749, 16
        %v5775 = vrot.slane %v5773, 3
        %v5776 = vshll.u32 %v5749, 16
        %v5778 = vrot.slane %v5776, 4
        %v5779 = vor.u32 %v5775, %v5778
        %v5780 = vsel %vm3492, %v5771, %v5779
        %v5782 = vshrl.u32 %v5750, 16
        %v5784 = vrot.slane %v5782, 3
        %v5785 = vshll.u32 %v5750, 16
        %v5787 = vrot.slane %v5785, 4
        %v5788 = vor.u32 %v5784, %v5787
        %v5789 = vsel %vm3492, %v5779, %v5788
        %v5791 = vshrl.u32 %v5751, 16
        %v5793 = vrot.slane %v5791, 3
        %v5794 = vshll.u32 %v5751, 16
        %v5796 = vrot.slane %v5794, 4
        %v5797 = vor.u32 %v5793, %v5796
        %v5798 = vsel %vm3492, %v5788, %v5797
        %v5800 = vshrl.u32 %v5752, 16
        %v5802 = vrot.slane %v5800, 3
        %v5803 = vshll.u32 %v5752, 16
        %v5805 = vrot.slane %v5803, 4
        %v5806 = vor.u32 %v5802, %v5805
        %v5807 = vsel %vm3492, %v5797, %v5806
        %v5809 = vshrl.u32 %v5753, 16
        %v5811 = vrot.slane %v5809, 3
        %v5812 = vshll.u32 %v5753, 16
        %v5814 = vrot.slane %v5812, 4
        %v5815 = vor.u32 %v5811, %v5814
        %v5816 = vsel %vm3492, %v5806, %v5815
        %v5818 = vshrl.u32 %v5754, 16
        %v5820 = vrot.slane %v5818, 3
        %v5821 = vshll.u32 %v5754, 16
        %v5823 = vrot.slane %v5821, 4
        %v5824 = vor.u32 %v5820, %v5823
        %v5825 = vsel %vm3492, %v5815, %v5824
        %v5827 = vshrl.u32 %v5755, 16
        %v5829 = vrot.slane %v5827, 3
        %v5830 = vshll.u32 %v5755, 16
        %v5832 = vrot.slane %v5830, 4
        %v5833 = vor.u32 %v5829, %v5832
        %v5834 = vsel %vm3492, %v5824, %v5833
        %v5836 = vshrl.u32 %v5756, 16
        %v5838 = vrot.slane %v5836, 3
        %v5839 = vshll.u32 %v5756, 16
        %v5841 = vrot.slane %v5839, 4
        %v5842 = vor.u32 %v5838, %v5841
        %v5843 = vsel %vm3492, %v5833, %v5842
        %v5845 = vshrl.u32 %v5757, 16
        %v5847 = vrot.slane %v5845, 3
        %v5848 = vshll.u32 %v5757, 16
        %v5850 = vrot.slane %v5848, 4
        %v5851 = vor.u32 %v5847, %v5850
        %v5852 = vsel %vm3492, %v5842, %v5851
        %v5854 = vshrl.u32 %v5758, 16
        %v5856 = vrot.slane %v5854, 3
        %v5857 = vshll.u32 %v5758, 16
        %v5859 = vrot.slane %v5857, 4
        %v5860 = vor.u32 %v5856, %v5859
        %v5861 = vsel %vm3492, %v5851, %v5860
        %v5863 = vshrl.u32 %v5759, 16
        %v5865 = vrot.slane %v5863, 3
        %v5866 = vshll.u32 %v5759, 16
        %v5868 = vrot.slane %v5866, 4
        %v5869 = vor.u32 %v5865, %v5868
        %v5870 = vsel %vm3492, %v5860, %v5869
        %v5872 = vshrl.u32 %v5760, 16
        %v5874 = vrot.slane %v5872, 3
        %v5875 = vshll.u32 %v5760, 16
        %v5877 = vrot.slane %v5875, 4
        %v5878 = vor.u32 %v5874, %v5877
        %v5879 = vsel %vm3492, %v5869, %v5878
        %v5881 = vshrl.u32 %v5761, 16
        %v5883 = vrot.slane %v5881, 3
        %v5884 = vshll.u32 %v5761, 16
        %v5886 = vrot.slane %v5884, 4
        %v5887 = vor.u32 %v5883, %v5886
        %v5888 = vsel %vm3492, %v5878, %v5887
        %v5890 = vshrl.u32 %v5762, 16
        %v5892 = vrot.slane %v5890, 3
        %v5893 = vshll.u32 %v5762, 16
        %v5895 = vrot.slane %v5893, 4
        %v5896 = vor.u32 %v5892, %v5895
        %v5897 = vsel %vm3492, %v5887, %v5896
        %v5899 = vshrl.u32 %v5763, 16
        %v5901 = vrot.slane %v5899, 3
        %v5902 = vshll.u32 %v5763, 16
        %v5904 = vrot.slane %v5902, 4
        %v5905 = vor.u32 %v5901, %v5904
        %v5906 = vsel %vm3492, %v5896, %v5905
        %v5938 = vunpack.c.l.b16 %v5670
        %v5939 = vunpack.c.l.b16 %v5671
        %v5940 = vunpack.c.l.b16 %v5672
        %v5941 = vunpack.c.l.b16 %v5673
        %v5942 = vunpack.c.l.b16 %v5674
        %v5943 = vunpack.c.l.b16 %v5675
        %v5944 = vunpack.c.l.b16 %v5676
        %v5945 = vunpack.c.l.b16 %v5677
        %v5946 = vunpack.c.l.b16 %v5678
        %v5947 = vunpack.c.l.b16 %v5679
        %v5948 = vunpack.c.l.b16 %v5680
        %v5949 = vunpack.c.l.b16 %v5681
        %v5950 = vunpack.c.l.b16 %v5682
        %v5951 = vunpack.c.l.b16 %v5683
        %v5952 = vunpack.c.l.b16 %v5684
        %v5953 = vunpack.c.l.b16 %v5685
        %v5954 = vpack.c.b16 %v5939, %v5938
        %v5955 = vpack.c.b16 %v5941, %v5940
        %v5956 = vpack.c.b16 %v5943, %v5942
        %v5957 = vpack.c.b16 %v5945, %v5944
        %v5958 = vpack.c.b16 %v5947, %v5946
        %v5959 = vpack.c.b16 %v5949, %v5948
        %v5960 = vpack.c.b16 %v5951, %v5950
        %v5961 = vpack.c.b16 %v5953, %v5952
        %5970 = vmatprep.subr.bf16.mxu0 0
        %5971 = vmatpush1.bf16.msra.mxu0 %v5961
        %5972 = vmatprep.subr.bf16.mxu0 0
        %5973 = vmatpush1.bf16.msra.mxu0 %v5960
        %5974 = vmatprep.subr.bf16.mxu0 0
        %5975 = vmatpush1.bf16.msra.mxu0 %v5959
        %5976 = vmatprep.subr.bf16.mxu0 0
        %5977 = vmatpush1.bf16.msra.mxu0 %v5958
        %5978 = vmatprep.subr.bf16.mxu0 0
        %5979 = vmatpush1.bf16.msra.mxu0 %v5957
        %5980 = vmatprep.subr.bf16.mxu0 0
        %5981 = vmatpush1.bf16.msra.mxu0 %v5956
        %5982 = vmatprep.subr.bf16.mxu0 0
        %5983 = vmatpush1.bf16.msra.mxu0 %v5955
        %5984 = vmatprep.subr.bf16.mxu0 0
        %5985 = vmatpush1.bf16.msra.mxu0 %v5954
        %5986 = vmatprep.subr.bf16.mxu0 0
        %5987 = vmatpush2.bf16.msra.mxu0 0
        %5988 = vmatprep.subr.bf16.mxu0 0
        %5989 = vmatpush2.bf16.msra.mxu0 0
        %5990 = vmatprep.subr.bf16.mxu0 0
        %5991 = vmatpush2.bf16.msra.mxu0 0
        %5992 = vmatprep.subr.bf16.mxu0 0
        %5993 = vmatpush2.bf16.msra.mxu0 0
        %5994 = vmatprep.subr.bf16.mxu0 0
        %5995 = vmatpush2.bf16.msra.mxu0 0
        %5996 = vmatprep.subr.bf16.mxu0 0
        %5997 = vmatpush2.bf16.msra.mxu0 0
        %5998 = vmatprep.subr.bf16.mxu0 0
        %5999 = vmatpush2.bf16.msra.mxu0 0
        %6000 = vmatprep.subr.bf16.mxu0 0
        %6001 = vmatpush2.bf16.msra.mxu0 0
        %6002 = vmatprep.mubr.bf16.mxu0 0
        %6003 = vmatmul.mubr.bf16.gmra.mxu0 %v5780
        %v6004 = vpop.f32.mrf.mxu0
        %v6005 = vadd.f32 0.0, %v6004
        %v6006 = vpop.f32.mrf.mxu0
        %v6007 = vpop.f32.mrf.mxu0
        %v6008 = vadd.f32 0.0, %v6007
        %v6009 = vpop.f32.mrf.mxu0
        %6010 = vmatprep.mubr.bf16.mxu0 0
        %6011 = vmatmul.mubr.bf16.gmra.mxu0 %v5789
        %v6012 = vpop.f32.mrf.mxu0
        %v6013 = vadd.f32 0.0, %v6012
        %v6014 = vpop.f32.mrf.mxu0
        %v6015 = vpop.f32.mrf.mxu0
        %v6016 = vadd.f32 0.0, %v6015
        %v6017 = vpop.f32.mrf.mxu0
        %6018 = vmatprep.mubr.bf16.mxu0 0
        %6019 = vmatmul.mubr.bf16.gmra.mxu0 %v5798
        %v6020 = vpop.f32.mrf.mxu0
        %v6021 = vadd.f32 0.0, %v6020
        %v6022 = vpop.f32.mrf.mxu0
        %v6023 = vpop.f32.mrf.mxu0
        %v6024 = vadd.f32 0.0, %v6023
        %v6025 = vpop.f32.mrf.mxu0
        %6026 = vmatprep.mubr.bf16.mxu0 0
        %6027 = vmatmul.mubr.bf16.gmra.mxu0 %v5807
        %v6028 = vpop.f32.mrf.mxu0
        %v6029 = vadd.f32 0.0, %v6028
        %v6030 = vpop.f32.mrf.mxu0
        %v6031 = vpop.f32.mrf.mxu0
        %v6032 = vadd.f32 0.0, %v6031
        %v6033 = vpop.f32.mrf.mxu0
        %6034 = vmatprep.mubr.bf16.mxu0 0
        %6035 = vmatmul.mubr.bf16.gmra.mxu0 %v5816
        %v6036 = vpop.f32.mrf.mxu0
        %v6037 = vadd.f32 0.0, %v6036
        %v6038 = vpop.f32.mrf.mxu0
        %v6039 = vpop.f32.mrf.mxu0
        %v6040 = vadd.f32 0.0, %v6039
        %v6041 = vpop.f32.mrf.mxu0
        %6042 = vmatprep.mubr.bf16.mxu0 0
        %6043 = vmatmul.mubr.bf16.gmra.mxu0 %v5825
        %v6044 = vpop.f32.mrf.mxu0
        %v6045 = vadd.f32 0.0, %v6044
        %v6046 = vpop.f32.mrf.mxu0
        %v6047 = vpop.f32.mrf.mxu0
        %v6048 = vadd.f32 0.0, %v6047
        %v6049 = vpop.f32.mrf.mxu0
        %6050 = vmatprep.mubr.bf16.mxu0 0
        %6051 = vmatmul.mubr.bf16.gmra.mxu0 %v5834
        %v6052 = vpop.f32.mrf.mxu0
        %v6053 = vadd.f32 0.0, %v6052
        %v6054 = vpop.f32.mrf.mxu0
        %v6055 = vpop.f32.mrf.mxu0
        %v6056 = vadd.f32 0.0, %v6055
        %v6057 = vpop.f32.mrf.mxu0
        %6058 = vmatprep.mubr.bf16.mxu0 0
        %6059 = vmatmul.mubr.bf16.gmra.mxu0 %v5843
        %v6060 = vpop.f32.mrf.mxu0
        %v6061 = vadd.f32 0.0, %v6060
        %v6062 = vpop.f32.mrf.mxu0
        %v6063 = vpop.f32.mrf.mxu0
        %v6064 = vadd.f32 0.0, %v6063
        %v6065 = vpop.f32.mrf.mxu0
        %6066 = vmatprep.mubr.bf16.mxu0 0
        %6067 = vmatmul.mubr.bf16.gmra.mxu0 %v5852
        %v6068 = vpop.f32.mrf.mxu0
        %v6069 = vadd.f32 0.0, %v6068
        %v6070 = vpop.f32.mrf.mxu0
        %v6071 = vpop.f32.mrf.mxu0
        %v6072 = vadd.f32 0.0, %v6071
        %v6073 = vpop.f32.mrf.mxu0
        %6074 = vmatprep.mubr.bf16.mxu0 0
        %6075 = vmatmul.mubr.bf16.gmra.mxu0 %v5861
        %v6076 = vpop.f32.mrf.mxu0
        %v6077 = vadd.f32 0.0, %v6076
        %v6078 = vpop.f32.mrf.mxu0
        %v6079 = vpop.f32.mrf.mxu0
        %v6080 = vadd.f32 0.0, %v6079
        %v6081 = vpop.f32.mrf.mxu0
        %6082 = vmatprep.mubr.bf16.mxu0 0
        %6083 = vmatmul.mubr.bf16.gmra.mxu0 %v5870
        %v6084 = vpop.f32.mrf.mxu0
        %v6085 = vadd.f32 0.0, %v6084
        %v6086 = vpop.f32.mrf.mxu0
        %v6087 = vpop.f32.mrf.mxu0
        %v6088 = vadd.f32 0.0, %v6087
        %v6089 = vpop.f32.mrf.mxu0
        %6090 = vmatprep.mubr.bf16.mxu0 0
        %6091 = vmatmul.mubr.bf16.gmra.mxu0 %v5879
        %v6092 = vpop.f32.mrf.mxu0
        %v6093 = vadd.f32 0.0, %v6092
        %v6094 = vpop.f32.mrf.mxu0
        %v6095 = vpop.f32.mrf.mxu0
        %v6096 = vadd.f32 0.0, %v6095
        %v6097 = vpop.f32.mrf.mxu0
        %6098 = vmatprep.mubr.bf16.mxu0 0
        %6099 = vmatmul.mubr.bf16.gmra.mxu0 %v5888
        %v6100 = vpop.f32.mrf.mxu0
        %v6101 = vadd.f32 0.0, %v6100
        %v6102 = vpop.f32.mrf.mxu0
        %v6103 = vpop.f32.mrf.mxu0
        %v6104 = vadd.f32 0.0, %v6103
        %v6105 = vpop.f32.mrf.mxu0
        %6106 = vmatprep.mubr.bf16.mxu0 0
        %6107 = vmatmul.mubr.bf16.gmra.mxu0 %v5897
        %v6108 = vpop.f32.mrf.mxu0
        %v6109 = vadd.f32 0.0, %v6108
        %v6110 = vpop.f32.mrf.mxu0
        %v6111 = vpop.f32.mrf.mxu0
        %v6112 = vadd.f32 0.0, %v6111
        %v6113 = vpop.f32.mrf.mxu0
        %6114 = vmatprep.mubr.bf16.mxu0 0
        %6115 = vmatmul.mubr.bf16.gmra.mxu0 %v5906
        %v6116 = vpop.f32.mrf.mxu0
        %v6117 = vadd.f32 0.0, %v6116
        %v6118 = vpop.f32.mrf.mxu0
        %v6119 = vpop.f32.mrf.mxu0
        %v6120 = vadd.f32 0.0, %v6119
        %v6121 = vpop.f32.mrf.mxu0
        %6122 = vdwg.mxu0
        %v6123 = vadd.f32 %v5608, %v6005
        %v6124 = vadd.f32 %v5609, %v6008
        %v6125 = vadd.f32 %v5610, %v6013
        %v6126 = vadd.f32 %v5611, %v6016
        %v6127 = vadd.f32 %v5612, %v6021
        %v6128 = vadd.f32 %v5613, %v6024
        %v6129 = vadd.f32 %v5614, %v6029
        %v6130 = vadd.f32 %v5615, %v6032
        %v6131 = vadd.f32 %v5616, %v6037
        %v6132 = vadd.f32 %v5617, %v6040
        %v6133 = vadd.f32 %v5618, %v6045
        %v6134 = vadd.f32 %v5619, %v6048
        %v6135 = vadd.f32 %v5620, %v6053
        %v6136 = vadd.f32 %v5621, %v6056
        %v6137 = vadd.f32 %v5622, %v6061
        %v6138 = vadd.f32 %v5623, %v6064
        %v6139 = vadd.f32 %v5624, %v6069
        %v6140 = vadd.f32 %v5625, %v6072
        %v6141 = vadd.f32 %v5626, %v6077
        %v6142 = vadd.f32 %v5627, %v6080
        %v6143 = vadd.f32 %v5628, %v6085
        %v6144 = vadd.f32 %v5629, %v6088
        %v6145 = vadd.f32 %v5630, %v6093
        %v6146 = vadd.f32 %v5631, %v6096
        %v6147 = vadd.f32 %v5632, %v6101
        %v6148 = vadd.f32 %v5633, %v6104
        %v6149 = vadd.f32 %v5634, %v6109
        %v6150 = vadd.f32 %v5635, %v6112
        %v6151 = vadd.f32 %v5636, %v6117
        %v6152 = vadd.f32 %v5637, %v6120
        %s6153 = scalar_lea.vmem [#allocation14], 448
        %v6154 = vld [vmem:[%s6153] sm:$0xf]
        %v6155 = vld [vmem:[%s6153 + $0x4] sm:$0xf]
        %v6156 = vld [vmem:[%s6153 + $0x8] sm:$0xf]
        %v6157 = vld [vmem:[%s6153 + $0xc] sm:$0xf]
        %v6158 = vld [vmem:[%s6153 + $0x10] sm:$0xf]
        %v6159 = vld [vmem:[%s6153 + $0x14] sm:$0xf]
        %v6160 = vld [vmem:[%s6153 + $0x18] sm:$0xf]
        %v6161 = vld [vmem:[%s6153 + $0x1c] sm:$0xf]
        %v6162 = vld [vmem:[%s6153 + $0x20] sm:$0xf]
        %v6163 = vld [vmem:[%s6153 + $0x24] sm:$0xf]
        %v6164 = vld [vmem:[%s6153 + $0x28] sm:$0xf]
        %v6165 = vld [vmem:[%s6153 + $0x2c] sm:$0xf]
        %v6166 = vld [vmem:[%s6153 + $0x30] sm:$0xf]
        %v6167 = vld [vmem:[%s6153 + $0x34] sm:$0xf]
        %v6168 = vld [vmem:[%s6153 + $0x38] sm:$0xf]
        %v6169 = vld [vmem:[%s6153 + $0x3c] sm:$0xf]
        %v6170 = vpack.c.b16 %v5719, %v5718
        %v6171 = vpack.c.b16 %v5721, %v5720
        %v6172 = vpack.c.b16 %v5723, %v5722
        %v6173 = vpack.c.b16 %v5725, %v5724
        %v6174 = vpack.c.b16 %v5727, %v5726
        %v6175 = vpack.c.b16 %v5729, %v5728
        %v6176 = vpack.c.b16 %v5731, %v5730
        %v6177 = vpack.c.b16 %v5733, %v5732
        %v6178 = vpack.c.b16 %v5735, %v5734
        %v6179 = vpack.c.b16 %v5737, %v5736
        %v6180 = vpack.c.b16 %v5739, %v5738
        %v6181 = vpack.c.b16 %v5741, %v5740
        %v6182 = vpack.c.b16 %v5743, %v5742
        %v6183 = vpack.c.b16 %v5745, %v5744
        %v6184 = vpack.c.b16 %v5747, %v5746
        %v6216 = vunpack.c.l.b16 %v6154
        %v6217 = vunpack.c.l.b16 %v6155
        %v6218 = vunpack.c.l.b16 %v6156
        %v6219 = vunpack.c.l.b16 %v6157
        %v6220 = vunpack.c.l.b16 %v6158
        %v6221 = vunpack.c.l.b16 %v6159
        %v6222 = vunpack.c.l.b16 %v6160
        %v6223 = vunpack.c.l.b16 %v6161
        %v6224 = vunpack.c.l.b16 %v6162
        %v6225 = vunpack.c.l.b16 %v6163
        %v6226 = vunpack.c.l.b16 %v6164
        %v6227 = vunpack.c.l.b16 %v6165
        %v6228 = vunpack.c.l.b16 %v6166
        %v6229 = vunpack.c.l.b16 %v6167
        %v6230 = vunpack.c.l.b16 %v6168
        %v6231 = vunpack.c.l.b16 %v6169
        %v6232 = vpack.c.b16 %v6217, %v6216
        %v6233 = vpack.c.b16 %v6219, %v6218
        %v6234 = vpack.c.b16 %v6221, %v6220
        %v6235 = vpack.c.b16 %v6223, %v6222
        %v6236 = vpack.c.b16 %v6225, %v6224
        %v6237 = vpack.c.b16 %v6227, %v6226
        %v6238 = vpack.c.b16 %v6229, %v6228
        %v6239 = vpack.c.b16 %v6231, %v6230
        %6248 = vmatprep.subr.bf16.mxu0 0
        %6249 = vmatpush1.bf16.msra.mxu0 %v6239
        %6250 = vmatprep.subr.bf16.mxu0 0
        %6251 = vmatpush1.bf16.msra.mxu0 %v6238
        %6252 = vmatprep.subr.bf16.mxu0 0
        %6253 = vmatpush1.bf16.msra.mxu0 %v6237
        %6254 = vmatprep.subr.bf16.mxu0 0
        %6255 = vmatpush1.bf16.msra.mxu0 %v6236
        %6256 = vmatprep.subr.bf16.mxu0 0
        %6257 = vmatpush1.bf16.msra.mxu0 %v6235
        %6258 = vmatprep.subr.bf16.mxu0 0
        %6259 = vmatpush1.bf16.msra.mxu0 %v6234
        %6260 = vmatprep.subr.bf16.mxu0 0
        %6261 = vmatpush1.bf16.msra.mxu0 %v6233
        %6262 = vmatprep.subr.bf16.mxu0 0
        %6263 = vmatpush1.bf16.msra.mxu0 %v6232
        %6264 = vmatprep.subr.bf16.mxu0 0
        %6265 = vmatpush2.bf16.msra.mxu0 0
        %6266 = vmatprep.subr.bf16.mxu0 0
        %6267 = vmatpush2.bf16.msra.mxu0 0
        %6268 = vmatprep.subr.bf16.mxu0 0
        %6269 = vmatpush2.bf16.msra.mxu0 0
        %6270 = vmatprep.subr.bf16.mxu0 0
        %6271 = vmatpush2.bf16.msra.mxu0 0
        %6272 = vmatprep.subr.bf16.mxu0 0
        %6273 = vmatpush2.bf16.msra.mxu0 0
        %6274 = vmatprep.subr.bf16.mxu0 0
        %6275 = vmatpush2.bf16.msra.mxu0 0
        %6276 = vmatprep.subr.bf16.mxu0 0
        %6277 = vmatpush2.bf16.msra.mxu0 0
        %6278 = vmatprep.subr.bf16.mxu0 0
        %6279 = vmatpush2.bf16.msra.mxu0 0
        %6280 = vmatprep.mubr.bf16.mxu0 0
        %6281 = vmatmul.mubr.bf16.gmra.mxu0 %v6170
        %v6282 = vpop.f32.mrf.mxu0
        %v6283 = vadd.f32 0.0, %v6282
        %v6284 = vpop.f32.mrf.mxu0
        %v6285 = vpop.f32.mrf.mxu0
        %v6286 = vadd.f32 0.0, %v6285
        %v6287 = vpop.f32.mrf.mxu0
        %6288 = vmatprep.mubr.bf16.mxu0 0
        %6289 = vmatmul.mubr.bf16.gmra.mxu0 %v6171
        %v6290 = vpop.f32.mrf.mxu0
        %v6291 = vadd.f32 0.0, %v6290
        %v6292 = vpop.f32.mrf.mxu0
        %v6293 = vpop.f32.mrf.mxu0
        %v6294 = vadd.f32 0.0, %v6293
        %v6295 = vpop.f32.mrf.mxu0
        %6296 = vmatprep.mubr.bf16.mxu0 0
        %6297 = vmatmul.mubr.bf16.gmra.mxu0 %v6172
        %v6298 = vpop.f32.mrf.mxu0
        %v6299 = vadd.f32 0.0, %v6298
        %v6300 = vpop.f32.mrf.mxu0
        %v6301 = vpop.f32.mrf.mxu0
        %v6302 = vadd.f32 0.0, %v6301
        %v6303 = vpop.f32.mrf.mxu0
        %6304 = vmatprep.mubr.bf16.mxu0 0
        %6305 = vmatmul.mubr.bf16.gmra.mxu0 %v6173
        %v6306 = vpop.f32.mrf.mxu0
        %v6307 = vadd.f32 0.0, %v6306
        %v6308 = vpop.f32.mrf.mxu0
        %v6309 = vpop.f32.mrf.mxu0
        %v6310 = vadd.f32 0.0, %v6309
        %v6311 = vpop.f32.mrf.mxu0
        %6312 = vmatprep.mubr.bf16.mxu0 0
        %6313 = vmatmul.mubr.bf16.gmra.mxu0 %v6174
        %v6314 = vpop.f32.mrf.mxu0
        %v6315 = vadd.f32 0.0, %v6314
        %v6316 = vpop.f32.mrf.mxu0
        %v6317 = vpop.f32.mrf.mxu0
        %v6318 = vadd.f32 0.0, %v6317
        %v6319 = vpop.f32.mrf.mxu0
        %6320 = vmatprep.mubr.bf16.mxu0 0
        %6321 = vmatmul.mubr.bf16.gmra.mxu0 %v6175
        %v6322 = vpop.f32.mrf.mxu0
        %v6323 = vadd.f32 0.0, %v6322
        %v6324 = vpop.f32.mrf.mxu0
        %v6325 = vpop.f32.mrf.mxu0
        %v6326 = vadd.f32 0.0, %v6325
        %v6327 = vpop.f32.mrf.mxu0
        %6328 = vmatprep.mubr.bf16.mxu0 0
        %6329 = vmatmul.mubr.bf16.gmra.mxu0 %v6176
        %v6330 = vpop.f32.mrf.mxu0
        %v6331 = vadd.f32 0.0, %v6330
        %v6332 = vpop.f32.mrf.mxu0
        %v6333 = vpop.f32.mrf.mxu0
        %v6334 = vadd.f32 0.0, %v6333
        %v6335 = vpop.f32.mrf.mxu0
        %6336 = vmatprep.mubr.bf16.mxu0 0
        %6337 = vmatmul.mubr.bf16.gmra.mxu0 %v6177
        %v6338 = vpop.f32.mrf.mxu0
        %v6339 = vadd.f32 0.0, %v6338
        %v6340 = vpop.f32.mrf.mxu0
        %v6341 = vpop.f32.mrf.mxu0
        %v6342 = vadd.f32 0.0, %v6341
        %v6343 = vpop.f32.mrf.mxu0
        %6344 = vmatprep.mubr.bf16.mxu0 0
        %6345 = vmatmul.mubr.bf16.gmra.mxu0 %v6178
        %v6346 = vpop.f32.mrf.mxu0
        %v6347 = vadd.f32 0.0, %v6346
        %v6348 = vpop.f32.mrf.mxu0
        %v6349 = vpop.f32.mrf.mxu0
        %v6350 = vadd.f32 0.0, %v6349
        %v6351 = vpop.f32.mrf.mxu0
        %6352 = vmatprep.mubr.bf16.mxu0 0
        %6353 = vmatmul.mubr.bf16.gmra.mxu0 %v6179
        %v6354 = vpop.f32.mrf.mxu0
        %v6355 = vadd.f32 0.0, %v6354
        %v6356 = vpop.f32.mrf.mxu0
        %v6357 = vpop.f32.mrf.mxu0
        %v6358 = vadd.f32 0.0, %v6357
        %v6359 = vpop.f32.mrf.mxu0
        %6360 = vmatprep.mubr.bf16.mxu0 0
        %6361 = vmatmul.mubr.bf16.gmra.mxu0 %v6180
        %v6362 = vpop.f32.mrf.mxu0
        %v6363 = vadd.f32 0.0, %v6362
        %v6364 = vpop.f32.mrf.mxu0
        %v6365 = vpop.f32.mrf.mxu0
        %v6366 = vadd.f32 0.0, %v6365
        %v6367 = vpop.f32.mrf.mxu0
        %6368 = vmatprep.mubr.bf16.mxu0 0
        %6369 = vmatmul.mubr.bf16.gmra.mxu0 %v6181
        %v6370 = vpop.f32.mrf.mxu0
        %v6371 = vadd.f32 0.0, %v6370
        %v6372 = vpop.f32.mrf.mxu0
        %v6373 = vpop.f32.mrf.mxu0
        %v6374 = vadd.f32 0.0, %v6373
        %v6375 = vpop.f32.mrf.mxu0
        %6376 = vmatprep.mubr.bf16.mxu0 0
        %6377 = vmatmul.mubr.bf16.gmra.mxu0 %v6182
        %v6378 = vpop.f32.mrf.mxu0
        %v6379 = vadd.f32 0.0, %v6378
        %v6380 = vpop.f32.mrf.mxu0
        %v6381 = vpop.f32.mrf.mxu0
        %v6382 = vadd.f32 0.0, %v6381
        %v6383 = vpop.f32.mrf.mxu0
        %6384 = vmatprep.mubr.bf16.mxu0 0
        %6385 = vmatmul.mubr.bf16.gmra.mxu0 %v6183
        %v6386 = vpop.f32.mrf.mxu0
        %v6387 = vadd.f32 0.0, %v6386
        %v6388 = vpop.f32.mrf.mxu0
        %v6389 = vpop.f32.mrf.mxu0
        %v6390 = vadd.f32 0.0, %v6389
        %v6391 = vpop.f32.mrf.mxu0
        %6392 = vmatprep.mubr.bf16.mxu0 0
        %6393 = vmatmul.mubr.bf16.gmra.mxu0 %v6184
        %v6394 = vpop.f32.mrf.mxu0
        %v6395 = vadd.f32 0.0, %v6394
        %v6396 = vpop.f32.mrf.mxu0
        %v6397 = vpop.f32.mrf.mxu0
        %v6398 = vadd.f32 0.0, %v6397
        %v6399 = vpop.f32.mrf.mxu0
        %6400 = vdwg.mxu0
        %v6401 = vadd.f32 %v6123, %v6283
        %v6402 = vadd.f32 %v6124, %v6286
        %v6403 = vadd.f32 %v6125, %v6291
        %v6404 = vadd.f32 %v6126, %v6294
        %v6405 = vadd.f32 %v6127, %v6299
        %v6406 = vadd.f32 %v6128, %v6302
        %v6407 = vadd.f32 %v6129, %v6307
        %v6408 = vadd.f32 %v6130, %v6310
        %v6409 = vadd.f32 %v6131, %v6315
        %v6410 = vadd.f32 %v6132, %v6318
        %v6411 = vadd.f32 %v6133, %v6323
        %v6412 = vadd.f32 %v6134, %v6326
        %v6413 = vadd.f32 %v6135, %v6331
        %v6414 = vadd.f32 %v6136, %v6334
        %v6415 = vadd.f32 %v6137, %v6339
        %v6416 = vadd.f32 %v6138, %v6342
        %v6417 = vadd.f32 %v6139, %v6347
        %v6418 = vadd.f32 %v6140, %v6350
        %v6419 = vadd.f32 %v6141, %v6355
        %v6420 = vadd.f32 %v6142, %v6358
        %v6421 = vadd.f32 %v6143, %v6363
        %v6422 = vadd.f32 %v6144, %v6366
        %v6423 = vadd.f32 %v6145, %v6371
        %v6424 = vadd.f32 %v6146, %v6374
        %v6425 = vadd.f32 %v6147, %v6379
        %v6426 = vadd.f32 %v6148, %v6382
        %v6427 = vadd.f32 %v6149, %v6387
        %v6428 = vadd.f32 %v6150, %v6390
        %v6429 = vadd.f32 %v6151, %v6395
        %v6430 = vadd.f32 %v6152, %v6398
        %v6431 = vld [vmem:[#allocation5 + $0x24] sm:$0xf]
        %v6432 = vld [vmem:[#allocation5 + $0x28] sm:$0xf]
        %v6433 = vld [vmem:[#allocation5 + $0x2c] sm:$0xf]
        %v6434 = vld [vmem:[#allocation5 + $0x30] sm:$0xf]
        %v6435 = vld [vmem:[#allocation5 + $0x34] sm:$0xf]
        %v6436 = vld [vmem:[#allocation5 + $0x38] sm:$0xf]
        %v6437 = vld [vmem:[#allocation5 + $0x3c] sm:$0xf]
        %v6438 = vld [vmem:[#allocation5 + $0x40] sm:$0xf]
        %v6439 = vld [vmem:[#allocation5 + $0x44] sm:$0xf]
        %v6440 = vld [vmem:[#allocation5 + $0x48] sm:$0xf]
        %v6441 = vld [vmem:[#allocation5 + $0x4c] sm:$0xf]
        %v6442 = vld [vmem:[#allocation5 + $0x50] sm:$0xf]
        %v6443 = vld [vmem:[#allocation5 + $0x54] sm:$0xf]
        %v6444 = vld [vmem:[#allocation5 + $0x58] sm:$0xf]
        %v6445 = vld [vmem:[#allocation5 + $0x5c] sm:$0xf]
        %v6446 = vld [vmem:[#allocation5 + $0x60] sm:$0xf]
        %v6447 = vld [vmem:[#allocation5 + $0x64] sm:$0xf]
        %v6448 = vld [vmem:[#allocation5 + $0x68] sm:$0xf]
        %v6449 = vld [vmem:[#allocation5 + $0x6c] sm:$0xf]
        %v6450 = vld [vmem:[#allocation5 + $0x70] sm:$0xf]
        %v6451 = vld [vmem:[#allocation5 + $0x74] sm:$0xf]
        %v6452 = vld [vmem:[#allocation5 + $0x78] sm:$0xf]
        %v6453 = vld [vmem:[#allocation5 + $0x7c] sm:$0xf]
        %v6454 = vld [vmem:[#allocation5 + $0x80] sm:$0xf]
        %v6455 = vld [vmem:[#allocation5 + $0x84] sm:$0xf]
        %v6456 = vld [vmem:[#allocation5 + $0x88] sm:$0xf]
        %v6457 = vld [vmem:[#allocation5 + $0x8c] sm:$0xf]
        %v6458 = vld [vmem:[#allocation5 + $0x90] sm:$0xf]
        %v6459 = vld [vmem:[#allocation5 + $0x94] sm:$0xf]
        %v6460 = vld [vmem:[#allocation5 + $0x98] sm:$0xf]
        %v6461 = vld [vmem:[#allocation5 + $0x9c] sm:$0x1]
        %s6462 = scalar_lea.vmem [#allocation14], 512
        %v6463 = vld [vmem:[%s6462] sm:$0xf]
        %v6464 = vld [vmem:[%s6462 + $0x4] sm:$0xf]
        %v6465 = vld [vmem:[%s6462 + $0x8] sm:$0xf]
        %v6466 = vld [vmem:[%s6462 + $0xc] sm:$0xf]
        %v6467 = vld [vmem:[%s6462 + $0x10] sm:$0xf]
        %v6468 = vld [vmem:[%s6462 + $0x14] sm:$0xf]
        %v6469 = vld [vmem:[%s6462 + $0x18] sm:$0xf]
        %v6470 = vld [vmem:[%s6462 + $0x1c] sm:$0xf]
        %v6471 = vld [vmem:[%s6462 + $0x20] sm:$0xf]
        %v6472 = vld [vmem:[%s6462 + $0x24] sm:$0xf]
        %v6473 = vld [vmem:[%s6462 + $0x28] sm:$0xf]
        %v6474 = vld [vmem:[%s6462 + $0x2c] sm:$0xf]
        %v6475 = vld [vmem:[%s6462 + $0x30] sm:$0xf]
        %v6476 = vld [vmem:[%s6462 + $0x34] sm:$0xf]
        %v6477 = vld [vmem:[%s6462 + $0x38] sm:$0xf]
        %v6478 = vld [vmem:[%s6462 + $0x3c] sm:$0xf]
        %v6510 = vunpack.c.l.b16 %v6431
        %v6511 = vunpack.c.l.b16 %v6432
        %v6512 = vunpack.c.l.b16 %v6433
        %v6513 = vunpack.c.l.b16 %v6434
        %v6514 = vunpack.c.l.b16 %v6435
        %v6515 = vunpack.c.l.b16 %v6436
        %v6516 = vunpack.c.l.b16 %v6437
        %v6517 = vunpack.c.l.b16 %v6438
        %v6518 = vunpack.c.l.b16 %v6439
        %v6519 = vunpack.c.l.b16 %v6440
        %v6520 = vunpack.c.l.b16 %v6441
        %v6521 = vunpack.c.l.b16 %v6442
        %v6522 = vunpack.c.l.b16 %v6443
        %v6523 = vunpack.c.l.b16 %v6444
        %v6524 = vunpack.c.l.b16 %v6445
        %v6525 = vunpack.c.l.b16 %v6446
        %v6526 = vunpack.c.l.b16 %v6447
        %v6527 = vunpack.c.l.b16 %v6448
        %v6528 = vunpack.c.l.b16 %v6449
        %v6529 = vunpack.c.l.b16 %v6450
        %v6530 = vunpack.c.l.b16 %v6451
        %v6531 = vunpack.c.l.b16 %v6452
        %v6532 = vunpack.c.l.b16 %v6453
        %v6533 = vunpack.c.l.b16 %v6454
        %v6534 = vunpack.c.l.b16 %v6455
        %v6535 = vunpack.c.l.b16 %v6456
        %v6536 = vunpack.c.l.b16 %v6457
        %v6537 = vunpack.c.l.b16 %v6458
        %v6538 = vunpack.c.l.b16 %v6459
        %v6539 = vunpack.c.l.b16 %v6460
        %v6540 = vunpack.c.l.b16 %v6461
        %v6541 = vpack.c.b16 %v6511, %v6510
        %v6542 = vpack.c.b16 %v6513, %v6512
        %v6543 = vpack.c.b16 %v6515, %v6514
        %v6544 = vpack.c.b16 %v6517, %v6516
        %v6545 = vpack.c.b16 %v6519, %v6518
        %v6546 = vpack.c.b16 %v6521, %v6520
        %v6547 = vpack.c.b16 %v6523, %v6522
        %v6548 = vpack.c.b16 %v6525, %v6524
        %v6549 = vpack.c.b16 %v6527, %v6526
        %v6550 = vpack.c.b16 %v6529, %v6528
        %v6551 = vpack.c.b16 %v6531, %v6530
        %v6552 = vpack.c.b16 %v6533, %v6532
        %v6553 = vpack.c.b16 %v6535, %v6534
        %v6554 = vpack.c.b16 %v6537, %v6536
        %v6555 = vpack.c.b16 %v6539, %v6538
        %v6556 = vpack.c.b16 %v6540, %v6540
        %v6558 = vshrl.u32 %v6541, 16
        %v6560 = vshll.u32 %v6541, 16
        %v6562 = vrot.slane %v6560, 1
        %v6563 = vor.u32 %v6558, %v6562
        %v6565 = vshll.u32 %v6542, 16
        %v6567 = vrot.slane %v6565, 1
        %v6568 = vsel %vm3978, %v6563, %v6567
        %v6569 = vshrl.u32 %v6542, 16
        %v6571 = vor.u32 %v6569, %v6567
        %v6573 = vshll.u32 %v6543, 16
        %v6575 = vrot.slane %v6573, 1
        %v6576 = vsel %vm3978, %v6571, %v6575
        %v6577 = vshrl.u32 %v6543, 16
        %v6579 = vor.u32 %v6577, %v6575
        %v6581 = vshll.u32 %v6544, 16
        %v6583 = vrot.slane %v6581, 1
        %v6584 = vsel %vm3978, %v6579, %v6583
        %v6585 = vshrl.u32 %v6544, 16
        %v6587 = vor.u32 %v6585, %v6583
        %v6589 = vshll.u32 %v6545, 16
        %v6591 = vrot.slane %v6589, 1
        %v6592 = vsel %vm3978, %v6587, %v6591
        %v6593 = vshrl.u32 %v6545, 16
        %v6595 = vor.u32 %v6593, %v6591
        %v6597 = vshll.u32 %v6546, 16
        %v6599 = vrot.slane %v6597, 1
        %v6600 = vsel %vm3978, %v6595, %v6599
        %v6601 = vshrl.u32 %v6546, 16
        %v6603 = vor.u32 %v6601, %v6599
        %v6605 = vshll.u32 %v6547, 16
        %v6607 = vrot.slane %v6605, 1
        %v6608 = vsel %vm3978, %v6603, %v6607
        %v6609 = vshrl.u32 %v6547, 16
        %v6611 = vor.u32 %v6609, %v6607
        %v6613 = vshll.u32 %v6548, 16
        %v6615 = vrot.slane %v6613, 1
        %v6616 = vsel %vm3978, %v6611, %v6615
        %v6617 = vshrl.u32 %v6548, 16
        %v6619 = vor.u32 %v6617, %v6615
        %v6621 = vshll.u32 %v6549, 16
        %v6623 = vrot.slane %v6621, 1
        %v6624 = vsel %vm3978, %v6619, %v6623
        %v6625 = vshrl.u32 %v6549, 16
        %v6627 = vor.u32 %v6625, %v6623
        %v6629 = vshll.u32 %v6550, 16
        %v6631 = vrot.slane %v6629, 1
        %v6632 = vsel %vm3978, %v6627, %v6631
        %v6633 = vshrl.u32 %v6550, 16
        %v6635 = vor.u32 %v6633, %v6631
        %v6637 = vshll.u32 %v6551, 16
        %v6639 = vrot.slane %v6637, 1
        %v6640 = vsel %vm3978, %v6635, %v6639
        %v6641 = vshrl.u32 %v6551, 16
        %v6643 = vor.u32 %v6641, %v6639
        %v6645 = vshll.u32 %v6552, 16
        %v6647 = vrot.slane %v6645, 1
        %v6648 = vsel %vm3978, %v6643, %v6647
        %v6649 = vshrl.u32 %v6552, 16
        %v6651 = vor.u32 %v6649, %v6647
        %v6653 = vshll.u32 %v6553, 16
        %v6655 = vrot.slane %v6653, 1
        %v6656 = vsel %vm3978, %v6651, %v6655
        %v6657 = vshrl.u32 %v6553, 16
        %v6659 = vor.u32 %v6657, %v6655
        %v6661 = vshll.u32 %v6554, 16
        %v6663 = vrot.slane %v6661, 1
        %v6664 = vsel %vm3978, %v6659, %v6663
        %v6665 = vshrl.u32 %v6554, 16
        %v6667 = vor.u32 %v6665, %v6663
        %v6669 = vshll.u32 %v6555, 16
        %v6671 = vrot.slane %v6669, 1
        %v6672 = vsel %vm3978, %v6667, %v6671
        %v6673 = vshrl.u32 %v6555, 16
        %v6675 = vor.u32 %v6673, %v6671
        %v6677 = vshll.u32 %v6556, 16
        %v6679 = vrot.slane %v6677, 1
        %v6680 = vsel %vm3978, %v6675, %v6679
        %v6712 = vunpack.c.l.b16 %v6463
        %v6713 = vunpack.c.l.b16 %v6464
        %v6714 = vunpack.c.l.b16 %v6465
        %v6715 = vunpack.c.l.b16 %v6466
        %v6716 = vunpack.c.l.b16 %v6467
        %v6717 = vunpack.c.l.b16 %v6468
        %v6718 = vunpack.c.l.b16 %v6469
        %v6719 = vunpack.c.l.b16 %v6470
        %v6720 = vunpack.c.l.b16 %v6471
        %v6721 = vunpack.c.l.b16 %v6472
        %v6722 = vunpack.c.l.b16 %v6473
        %v6723 = vunpack.c.l.b16 %v6474
        %v6724 = vunpack.c.l.b16 %v6475
        %v6725 = vunpack.c.l.b16 %v6476
        %v6726 = vunpack.c.l.b16 %v6477
        %v6727 = vunpack.c.l.b16 %v6478
        %v6728 = vpack.c.b16 %v6713, %v6712
        %v6729 = vpack.c.b16 %v6715, %v6714
        %v6730 = vpack.c.b16 %v6717, %v6716
        %v6731 = vpack.c.b16 %v6719, %v6718
        %v6732 = vpack.c.b16 %v6721, %v6720
        %v6733 = vpack.c.b16 %v6723, %v6722
        %v6734 = vpack.c.b16 %v6725, %v6724
        %v6735 = vpack.c.b16 %v6727, %v6726
        %6744 = vmatprep.subr.bf16.mxu0 0
        %6745 = vmatpush1.bf16.msra.mxu0 %v6735
        %6746 = vmatprep.subr.bf16.mxu0 0
        %6747 = vmatpush1.bf16.msra.mxu0 %v6734
        %6748 = vmatprep.subr.bf16.mxu0 0
        %6749 = vmatpush1.bf16.msra.mxu0 %v6733
        %6750 = vmatprep.subr.bf16.mxu0 0
        %6751 = vmatpush1.bf16.msra.mxu0 %v6732
        %6752 = vmatprep.subr.bf16.mxu0 0
        %6753 = vmatpush1.bf16.msra.mxu0 %v6731
        %6754 = vmatprep.subr.bf16.mxu0 0
        %6755 = vmatpush1.bf16.msra.mxu0 %v6730
        %6756 = vmatprep.subr.bf16.mxu0 0
        %6757 = vmatpush1.bf16.msra.mxu0 %v6729
        %6758 = vmatprep.subr.bf16.mxu0 0
        %6759 = vmatpush1.bf16.msra.mxu0 %v6728
        %6760 = vmatprep.subr.bf16.mxu0 0
        %6761 = vmatpush2.bf16.msra.mxu0 0
        %6762 = vmatprep.subr.bf16.mxu0 0
        %6763 = vmatpush2.bf16.msra.mxu0 0
        %6764 = vmatprep.subr.bf16.mxu0 0
        %6765 = vmatpush2.bf16.msra.mxu0 0
        %6766 = vmatprep.subr.bf16.mxu0 0
        %6767 = vmatpush2.bf16.msra.mxu0 0
        %6768 = vmatprep.subr.bf16.mxu0 0
        %6769 = vmatpush2.bf16.msra.mxu0 0
        %6770 = vmatprep.subr.bf16.mxu0 0
        %6771 = vmatpush2.bf16.msra.mxu0 0
        %6772 = vmatprep.subr.bf16.mxu0 0
        %6773 = vmatpush2.bf16.msra.mxu0 0
        %6774 = vmatprep.subr.bf16.mxu0 0
        %6775 = vmatpush2.bf16.msra.mxu0 0
        %6776 = vmatprep.mubr.bf16.mxu0 0
        %6777 = vmatmul.mubr.bf16.gmra.mxu0 %v6568
        %v6778 = vpop.f32.mrf.mxu0
        %v6779 = vadd.f32 0.0, %v6778
        %v6780 = vpop.f32.mrf.mxu0
        %v6781 = vpop.f32.mrf.mxu0
        %v6782 = vadd.f32 0.0, %v6781
        %v6783 = vpop.f32.mrf.mxu0
        %6784 = vmatprep.mubr.bf16.mxu0 0
        %6785 = vmatmul.mubr.bf16.gmra.mxu0 %v6576
        %v6786 = vpop.f32.mrf.mxu0
        %v6787 = vadd.f32 0.0, %v6786
        %v6788 = vpop.f32.mrf.mxu0
        %v6789 = vpop.f32.mrf.mxu0
        %v6790 = vadd.f32 0.0, %v6789
        %v6791 = vpop.f32.mrf.mxu0
        %6792 = vmatprep.mubr.bf16.mxu0 0
        %6793 = vmatmul.mubr.bf16.gmra.mxu0 %v6584
        %v6794 = vpop.f32.mrf.mxu0
        %v6795 = vadd.f32 0.0, %v6794
        %v6796 = vpop.f32.mrf.mxu0
        %v6797 = vpop.f32.mrf.mxu0
        %v6798 = vadd.f32 0.0, %v6797
        %v6799 = vpop.f32.mrf.mxu0
        %6800 = vmatprep.mubr.bf16.mxu0 0
        %6801 = vmatmul.mubr.bf16.gmra.mxu0 %v6592
        %v6802 = vpop.f32.mrf.mxu0
        %v6803 = vadd.f32 0.0, %v6802
        %v6804 = vpop.f32.mrf.mxu0
        %v6805 = vpop.f32.mrf.mxu0
        %v6806 = vadd.f32 0.0, %v6805
        %v6807 = vpop.f32.mrf.mxu0
        %6808 = vmatprep.mubr.bf16.mxu0 0
        %6809 = vmatmul.mubr.bf16.gmra.mxu0 %v6600
        %v6810 = vpop.f32.mrf.mxu0
        %v6811 = vadd.f32 0.0, %v6810
        %v6812 = vpop.f32.mrf.mxu0
        %v6813 = vpop.f32.mrf.mxu0
        %v6814 = vadd.f32 0.0, %v6813
        %v6815 = vpop.f32.mrf.mxu0
        %6816 = vmatprep.mubr.bf16.mxu0 0
        %6817 = vmatmul.mubr.bf16.gmra.mxu0 %v6608
        %v6818 = vpop.f32.mrf.mxu0
        %v6819 = vadd.f32 0.0, %v6818
        %v6820 = vpop.f32.mrf.mxu0
        %v6821 = vpop.f32.mrf.mxu0
        %v6822 = vadd.f32 0.0, %v6821
        %v6823 = vpop.f32.mrf.mxu0
        %6824 = vmatprep.mubr.bf16.mxu0 0
        %6825 = vmatmul.mubr.bf16.gmra.mxu0 %v6616
        %v6826 = vpop.f32.mrf.mxu0
        %v6827 = vadd.f32 0.0, %v6826
        %v6828 = vpop.f32.mrf.mxu0
        %v6829 = vpop.f32.mrf.mxu0
        %v6830 = vadd.f32 0.0, %v6829
        %v6831 = vpop.f32.mrf.mxu0
        %6832 = vmatprep.mubr.bf16.mxu0 0
        %6833 = vmatmul.mubr.bf16.gmra.mxu0 %v6624
        %v6834 = vpop.f32.mrf.mxu0
        %v6835 = vadd.f32 0.0, %v6834
        %v6836 = vpop.f32.mrf.mxu0
        %v6837 = vpop.f32.mrf.mxu0
        %v6838 = vadd.f32 0.0, %v6837
        %v6839 = vpop.f32.mrf.mxu0
        %6840 = vmatprep.mubr.bf16.mxu0 0
        %6841 = vmatmul.mubr.bf16.gmra.mxu0 %v6632
        %v6842 = vpop.f32.mrf.mxu0
        %v6843 = vadd.f32 0.0, %v6842
        %v6844 = vpop.f32.mrf.mxu0
        %v6845 = vpop.f32.mrf.mxu0
        %v6846 = vadd.f32 0.0, %v6845
        %v6847 = vpop.f32.mrf.mxu0
        %6848 = vmatprep.mubr.bf16.mxu0 0
        %6849 = vmatmul.mubr.bf16.gmra.mxu0 %v6640
        %v6850 = vpop.f32.mrf.mxu0
        %v6851 = vadd.f32 0.0, %v6850
        %v6852 = vpop.f32.mrf.mxu0
        %v6853 = vpop.f32.mrf.mxu0
        %v6854 = vadd.f32 0.0, %v6853
        %v6855 = vpop.f32.mrf.mxu0
        %6856 = vmatprep.mubr.bf16.mxu0 0
        %6857 = vmatmul.mubr.bf16.gmra.mxu0 %v6648
        %v6858 = vpop.f32.mrf.mxu0
        %v6859 = vadd.f32 0.0, %v6858
        %v6860 = vpop.f32.mrf.mxu0
        %v6861 = vpop.f32.mrf.mxu0
        %v6862 = vadd.f32 0.0, %v6861
        %v6863 = vpop.f32.mrf.mxu0
        %6864 = vmatprep.mubr.bf16.mxu0 0
        %6865 = vmatmul.mubr.bf16.gmra.mxu0 %v6656
        %v6866 = vpop.f32.mrf.mxu0
        %v6867 = vadd.f32 0.0, %v6866
        %v6868 = vpop.f32.mrf.mxu0
        %v6869 = vpop.f32.mrf.mxu0
        %v6870 = vadd.f32 0.0, %v6869
        %v6871 = vpop.f32.mrf.mxu0
        %6872 = vmatprep.mubr.bf16.mxu0 0
        %6873 = vmatmul.mubr.bf16.gmra.mxu0 %v6664
        %v6874 = vpop.f32.mrf.mxu0
        %v6875 = vadd.f32 0.0, %v6874
        %v6876 = vpop.f32.mrf.mxu0
        %v6877 = vpop.f32.mrf.mxu0
        %v6878 = vadd.f32 0.0, %v6877
        %v6879 = vpop.f32.mrf.mxu0
        %6880 = vmatprep.mubr.bf16.mxu0 0
        %6881 = vmatmul.mubr.bf16.gmra.mxu0 %v6672
        %v6882 = vpop.f32.mrf.mxu0
        %v6883 = vadd.f32 0.0, %v6882
        %v6884 = vpop.f32.mrf.mxu0
        %v6885 = vpop.f32.mrf.mxu0
        %v6886 = vadd.f32 0.0, %v6885
        %v6887 = vpop.f32.mrf.mxu0
        %6888 = vmatprep.mubr.bf16.mxu0 0
        %6889 = vmatmul.mubr.bf16.gmra.mxu0 %v6680
        %v6890 = vpop.f32.mrf.mxu0
        %v6891 = vadd.f32 0.0, %v6890
        %v6892 = vpop.f32.mrf.mxu0
        %v6893 = vpop.f32.mrf.mxu0
        %v6894 = vadd.f32 0.0, %v6893
        %v6895 = vpop.f32.mrf.mxu0
        %6896 = vdwg.mxu0
        %v6897 = vadd.f32 %v6401, %v6779
        %v6898 = vadd.f32 %v6402, %v6782
        %v6899 = vadd.f32 %v6403, %v6787
        %v6900 = vadd.f32 %v6404, %v6790
        %v6901 = vadd.f32 %v6405, %v6795
        %v6902 = vadd.f32 %v6406, %v6798
        %v6903 = vadd.f32 %v6407, %v6803
        %v6904 = vadd.f32 %v6408, %v6806
        %v6905 = vadd.f32 %v6409, %v6811
        %v6906 = vadd.f32 %v6410, %v6814
        %v6907 = vadd.f32 %v6411, %v6819
        %v6908 = vadd.f32 %v6412, %v6822
        %v6909 = vadd.f32 %v6413, %v6827
        %v6910 = vadd.f32 %v6414, %v6830
        %v6911 = vadd.f32 %v6415, %v6835
        %v6912 = vadd.f32 %v6416, %v6838
        %v6913 = vadd.f32 %v6417, %v6843
        %v6914 = vadd.f32 %v6418, %v6846
        %v6915 = vadd.f32 %v6419, %v6851
        %v6916 = vadd.f32 %v6420, %v6854
        %v6917 = vadd.f32 %v6421, %v6859
        %v6918 = vadd.f32 %v6422, %v6862
        %v6919 = vadd.f32 %v6423, %v6867
        %v6920 = vadd.f32 %v6424, %v6870
        %v6921 = vadd.f32 %v6425, %v6875
        %v6922 = vadd.f32 %v6426, %v6878
        %v6923 = vadd.f32 %v6427, %v6883
        %v6924 = vadd.f32 %v6428, %v6886
        %v6925 = vadd.f32 %v6429, %v6891
        %v6926 = vadd.f32 %v6430, %v6894
        %v6927 = vld [vmem:[%s10] sm:$0x1]
        %v6929 = vlaneseq
        %v6930 = vshrl.u32 %v6929, 7
        %v6931 = vsub.s32 0, %v6930
        %v6932 = vrot.slane %v6927, %v6931
        %v6934 = vadd.f32 %v6897, %v6932
        %v6935 = vadd.f32 %v6898, %v6932
        %v6936 = vadd.f32 %v6899, %v6932
        %v6937 = vadd.f32 %v6900, %v6932
        %v6938 = vadd.f32 %v6901, %v6932
        %v6939 = vadd.f32 %v6902, %v6932
        %v6940 = vadd.f32 %v6903, %v6932
        %v6941 = vadd.f32 %v6904, %v6932
        %v6942 = vadd.f32 %v6905, %v6932
        %v6943 = vadd.f32 %v6906, %v6932
        %v6944 = vadd.f32 %v6907, %v6932
        %v6945 = vadd.f32 %v6908, %v6932
        %v6946 = vadd.f32 %v6909, %v6932
        %v6947 = vadd.f32 %v6910, %v6932
        %v6948 = vadd.f32 %v6911, %v6932
        %v6949 = vadd.f32 %v6912, %v6932
        %v6950 = vadd.f32 %v6913, %v6932
        %v6951 = vadd.f32 %v6914, %v6932
        %v6952 = vadd.f32 %v6915, %v6932
        %v6953 = vadd.f32 %v6916, %v6932
        %v6954 = vadd.f32 %v6917, %v6932
        %v6955 = vadd.f32 %v6918, %v6932
        %v6956 = vadd.f32 %v6919, %v6932
        %v6957 = vadd.f32 %v6920, %v6932
        %v6958 = vadd.f32 %v6921, %v6932
        %v6959 = vadd.f32 %v6922, %v6932
        %v6960 = vadd.f32 %v6923, %v6932
        %v6961 = vadd.f32 %v6924, %v6932
        %v6962 = vadd.f32 %v6925, %v6932
        %v6963 = vadd.f32 %v6926, %v6932
        %vm6964 = vcmp.gt.f32.partialorder %v6934, 0.0
        %vm6965 = vcmp.gt.f32.partialorder %v6935, 0.0
        %vm6966 = vcmp.gt.f32.partialorder %v6936, 0.0
        %vm6967 = vcmp.gt.f32.partialorder %v6937, 0.0
        %vm6968 = vcmp.gt.f32.partialorder %v6938, 0.0
        %vm6969 = vcmp.gt.f32.partialorder %v6939, 0.0
        %vm6970 = vcmp.gt.f32.partialorder %v6940, 0.0
        %vm6971 = vcmp.gt.f32.partialorder %v6941, 0.0
        %vm6972 = vcmp.gt.f32.partialorder %v6942, 0.0
        %vm6973 = vcmp.gt.f32.partialorder %v6943, 0.0
        %vm6974 = vcmp.gt.f32.partialorder %v6944, 0.0
        %vm6975 = vcmp.gt.f32.partialorder %v6945, 0.0
        %vm6976 = vcmp.gt.f32.partialorder %v6946, 0.0
        %vm6977 = vcmp.gt.f32.partialorder %v6947, 0.0
        %vm6978 = vcmp.gt.f32.partialorder %v6948, 0.0
        %vm6979 = vcmp.gt.f32.partialorder %v6949, 0.0
        %vm6980 = vcmp.gt.f32.partialorder %v6950, 0.0
        %vm6981 = vcmp.gt.f32.partialorder %v6951, 0.0
        %vm6982 = vcmp.gt.f32.partialorder %v6952, 0.0
        %vm6983 = vcmp.gt.f32.partialorder %v6953, 0.0
        %vm6984 = vcmp.gt.f32.partialorder %v6954, 0.0
        %vm6985 = vcmp.gt.f32.partialorder %v6955, 0.0
        %vm6986 = vcmp.gt.f32.partialorder %v6956, 0.0
        %vm6987 = vcmp.gt.f32.partialorder %v6957, 0.0
        %vm6988 = vcmp.gt.f32.partialorder %v6958, 0.0
        %vm6989 = vcmp.gt.f32.partialorder %v6959, 0.0
        %vm6990 = vcmp.gt.f32.partialorder %v6960, 0.0
        %vm6991 = vcmp.gt.f32.partialorder %v6961, 0.0
        %vm6992 = vcmp.gt.f32.partialorder %v6962, 0.0
        %vm6993 = vcmp.gt.f32.partialorder %v6963, 0.0
        %v6994 = vmul.f32 %v6934, 0.01
        %v6995 = vmul.f32 %v6935, 0.01
        %v6996 = vmul.f32 %v6936, 0.01
        %v6997 = vmul.f32 %v6937, 0.01
        %v6998 = vmul.f32 %v6938, 0.01
        %v6999 = vmul.f32 %v6939, 0.01
        %v7000 = vmul.f32 %v6940, 0.01
        %v7001 = vmul.f32 %v6941, 0.01
        %v7002 = vmul.f32 %v6942, 0.01
        %v7003 = vmul.f32 %v6943, 0.01
        %v7004 = vmul.f32 %v6944, 0.01
        %v7005 = vmul.f32 %v6945, 0.01
        %v7006 = vmul.f32 %v6946, 0.01
        %v7007 = vmul.f32 %v6947, 0.01
        %v7008 = vmul.f32 %v6948, 0.01
        %v7009 = vmul.f32 %v6949, 0.01
        %v7010 = vmul.f32 %v6950, 0.01
        %v7011 = vmul.f32 %v6951, 0.01
        %v7012 = vmul.f32 %v6952, 0.01
        %v7013 = vmul.f32 %v6953, 0.01
        %v7014 = vmul.f32 %v6954, 0.01
        %v7015 = vmul.f32 %v6955, 0.01
        %v7016 = vmul.f32 %v6956, 0.01
        %v7017 = vmul.f32 %v6957, 0.01
        %v7018 = vmul.f32 %v6958, 0.01
        %v7019 = vmul.f32 %v6959, 0.01
        %v7020 = vmul.f32 %v6960, 0.01
        %v7021 = vmul.f32 %v6961, 0.01
        %v7022 = vmul.f32 %v6962, 0.01
        %v7023 = vmul.f32 %v6963, 0.01
        %v7024 = vsel %vm6964, %v6934, %v6994
        %v7025 = vsel %vm6965, %v6935, %v6995
        %v7026 = vsel %vm6966, %v6936, %v6996
        %v7027 = vsel %vm6967, %v6937, %v6997
        %v7028 = vsel %vm6968, %v6938, %v6998
        %v7029 = vsel %vm6969, %v6939, %v6999
        %v7030 = vsel %vm6970, %v6940, %v7000
        %v7031 = vsel %vm6971, %v6941, %v7001
        %v7032 = vsel %vm6972, %v6942, %v7002
        %v7033 = vsel %vm6973, %v6943, %v7003
        %v7034 = vsel %vm6974, %v6944, %v7004
        %v7035 = vsel %vm6975, %v6945, %v7005
        %v7036 = vsel %vm6976, %v6946, %v7006
        %v7037 = vsel %vm6977, %v6947, %v7007
        %v7038 = vsel %vm6978, %v6948, %v7008
        %v7039 = vsel %vm6979, %v6949, %v7009
        %v7040 = vsel %vm6980, %v6950, %v7010
        %v7041 = vsel %vm6981, %v6951, %v7011
        %v7042 = vsel %vm6982, %v6952, %v7012
        %v7043 = vsel %vm6983, %v6953, %v7013
        %v7044 = vsel %vm6984, %v6954, %v7014
        %v7045 = vsel %vm6985, %v6955, %v7015
        %v7046 = vsel %vm6986, %v6956, %v7016
        %v7047 = vsel %vm6987, %v6957, %v7017
        %v7048 = vsel %vm6988, %v6958, %v7018
        %v7049 = vsel %vm6989, %v6959, %v7019
        %v7050 = vsel %vm6990, %v6960, %v7020
        %v7051 = vsel %vm6991, %v6961, %v7021
        %v7052 = vsel %vm6992, %v6962, %v7022
        %v7053 = vsel %vm6993, %v6963, %v7023
        %v7054 = vld [vmem:[%s12] sm:$0xff]
        %v7055 = vld [vmem:[%s12 + $0x8] sm:$0xff]
        %v7056 = vld [vmem:[%s12 + $0x10] sm:$0xff]
        %v7057 = vld [vmem:[%s12 + $0x18] sm:$0xff]
        %v7058 = vld [vmem:[%s12 + $0x20] sm:$0xff]
        %v7059 = vld [vmem:[%s12 + $0x28] sm:$0xff]
        %v7060 = vld [vmem:[%s12 + $0x30] sm:$0xff]
        %v7061 = vld [vmem:[%s12 + $0x38] sm:$0xff]
        %v7062 = vld [vmem:[%s12 + $0x40] sm:$0xff]
        %v7063 = vld [vmem:[%s12 + $0x48] sm:$0xff]
        %v7064 = vld [vmem:[%s12 + $0x50] sm:$0xff]
        %v7065 = vld [vmem:[%s12 + $0x58] sm:$0xff]
        %v7066 = vld [vmem:[%s12 + $0x60] sm:$0xff]
        %v7067 = vld [vmem:[%s12 + $0x68] sm:$0xff]
        %v7068 = vld [vmem:[%s12 + $0x70] sm:$0xff]
        %v7069 = vld [vmem:[%s12 + $0x78] sm:$0xff]
        %v7070 = vld [vmem:[%s12 + $0x80] sm:$0xff]
        %v7071 = vld [vmem:[%s12 + $0x88] sm:$0xff]
        %v7072 = vld [vmem:[%s12 + $0x90] sm:$0xff]
        %v7073 = vld [vmem:[%s12 + $0x98] sm:$0xff]
        %v7074 = vld [vmem:[%s12 + $0xa0] sm:$0xff]
        %v7075 = vld [vmem:[%s12 + $0xa8] sm:$0xff]
        %v7076 = vld [vmem:[%s12 + $0xb0] sm:$0xff]
        %v7077 = vld [vmem:[%s12 + $0xb8] sm:$0xff]
        %v7078 = vld [vmem:[%s12 + $0xc0] sm:$0xff]
        %v7079 = vld [vmem:[%s12 + $0xc8] sm:$0xff]
        %v7080 = vld [vmem:[%s12 + $0xd0] sm:$0xff]
        %v7081 = vld [vmem:[%s12 + $0xd8] sm:$0xff]
        %v7082 = vld [vmem:[%s12 + $0xe0] sm:$0xff]
        %v7083 = vld [vmem:[%s12 + $0xe8] sm:$0xff]
        %7085 = vset.pattern.permute.xlu0 0
        %7086 = vperm.xlu0 %7085, %v7054
        %v7087 = vpop.permute.xlu0 %7086
        %7090 = vset.pattern.permute.xlu0 0
        %7091 = vperm.xlu0 %7090, %v7055
        %v7092 = vpop.permute.xlu0 %7091
        %7095 = vset.pattern.permute.xlu0 0
        %7096 = vperm.xlu0 %7095, %v7056
        %v7097 = vpop.permute.xlu0 %7096
        %7100 = vset.pattern.permute.xlu0 0
        %7101 = vperm.xlu0 %7100, %v7057
        %v7102 = vpop.permute.xlu0 %7101
        %7105 = vset.pattern.permute.xlu0 0
        %7106 = vperm.xlu0 %7105, %v7058
        %v7107 = vpop.permute.xlu0 %7106
        %7110 = vset.pattern.permute.xlu0 0
        %7111 = vperm.xlu0 %7110, %v7059
        %v7112 = vpop.permute.xlu0 %7111
        %7115 = vset.pattern.permute.xlu0 0
        %7116 = vperm.xlu0 %7115, %v7060
        %v7117 = vpop.permute.xlu0 %7116
        %7120 = vset.pattern.permute.xlu0 0
        %7121 = vperm.xlu0 %7120, %v7061
        %v7122 = vpop.permute.xlu0 %7121
        %7125 = vset.pattern.permute.xlu0 0
        %7126 = vperm.xlu0 %7125, %v7062
        %v7127 = vpop.permute.xlu0 %7126
        %7130 = vset.pattern.permute.xlu0 0
        %7131 = vperm.xlu0 %7130, %v7063
        %v7132 = vpop.permute.xlu0 %7131
        %7135 = vset.pattern.permute.xlu0 0
        %7136 = vperm.xlu0 %7135, %v7064
        %v7137 = vpop.permute.xlu0 %7136
        %7140 = vset.pattern.permute.xlu0 0
        %7141 = vperm.xlu0 %7140, %v7065
        %v7142 = vpop.permute.xlu0 %7141
        %7145 = vset.pattern.permute.xlu0 0
        %7146 = vperm.xlu0 %7145, %v7066
        %v7147 = vpop.permute.xlu0 %7146
        %7150 = vset.pattern.permute.xlu0 0
        %7151 = vperm.xlu0 %7150, %v7067
        %v7152 = vpop.permute.xlu0 %7151
        %7155 = vset.pattern.permute.xlu0 0
        %7156 = vperm.xlu0 %7155, %v7068
        %v7157 = vpop.permute.xlu0 %7156
        %7160 = vset.pattern.permute.xlu0 0
        %7161 = vperm.xlu0 %7160, %v7069
        %v7162 = vpop.permute.xlu0 %7161
        %7165 = vset.pattern.permute.xlu0 0
        %7166 = vperm.xlu0 %7165, %v7070
        %v7167 = vpop.permute.xlu0 %7166
        %7170 = vset.pattern.permute.xlu0 0
        %7171 = vperm.xlu0 %7170, %v7071
        %v7172 = vpop.permute.xlu0 %7171
        %7175 = vset.pattern.permute.xlu0 0
        %7176 = vperm.xlu0 %7175, %v7072
        %v7177 = vpop.permute.xlu0 %7176
        %7180 = vset.pattern.permute.xlu0 0
        %7181 = vperm.xlu0 %7180, %v7073
        %v7182 = vpop.permute.xlu0 %7181
        %7185 = vset.pattern.permute.xlu0 0
        %7186 = vperm.xlu0 %7185, %v7074
        %v7187 = vpop.permute.xlu0 %7186
        %7190 = vset.pattern.permute.xlu0 0
        %7191 = vperm.xlu0 %7190, %v7075
        %v7192 = vpop.permute.xlu0 %7191
        %7195 = vset.pattern.permute.xlu0 0
        %7196 = vperm.xlu0 %7195, %v7076
        %v7197 = vpop.permute.xlu0 %7196
        %7200 = vset.pattern.permute.xlu0 0
        %7201 = vperm.xlu0 %7200, %v7077
        %v7202 = vpop.permute.xlu0 %7201
        %7205 = vset.pattern.permute.xlu0 0
        %7206 = vperm.xlu0 %7205, %v7078
        %v7207 = vpop.permute.xlu0 %7206
        %7210 = vset.pattern.permute.xlu0 0
        %7211 = vperm.xlu0 %7210, %v7079
        %v7212 = vpop.permute.xlu0 %7211
        %7215 = vset.pattern.permute.xlu0 0
        %7216 = vperm.xlu0 %7215, %v7080
        %v7217 = vpop.permute.xlu0 %7216
        %7220 = vset.pattern.permute.xlu0 0
        %7221 = vperm.xlu0 %7220, %v7081
        %v7222 = vpop.permute.xlu0 %7221
        %7225 = vset.pattern.permute.xlu0 0
        %7226 = vperm.xlu0 %7225, %v7082
        %v7227 = vpop.permute.xlu0 %7226
        %7230 = vset.pattern.permute.xlu0 0
        %7231 = vperm.xlu0 %7230, %v7083
        %v7232 = vpop.permute.xlu0 %7231
        %v7234 = vmul.f32 %v7024, %v7087
        %v7235 = vmul.f32 %v7025, %v7092
        %v7236 = vmul.f32 %v7026, %v7097
        %v7237 = vmul.f32 %v7027, %v7102
        %v7238 = vmul.f32 %v7028, %v7107
        %v7239 = vmul.f32 %v7029, %v7112
        %v7240 = vmul.f32 %v7030, %v7117
        %v7241 = vmul.f32 %v7031, %v7122
        %v7242 = vmul.f32 %v7032, %v7127
        %v7243 = vmul.f32 %v7033, %v7132
        %v7244 = vmul.f32 %v7034, %v7137
        %v7245 = vmul.f32 %v7035, %v7142
        %v7246 = vmul.f32 %v7036, %v7147
        %v7247 = vmul.f32 %v7037, %v7152
        %v7248 = vmul.f32 %v7038, %v7157
        %v7249 = vmul.f32 %v7039, %v7162
        %v7250 = vmul.f32 %v7040, %v7167
        %v7251 = vmul.f32 %v7041, %v7172
        %v7252 = vmul.f32 %v7042, %v7177
        %v7253 = vmul.f32 %v7043, %v7182
        %v7254 = vmul.f32 %v7044, %v7187
        %v7255 = vmul.f32 %v7045, %v7192
        %v7256 = vmul.f32 %v7046, %v7197
        %v7257 = vmul.f32 %v7047, %v7202
        %v7258 = vmul.f32 %v7048, %v7207
        %v7259 = vmul.f32 %v7049, %v7212
        %v7260 = vmul.f32 %v7050, %v7217
        %v7261 = vmul.f32 %v7051, %v7222
        %v7262 = vmul.f32 %v7052, %v7227
        %v7263 = vmul.f32 %v7053, %v7232
        %p7264 = scmp.gt.s32.totalorder %s305, 0
        %s7265 = scalar_select %p7264, 1, 0
        %s7266 = scvt.s32.f32 %s7265
        %p7267 = scmp.lt.s32.totalorder %s2383, 16
        %s7268 = scalar_select %p7267, 1, 0
        %s7269 = scvt.s32.f32 %s7268
        %v7270 = vstv %s7266
        %v7271 = vmul.f32 %v7234, %v7270
        %v7272 = vmul.f32 %v7235, %v7270
        %v7273 = vmul.f32 %v7236, %v7270
        %v7274 = vpack.c.bf16 %v7272, %v7271
        %v7275 = vpack.c.bf16 %v7273, %v7273
        %v7278 = vunpack.c.l.b16 %v7274
        %v7279 = vunpack.c.h.b16 %v7274
        %v7280 = vunpack.c.l.b16 %v7275
        %v7281 = vpack.c.b16 %v7278, %v7278
        %v7282 = vpack.c.b16 %v7279, %v7279
        %v7283 = vpack.c.b16 %v7280, %v7280
        %7287 = vst [vmem:[#allocation6 + $0xc] sm:$0xf] %v7281
        %7288 = vst [vmem:[#allocation6 + $0x10] sm:$0xf] %v7282
        %7289 = vst [vmem:[#allocation6 + $0x14] sm:$0xf] %v7283
        %v7290 = vpack.c.bf16 %v7238, %v7237
        %v7291 = vpack.c.bf16 %v7240, %v7239
        %v7292 = vpack.c.bf16 %v7242, %v7241
        %v7293 = vpack.c.bf16 %v7244, %v7243
        %v7294 = vpack.c.bf16 %v7246, %v7245
        %v7295 = vpack.c.bf16 %v7248, %v7247
        %v7296 = vpack.c.bf16 %v7250, %v7249
        %v7297 = vpack.c.bf16 %v7252, %v7251
        %v7298 = vpack.c.bf16 %v7254, %v7253
        %v7299 = vpack.c.bf16 %v7256, %v7255
        %v7300 = vpack.c.bf16 %v7258, %v7257
        %v7301 = vpack.c.bf16 %v7260, %v7259
        %v7314 = vunpack.c.l.b16 %v7290
        %v7315 = vunpack.c.h.b16 %v7290
        %v7316 = vunpack.c.l.b16 %v7291
        %v7317 = vunpack.c.h.b16 %v7291
        %v7318 = vunpack.c.l.b16 %v7292
        %v7319 = vunpack.c.h.b16 %v7292
        %v7320 = vunpack.c.l.b16 %v7293
        %v7321 = vunpack.c.h.b16 %v7293
        %v7322 = vunpack.c.l.b16 %v7294
        %v7323 = vunpack.c.h.b16 %v7294
        %v7324 = vunpack.c.l.b16 %v7295
        %v7325 = vunpack.c.h.b16 %v7295
        %v7326 = vunpack.c.l.b16 %v7296
        %v7327 = vunpack.c.h.b16 %v7296
        %v7328 = vunpack.c.l.b16 %v7297
        %v7329 = vunpack.c.h.b16 %v7297
        %v7330 = vunpack.c.l.b16 %v7298
        %v7331 = vunpack.c.h.b16 %v7298
        %v7332 = vunpack.c.l.b16 %v7299
        %v7333 = vunpack.c.h.b16 %v7299
        %v7334 = vunpack.c.l.b16 %v7300
        %v7335 = vunpack.c.h.b16 %v7300
        %v7336 = vunpack.c.l.b16 %v7301
        %v7337 = vunpack.c.h.b16 %v7301
        %v7338 = vpack.c.b16 %v7314, %v7314
        %v7339 = vpack.c.b16 %v7315, %v7315
        %v7340 = vpack.c.b16 %v7316, %v7316
        %v7341 = vpack.c.b16 %v7317, %v7317
        %v7342 = vpack.c.b16 %v7318, %v7318
        %v7343 = vpack.c.b16 %v7319, %v7319
        %v7344 = vpack.c.b16 %v7320, %v7320
        %v7345 = vpack.c.b16 %v7321, %v7321
        %v7346 = vpack.c.b16 %v7322, %v7322
        %v7347 = vpack.c.b16 %v7323, %v7323
        %v7348 = vpack.c.b16 %v7324, %v7324
        %v7349 = vpack.c.b16 %v7325, %v7325
        %v7350 = vpack.c.b16 %v7326, %v7326
        %v7351 = vpack.c.b16 %v7327, %v7327
        %v7352 = vpack.c.b16 %v7328, %v7328
        %v7353 = vpack.c.b16 %v7329, %v7329
        %v7354 = vpack.c.b16 %v7330, %v7330
        %v7355 = vpack.c.b16 %v7331, %v7331
        %v7356 = vpack.c.b16 %v7332, %v7332
        %v7357 = vpack.c.b16 %v7333, %v7333
        %v7358 = vpack.c.b16 %v7334, %v7334
        %v7359 = vpack.c.b16 %v7335, %v7335
        %v7360 = vpack.c.b16 %v7336, %v7336
        %v7361 = vpack.c.b16 %v7337, %v7337
        %7386 = vst [vmem:[#allocation6 + $0x18] sm:$0xf] %v7338
        %7387 = vst [vmem:[#allocation6 + $0x1c] sm:$0xf] %v7339
        %7388 = vst [vmem:[#allocation6 + $0x20] sm:$0xf] %v7340
        %7389 = vst [vmem:[#allocation6 + $0x24] sm:$0xf] %v7341
        %7390 = vst [vmem:[#allocation6 + $0x28] sm:$0xf] %v7342
        %7391 = vst [vmem:[#allocation6 + $0x2c] sm:$0xf] %v7343
        %7392 = vst [vmem:[#allocation6 + $0x30] sm:$0xf] %v7344
        %7393 = vst [vmem:[#allocation6 + $0x34] sm:$0xf] %v7345
        %7394 = vst [vmem:[#allocation6 + $0x38] sm:$0xf] %v7346
        %7395 = vst [vmem:[#allocation6 + $0x3c] sm:$0xf] %v7347
        %7396 = vst [vmem:[#allocation6 + $0x40] sm:$0xf] %v7348
        %7397 = vst [vmem:[#allocation6 + $0x44] sm:$0xf] %v7349
        %7398 = vst [vmem:[#allocation6 + $0x48] sm:$0xf] %v7350
        %7399 = vst [vmem:[#allocation6 + $0x4c] sm:$0xf] %v7351
        %7400 = vst [vmem:[#allocation6 + $0x50] sm:$0xf] %v7352
        %7401 = vst [vmem:[#allocation6 + $0x54] sm:$0xf] %v7353
        %7402 = vst [vmem:[#allocation6 + $0x58] sm:$0xf] %v7354
        %7403 = vst [vmem:[#allocation6 + $0x5c] sm:$0xf] %v7355
        %7404 = vst [vmem:[#allocation6 + $0x60] sm:$0xf] %v7356
        %7405 = vst [vmem:[#allocation6 + $0x64] sm:$0xf] %v7357
        %7406 = vst [vmem:[#allocation6 + $0x68] sm:$0xf] %v7358
        %7407 = vst [vmem:[#allocation6 + $0x6c] sm:$0xf] %v7359
        %7408 = vst [vmem:[#allocation6 + $0x70] sm:$0xf] %v7360
        %7409 = vst [vmem:[#allocation6 + $0x74] sm:$0xf] %v7361
        %v7410 = vstv %s7269
        %v7411 = vmul.f32 %v7261, %v7410
        %v7412 = vmul.f32 %v7262, %v7410
        %v7413 = vmul.f32 %v7263, %v7410
        %v7414 = vpack.c.bf16 %v7412, %v7411
        %v7415 = vpack.c.bf16 %v7413, %v7413
        %v7418 = vunpack.c.l.b16 %v7414
        %v7419 = vunpack.c.h.b16 %v7414
        %v7420 = vunpack.c.l.b16 %v7415
        %v7421 = vpack.c.b16 %v7418, %v7418
        %v7422 = vpack.c.b16 %v7419, %v7419
        %v7423 = vpack.c.b16 %v7420, %v7420
        %7427 = vst [vmem:[#allocation6 + $0x78] sm:$0xf] %v7421
        %7428 = vst [vmem:[#allocation6 + $0x7c] sm:$0xf] %v7422
        %7429 = vst [vmem:[#allocation6 + $0x80] sm:$0xf] %v7423
        %v7430 = vld [vmem:[#allocation6 + $0x8] sm:$0x8]
        %v7431 = vld [vmem:[#allocation6 + $0xc] sm:$0xf]
        %v7432 = vld [vmem:[#allocation6 + $0x10] sm:$0xf]
        %v7433 = vld [vmem:[#allocation6 + $0x14] sm:$0xf]
        %v7434 = vld [vmem:[#allocation6 + $0x18] sm:$0xf]
        %v7435 = vld [vmem:[#allocation6 + $0x1c] sm:$0xf]
        %v7436 = vld [vmem:[#allocation6 + $0x20] sm:$0xf]
        %v7437 = vld [vmem:[#allocation6 + $0x24] sm:$0xf]
        %v7438 = vld [vmem:[#allocation6 + $0x28] sm:$0xf]
        %v7439 = vld [vmem:[#allocation6 + $0x2c] sm:$0xf]
        %v7440 = vld [vmem:[#allocation6 + $0x30] sm:$0xf]
        %v7441 = vld [vmem:[#allocation6 + $0x34] sm:$0xf]
        %v7442 = vld [vmem:[#allocation6 + $0x38] sm:$0xf]
        %v7443 = vld [vmem:[#allocation6 + $0x3c] sm:$0xf]
        %v7444 = vld [vmem:[#allocation6 + $0x40] sm:$0xf]
        %v7445 = vld [vmem:[#allocation6 + $0x44] sm:$0xf]
        %v7446 = vld [vmem:[#allocation6 + $0x48] sm:$0xf]
        %v7447 = vld [vmem:[#allocation6 + $0x4c] sm:$0xf]
        %v7448 = vld [vmem:[#allocation6 + $0x50] sm:$0xf]
        %v7449 = vld [vmem:[#allocation6 + $0x54] sm:$0xf]
        %v7450 = vld [vmem:[#allocation6 + $0x58] sm:$0xf]
        %v7451 = vld [vmem:[#allocation6 + $0x5c] sm:$0xf]
        %v7452 = vld [vmem:[#allocation6 + $0x60] sm:$0xf]
        %v7453 = vld [vmem:[#allocation6 + $0x64] sm:$0xf]
        %v7454 = vld [vmem:[#allocation6 + $0x68] sm:$0xf]
        %v7455 = vld [vmem:[#allocation17] sm:$0xf]
        %v7456 = vld [vmem:[#allocation17 + $0x4] sm:$0xf]
        %v7457 = vld [vmem:[#allocation17 + $0x8] sm:$0xf]
        %v7458 = vld [vmem:[#allocation17 + $0xc] sm:$0xf]
        %v7459 = vld [vmem:[#allocation17 + $0x10] sm:$0xf]
        %v7460 = vld [vmem:[#allocation17 + $0x14] sm:$0xf]
        %v7461 = vld [vmem:[#allocation17 + $0x18] sm:$0xf]
        %v7462 = vld [vmem:[#allocation17 + $0x1c] sm:$0xf]
        %v7463 = vld [vmem:[#allocation17 + $0x20] sm:$0xf]
        %v7464 = vld [vmem:[#allocation17 + $0x24] sm:$0xf]
        %v7465 = vld [vmem:[#allocation17 + $0x28] sm:$0xf]
        %v7466 = vld [vmem:[#allocation17 + $0x2c] sm:$0xf]
        %v7467 = vld [vmem:[#allocation17 + $0x30] sm:$0xf]
        %v7468 = vld [vmem:[#allocation17 + $0x34] sm:$0xf]
        %v7469 = vld [vmem:[#allocation17 + $0x38] sm:$0xf]
        %v7470 = vld [vmem:[#allocation17 + $0x3c] sm:$0xf]
        %s7471 = scalar_lea.vmem [#allocation17], 64
        %v7472 = vld [vmem:[%s7471] sm:$0xf]
        %v7473 = vld [vmem:[%s7471 + $0x4] sm:$0xf]
        %v7474 = vld [vmem:[%s7471 + $0x8] sm:$0xf]
        %v7475 = vld [vmem:[%s7471 + $0xc] sm:$0xf]
        %v7476 = vld [vmem:[%s7471 + $0x10] sm:$0xf]
        %v7477 = vld [vmem:[%s7471 + $0x14] sm:$0xf]
        %v7478 = vld [vmem:[%s7471 + $0x18] sm:$0xf]
        %v7479 = vld [vmem:[%s7471 + $0x1c] sm:$0xf]
        %v7480 = vld [vmem:[%s7471 + $0x20] sm:$0xf]
        %v7481 = vld [vmem:[%s7471 + $0x24] sm:$0xf]
        %v7482 = vld [vmem:[%s7471 + $0x28] sm:$0xf]
        %v7483 = vld [vmem:[%s7471 + $0x2c] sm:$0xf]
        %v7484 = vld [vmem:[%s7471 + $0x30] sm:$0xf]
        %v7485 = vld [vmem:[%s7471 + $0x34] sm:$0xf]
        %v7486 = vld [vmem:[%s7471 + $0x38] sm:$0xf]
        %v7487 = vld [vmem:[%s7471 + $0x3c] sm:$0xf]
        %v7512 = vunpack.c.l.b16 %v7431
        %v7513 = vunpack.c.l.b16 %v7432
        %v7514 = vunpack.c.l.b16 %v7433
        %v7515 = vunpack.c.l.b16 %v7434
        %v7516 = vunpack.c.l.b16 %v7435
        %v7517 = vunpack.c.l.b16 %v7436
        %v7518 = vunpack.c.l.b16 %v7437
        %v7519 = vunpack.c.l.b16 %v7438
        %v7520 = vunpack.c.l.b16 %v7439
        %v7521 = vunpack.c.l.b16 %v7440
        %v7522 = vunpack.c.l.b16 %v7441
        %v7523 = vunpack.c.l.b16 %v7442
        %v7524 = vunpack.c.l.b16 %v7443
        %v7525 = vunpack.c.l.b16 %v7444
        %v7526 = vunpack.c.l.b16 %v7445
        %v7527 = vunpack.c.l.b16 %v7446
        %v7528 = vunpack.c.l.b16 %v7447
        %v7529 = vunpack.c.l.b16 %v7448
        %v7530 = vunpack.c.l.b16 %v7449
        %v7531 = vunpack.c.l.b16 %v7450
        %v7532 = vunpack.c.l.b16 %v7451
        %v7533 = vunpack.c.l.b16 %v7452
        %v7534 = vunpack.c.l.b16 %v7453
        %v7535 = vunpack.c.l.b16 %v7454
        %v7536 = vpack.c.b16 %v7513, %v7512
        %v7537 = vpack.c.b16 %v7515, %v7514
        %v7538 = vpack.c.b16 %v7517, %v7516
        %v7539 = vpack.c.b16 %v7519, %v7518
        %v7540 = vpack.c.b16 %v7521, %v7520
        %v7541 = vpack.c.b16 %v7523, %v7522
        %v7542 = vpack.c.b16 %v7525, %v7524
        %v7543 = vpack.c.b16 %v7527, %v7526
        %v7544 = vpack.c.b16 %v7529, %v7528
        %v7545 = vpack.c.b16 %v7531, %v7530
        %v7546 = vpack.c.b16 %v7533, %v7532
        %v7547 = vpack.c.b16 %v7535, %v7534
        %v7576 = vunpack.c.l.b16 %v7472
        %v7577 = vunpack.c.l.b16 %v7473
        %v7578 = vunpack.c.l.b16 %v7474
        %v7579 = vunpack.c.l.b16 %v7475
        %v7580 = vunpack.c.l.b16 %v7476
        %v7581 = vunpack.c.l.b16 %v7477
        %v7582 = vunpack.c.l.b16 %v7478
        %v7583 = vunpack.c.l.b16 %v7479
        %v7584 = vunpack.c.l.b16 %v7480
        %v7585 = vunpack.c.l.b16 %v7481
        %v7586 = vunpack.c.l.b16 %v7482
        %v7587 = vunpack.c.l.b16 %v7483
        %v7588 = vunpack.c.l.b16 %v7484
        %v7589 = vunpack.c.l.b16 %v7485
        %v7590 = vunpack.c.l.b16 %v7486
        %v7591 = vunpack.c.l.b16 %v7487
        %v7592 = vpack.c.b16 %v7577, %v7576
        %v7593 = vpack.c.b16 %v7579, %v7578
        %v7594 = vpack.c.b16 %v7581, %v7580
        %v7595 = vpack.c.b16 %v7583, %v7582
        %v7596 = vpack.c.b16 %v7585, %v7584
        %v7597 = vpack.c.b16 %v7587, %v7586
        %v7598 = vpack.c.b16 %v7589, %v7588
        %v7599 = vpack.c.b16 %v7591, %v7590
        %7608 = vmatprep.subr.bf16.mxu0 0
        %7609 = vmatpush1.bf16.msra.mxu0 %v7599
        %7610 = vmatprep.subr.bf16.mxu0 0
        %7611 = vmatpush1.bf16.msra.mxu0 %v7598
        %7612 = vmatprep.subr.bf16.mxu0 0
        %7613 = vmatpush1.bf16.msra.mxu0 %v7597
        %7614 = vmatprep.subr.bf16.mxu0 0
        %7615 = vmatpush1.bf16.msra.mxu0 %v7596
        %7616 = vmatprep.subr.bf16.mxu0 0
        %7617 = vmatpush1.bf16.msra.mxu0 %v7595
        %7618 = vmatprep.subr.bf16.mxu0 0
        %7619 = vmatpush1.bf16.msra.mxu0 %v7594
        %7620 = vmatprep.subr.bf16.mxu0 0
        %7621 = vmatpush1.bf16.msra.mxu0 %v7593
        %7622 = vmatprep.subr.bf16.mxu0 0
        %7623 = vmatpush1.bf16.msra.mxu0 %v7592
        %7624 = vmatprep.subr.bf16.mxu0 0
        %7625 = vmatpush2.bf16.msra.mxu0 0
        %7626 = vmatprep.subr.bf16.mxu0 0
        %7627 = vmatpush2.bf16.msra.mxu0 0
        %7628 = vmatprep.subr.bf16.mxu0 0
        %7629 = vmatpush2.bf16.msra.mxu0 0
        %7630 = vmatprep.subr.bf16.mxu0 0
        %7631 = vmatpush2.bf16.msra.mxu0 0
        %7632 = vmatprep.subr.bf16.mxu0 0
        %7633 = vmatpush2.bf16.msra.mxu0 0
        %7634 = vmatprep.subr.bf16.mxu0 0
        %7635 = vmatpush2.bf16.msra.mxu0 0
        %7636 = vmatprep.subr.bf16.mxu0 0
        %7637 = vmatpush2.bf16.msra.mxu0 0
        %7638 = vmatprep.subr.bf16.mxu0 0
        %7639 = vmatpush2.bf16.msra.mxu0 0
        %7640 = vmatprep.mubr.bf16.mxu0 0
        %7641 = vmatmul.mubr.bf16.gmra.mxu0 %v7536
        %v7642 = vpop.f32.mrf.mxu0
        %v7643 = vadd.f32 0.0, %v7642
        %v7644 = vpop.f32.mrf.mxu0
        %v7645 = vpop.f32.mrf.mxu0
        %v7646 = vadd.f32 0.0, %v7645
        %v7647 = vpop.f32.mrf.mxu0
        %7648 = vmatprep.mubr.bf16.mxu0 0
        %7649 = vmatmul.mubr.bf16.gmra.mxu0 %v7537
        %v7650 = vpop.f32.mrf.mxu0
        %v7651 = vadd.f32 0.0, %v7650
        %v7652 = vpop.f32.mrf.mxu0
        %v7653 = vpop.f32.mrf.mxu0
        %v7654 = vadd.f32 0.0, %v7653
        %v7655 = vpop.f32.mrf.mxu0
        %7656 = vmatprep.mubr.bf16.mxu0 0
        %7657 = vmatmul.mubr.bf16.gmra.mxu0 %v7538
        %v7658 = vpop.f32.mrf.mxu0
        %v7659 = vadd.f32 0.0, %v7658
        %v7660 = vpop.f32.mrf.mxu0
        %v7661 = vpop.f32.mrf.mxu0
        %v7662 = vadd.f32 0.0, %v7661
        %v7663 = vpop.f32.mrf.mxu0
        %7664 = vmatprep.mubr.bf16.mxu0 0
        %7665 = vmatmul.mubr.bf16.gmra.mxu0 %v7539
        %v7666 = vpop.f32.mrf.mxu0
        %v7667 = vadd.f32 0.0, %v7666
        %v7668 = vpop.f32.mrf.mxu0
        %v7669 = vpop.f32.mrf.mxu0
        %v7670 = vadd.f32 0.0, %v7669
        %v7671 = vpop.f32.mrf.mxu0
        %7672 = vmatprep.mubr.bf16.mxu0 0
        %7673 = vmatmul.mubr.bf16.gmra.mxu0 %v7540
        %v7674 = vpop.f32.mrf.mxu0
        %v7675 = vadd.f32 0.0, %v7674
        %v7676 = vpop.f32.mrf.mxu0
        %v7677 = vpop.f32.mrf.mxu0
        %v7678 = vadd.f32 0.0, %v7677
        %v7679 = vpop.f32.mrf.mxu0
        %7680 = vmatprep.mubr.bf16.mxu0 0
        %7681 = vmatmul.mubr.bf16.gmra.mxu0 %v7541
        %v7682 = vpop.f32.mrf.mxu0
        %v7683 = vadd.f32 0.0, %v7682
        %v7684 = vpop.f32.mrf.mxu0
        %v7685 = vpop.f32.mrf.mxu0
        %v7686 = vadd.f32 0.0, %v7685
        %v7687 = vpop.f32.mrf.mxu0
        %7688 = vmatprep.mubr.bf16.mxu0 0
        %7689 = vmatmul.mubr.bf16.gmra.mxu0 %v7542
        %v7690 = vpop.f32.mrf.mxu0
        %v7691 = vadd.f32 0.0, %v7690
        %v7692 = vpop.f32.mrf.mxu0
        %v7693 = vpop.f32.mrf.mxu0
        %v7694 = vadd.f32 0.0, %v7693
        %v7695 = vpop.f32.mrf.mxu0
        %7696 = vmatprep.mubr.bf16.mxu0 0
        %7697 = vmatmul.mubr.bf16.gmra.mxu0 %v7543
        %v7698 = vpop.f32.mrf.mxu0
        %v7699 = vadd.f32 0.0, %v7698
        %v7700 = vpop.f32.mrf.mxu0
        %v7701 = vpop.f32.mrf.mxu0
        %v7702 = vadd.f32 0.0, %v7701
        %v7703 = vpop.f32.mrf.mxu0
        %7704 = vmatprep.mubr.bf16.mxu0 0
        %7705 = vmatmul.mubr.bf16.gmra.mxu0 %v7544
        %v7706 = vpop.f32.mrf.mxu0
        %v7707 = vadd.f32 0.0, %v7706
        %v7708 = vpop.f32.mrf.mxu0
        %v7709 = vpop.f32.mrf.mxu0
        %v7710 = vadd.f32 0.0, %v7709
        %v7711 = vpop.f32.mrf.mxu0
        %7712 = vmatprep.mubr.bf16.mxu0 0
        %7713 = vmatmul.mubr.bf16.gmra.mxu0 %v7545
        %v7714 = vpop.f32.mrf.mxu0
        %v7715 = vadd.f32 0.0, %v7714
        %v7716 = vpop.f32.mrf.mxu0
        %v7717 = vpop.f32.mrf.mxu0
        %v7718 = vadd.f32 0.0, %v7717
        %v7719 = vpop.f32.mrf.mxu0
        %7720 = vmatprep.mubr.bf16.mxu0 0
        %7721 = vmatmul.mubr.bf16.gmra.mxu0 %v7546
        %v7722 = vpop.f32.mrf.mxu0
        %v7723 = vadd.f32 0.0, %v7722
        %v7724 = vpop.f32.mrf.mxu0
        %v7725 = vpop.f32.mrf.mxu0
        %v7726 = vadd.f32 0.0, %v7725
        %v7727 = vpop.f32.mrf.mxu0
        %7728 = vmatprep.mubr.bf16.mxu0 0
        %7729 = vmatmul.mubr.bf16.gmra.mxu0 %v7547
        %v7730 = vpop.f32.mrf.mxu0
        %v7731 = vadd.f32 0.0, %v7730
        %v7732 = vpop.f32.mrf.mxu0
        %v7733 = vpop.f32.mrf.mxu0
        %v7734 = vadd.f32 0.0, %v7733
        %v7735 = vpop.f32.mrf.mxu0
        %7736 = vdwg.mxu0
        %v7738 = vunpack.c.l.b16 %v7430
        %v7739 = vpack.c.b16 %v7512, %v7738
        %v7740 = vpack.c.b16 %v7514, %v7513
        %v7741 = vpack.c.b16 %v7516, %v7515
        %v7742 = vpack.c.b16 %v7518, %v7517
        %v7743 = vpack.c.b16 %v7520, %v7519
        %v7744 = vpack.c.b16 %v7522, %v7521
        %v7745 = vpack.c.b16 %v7524, %v7523
        %v7746 = vpack.c.b16 %v7526, %v7525
        %v7747 = vpack.c.b16 %v7528, %v7527
        %v7748 = vpack.c.b16 %v7530, %v7529
        %v7749 = vpack.c.b16 %v7532, %v7531
        %v7750 = vpack.c.b16 %v7534, %v7533
        %v7751 = vpack.c.b16 %v7535, %v7535
        %v7753 = vshrl.u32 %v7739, 16
        %v7755 = vrot.slane %v7753, 3
        %v7756 = vshll.u32 %v7739, 16
        %v7758 = vrot.slane %v7756, 4
        %v7759 = vor.u32 %v7755, %v7758
        %v7761 = vshrl.u32 %v7740, 16
        %v7763 = vrot.slane %v7761, 3
        %v7764 = vshll.u32 %v7740, 16
        %v7766 = vrot.slane %v7764, 4
        %v7767 = vor.u32 %v7763, %v7766
        %v7768 = vsel %vm3492, %v7759, %v7767
        %v7770 = vshrl.u32 %v7741, 16
        %v7772 = vrot.slane %v7770, 3
        %v7773 = vshll.u32 %v7741, 16
        %v7775 = vrot.slane %v7773, 4
        %v7776 = vor.u32 %v7772, %v7775
        %v7777 = vsel %vm3492, %v7767, %v7776
        %v7779 = vshrl.u32 %v7742, 16
        %v7781 = vrot.slane %v7779, 3
        %v7782 = vshll.u32 %v7742, 16
        %v7784 = vrot.slane %v7782, 4
        %v7785 = vor.u32 %v7781, %v7784
        %v7786 = vsel %vm3492, %v7776, %v7785
        %v7788 = vshrl.u32 %v7743, 16
        %v7790 = vrot.slane %v7788, 3
        %v7791 = vshll.u32 %v7743, 16
        %v7793 = vrot.slane %v7791, 4
        %v7794 = vor.u32 %v7790, %v7793
        %v7795 = vsel %vm3492, %v7785, %v7794
        %v7797 = vshrl.u32 %v7744, 16
        %v7799 = vrot.slane %v7797, 3
        %v7800 = vshll.u32 %v7744, 16
        %v7802 = vrot.slane %v7800, 4
        %v7803 = vor.u32 %v7799, %v7802
        %v7804 = vsel %vm3492, %v7794, %v7803
        %v7806 = vshrl.u32 %v7745, 16
        %v7808 = vrot.slane %v7806, 3
        %v7809 = vshll.u32 %v7745, 16
        %v7811 = vrot.slane %v7809, 4
        %v7812 = vor.u32 %v7808, %v7811
        %v7813 = vsel %vm3492, %v7803, %v7812
        %v7815 = vshrl.u32 %v7746, 16
        %v7817 = vrot.slane %v7815, 3
        %v7818 = vshll.u32 %v7746, 16
        %v7820 = vrot.slane %v7818, 4
        %v7821 = vor.u32 %v7817, %v7820
        %v7822 = vsel %vm3492, %v7812, %v7821
        %v7824 = vshrl.u32 %v7747, 16
        %v7826 = vrot.slane %v7824, 3
        %v7827 = vshll.u32 %v7747, 16
        %v7829 = vrot.slane %v7827, 4
        %v7830 = vor.u32 %v7826, %v7829
        %v7831 = vsel %vm3492, %v7821, %v7830
        %v7833 = vshrl.u32 %v7748, 16
        %v7835 = vrot.slane %v7833, 3
        %v7836 = vshll.u32 %v7748, 16
        %v7838 = vrot.slane %v7836, 4
        %v7839 = vor.u32 %v7835, %v7838
        %v7840 = vsel %vm3492, %v7830, %v7839
        %v7842 = vshrl.u32 %v7749, 16
        %v7844 = vrot.slane %v7842, 3
        %v7845 = vshll.u32 %v7749, 16
        %v7847 = vrot.slane %v7845, 4
        %v7848 = vor.u32 %v7844, %v7847
        %v7849 = vsel %vm3492, %v7839, %v7848
        %v7851 = vshrl.u32 %v7750, 16
        %v7853 = vrot.slane %v7851, 3
        %v7854 = vshll.u32 %v7750, 16
        %v7856 = vrot.slane %v7854, 4
        %v7857 = vor.u32 %v7853, %v7856
        %v7858 = vsel %vm3492, %v7848, %v7857
        %v7860 = vshrl.u32 %v7751, 16
        %v7862 = vrot.slane %v7860, 3
        %v7863 = vshll.u32 %v7751, 16
        %v7865 = vrot.slane %v7863, 4
        %v7866 = vor.u32 %v7862, %v7865
        %v7867 = vsel %vm3492, %v7857, %v7866
        %v7896 = vunpack.c.l.b16 %v7455
        %v7897 = vunpack.c.l.b16 %v7456
        %v7898 = vunpack.c.l.b16 %v7457
        %v7899 = vunpack.c.l.b16 %v7458
        %v7900 = vunpack.c.l.b16 %v7459
        %v7901 = vunpack.c.l.b16 %v7460
        %v7902 = vunpack.c.l.b16 %v7461
        %v7903 = vunpack.c.l.b16 %v7462
        %v7904 = vunpack.c.l.b16 %v7463
        %v7905 = vunpack.c.l.b16 %v7464
        %v7906 = vunpack.c.l.b16 %v7465
        %v7907 = vunpack.c.l.b16 %v7466
        %v7908 = vunpack.c.l.b16 %v7467
        %v7909 = vunpack.c.l.b16 %v7468
        %v7910 = vunpack.c.l.b16 %v7469
        %v7911 = vunpack.c.l.b16 %v7470
        %v7912 = vpack.c.b16 %v7897, %v7896
        %v7913 = vpack.c.b16 %v7899, %v7898
        %v7914 = vpack.c.b16 %v7901, %v7900
        %v7915 = vpack.c.b16 %v7903, %v7902
        %v7916 = vpack.c.b16 %v7905, %v7904
        %v7917 = vpack.c.b16 %v7907, %v7906
        %v7918 = vpack.c.b16 %v7909, %v7908
        %v7919 = vpack.c.b16 %v7911, %v7910
        %7928 = vmatprep.subr.bf16.mxu0 0
        %7929 = vmatpush1.bf16.msra.mxu0 %v7919
        %7930 = vmatprep.subr.bf16.mxu0 0
        %7931 = vmatpush1.bf16.msra.mxu0 %v7918
        %7932 = vmatprep.subr.bf16.mxu0 0
        %7933 = vmatpush1.bf16.msra.mxu0 %v7917
        %7934 = vmatprep.subr.bf16.mxu0 0
        %7935 = vmatpush1.bf16.msra.mxu0 %v7916
        %7936 = vmatprep.subr.bf16.mxu0 0
        %7937 = vmatpush1.bf16.msra.mxu0 %v7915
        %7938 = vmatprep.subr.bf16.mxu0 0
        %7939 = vmatpush1.bf16.msra.mxu0 %v7914
        %7940 = vmatprep.subr.bf16.mxu0 0
        %7941 = vmatpush1.bf16.msra.mxu0 %v7913
        %7942 = vmatprep.subr.bf16.mxu0 0
        %7943 = vmatpush1.bf16.msra.mxu0 %v7912
        %7944 = vmatprep.subr.bf16.mxu0 0
        %7945 = vmatpush2.bf16.msra.mxu0 0
        %7946 = vmatprep.subr.bf16.mxu0 0
        %7947 = vmatpush2.bf16.msra.mxu0 0
        %7948 = vmatprep.subr.bf16.mxu0 0
        %7949 = vmatpush2.bf16.msra.mxu0 0
        %7950 = vmatprep.subr.bf16.mxu0 0
        %7951 = vmatpush2.bf16.msra.mxu0 0
        %7952 = vmatprep.subr.bf16.mxu0 0
        %7953 = vmatpush2.bf16.msra.mxu0 0
        %7954 = vmatprep.subr.bf16.mxu0 0
        %7955 = vmatpush2.bf16.msra.mxu0 0
        %7956 = vmatprep.subr.bf16.mxu0 0
        %7957 = vmatpush2.bf16.msra.mxu0 0
        %7958 = vmatprep.subr.bf16.mxu0 0
        %7959 = vmatpush2.bf16.msra.mxu0 0
        %7960 = vmatprep.mubr.bf16.mxu0 0
        %7961 = vmatmul.mubr.bf16.gmra.mxu0 %v7768
        %v7962 = vpop.f32.mrf.mxu0
        %v7963 = vadd.f32 %v7643, %v7962
        %v7964 = vpop.f32.mrf.mxu0
        %v7965 = vpop.f32.mrf.mxu0
        %v7966 = vadd.f32 %v7646, %v7965
        %v7967 = vpop.f32.mrf.mxu0
        %7968 = vmatprep.mubr.bf16.mxu0 0
        %7969 = vmatmul.mubr.bf16.gmra.mxu0 %v7777
        %v7970 = vpop.f32.mrf.mxu0
        %v7971 = vadd.f32 %v7651, %v7970
        %v7972 = vpop.f32.mrf.mxu0
        %v7973 = vpop.f32.mrf.mxu0
        %v7974 = vadd.f32 %v7654, %v7973
        %v7975 = vpop.f32.mrf.mxu0
        %7976 = vmatprep.mubr.bf16.mxu0 0
        %7977 = vmatmul.mubr.bf16.gmra.mxu0 %v7786
        %v7978 = vpop.f32.mrf.mxu0
        %v7979 = vadd.f32 %v7659, %v7978
        %v7980 = vpop.f32.mrf.mxu0
        %v7981 = vpop.f32.mrf.mxu0
        %v7982 = vadd.f32 %v7662, %v7981
        %v7983 = vpop.f32.mrf.mxu0
        %7984 = vmatprep.mubr.bf16.mxu0 0
        %7985 = vmatmul.mubr.bf16.gmra.mxu0 %v7795
        %v7986 = vpop.f32.mrf.mxu0
        %v7987 = vadd.f32 %v7667, %v7986
        %v7988 = vpop.f32.mrf.mxu0
        %v7989 = vpop.f32.mrf.mxu0
        %v7990 = vadd.f32 %v7670, %v7989
        %v7991 = vpop.f32.mrf.mxu0
        %7992 = vmatprep.mubr.bf16.mxu0 0
        %7993 = vmatmul.mubr.bf16.gmra.mxu0 %v7804
        %v7994 = vpop.f32.mrf.mxu0
        %v7995 = vadd.f32 %v7675, %v7994
        %v7996 = vpop.f32.mrf.mxu0
        %v7997 = vpop.f32.mrf.mxu0
        %v7998 = vadd.f32 %v7678, %v7997
        %v7999 = vpop.f32.mrf.mxu0
        %8000 = vmatprep.mubr.bf16.mxu0 0
        %8001 = vmatmul.mubr.bf16.gmra.mxu0 %v7813
        %v8002 = vpop.f32.mrf.mxu0
        %v8003 = vadd.f32 %v7683, %v8002
        %v8004 = vpop.f32.mrf.mxu0
        %v8005 = vpop.f32.mrf.mxu0
        %v8006 = vadd.f32 %v7686, %v8005
        %v8007 = vpop.f32.mrf.mxu0
        %8008 = vmatprep.mubr.bf16.mxu0 0
        %8009 = vmatmul.mubr.bf16.gmra.mxu0 %v7822
        %v8010 = vpop.f32.mrf.mxu0
        %v8011 = vadd.f32 %v7691, %v8010
        %v8012 = vpop.f32.mrf.mxu0
        %v8013 = vpop.f32.mrf.mxu0
        %v8014 = vadd.f32 %v7694, %v8013
        %v8015 = vpop.f32.mrf.mxu0
        %8016 = vmatprep.mubr.bf16.mxu0 0
        %8017 = vmatmul.mubr.bf16.gmra.mxu0 %v7831
        %v8018 = vpop.f32.mrf.mxu0
        %v8019 = vadd.f32 %v7699, %v8018
        %v8020 = vpop.f32.mrf.mxu0
        %v8021 = vpop.f32.mrf.mxu0
        %v8022 = vadd.f32 %v7702, %v8021
        %v8023 = vpop.f32.mrf.mxu0
        %8024 = vmatprep.mubr.bf16.mxu0 0
        %8025 = vmatmul.mubr.bf16.gmra.mxu0 %v7840
        %v8026 = vpop.f32.mrf.mxu0
        %v8027 = vadd.f32 %v7707, %v8026
        %v8028 = vpop.f32.mrf.mxu0
        %v8029 = vpop.f32.mrf.mxu0
        %v8030 = vadd.f32 %v7710, %v8029
        %v8031 = vpop.f32.mrf.mxu0
        %8032 = vmatprep.mubr.bf16.mxu0 0
        %8033 = vmatmul.mubr.bf16.gmra.mxu0 %v7849
        %v8034 = vpop.f32.mrf.mxu0
        %v8035 = vadd.f32 %v7715, %v8034
        %v8036 = vpop.f32.mrf.mxu0
        %v8037 = vpop.f32.mrf.mxu0
        %v8038 = vadd.f32 %v7718, %v8037
        %v8039 = vpop.f32.mrf.mxu0
        %8040 = vmatprep.mubr.bf16.mxu0 0
        %8041 = vmatmul.mubr.bf16.gmra.mxu0 %v7858
        %v8042 = vpop.f32.mrf.mxu0
        %v8043 = vadd.f32 %v7723, %v8042
        %v8044 = vpop.f32.mrf.mxu0
        %v8045 = vpop.f32.mrf.mxu0
        %v8046 = vadd.f32 %v7726, %v8045
        %v8047 = vpop.f32.mrf.mxu0
        %8048 = vmatprep.mubr.bf16.mxu0 0
        %8049 = vmatmul.mubr.bf16.gmra.mxu0 %v7867
        %v8050 = vpop.f32.mrf.mxu0
        %v8051 = vadd.f32 %v7731, %v8050
        %v8052 = vpop.f32.mrf.mxu0
        %v8053 = vpop.f32.mrf.mxu0
        %v8054 = vadd.f32 %v7734, %v8053
        %v8055 = vpop.f32.mrf.mxu0
        %8056 = vdwg.mxu0
        %v8057 = vld [vmem:[#allocation6 + $0xc] sm:$0xf]
        %v8058 = vld [vmem:[#allocation6 + $0x10] sm:$0xf]
        %v8059 = vld [vmem:[#allocation6 + $0x14] sm:$0xf]
        %v8060 = vld [vmem:[#allocation6 + $0x18] sm:$0xf]
        %v8061 = vld [vmem:[#allocation6 + $0x1c] sm:$0xf]
        %v8062 = vld [vmem:[#allocation6 + $0x20] sm:$0xf]
        %v8063 = vld [vmem:[#allocation6 + $0x24] sm:$0xf]
        %v8064 = vld [vmem:[#allocation6 + $0x28] sm:$0xf]
        %v8065 = vld [vmem:[#allocation6 + $0x2c] sm:$0xf]
        %v8066 = vld [vmem:[#allocation6 + $0x30] sm:$0xf]
        %v8067 = vld [vmem:[#allocation6 + $0x34] sm:$0xf]
        %v8068 = vld [vmem:[#allocation6 + $0x38] sm:$0xf]
        %v8069 = vld [vmem:[#allocation6 + $0x3c] sm:$0xf]
        %v8070 = vld [vmem:[#allocation6 + $0x40] sm:$0xf]
        %v8071 = vld [vmem:[#allocation6 + $0x44] sm:$0xf]
        %v8072 = vld [vmem:[#allocation6 + $0x48] sm:$0xf]
        %v8073 = vld [vmem:[#allocation6 + $0x4c] sm:$0xf]
        %v8074 = vld [vmem:[#allocation6 + $0x50] sm:$0xf]
        %v8075 = vld [vmem:[#allocation6 + $0x54] sm:$0xf]
        %v8076 = vld [vmem:[#allocation6 + $0x58] sm:$0xf]
        %v8077 = vld [vmem:[#allocation6 + $0x5c] sm:$0xf]
        %v8078 = vld [vmem:[#allocation6 + $0x60] sm:$0xf]
        %v8079 = vld [vmem:[#allocation6 + $0x64] sm:$0xf]
        %v8080 = vld [vmem:[#allocation6 + $0x68] sm:$0xf]
        %v8081 = vld [vmem:[#allocation6 + $0x6c] sm:$0x1]
        %s8082 = scalar_lea.vmem [#allocation17], 128
        %v8083 = vld [vmem:[%s8082] sm:$0xf]
        %v8084 = vld [vmem:[%s8082 + $0x4] sm:$0xf]
        %v8085 = vld [vmem:[%s8082 + $0x8] sm:$0xf]
        %v8086 = vld [vmem:[%s8082 + $0xc] sm:$0xf]
        %v8087 = vld [vmem:[%s8082 + $0x10] sm:$0xf]
        %v8088 = vld [vmem:[%s8082 + $0x14] sm:$0xf]
        %v8089 = vld [vmem:[%s8082 + $0x18] sm:$0xf]
        %v8090 = vld [vmem:[%s8082 + $0x1c] sm:$0xf]
        %v8091 = vld [vmem:[%s8082 + $0x20] sm:$0xf]
        %v8092 = vld [vmem:[%s8082 + $0x24] sm:$0xf]
        %v8093 = vld [vmem:[%s8082 + $0x28] sm:$0xf]
        %v8094 = vld [vmem:[%s8082 + $0x2c] sm:$0xf]
        %v8095 = vld [vmem:[%s8082 + $0x30] sm:$0xf]
        %v8096 = vld [vmem:[%s8082 + $0x34] sm:$0xf]
        %v8097 = vld [vmem:[%s8082 + $0x38] sm:$0xf]
        %v8098 = vld [vmem:[%s8082 + $0x3c] sm:$0xf]
        %v8124 = vunpack.c.l.b16 %v8057
        %v8125 = vunpack.c.l.b16 %v8058
        %v8126 = vunpack.c.l.b16 %v8059
        %v8127 = vunpack.c.l.b16 %v8060
        %v8128 = vunpack.c.l.b16 %v8061
        %v8129 = vunpack.c.l.b16 %v8062
        %v8130 = vunpack.c.l.b16 %v8063
        %v8131 = vunpack.c.l.b16 %v8064
        %v8132 = vunpack.c.l.b16 %v8065
        %v8133 = vunpack.c.l.b16 %v8066
        %v8134 = vunpack.c.l.b16 %v8067
        %v8135 = vunpack.c.l.b16 %v8068
        %v8136 = vunpack.c.l.b16 %v8069
        %v8137 = vunpack.c.l.b16 %v8070
        %v8138 = vunpack.c.l.b16 %v8071
        %v8139 = vunpack.c.l.b16 %v8072
        %v8140 = vunpack.c.l.b16 %v8073
        %v8141 = vunpack.c.l.b16 %v8074
        %v8142 = vunpack.c.l.b16 %v8075
        %v8143 = vunpack.c.l.b16 %v8076
        %v8144 = vunpack.c.l.b16 %v8077
        %v8145 = vunpack.c.l.b16 %v8078
        %v8146 = vunpack.c.l.b16 %v8079
        %v8147 = vunpack.c.l.b16 %v8080
        %v8148 = vunpack.c.l.b16 %v8081
        %v8149 = vpack.c.b16 %v8125, %v8124
        %v8150 = vpack.c.b16 %v8127, %v8126
        %v8151 = vpack.c.b16 %v8129, %v8128
        %v8152 = vpack.c.b16 %v8131, %v8130
        %v8153 = vpack.c.b16 %v8133, %v8132
        %v8154 = vpack.c.b16 %v8135, %v8134
        %v8155 = vpack.c.b16 %v8137, %v8136
        %v8156 = vpack.c.b16 %v8139, %v8138
        %v8157 = vpack.c.b16 %v8141, %v8140
        %v8158 = vpack.c.b16 %v8143, %v8142
        %v8159 = vpack.c.b16 %v8145, %v8144
        %v8160 = vpack.c.b16 %v8147, %v8146
        %v8161 = vpack.c.b16 %v8148, %v8148
        %v8163 = vshrl.u32 %v8149, 16
        %v8165 = vshll.u32 %v8149, 16
        %v8167 = vrot.slane %v8165, 1
        %v8168 = vor.u32 %v8163, %v8167
        %v8170 = vshll.u32 %v8150, 16
        %v8172 = vrot.slane %v8170, 1
        %v8173 = vsel %vm3978, %v8168, %v8172
        %v8174 = vshrl.u32 %v8150, 16
        %v8176 = vor.u32 %v8174, %v8172
        %v8178 = vshll.u32 %v8151, 16
        %v8180 = vrot.slane %v8178, 1
        %v8181 = vsel %vm3978, %v8176, %v8180
        %v8182 = vshrl.u32 %v8151, 16
        %v8184 = vor.u32 %v8182, %v8180
        %v8186 = vshll.u32 %v8152, 16
        %v8188 = vrot.slane %v8186, 1
        %v8189 = vsel %vm3978, %v8184, %v8188
        %v8190 = vshrl.u32 %v8152, 16
        %v8192 = vor.u32 %v8190, %v8188
        %v8194 = vshll.u32 %v8153, 16
        %v8196 = vrot.slane %v8194, 1
        %v8197 = vsel %vm3978, %v8192, %v8196
        %v8198 = vshrl.u32 %v8153, 16
        %v8200 = vor.u32 %v8198, %v8196
        %v8202 = vshll.u32 %v8154, 16
        %v8204 = vrot.slane %v8202, 1
        %v8205 = vsel %vm3978, %v8200, %v8204
        %v8206 = vshrl.u32 %v8154, 16
        %v8208 = vor.u32 %v8206, %v8204
        %v8210 = vshll.u32 %v8155, 16
        %v8212 = vrot.slane %v8210, 1
        %v8213 = vsel %vm3978, %v8208, %v8212
        %v8214 = vshrl.u32 %v8155, 16
        %v8216 = vor.u32 %v8214, %v8212
        %v8218 = vshll.u32 %v8156, 16
        %v8220 = vrot.slane %v8218, 1
        %v8221 = vsel %vm3978, %v8216, %v8220
        %v8222 = vshrl.u32 %v8156, 16
        %v8224 = vor.u32 %v8222, %v8220
        %v8226 = vshll.u32 %v8157, 16
        %v8228 = vrot.slane %v8226, 1
        %v8229 = vsel %vm3978, %v8224, %v8228
        %v8230 = vshrl.u32 %v8157, 16
        %v8232 = vor.u32 %v8230, %v8228
        %v8234 = vshll.u32 %v8158, 16
        %v8236 = vrot.slane %v8234, 1
        %v8237 = vsel %vm3978, %v8232, %v8236
        %v8238 = vshrl.u32 %v8158, 16
        %v8240 = vor.u32 %v8238, %v8236
        %v8242 = vshll.u32 %v8159, 16
        %v8244 = vrot.slane %v8242, 1
        %v8245 = vsel %vm3978, %v8240, %v8244
        %v8246 = vshrl.u32 %v8159, 16
        %v8248 = vor.u32 %v8246, %v8244
        %v8250 = vshll.u32 %v8160, 16
        %v8252 = vrot.slane %v8250, 1
        %v8253 = vsel %vm3978, %v8248, %v8252
        %v8254 = vshrl.u32 %v8160, 16
        %v8256 = vor.u32 %v8254, %v8252
        %v8258 = vshll.u32 %v8161, 16
        %v8260 = vrot.slane %v8258, 1
        %v8261 = vsel %vm3978, %v8256, %v8260
        %v8290 = vunpack.c.l.b16 %v8083
        %v8291 = vunpack.c.l.b16 %v8084
        %v8292 = vunpack.c.l.b16 %v8085
        %v8293 = vunpack.c.l.b16 %v8086
        %v8294 = vunpack.c.l.b16 %v8087
        %v8295 = vunpack.c.l.b16 %v8088
        %v8296 = vunpack.c.l.b16 %v8089
        %v8297 = vunpack.c.l.b16 %v8090
        %v8298 = vunpack.c.l.b16 %v8091
        %v8299 = vunpack.c.l.b16 %v8092
        %v8300 = vunpack.c.l.b16 %v8093
        %v8301 = vunpack.c.l.b16 %v8094
        %v8302 = vunpack.c.l.b16 %v8095
        %v8303 = vunpack.c.l.b16 %v8096
        %v8304 = vunpack.c.l.b16 %v8097
        %v8305 = vunpack.c.l.b16 %v8098
        %v8306 = vpack.c.b16 %v8291, %v8290
        %v8307 = vpack.c.b16 %v8293, %v8292
        %v8308 = vpack.c.b16 %v8295, %v8294
        %v8309 = vpack.c.b16 %v8297, %v8296
        %v8310 = vpack.c.b16 %v8299, %v8298
        %v8311 = vpack.c.b16 %v8301, %v8300
        %v8312 = vpack.c.b16 %v8303, %v8302
        %v8313 = vpack.c.b16 %v8305, %v8304
        %8322 = vmatprep.subr.bf16.mxu0 0
        %8323 = vmatpush1.bf16.msra.mxu0 %v8313
        %8324 = vmatprep.subr.bf16.mxu0 0
        %8325 = vmatpush1.bf16.msra.mxu0 %v8312
        %8326 = vmatprep.subr.bf16.mxu0 0
        %8327 = vmatpush1.bf16.msra.mxu0 %v8311
        %8328 = vmatprep.subr.bf16.mxu0 0
        %8329 = vmatpush1.bf16.msra.mxu0 %v8310
        %8330 = vmatprep.subr.bf16.mxu0 0
        %8331 = vmatpush1.bf16.msra.mxu0 %v8309
        %8332 = vmatprep.subr.bf16.mxu0 0
        %8333 = vmatpush1.bf16.msra.mxu0 %v8308
        %8334 = vmatprep.subr.bf16.mxu0 0
        %8335 = vmatpush1.bf16.msra.mxu0 %v8307
        %8336 = vmatprep.subr.bf16.mxu0 0
        %8337 = vmatpush1.bf16.msra.mxu0 %v8306
        %8338 = vmatprep.subr.bf16.mxu0 0
        %8339 = vmatpush2.bf16.msra.mxu0 0
        %8340 = vmatprep.subr.bf16.mxu0 0
        %8341 = vmatpush2.bf16.msra.mxu0 0
        %8342 = vmatprep.subr.bf16.mxu0 0
        %8343 = vmatpush2.bf16.msra.mxu0 0
        %8344 = vmatprep.subr.bf16.mxu0 0
        %8345 = vmatpush2.bf16.msra.mxu0 0
        %8346 = vmatprep.subr.bf16.mxu0 0
        %8347 = vmatpush2.bf16.msra.mxu0 0
        %8348 = vmatprep.subr.bf16.mxu0 0
        %8349 = vmatpush2.bf16.msra.mxu0 0
        %8350 = vmatprep.subr.bf16.mxu0 0
        %8351 = vmatpush2.bf16.msra.mxu0 0
        %8352 = vmatprep.subr.bf16.mxu0 0
        %8353 = vmatpush2.bf16.msra.mxu0 0
        %8354 = vmatprep.mubr.bf16.mxu0 0
        %8355 = vmatmul.mubr.bf16.gmra.mxu0 %v8173
        %v8356 = vpop.f32.mrf.mxu0
        %v8357 = vadd.f32 0.0, %v8356
        %v8358 = vpop.f32.mrf.mxu0
        %v8359 = vpop.f32.mrf.mxu0
        %v8360 = vadd.f32 0.0, %v8359
        %v8361 = vpop.f32.mrf.mxu0
        %8362 = vmatprep.mubr.bf16.mxu0 0
        %8363 = vmatmul.mubr.bf16.gmra.mxu0 %v8181
        %v8364 = vpop.f32.mrf.mxu0
        %v8365 = vadd.f32 0.0, %v8364
        %v8366 = vpop.f32.mrf.mxu0
        %v8367 = vpop.f32.mrf.mxu0
        %v8368 = vadd.f32 0.0, %v8367
        %v8369 = vpop.f32.mrf.mxu0
        %8370 = vmatprep.mubr.bf16.mxu0 0
        %8371 = vmatmul.mubr.bf16.gmra.mxu0 %v8189
        %v8372 = vpop.f32.mrf.mxu0
        %v8373 = vadd.f32 0.0, %v8372
        %v8374 = vpop.f32.mrf.mxu0
        %v8375 = vpop.f32.mrf.mxu0
        %v8376 = vadd.f32 0.0, %v8375
        %v8377 = vpop.f32.mrf.mxu0
        %8378 = vmatprep.mubr.bf16.mxu0 0
        %8379 = vmatmul.mubr.bf16.gmra.mxu0 %v8197
        %v8380 = vpop.f32.mrf.mxu0
        %v8381 = vadd.f32 0.0, %v8380
        %v8382 = vpop.f32.mrf.mxu0
        %v8383 = vpop.f32.mrf.mxu0
        %v8384 = vadd.f32 0.0, %v8383
        %v8385 = vpop.f32.mrf.mxu0
        %8386 = vmatprep.mubr.bf16.mxu0 0
        %8387 = vmatmul.mubr.bf16.gmra.mxu0 %v8205
        %v8388 = vpop.f32.mrf.mxu0
        %v8389 = vadd.f32 0.0, %v8388
        %v8390 = vpop.f32.mrf.mxu0
        %v8391 = vpop.f32.mrf.mxu0
        %v8392 = vadd.f32 0.0, %v8391
        %v8393 = vpop.f32.mrf.mxu0
        %8394 = vmatprep.mubr.bf16.mxu0 0
        %8395 = vmatmul.mubr.bf16.gmra.mxu0 %v8213
        %v8396 = vpop.f32.mrf.mxu0
        %v8397 = vadd.f32 0.0, %v8396
        %v8398 = vpop.f32.mrf.mxu0
        %v8399 = vpop.f32.mrf.mxu0
        %v8400 = vadd.f32 0.0, %v8399
        %v8401 = vpop.f32.mrf.mxu0
        %8402 = vmatprep.mubr.bf16.mxu0 0
        %8403 = vmatmul.mubr.bf16.gmra.mxu0 %v8221
        %v8404 = vpop.f32.mrf.mxu0
        %v8405 = vadd.f32 0.0, %v8404
        %v8406 = vpop.f32.mrf.mxu0
        %v8407 = vpop.f32.mrf.mxu0
        %v8408 = vadd.f32 0.0, %v8407
        %v8409 = vpop.f32.mrf.mxu0
        %8410 = vmatprep.mubr.bf16.mxu0 0
        %8411 = vmatmul.mubr.bf16.gmra.mxu0 %v8229
        %v8412 = vpop.f32.mrf.mxu0
        %v8413 = vadd.f32 0.0, %v8412
        %v8414 = vpop.f32.mrf.mxu0
        %v8415 = vpop.f32.mrf.mxu0
        %v8416 = vadd.f32 0.0, %v8415
        %v8417 = vpop.f32.mrf.mxu0
        %8418 = vmatprep.mubr.bf16.mxu0 0
        %8419 = vmatmul.mubr.bf16.gmra.mxu0 %v8237
        %v8420 = vpop.f32.mrf.mxu0
        %v8421 = vadd.f32 0.0, %v8420
        %v8422 = vpop.f32.mrf.mxu0
        %v8423 = vpop.f32.mrf.mxu0
        %v8424 = vadd.f32 0.0, %v8423
        %v8425 = vpop.f32.mrf.mxu0
        %8426 = vmatprep.mubr.bf16.mxu0 0
        %8427 = vmatmul.mubr.bf16.gmra.mxu0 %v8245
        %v8428 = vpop.f32.mrf.mxu0
        %v8429 = vadd.f32 0.0, %v8428
        %v8430 = vpop.f32.mrf.mxu0
        %v8431 = vpop.f32.mrf.mxu0
        %v8432 = vadd.f32 0.0, %v8431
        %v8433 = vpop.f32.mrf.mxu0
        %8434 = vmatprep.mubr.bf16.mxu0 0
        %8435 = vmatmul.mubr.bf16.gmra.mxu0 %v8253
        %v8436 = vpop.f32.mrf.mxu0
        %v8437 = vadd.f32 0.0, %v8436
        %v8438 = vpop.f32.mrf.mxu0
        %v8439 = vpop.f32.mrf.mxu0
        %v8440 = vadd.f32 0.0, %v8439
        %v8441 = vpop.f32.mrf.mxu0
        %8442 = vmatprep.mubr.bf16.mxu0 0
        %8443 = vmatmul.mubr.bf16.gmra.mxu0 %v8261
        %v8444 = vpop.f32.mrf.mxu0
        %v8445 = vadd.f32 0.0, %v8444
        %v8446 = vpop.f32.mrf.mxu0
        %v8447 = vpop.f32.mrf.mxu0
        %v8448 = vadd.f32 0.0, %v8447
        %v8449 = vpop.f32.mrf.mxu0
        %8450 = vdwg.mxu0
        %v8451 = vadd.f32 %v7963, %v8357
        %v8452 = vadd.f32 %v7966, %v8360
        %v8453 = vadd.f32 %v7971, %v8365
        %v8454 = vadd.f32 %v7974, %v8368
        %v8455 = vadd.f32 %v7979, %v8373
        %v8456 = vadd.f32 %v7982, %v8376
        %v8457 = vadd.f32 %v7987, %v8381
        %v8458 = vadd.f32 %v7990, %v8384
        %v8459 = vadd.f32 %v7995, %v8389
        %v8460 = vadd.f32 %v7998, %v8392
        %v8461 = vadd.f32 %v8003, %v8397
        %v8462 = vadd.f32 %v8006, %v8400
        %v8463 = vadd.f32 %v8011, %v8405
        %v8464 = vadd.f32 %v8014, %v8408
        %v8465 = vadd.f32 %v8019, %v8413
        %v8466 = vadd.f32 %v8022, %v8416
        %v8467 = vadd.f32 %v8027, %v8421
        %v8468 = vadd.f32 %v8030, %v8424
        %v8469 = vadd.f32 %v8035, %v8429
        %v8470 = vadd.f32 %v8038, %v8432
        %v8471 = vadd.f32 %v8043, %v8437
        %v8472 = vadd.f32 %v8046, %v8440
        %v8473 = vadd.f32 %v8051, %v8445
        %v8474 = vadd.f32 %v8054, %v8448
        %v8475 = vld [vmem:[#allocation6 + $0x14] sm:$0x8]
        %v8476 = vld [vmem:[#allocation6 + $0x18] sm:$0xf]
        %v8477 = vld [vmem:[#allocation6 + $0x1c] sm:$0xf]
        %v8478 = vld [vmem:[#allocation6 + $0x20] sm:$0xf]
        %v8479 = vld [vmem:[#allocation6 + $0x24] sm:$0xf]
        %v8480 = vld [vmem:[#allocation6 + $0x28] sm:$0xf]
        %v8481 = vld [vmem:[#allocation6 + $0x2c] sm:$0xf]
        %v8482 = vld [vmem:[#allocation6 + $0x30] sm:$0xf]
        %v8483 = vld [vmem:[#allocation6 + $0x34] sm:$0xf]
        %v8484 = vld [vmem:[#allocation6 + $0x38] sm:$0xf]
        %v8485 = vld [vmem:[#allocation6 + $0x3c] sm:$0xf]
        %v8486 = vld [vmem:[#allocation6 + $0x40] sm:$0xf]
        %v8487 = vld [vmem:[#allocation6 + $0x44] sm:$0xf]
        %v8488 = vld [vmem:[#allocation6 + $0x48] sm:$0xf]
        %v8489 = vld [vmem:[#allocation6 + $0x4c] sm:$0xf]
        %v8490 = vld [vmem:[#allocation6 + $0x50] sm:$0xf]
        %v8491 = vld [vmem:[#allocation6 + $0x54] sm:$0xf]
        %v8492 = vld [vmem:[#allocation6 + $0x58] sm:$0xf]
        %v8493 = vld [vmem:[#allocation6 + $0x5c] sm:$0xf]
        %v8494 = vld [vmem:[#allocation6 + $0x60] sm:$0xf]
        %v8495 = vld [vmem:[#allocation6 + $0x64] sm:$0xf]
        %v8496 = vld [vmem:[#allocation6 + $0x68] sm:$0xf]
        %v8497 = vld [vmem:[#allocation6 + $0x6c] sm:$0xf]
        %v8498 = vld [vmem:[#allocation6 + $0x70] sm:$0xf]
        %v8499 = vld [vmem:[#allocation6 + $0x74] sm:$0xf]
        %s8500 = scalar_lea.vmem [#allocation17], 192
        %v8501 = vld [vmem:[%s8500] sm:$0xf]
        %v8502 = vld [vmem:[%s8500 + $0x4] sm:$0xf]
        %v8503 = vld [vmem:[%s8500 + $0x8] sm:$0xf]
        %v8504 = vld [vmem:[%s8500 + $0xc] sm:$0xf]
        %v8505 = vld [vmem:[%s8500 + $0x10] sm:$0xf]
        %v8506 = vld [vmem:[%s8500 + $0x14] sm:$0xf]
        %v8507 = vld [vmem:[%s8500 + $0x18] sm:$0xf]
        %v8508 = vld [vmem:[%s8500 + $0x1c] sm:$0xf]
        %v8509 = vld [vmem:[%s8500 + $0x20] sm:$0xf]
        %v8510 = vld [vmem:[%s8500 + $0x24] sm:$0xf]
        %v8511 = vld [vmem:[%s8500 + $0x28] sm:$0xf]
        %v8512 = vld [vmem:[%s8500 + $0x2c] sm:$0xf]
        %v8513 = vld [vmem:[%s8500 + $0x30] sm:$0xf]
        %v8514 = vld [vmem:[%s8500 + $0x34] sm:$0xf]
        %v8515 = vld [vmem:[%s8500 + $0x38] sm:$0xf]
        %v8516 = vld [vmem:[%s8500 + $0x3c] sm:$0xf]
        %v8542 = vunpack.c.l.b16 %v8475
        %v8543 = vunpack.c.l.b16 %v8476
        %v8544 = vunpack.c.l.b16 %v8477
        %v8545 = vunpack.c.l.b16 %v8478
        %v8546 = vunpack.c.l.b16 %v8479
        %v8547 = vunpack.c.l.b16 %v8480
        %v8548 = vunpack.c.l.b16 %v8481
        %v8549 = vunpack.c.l.b16 %v8482
        %v8550 = vunpack.c.l.b16 %v8483
        %v8551 = vunpack.c.l.b16 %v8484
        %v8552 = vunpack.c.l.b16 %v8485
        %v8553 = vunpack.c.l.b16 %v8486
        %v8554 = vunpack.c.l.b16 %v8487
        %v8555 = vunpack.c.l.b16 %v8488
        %v8556 = vunpack.c.l.b16 %v8489
        %v8557 = vunpack.c.l.b16 %v8490
        %v8558 = vunpack.c.l.b16 %v8491
        %v8559 = vunpack.c.l.b16 %v8492
        %v8560 = vunpack.c.l.b16 %v8493
        %v8561 = vunpack.c.l.b16 %v8494
        %v8562 = vunpack.c.l.b16 %v8495
        %v8563 = vunpack.c.l.b16 %v8496
        %v8564 = vunpack.c.l.b16 %v8497
        %v8565 = vunpack.c.l.b16 %v8498
        %v8566 = vunpack.c.l.b16 %v8499
        %v8567 = vpack.c.b16 %v8543, %v8542
        %v8568 = vpack.c.b16 %v8545, %v8544
        %v8569 = vpack.c.b16 %v8547, %v8546
        %v8570 = vpack.c.b16 %v8549, %v8548
        %v8571 = vpack.c.b16 %v8551, %v8550
        %v8572 = vpack.c.b16 %v8553, %v8552
        %v8573 = vpack.c.b16 %v8555, %v8554
        %v8574 = vpack.c.b16 %v8557, %v8556
        %v8575 = vpack.c.b16 %v8559, %v8558
        %v8576 = vpack.c.b16 %v8561, %v8560
        %v8577 = vpack.c.b16 %v8563, %v8562
        %v8578 = vpack.c.b16 %v8565, %v8564
        %v8579 = vpack.c.b16 %v8566, %v8566
        %v8581 = vshrl.u32 %v8567, 16
        %v8583 = vrot.slane %v8581, 3
        %v8584 = vshll.u32 %v8567, 16
        %v8586 = vrot.slane %v8584, 4
        %v8587 = vor.u32 %v8583, %v8586
        %v8589 = vshrl.u32 %v8568, 16
        %v8591 = vrot.slane %v8589, 3
        %v8592 = vshll.u32 %v8568, 16
        %v8594 = vrot.slane %v8592, 4
        %v8595 = vor.u32 %v8591, %v8594
        %v8596 = vsel %vm3492, %v8587, %v8595
        %v8598 = vshrl.u32 %v8569, 16
        %v8600 = vrot.slane %v8598, 3
        %v8601 = vshll.u32 %v8569, 16
        %v8603 = vrot.slane %v8601, 4
        %v8604 = vor.u32 %v8600, %v8603
        %v8605 = vsel %vm3492, %v8595, %v8604
        %v8607 = vshrl.u32 %v8570, 16
        %v8609 = vrot.slane %v8607, 3
        %v8610 = vshll.u32 %v8570, 16
        %v8612 = vrot.slane %v8610, 4
        %v8613 = vor.u32 %v8609, %v8612
        %v8614 = vsel %vm3492, %v8604, %v8613
        %v8616 = vshrl.u32 %v8571, 16
        %v8618 = vrot.slane %v8616, 3
        %v8619 = vshll.u32 %v8571, 16
        %v8621 = vrot.slane %v8619, 4
        %v8622 = vor.u32 %v8618, %v8621
        %v8623 = vsel %vm3492, %v8613, %v8622
        %v8625 = vshrl.u32 %v8572, 16
        %v8627 = vrot.slane %v8625, 3
        %v8628 = vshll.u32 %v8572, 16
        %v8630 = vrot.slane %v8628, 4
        %v8631 = vor.u32 %v8627, %v8630
        %v8632 = vsel %vm3492, %v8622, %v8631
        %v8634 = vshrl.u32 %v8573, 16
        %v8636 = vrot.slane %v8634, 3
        %v8637 = vshll.u32 %v8573, 16
        %v8639 = vrot.slane %v8637, 4
        %v8640 = vor.u32 %v8636, %v8639
        %v8641 = vsel %vm3492, %v8631, %v8640
        %v8643 = vshrl.u32 %v8574, 16
        %v8645 = vrot.slane %v8643, 3
        %v8646 = vshll.u32 %v8574, 16
        %v8648 = vrot.slane %v8646, 4
        %v8649 = vor.u32 %v8645, %v8648
        %v8650 = vsel %vm3492, %v8640, %v8649
        %v8652 = vshrl.u32 %v8575, 16
        %v8654 = vrot.slane %v8652, 3
        %v8655 = vshll.u32 %v8575, 16
        %v8657 = vrot.slane %v8655, 4
        %v8658 = vor.u32 %v8654, %v8657
        %v8659 = vsel %vm3492, %v8649, %v8658
        %v8661 = vshrl.u32 %v8576, 16
        %v8663 = vrot.slane %v8661, 3
        %v8664 = vshll.u32 %v8576, 16
        %v8666 = vrot.slane %v8664, 4
        %v8667 = vor.u32 %v8663, %v8666
        %v8668 = vsel %vm3492, %v8658, %v8667
        %v8670 = vshrl.u32 %v8577, 16
        %v8672 = vrot.slane %v8670, 3
        %v8673 = vshll.u32 %v8577, 16
        %v8675 = vrot.slane %v8673, 4
        %v8676 = vor.u32 %v8672, %v8675
        %v8677 = vsel %vm3492, %v8667, %v8676
        %v8679 = vshrl.u32 %v8578, 16
        %v8681 = vrot.slane %v8679, 3
        %v8682 = vshll.u32 %v8578, 16
        %v8684 = vrot.slane %v8682, 4
        %v8685 = vor.u32 %v8681, %v8684
        %v8686 = vsel %vm3492, %v8676, %v8685
        %v8688 = vshrl.u32 %v8579, 16
        %v8690 = vrot.slane %v8688, 3
        %v8691 = vshll.u32 %v8579, 16
        %v8693 = vrot.slane %v8691, 4
        %v8694 = vor.u32 %v8690, %v8693
        %v8695 = vsel %vm3492, %v8685, %v8694
        %v8724 = vunpack.c.l.b16 %v8501
        %v8725 = vunpack.c.l.b16 %v8502
        %v8726 = vunpack.c.l.b16 %v8503
        %v8727 = vunpack.c.l.b16 %v8504
        %v8728 = vunpack.c.l.b16 %v8505
        %v8729 = vunpack.c.l.b16 %v8506
        %v8730 = vunpack.c.l.b16 %v8507
        %v8731 = vunpack.c.l.b16 %v8508
        %v8732 = vunpack.c.l.b16 %v8509
        %v8733 = vunpack.c.l.b16 %v8510
        %v8734 = vunpack.c.l.b16 %v8511
        %v8735 = vunpack.c.l.b16 %v8512
        %v8736 = vunpack.c.l.b16 %v8513
        %v8737 = vunpack.c.l.b16 %v8514
        %v8738 = vunpack.c.l.b16 %v8515
        %v8739 = vunpack.c.l.b16 %v8516
        %v8740 = vpack.c.b16 %v8725, %v8724
        %v8741 = vpack.c.b16 %v8727, %v8726
        %v8742 = vpack.c.b16 %v8729, %v8728
        %v8743 = vpack.c.b16 %v8731, %v8730
        %v8744 = vpack.c.b16 %v8733, %v8732
        %v8745 = vpack.c.b16 %v8735, %v8734
        %v8746 = vpack.c.b16 %v8737, %v8736
        %v8747 = vpack.c.b16 %v8739, %v8738
        %8756 = vmatprep.subr.bf16.mxu0 0
        %8757 = vmatpush1.bf16.msra.mxu0 %v8747
        %8758 = vmatprep.subr.bf16.mxu0 0
        %8759 = vmatpush1.bf16.msra.mxu0 %v8746
        %8760 = vmatprep.subr.bf16.mxu0 0
        %8761 = vmatpush1.bf16.msra.mxu0 %v8745
        %8762 = vmatprep.subr.bf16.mxu0 0
        %8763 = vmatpush1.bf16.msra.mxu0 %v8744
        %8764 = vmatprep.subr.bf16.mxu0 0
        %8765 = vmatpush1.bf16.msra.mxu0 %v8743
        %8766 = vmatprep.subr.bf16.mxu0 0
        %8767 = vmatpush1.bf16.msra.mxu0 %v8742
        %8768 = vmatprep.subr.bf16.mxu0 0
        %8769 = vmatpush1.bf16.msra.mxu0 %v8741
        %8770 = vmatprep.subr.bf16.mxu0 0
        %8771 = vmatpush1.bf16.msra.mxu0 %v8740
        %8772 = vmatprep.subr.bf16.mxu0 0
        %8773 = vmatpush2.bf16.msra.mxu0 0
        %8774 = vmatprep.subr.bf16.mxu0 0
        %8775 = vmatpush2.bf16.msra.mxu0 0
        %8776 = vmatprep.subr.bf16.mxu0 0
        %8777 = vmatpush2.bf16.msra.mxu0 0
        %8778 = vmatprep.subr.bf16.mxu0 0
        %8779 = vmatpush2.bf16.msra.mxu0 0
        %8780 = vmatprep.subr.bf16.mxu0 0
        %8781 = vmatpush2.bf16.msra.mxu0 0
        %8782 = vmatprep.subr.bf16.mxu0 0
        %8783 = vmatpush2.bf16.msra.mxu0 0
        %8784 = vmatprep.subr.bf16.mxu0 0
        %8785 = vmatpush2.bf16.msra.mxu0 0
        %8786 = vmatprep.subr.bf16.mxu0 0
        %8787 = vmatpush2.bf16.msra.mxu0 0
        %8788 = vmatprep.mubr.bf16.mxu0 0
        %8789 = vmatmul.mubr.bf16.gmra.mxu0 %v8596
        %v8790 = vpop.f32.mrf.mxu0
        %v8791 = vadd.f32 0.0, %v8790
        %v8792 = vpop.f32.mrf.mxu0
        %v8793 = vpop.f32.mrf.mxu0
        %v8794 = vadd.f32 0.0, %v8793
        %v8795 = vpop.f32.mrf.mxu0
        %8796 = vmatprep.mubr.bf16.mxu0 0
        %8797 = vmatmul.mubr.bf16.gmra.mxu0 %v8605
        %v8798 = vpop.f32.mrf.mxu0
        %v8799 = vadd.f32 0.0, %v8798
        %v8800 = vpop.f32.mrf.mxu0
        %v8801 = vpop.f32.mrf.mxu0
        %v8802 = vadd.f32 0.0, %v8801
        %v8803 = vpop.f32.mrf.mxu0
        %8804 = vmatprep.mubr.bf16.mxu0 0
        %8805 = vmatmul.mubr.bf16.gmra.mxu0 %v8614
        %v8806 = vpop.f32.mrf.mxu0
        %v8807 = vadd.f32 0.0, %v8806
        %v8808 = vpop.f32.mrf.mxu0
        %v8809 = vpop.f32.mrf.mxu0
        %v8810 = vadd.f32 0.0, %v8809
        %v8811 = vpop.f32.mrf.mxu0
        %8812 = vmatprep.mubr.bf16.mxu0 0
        %8813 = vmatmul.mubr.bf16.gmra.mxu0 %v8623
        %v8814 = vpop.f32.mrf.mxu0
        %v8815 = vadd.f32 0.0, %v8814
        %v8816 = vpop.f32.mrf.mxu0
        %v8817 = vpop.f32.mrf.mxu0
        %v8818 = vadd.f32 0.0, %v8817
        %v8819 = vpop.f32.mrf.mxu0
        %8820 = vmatprep.mubr.bf16.mxu0 0
        %8821 = vmatmul.mubr.bf16.gmra.mxu0 %v8632
        %v8822 = vpop.f32.mrf.mxu0
        %v8823 = vadd.f32 0.0, %v8822
        %v8824 = vpop.f32.mrf.mxu0
        %v8825 = vpop.f32.mrf.mxu0
        %v8826 = vadd.f32 0.0, %v8825
        %v8827 = vpop.f32.mrf.mxu0
        %8828 = vmatprep.mubr.bf16.mxu0 0
        %8829 = vmatmul.mubr.bf16.gmra.mxu0 %v8641
        %v8830 = vpop.f32.mrf.mxu0
        %v8831 = vadd.f32 0.0, %v8830
        %v8832 = vpop.f32.mrf.mxu0
        %v8833 = vpop.f32.mrf.mxu0
        %v8834 = vadd.f32 0.0, %v8833
        %v8835 = vpop.f32.mrf.mxu0
        %8836 = vmatprep.mubr.bf16.mxu0 0
        %8837 = vmatmul.mubr.bf16.gmra.mxu0 %v8650
        %v8838 = vpop.f32.mrf.mxu0
        %v8839 = vadd.f32 0.0, %v8838
        %v8840 = vpop.f32.mrf.mxu0
        %v8841 = vpop.f32.mrf.mxu0
        %v8842 = vadd.f32 0.0, %v8841
        %v8843 = vpop.f32.mrf.mxu0
        %8844 = vmatprep.mubr.bf16.mxu0 0
        %8845 = vmatmul.mubr.bf16.gmra.mxu0 %v8659
        %v8846 = vpop.f32.mrf.mxu0
        %v8847 = vadd.f32 0.0, %v8846
        %v8848 = vpop.f32.mrf.mxu0
        %v8849 = vpop.f32.mrf.mxu0
        %v8850 = vadd.f32 0.0, %v8849
        %v8851 = vpop.f32.mrf.mxu0
        %8852 = vmatprep.mubr.bf16.mxu0 0
        %8853 = vmatmul.mubr.bf16.gmra.mxu0 %v8668
        %v8854 = vpop.f32.mrf.mxu0
        %v8855 = vadd.f32 0.0, %v8854
        %v8856 = vpop.f32.mrf.mxu0
        %v8857 = vpop.f32.mrf.mxu0
        %v8858 = vadd.f32 0.0, %v8857
        %v8859 = vpop.f32.mrf.mxu0
        %8860 = vmatprep.mubr.bf16.mxu0 0
        %8861 = vmatmul.mubr.bf16.gmra.mxu0 %v8677
        %v8862 = vpop.f32.mrf.mxu0
        %v8863 = vadd.f32 0.0, %v8862
        %v8864 = vpop.f32.mrf.mxu0
        %v8865 = vpop.f32.mrf.mxu0
        %v8866 = vadd.f32 0.0, %v8865
        %v8867 = vpop.f32.mrf.mxu0
        %8868 = vmatprep.mubr.bf16.mxu0 0
        %8869 = vmatmul.mubr.bf16.gmra.mxu0 %v8686
        %v8870 = vpop.f32.mrf.mxu0
        %v8871 = vadd.f32 0.0, %v8870
        %v8872 = vpop.f32.mrf.mxu0
        %v8873 = vpop.f32.mrf.mxu0
        %v8874 = vadd.f32 0.0, %v8873
        %v8875 = vpop.f32.mrf.mxu0
        %8876 = vmatprep.mubr.bf16.mxu0 0
        %8877 = vmatmul.mubr.bf16.gmra.mxu0 %v8695
        %v8878 = vpop.f32.mrf.mxu0
        %v8879 = vadd.f32 0.0, %v8878
        %v8880 = vpop.f32.mrf.mxu0
        %v8881 = vpop.f32.mrf.mxu0
        %v8882 = vadd.f32 0.0, %v8881
        %v8883 = vpop.f32.mrf.mxu0
        %8884 = vdwg.mxu0
        %v8885 = vadd.f32 %v8451, %v8791
        %v8886 = vadd.f32 %v8452, %v8794
        %v8887 = vadd.f32 %v8453, %v8799
        %v8888 = vadd.f32 %v8454, %v8802
        %v8889 = vadd.f32 %v8455, %v8807
        %v8890 = vadd.f32 %v8456, %v8810
        %v8891 = vadd.f32 %v8457, %v8815
        %v8892 = vadd.f32 %v8458, %v8818
        %v8893 = vadd.f32 %v8459, %v8823
        %v8894 = vadd.f32 %v8460, %v8826
        %v8895 = vadd.f32 %v8461, %v8831
        %v8896 = vadd.f32 %v8462, %v8834
        %v8897 = vadd.f32 %v8463, %v8839
        %v8898 = vadd.f32 %v8464, %v8842
        %v8899 = vadd.f32 %v8465, %v8847
        %v8900 = vadd.f32 %v8466, %v8850
        %v8901 = vadd.f32 %v8467, %v8855
        %v8902 = vadd.f32 %v8468, %v8858
        %v8903 = vadd.f32 %v8469, %v8863
        %v8904 = vadd.f32 %v8470, %v8866
        %v8905 = vadd.f32 %v8471, %v8871
        %v8906 = vadd.f32 %v8472, %v8874
        %v8907 = vadd.f32 %v8473, %v8879
        %v8908 = vadd.f32 %v8474, %v8882
        %s8909 = scalar_lea.vmem [#allocation17], 256
        %v8910 = vld [vmem:[%s8909] sm:$0xf]
        %v8911 = vld [vmem:[%s8909 + $0x4] sm:$0xf]
        %v8912 = vld [vmem:[%s8909 + $0x8] sm:$0xf]
        %v8913 = vld [vmem:[%s8909 + $0xc] sm:$0xf]
        %v8914 = vld [vmem:[%s8909 + $0x10] sm:$0xf]
        %v8915 = vld [vmem:[%s8909 + $0x14] sm:$0xf]
        %v8916 = vld [vmem:[%s8909 + $0x18] sm:$0xf]
        %v8917 = vld [vmem:[%s8909 + $0x1c] sm:$0xf]
        %v8918 = vld [vmem:[%s8909 + $0x20] sm:$0xf]
        %v8919 = vld [vmem:[%s8909 + $0x24] sm:$0xf]
        %v8920 = vld [vmem:[%s8909 + $0x28] sm:$0xf]
        %v8921 = vld [vmem:[%s8909 + $0x2c] sm:$0xf]
        %v8922 = vld [vmem:[%s8909 + $0x30] sm:$0xf]
        %v8923 = vld [vmem:[%s8909 + $0x34] sm:$0xf]
        %v8924 = vld [vmem:[%s8909 + $0x38] sm:$0xf]
        %v8925 = vld [vmem:[%s8909 + $0x3c] sm:$0xf]
        %v8926 = vpack.c.b16 %v8544, %v8543
        %v8927 = vpack.c.b16 %v8546, %v8545
        %v8928 = vpack.c.b16 %v8548, %v8547
        %v8929 = vpack.c.b16 %v8550, %v8549
        %v8930 = vpack.c.b16 %v8552, %v8551
        %v8931 = vpack.c.b16 %v8554, %v8553
        %v8932 = vpack.c.b16 %v8556, %v8555
        %v8933 = vpack.c.b16 %v8558, %v8557
        %v8934 = vpack.c.b16 %v8560, %v8559
        %v8935 = vpack.c.b16 %v8562, %v8561
        %v8936 = vpack.c.b16 %v8564, %v8563
        %v8937 = vpack.c.b16 %v8566, %v8565
        %v8966 = vunpack.c.l.b16 %v8910
        %v8967 = vunpack.c.l.b16 %v8911
        %v8968 = vunpack.c.l.b16 %v8912
        %v8969 = vunpack.c.l.b16 %v8913
        %v8970 = vunpack.c.l.b16 %v8914
        %v8971 = vunpack.c.l.b16 %v8915
        %v8972 = vunpack.c.l.b16 %v8916
        %v8973 = vunpack.c.l.b16 %v8917
        %v8974 = vunpack.c.l.b16 %v8918
        %v8975 = vunpack.c.l.b16 %v8919
        %v8976 = vunpack.c.l.b16 %v8920
        %v8977 = vunpack.c.l.b16 %v8921
        %v8978 = vunpack.c.l.b16 %v8922
        %v8979 = vunpack.c.l.b16 %v8923
        %v8980 = vunpack.c.l.b16 %v8924
        %v8981 = vunpack.c.l.b16 %v8925
        %v8982 = vpack.c.b16 %v8967, %v8966
        %v8983 = vpack.c.b16 %v8969, %v8968
        %v8984 = vpack.c.b16 %v8971, %v8970
        %v8985 = vpack.c.b16 %v8973, %v8972
        %v8986 = vpack.c.b16 %v8975, %v8974
        %v8987 = vpack.c.b16 %v8977, %v8976
        %v8988 = vpack.c.b16 %v8979, %v8978
        %v8989 = vpack.c.b16 %v8981, %v8980
        %8998 = vmatprep.subr.bf16.mxu0 0
        %8999 = vmatpush1.bf16.msra.mxu0 %v8989
        %9000 = vmatprep.subr.bf16.mxu0 0
        %9001 = vmatpush1.bf16.msra.mxu0 %v8988
        %9002 = vmatprep.subr.bf16.mxu0 0
        %9003 = vmatpush1.bf16.msra.mxu0 %v8987
        %9004 = vmatprep.subr.bf16.mxu0 0
        %9005 = vmatpush1.bf16.msra.mxu0 %v8986
        %9006 = vmatprep.subr.bf16.mxu0 0
        %9007 = vmatpush1.bf16.msra.mxu0 %v8985
        %9008 = vmatprep.subr.bf16.mxu0 0
        %9009 = vmatpush1.bf16.msra.mxu0 %v8984
        %9010 = vmatprep.subr.bf16.mxu0 0
        %9011 = vmatpush1.bf16.msra.mxu0 %v8983
        %9012 = vmatprep.subr.bf16.mxu0 0
        %9013 = vmatpush1.bf16.msra.mxu0 %v8982
        %9014 = vmatprep.subr.bf16.mxu0 0
        %9015 = vmatpush2.bf16.msra.mxu0 0
        %9016 = vmatprep.subr.bf16.mxu0 0
        %9017 = vmatpush2.bf16.msra.mxu0 0
        %9018 = vmatprep.subr.bf16.mxu0 0
        %9019 = vmatpush2.bf16.msra.mxu0 0
        %9020 = vmatprep.subr.bf16.mxu0 0
        %9021 = vmatpush2.bf16.msra.mxu0 0
        %9022 = vmatprep.subr.bf16.mxu0 0
        %9023 = vmatpush2.bf16.msra.mxu0 0
        %9024 = vmatprep.subr.bf16.mxu0 0
        %9025 = vmatpush2.bf16.msra.mxu0 0
        %9026 = vmatprep.subr.bf16.mxu0 0
        %9027 = vmatpush2.bf16.msra.mxu0 0
        %9028 = vmatprep.subr.bf16.mxu0 0
        %9029 = vmatpush2.bf16.msra.mxu0 0
        %9030 = vmatprep.mubr.bf16.mxu0 0
        %9031 = vmatmul.mubr.bf16.gmra.mxu0 %v8926
        %v9032 = vpop.f32.mrf.mxu0
        %v9033 = vadd.f32 0.0, %v9032
        %v9034 = vpop.f32.mrf.mxu0
        %v9035 = vpop.f32.mrf.mxu0
        %v9036 = vadd.f32 0.0, %v9035
        %v9037 = vpop.f32.mrf.mxu0
        %9038 = vmatprep.mubr.bf16.mxu0 0
        %9039 = vmatmul.mubr.bf16.gmra.mxu0 %v8927
        %v9040 = vpop.f32.mrf.mxu0
        %v9041 = vadd.f32 0.0, %v9040
        %v9042 = vpop.f32.mrf.mxu0
        %v9043 = vpop.f32.mrf.mxu0
        %v9044 = vadd.f32 0.0, %v9043
        %v9045 = vpop.f32.mrf.mxu0
        %9046 = vmatprep.mubr.bf16.mxu0 0
        %9047 = vmatmul.mubr.bf16.gmra.mxu0 %v8928
        %v9048 = vpop.f32.mrf.mxu0
        %v9049 = vadd.f32 0.0, %v9048
        %v9050 = vpop.f32.mrf.mxu0
        %v9051 = vpop.f32.mrf.mxu0
        %v9052 = vadd.f32 0.0, %v9051
        %v9053 = vpop.f32.mrf.mxu0
        %9054 = vmatprep.mubr.bf16.mxu0 0
        %9055 = vmatmul.mubr.bf16.gmra.mxu0 %v8929
        %v9056 = vpop.f32.mrf.mxu0
        %v9057 = vadd.f32 0.0, %v9056
        %v9058 = vpop.f32.mrf.mxu0
        %v9059 = vpop.f32.mrf.mxu0
        %v9060 = vadd.f32 0.0, %v9059
        %v9061 = vpop.f32.mrf.mxu0
        %9062 = vmatprep.mubr.bf16.mxu0 0
        %9063 = vmatmul.mubr.bf16.gmra.mxu0 %v8930
        %v9064 = vpop.f32.mrf.mxu0
        %v9065 = vadd.f32 0.0, %v9064
        %v9066 = vpop.f32.mrf.mxu0
        %v9067 = vpop.f32.mrf.mxu0
        %v9068 = vadd.f32 0.0, %v9067
        %v9069 = vpop.f32.mrf.mxu0
        %9070 = vmatprep.mubr.bf16.mxu0 0
        %9071 = vmatmul.mubr.bf16.gmra.mxu0 %v8931
        %v9072 = vpop.f32.mrf.mxu0
        %v9073 = vadd.f32 0.0, %v9072
        %v9074 = vpop.f32.mrf.mxu0
        %v9075 = vpop.f32.mrf.mxu0
        %v9076 = vadd.f32 0.0, %v9075
        %v9077 = vpop.f32.mrf.mxu0
        %9078 = vmatprep.mubr.bf16.mxu0 0
        %9079 = vmatmul.mubr.bf16.gmra.mxu0 %v8932
        %v9080 = vpop.f32.mrf.mxu0
        %v9081 = vadd.f32 0.0, %v9080
        %v9082 = vpop.f32.mrf.mxu0
        %v9083 = vpop.f32.mrf.mxu0
        %v9084 = vadd.f32 0.0, %v9083
        %v9085 = vpop.f32.mrf.mxu0
        %9086 = vmatprep.mubr.bf16.mxu0 0
        %9087 = vmatmul.mubr.bf16.gmra.mxu0 %v8933
        %v9088 = vpop.f32.mrf.mxu0
        %v9089 = vadd.f32 0.0, %v9088
        %v9090 = vpop.f32.mrf.mxu0
        %v9091 = vpop.f32.mrf.mxu0
        %v9092 = vadd.f32 0.0, %v9091
        %v9093 = vpop.f32.mrf.mxu0
        %9094 = vmatprep.mubr.bf16.mxu0 0
        %9095 = vmatmul.mubr.bf16.gmra.mxu0 %v8934
        %v9096 = vpop.f32.mrf.mxu0
        %v9097 = vadd.f32 0.0, %v9096
        %v9098 = vpop.f32.mrf.mxu0
        %v9099 = vpop.f32.mrf.mxu0
        %v9100 = vadd.f32 0.0, %v9099
        %v9101 = vpop.f32.mrf.mxu0
        %9102 = vmatprep.mubr.bf16.mxu0 0
        %9103 = vmatmul.mubr.bf16.gmra.mxu0 %v8935
        %v9104 = vpop.f32.mrf.mxu0
        %v9105 = vadd.f32 0.0, %v9104
        %v9106 = vpop.f32.mrf.mxu0
        %v9107 = vpop.f32.mrf.mxu0
        %v9108 = vadd.f32 0.0, %v9107
        %v9109 = vpop.f32.mrf.mxu0
        %9110 = vmatprep.mubr.bf16.mxu0 0
        %9111 = vmatmul.mubr.bf16.gmra.mxu0 %v8936
        %v9112 = vpop.f32.mrf.mxu0
        %v9113 = vadd.f32 0.0, %v9112
        %v9114 = vpop.f32.mrf.mxu0
        %v9115 = vpop.f32.mrf.mxu0
        %v9116 = vadd.f32 0.0, %v9115
        %v9117 = vpop.f32.mrf.mxu0
        %9118 = vmatprep.mubr.bf16.mxu0 0
        %9119 = vmatmul.mubr.bf16.gmra.mxu0 %v8937
        %v9120 = vpop.f32.mrf.mxu0
        %v9121 = vadd.f32 0.0, %v9120
        %v9122 = vpop.f32.mrf.mxu0
        %v9123 = vpop.f32.mrf.mxu0
        %v9124 = vadd.f32 0.0, %v9123
        %v9125 = vpop.f32.mrf.mxu0
        %9126 = vdwg.mxu0
        %v9127 = vadd.f32 %v8885, %v9033
        %v9128 = vadd.f32 %v8886, %v9036
        %v9129 = vadd.f32 %v8887, %v9041
        %v9130 = vadd.f32 %v8888, %v9044
        %v9131 = vadd.f32 %v8889, %v9049
        %v9132 = vadd.f32 %v8890, %v9052
        %v9133 = vadd.f32 %v8891, %v9057
        %v9134 = vadd.f32 %v8892, %v9060
        %v9135 = vadd.f32 %v8893, %v9065
        %v9136 = vadd.f32 %v8894, %v9068
        %v9137 = vadd.f32 %v8895, %v9073
        %v9138 = vadd.f32 %v8896, %v9076
        %v9139 = vadd.f32 %v8897, %v9081
        %v9140 = vadd.f32 %v8898, %v9084
        %v9141 = vadd.f32 %v8899, %v9089
        %v9142 = vadd.f32 %v8900, %v9092
        %v9143 = vadd.f32 %v8901, %v9097
        %v9144 = vadd.f32 %v8902, %v9100
        %v9145 = vadd.f32 %v8903, %v9105
        %v9146 = vadd.f32 %v8904, %v9108
        %v9147 = vadd.f32 %v8905, %v9113
        %v9148 = vadd.f32 %v8906, %v9116
        %v9149 = vadd.f32 %v8907, %v9121
        %v9150 = vadd.f32 %v8908, %v9124
        %v9151 = vld [vmem:[#allocation6 + $0x18] sm:$0xf]
        %v9152 = vld [vmem:[#allocation6 + $0x1c] sm:$0xf]
        %v9153 = vld [vmem:[#allocation6 + $0x20] sm:$0xf]
        %v9154 = vld [vmem:[#allocation6 + $0x24] sm:$0xf]
        %v9155 = vld [vmem:[#allocation6 + $0x28] sm:$0xf]
        %v9156 = vld [vmem:[#allocation6 + $0x2c] sm:$0xf]
        %v9157 = vld [vmem:[#allocation6 + $0x30] sm:$0xf]
        %v9158 = vld [vmem:[#allocation6 + $0x34] sm:$0xf]
        %v9159 = vld [vmem:[#allocation6 + $0x38] sm:$0xf]
        %v9160 = vld [vmem:[#allocation6 + $0x3c] sm:$0xf]
        %v9161 = vld [vmem:[#allocation6 + $0x40] sm:$0xf]
        %v9162 = vld [vmem:[#allocation6 + $0x44] sm:$0xf]
        %v9163 = vld [vmem:[#allocation6 + $0x48] sm:$0xf]
        %v9164 = vld [vmem:[#allocation6 + $0x4c] sm:$0xf]
        %v9165 = vld [vmem:[#allocation6 + $0x50] sm:$0xf]
        %v9166 = vld [vmem:[#allocation6 + $0x54] sm:$0xf]
        %v9167 = vld [vmem:[#allocation6 + $0x58] sm:$0xf]
        %v9168 = vld [vmem:[#allocation6 + $0x5c] sm:$0xf]
        %v9169 = vld [vmem:[#allocation6 + $0x60] sm:$0xf]
        %v9170 = vld [vmem:[#allocation6 + $0x64] sm:$0xf]
        %v9171 = vld [vmem:[#allocation6 + $0x68] sm:$0xf]
        %v9172 = vld [vmem:[#allocation6 + $0x6c] sm:$0xf]
        %v9173 = vld [vmem:[#allocation6 + $0x70] sm:$0xf]
        %v9174 = vld [vmem:[#allocation6 + $0x74] sm:$0xf]
        %v9175 = vld [vmem:[#allocation6 + $0x78] sm:$0x1]
        %s9176 = scalar_lea.vmem [#allocation17], 320
        %v9177 = vld [vmem:[%s9176] sm:$0xf]
        %v9178 = vld [vmem:[%s9176 + $0x4] sm:$0xf]
        %v9179 = vld [vmem:[%s9176 + $0x8] sm:$0xf]
        %v9180 = vld [vmem:[%s9176 + $0xc] sm:$0xf]
        %v9181 = vld [vmem:[%s9176 + $0x10] sm:$0xf]
        %v9182 = vld [vmem:[%s9176 + $0x14] sm:$0xf]
        %v9183 = vld [vmem:[%s9176 + $0x18] sm:$0xf]
        %v9184 = vld [vmem:[%s9176 + $0x1c] sm:$0xf]
        %v9185 = vld [vmem:[%s9176 + $0x20] sm:$0xf]
        %v9186 = vld [vmem:[%s9176 + $0x24] sm:$0xf]
        %v9187 = vld [vmem:[%s9176 + $0x28] sm:$0xf]
        %v9188 = vld [vmem:[%s9176 + $0x2c] sm:$0xf]
        %v9189 = vld [vmem:[%s9176 + $0x30] sm:$0xf]
        %v9190 = vld [vmem:[%s9176 + $0x34] sm:$0xf]
        %v9191 = vld [vmem:[%s9176 + $0x38] sm:$0xf]
        %v9192 = vld [vmem:[%s9176 + $0x3c] sm:$0xf]
        %v9218 = vunpack.c.l.b16 %v9151
        %v9219 = vunpack.c.l.b16 %v9152
        %v9220 = vunpack.c.l.b16 %v9153
        %v9221 = vunpack.c.l.b16 %v9154
        %v9222 = vunpack.c.l.b16 %v9155
        %v9223 = vunpack.c.l.b16 %v9156
        %v9224 = vunpack.c.l.b16 %v9157
        %v9225 = vunpack.c.l.b16 %v9158
        %v9226 = vunpack.c.l.b16 %v9159
        %v9227 = vunpack.c.l.b16 %v9160
        %v9228 = vunpack.c.l.b16 %v9161
        %v9229 = vunpack.c.l.b16 %v9162
        %v9230 = vunpack.c.l.b16 %v9163
        %v9231 = vunpack.c.l.b16 %v9164
        %v9232 = vunpack.c.l.b16 %v9165
        %v9233 = vunpack.c.l.b16 %v9166
        %v9234 = vunpack.c.l.b16 %v9167
        %v9235 = vunpack.c.l.b16 %v9168
        %v9236 = vunpack.c.l.b16 %v9169
        %v9237 = vunpack.c.l.b16 %v9170
        %v9238 = vunpack.c.l.b16 %v9171
        %v9239 = vunpack.c.l.b16 %v9172
        %v9240 = vunpack.c.l.b16 %v9173
        %v9241 = vunpack.c.l.b16 %v9174
        %v9242 = vunpack.c.l.b16 %v9175
        %v9243 = vpack.c.b16 %v9219, %v9218
        %v9244 = vpack.c.b16 %v9221, %v9220
        %v9245 = vpack.c.b16 %v9223, %v9222
        %v9246 = vpack.c.b16 %v9225, %v9224
        %v9247 = vpack.c.b16 %v9227, %v9226
        %v9248 = vpack.c.b16 %v9229, %v9228
        %v9249 = vpack.c.b16 %v9231, %v9230
        %v9250 = vpack.c.b16 %v9233, %v9232
        %v9251 = vpack.c.b16 %v9235, %v9234
        %v9252 = vpack.c.b16 %v9237, %v9236
        %v9253 = vpack.c.b16 %v9239, %v9238
        %v9254 = vpack.c.b16 %v9241, %v9240
        %v9255 = vpack.c.b16 %v9242, %v9242
        %v9257 = vshrl.u32 %v9243, 16
        %v9259 = vshll.u32 %v9243, 16
        %v9261 = vrot.slane %v9259, 1
        %v9262 = vor.u32 %v9257, %v9261
        %v9264 = vshll.u32 %v9244, 16
        %v9266 = vrot.slane %v9264, 1
        %v9267 = vsel %vm3978, %v9262, %v9266
        %v9268 = vshrl.u32 %v9244, 16
        %v9270 = vor.u32 %v9268, %v9266
        %v9272 = vshll.u32 %v9245, 16
        %v9274 = vrot.slane %v9272, 1
        %v9275 = vsel %vm3978, %v9270, %v9274
        %v9276 = vshrl.u32 %v9245, 16
        %v9278 = vor.u32 %v9276, %v9274
        %v9280 = vshll.u32 %v9246, 16
        %v9282 = vrot.slane %v9280, 1
        %v9283 = vsel %vm3978, %v9278, %v9282
        %v9284 = vshrl.u32 %v9246, 16
        %v9286 = vor.u32 %v9284, %v9282
        %v9288 = vshll.u32 %v9247, 16
        %v9290 = vrot.slane %v9288, 1
        %v9291 = vsel %vm3978, %v9286, %v9290
        %v9292 = vshrl.u32 %v9247, 16
        %v9294 = vor.u32 %v9292, %v9290
        %v9296 = vshll.u32 %v9248, 16
        %v9298 = vrot.slane %v9296, 1
        %v9299 = vsel %vm3978, %v9294, %v9298
        %v9300 = vshrl.u32 %v9248, 16
        %v9302 = vor.u32 %v9300, %v9298
        %v9304 = vshll.u32 %v9249, 16
        %v9306 = vrot.slane %v9304, 1
        %v9307 = vsel %vm3978, %v9302, %v9306
        %v9308 = vshrl.u32 %v9249, 16
        %v9310 = vor.u32 %v9308, %v9306
        %v9312 = vshll.u32 %v9250, 16
        %v9314 = vrot.slane %v9312, 1
        %v9315 = vsel %vm3978, %v9310, %v9314
        %v9316 = vshrl.u32 %v9250, 16
        %v9318 = vor.u32 %v9316, %v9314
        %v9320 = vshll.u32 %v9251, 16
        %v9322 = vrot.slane %v9320, 1
        %v9323 = vsel %vm3978, %v9318, %v9322
        %v9324 = vshrl.u32 %v9251, 16
        %v9326 = vor.u32 %v9324, %v9322
        %v9328 = vshll.u32 %v9252, 16
        %v9330 = vrot.slane %v9328, 1
        %v9331 = vsel %vm3978, %v9326, %v9330
        %v9332 = vshrl.u32 %v9252, 16
        %v9334 = vor.u32 %v9332, %v9330
        %v9336 = vshll.u32 %v9253, 16
        %v9338 = vrot.slane %v9336, 1
        %v9339 = vsel %vm3978, %v9334, %v9338
        %v9340 = vshrl.u32 %v9253, 16
        %v9342 = vor.u32 %v9340, %v9338
        %v9344 = vshll.u32 %v9254, 16
        %v9346 = vrot.slane %v9344, 1
        %v9347 = vsel %vm3978, %v9342, %v9346
        %v9348 = vshrl.u32 %v9254, 16
        %v9350 = vor.u32 %v9348, %v9346
        %v9352 = vshll.u32 %v9255, 16
        %v9354 = vrot.slane %v9352, 1
        %v9355 = vsel %vm3978, %v9350, %v9354
        %v9384 = vunpack.c.l.b16 %v9177
        %v9385 = vunpack.c.l.b16 %v9178
        %v9386 = vunpack.c.l.b16 %v9179
        %v9387 = vunpack.c.l.b16 %v9180
        %v9388 = vunpack.c.l.b16 %v9181
        %v9389 = vunpack.c.l.b16 %v9182
        %v9390 = vunpack.c.l.b16 %v9183
        %v9391 = vunpack.c.l.b16 %v9184
        %v9392 = vunpack.c.l.b16 %v9185
        %v9393 = vunpack.c.l.b16 %v9186
        %v9394 = vunpack.c.l.b16 %v9187
        %v9395 = vunpack.c.l.b16 %v9188
        %v9396 = vunpack.c.l.b16 %v9189
        %v9397 = vunpack.c.l.b16 %v9190
        %v9398 = vunpack.c.l.b16 %v9191
        %v9399 = vunpack.c.l.b16 %v9192
        %v9400 = vpack.c.b16 %v9385, %v9384
        %v9401 = vpack.c.b16 %v9387, %v9386
        %v9402 = vpack.c.b16 %v9389, %v9388
        %v9403 = vpack.c.b16 %v9391, %v9390
        %v9404 = vpack.c.b16 %v9393, %v9392
        %v9405 = vpack.c.b16 %v9395, %v9394
        %v9406 = vpack.c.b16 %v9397, %v9396
        %v9407 = vpack.c.b16 %v9399, %v9398
        %9416 = vmatprep.subr.bf16.mxu0 0
        %9417 = vmatpush1.bf16.msra.mxu0 %v9407
        %9418 = vmatprep.subr.bf16.mxu0 0
        %9419 = vmatpush1.bf16.msra.mxu0 %v9406
        %9420 = vmatprep.subr.bf16.mxu0 0
        %9421 = vmatpush1.bf16.msra.mxu0 %v9405
        %9422 = vmatprep.subr.bf16.mxu0 0
        %9423 = vmatpush1.bf16.msra.mxu0 %v9404
        %9424 = vmatprep.subr.bf16.mxu0 0
        %9425 = vmatpush1.bf16.msra.mxu0 %v9403
        %9426 = vmatprep.subr.bf16.mxu0 0
        %9427 = vmatpush1.bf16.msra.mxu0 %v9402
        %9428 = vmatprep.subr.bf16.mxu0 0
        %9429 = vmatpush1.bf16.msra.mxu0 %v9401
        %9430 = vmatprep.subr.bf16.mxu0 0
        %9431 = vmatpush1.bf16.msra.mxu0 %v9400
        %9432 = vmatprep.subr.bf16.mxu0 0
        %9433 = vmatpush2.bf16.msra.mxu0 0
        %9434 = vmatprep.subr.bf16.mxu0 0
        %9435 = vmatpush2.bf16.msra.mxu0 0
        %9436 = vmatprep.subr.bf16.mxu0 0
        %9437 = vmatpush2.bf16.msra.mxu0 0
        %9438 = vmatprep.subr.bf16.mxu0 0
        %9439 = vmatpush2.bf16.msra.mxu0 0
        %9440 = vmatprep.subr.bf16.mxu0 0
        %9441 = vmatpush2.bf16.msra.mxu0 0
        %9442 = vmatprep.subr.bf16.mxu0 0
        %9443 = vmatpush2.bf16.msra.mxu0 0
        %9444 = vmatprep.subr.bf16.mxu0 0
        %9445 = vmatpush2.bf16.msra.mxu0 0
        %9446 = vmatprep.subr.bf16.mxu0 0
        %9447 = vmatpush2.bf16.msra.mxu0 0
        %9448 = vmatprep.mubr.bf16.mxu0 0
        %9449 = vmatmul.mubr.bf16.gmra.mxu0 %v9267
        %v9450 = vpop.f32.mrf.mxu0
        %v9451 = vadd.f32 0.0, %v9450
        %v9452 = vpop.f32.mrf.mxu0
        %v9453 = vpop.f32.mrf.mxu0
        %v9454 = vadd.f32 0.0, %v9453
        %v9455 = vpop.f32.mrf.mxu0
        %9456 = vmatprep.mubr.bf16.mxu0 0
        %9457 = vmatmul.mubr.bf16.gmra.mxu0 %v9275
        %v9458 = vpop.f32.mrf.mxu0
        %v9459 = vadd.f32 0.0, %v9458
        %v9460 = vpop.f32.mrf.mxu0
        %v9461 = vpop.f32.mrf.mxu0
        %v9462 = vadd.f32 0.0, %v9461
        %v9463 = vpop.f32.mrf.mxu0
        %9464 = vmatprep.mubr.bf16.mxu0 0
        %9465 = vmatmul.mubr.bf16.gmra.mxu0 %v9283
        %v9466 = vpop.f32.mrf.mxu0
        %v9467 = vadd.f32 0.0, %v9466
        %v9468 = vpop.f32.mrf.mxu0
        %v9469 = vpop.f32.mrf.mxu0
        %v9470 = vadd.f32 0.0, %v9469
        %v9471 = vpop.f32.mrf.mxu0
        %9472 = vmatprep.mubr.bf16.mxu0 0
        %9473 = vmatmul.mubr.bf16.gmra.mxu0 %v9291
        %v9474 = vpop.f32.mrf.mxu0
        %v9475 = vadd.f32 0.0, %v9474
        %v9476 = vpop.f32.mrf.mxu0
        %v9477 = vpop.f32.mrf.mxu0
        %v9478 = vadd.f32 0.0, %v9477
        %v9479 = vpop.f32.mrf.mxu0
        %9480 = vmatprep.mubr.bf16.mxu0 0
        %9481 = vmatmul.mubr.bf16.gmra.mxu0 %v9299
        %v9482 = vpop.f32.mrf.mxu0
        %v9483 = vadd.f32 0.0, %v9482
        %v9484 = vpop.f32.mrf.mxu0
        %v9485 = vpop.f32.mrf.mxu0
        %v9486 = vadd.f32 0.0, %v9485
        %v9487 = vpop.f32.mrf.mxu0
        %9488 = vmatprep.mubr.bf16.mxu0 0
        %9489 = vmatmul.mubr.bf16.gmra.mxu0 %v9307
        %v9490 = vpop.f32.mrf.mxu0
        %v9491 = vadd.f32 0.0, %v9490
        %v9492 = vpop.f32.mrf.mxu0
        %v9493 = vpop.f32.mrf.mxu0
        %v9494 = vadd.f32 0.0, %v9493
        %v9495 = vpop.f32.mrf.mxu0
        %9496 = vmatprep.mubr.bf16.mxu0 0
        %9497 = vmatmul.mubr.bf16.gmra.mxu0 %v9315
        %v9498 = vpop.f32.mrf.mxu0
        %v9499 = vadd.f32 0.0, %v9498
        %v9500 = vpop.f32.mrf.mxu0
        %v9501 = vpop.f32.mrf.mxu0
        %v9502 = vadd.f32 0.0, %v9501
        %v9503 = vpop.f32.mrf.mxu0
        %9504 = vmatprep.mubr.bf16.mxu0 0
        %9505 = vmatmul.mubr.bf16.gmra.mxu0 %v9323
        %v9506 = vpop.f32.mrf.mxu0
        %v9507 = vadd.f32 0.0, %v9506
        %v9508 = vpop.f32.mrf.mxu0
        %v9509 = vpop.f32.mrf.mxu0
        %v9510 = vadd.f32 0.0, %v9509
        %v9511 = vpop.f32.mrf.mxu0
        %9512 = vmatprep.mubr.bf16.mxu0 0
        %9513 = vmatmul.mubr.bf16.gmra.mxu0 %v9331
        %v9514 = vpop.f32.mrf.mxu0
        %v9515 = vadd.f32 0.0, %v9514
        %v9516 = vpop.f32.mrf.mxu0
        %v9517 = vpop.f32.mrf.mxu0
        %v9518 = vadd.f32 0.0, %v9517
        %v9519 = vpop.f32.mrf.mxu0
        %9520 = vmatprep.mubr.bf16.mxu0 0
        %9521 = vmatmul.mubr.bf16.gmra.mxu0 %v9339
        %v9522 = vpop.f32.mrf.mxu0
        %v9523 = vadd.f32 0.0, %v9522
        %v9524 = vpop.f32.mrf.mxu0
        %v9525 = vpop.f32.mrf.mxu0
        %v9526 = vadd.f32 0.0, %v9525
        %v9527 = vpop.f32.mrf.mxu0
        %9528 = vmatprep.mubr.bf16.mxu0 0
        %9529 = vmatmul.mubr.bf16.gmra.mxu0 %v9347
        %v9530 = vpop.f32.mrf.mxu0
        %v9531 = vadd.f32 0.0, %v9530
        %v9532 = vpop.f32.mrf.mxu0
        %v9533 = vpop.f32.mrf.mxu0
        %v9534 = vadd.f32 0.0, %v9533
        %v9535 = vpop.f32.mrf.mxu0
        %9536 = vmatprep.mubr.bf16.mxu0 0
        %9537 = vmatmul.mubr.bf16.gmra.mxu0 %v9355
        %v9538 = vpop.f32.mrf.mxu0
        %v9539 = vadd.f32 0.0, %v9538
        %v9540 = vpop.f32.mrf.mxu0
        %v9541 = vpop.f32.mrf.mxu0
        %v9542 = vadd.f32 0.0, %v9541
        %v9543 = vpop.f32.mrf.mxu0
        %9544 = vdwg.mxu0
        %v9545 = vadd.f32 %v9127, %v9451
        %v9546 = vadd.f32 %v9128, %v9454
        %v9547 = vadd.f32 %v9129, %v9459
        %v9548 = vadd.f32 %v9130, %v9462
        %v9549 = vadd.f32 %v9131, %v9467
        %v9550 = vadd.f32 %v9132, %v9470
        %v9551 = vadd.f32 %v9133, %v9475
        %v9552 = vadd.f32 %v9134, %v9478
        %v9553 = vadd.f32 %v9135, %v9483
        %v9554 = vadd.f32 %v9136, %v9486
        %v9555 = vadd.f32 %v9137, %v9491
        %v9556 = vadd.f32 %v9138, %v9494
        %v9557 = vadd.f32 %v9139, %v9499
        %v9558 = vadd.f32 %v9140, %v9502
        %v9559 = vadd.f32 %v9141, %v9507
        %v9560 = vadd.f32 %v9142, %v9510
        %v9561 = vadd.f32 %v9143, %v9515
        %v9562 = vadd.f32 %v9144, %v9518
        %v9563 = vadd.f32 %v9145, %v9523
        %v9564 = vadd.f32 %v9146, %v9526
        %v9565 = vadd.f32 %v9147, %v9531
        %v9566 = vadd.f32 %v9148, %v9534
        %v9567 = vadd.f32 %v9149, %v9539
        %v9568 = vadd.f32 %v9150, %v9542
        %v9569 = vld [vmem:[#allocation6 + $0x20] sm:$0x8]
        %v9570 = vld [vmem:[#allocation6 + $0x24] sm:$0xf]
        %v9571 = vld [vmem:[#allocation6 + $0x28] sm:$0xf]
        %v9572 = vld [vmem:[#allocation6 + $0x2c] sm:$0xf]
        %v9573 = vld [vmem:[#allocation6 + $0x30] sm:$0xf]
        %v9574 = vld [vmem:[#allocation6 + $0x34] sm:$0xf]
        %v9575 = vld [vmem:[#allocation6 + $0x38] sm:$0xf]
        %v9576 = vld [vmem:[#allocation6 + $0x3c] sm:$0xf]
        %v9577 = vld [vmem:[#allocation6 + $0x40] sm:$0xf]
        %v9578 = vld [vmem:[#allocation6 + $0x44] sm:$0xf]
        %v9579 = vld [vmem:[#allocation6 + $0x48] sm:$0xf]
        %v9580 = vld [vmem:[#allocation6 + $0x4c] sm:$0xf]
        %v9581 = vld [vmem:[#allocation6 + $0x50] sm:$0xf]
        %v9582 = vld [vmem:[#allocation6 + $0x54] sm:$0xf]
        %v9583 = vld [vmem:[#allocation6 + $0x58] sm:$0xf]
        %v9584 = vld [vmem:[#allocation6 + $0x5c] sm:$0xf]
        %v9585 = vld [vmem:[#allocation6 + $0x60] sm:$0xf]
        %v9586 = vld [vmem:[#allocation6 + $0x64] sm:$0xf]
        %v9587 = vld [vmem:[#allocation6 + $0x68] sm:$0xf]
        %v9588 = vld [vmem:[#allocation6 + $0x6c] sm:$0xf]
        %v9589 = vld [vmem:[#allocation6 + $0x70] sm:$0xf]
        %v9590 = vld [vmem:[#allocation6 + $0x74] sm:$0xf]
        %v9591 = vld [vmem:[#allocation6 + $0x78] sm:$0xf]
        %v9592 = vld [vmem:[#allocation6 + $0x7c] sm:$0xf]
        %v9593 = vld [vmem:[#allocation6 + $0x80] sm:$0xf]
        %s9594 = scalar_lea.vmem [#allocation17], 384
        %v9595 = vld [vmem:[%s9594] sm:$0xf]
        %v9596 = vld [vmem:[%s9594 + $0x4] sm:$0xf]
        %v9597 = vld [vmem:[%s9594 + $0x8] sm:$0xf]
        %v9598 = vld [vmem:[%s9594 + $0xc] sm:$0xf]
        %v9599 = vld [vmem:[%s9594 + $0x10] sm:$0xf]
        %v9600 = vld [vmem:[%s9594 + $0x14] sm:$0xf]
        %v9601 = vld [vmem:[%s9594 + $0x18] sm:$0xf]
        %v9602 = vld [vmem:[%s9594 + $0x1c] sm:$0xf]
        %v9603 = vld [vmem:[%s9594 + $0x20] sm:$0xf]
        %v9604 = vld [vmem:[%s9594 + $0x24] sm:$0xf]
        %v9605 = vld [vmem:[%s9594 + $0x28] sm:$0xf]
        %v9606 = vld [vmem:[%s9594 + $0x2c] sm:$0xf]
        %v9607 = vld [vmem:[%s9594 + $0x30] sm:$0xf]
        %v9608 = vld [vmem:[%s9594 + $0x34] sm:$0xf]
        %v9609 = vld [vmem:[%s9594 + $0x38] sm:$0xf]
        %v9610 = vld [vmem:[%s9594 + $0x3c] sm:$0xf]
        %v9636 = vunpack.c.l.b16 %v9569
        %v9637 = vunpack.c.l.b16 %v9570
        %v9638 = vunpack.c.l.b16 %v9571
        %v9639 = vunpack.c.l.b16 %v9572
        %v9640 = vunpack.c.l.b16 %v9573
        %v9641 = vunpack.c.l.b16 %v9574
        %v9642 = vunpack.c.l.b16 %v9575
        %v9643 = vunpack.c.l.b16 %v9576
        %v9644 = vunpack.c.l.b16 %v9577
        %v9645 = vunpack.c.l.b16 %v9578
        %v9646 = vunpack.c.l.b16 %v9579
        %v9647 = vunpack.c.l.b16 %v9580
        %v9648 = vunpack.c.l.b16 %v9581
        %v9649 = vunpack.c.l.b16 %v9582
        %v9650 = vunpack.c.l.b16 %v9583
        %v9651 = vunpack.c.l.b16 %v9584
        %v9652 = vunpack.c.l.b16 %v9585
        %v9653 = vunpack.c.l.b16 %v9586
        %v9654 = vunpack.c.l.b16 %v9587
        %v9655 = vunpack.c.l.b16 %v9588
        %v9656 = vunpack.c.l.b16 %v9589
        %v9657 = vunpack.c.l.b16 %v9590
        %v9658 = vunpack.c.l.b16 %v9591
        %v9659 = vunpack.c.l.b16 %v9592
        %v9660 = vunpack.c.l.b16 %v9593
        %v9661 = vpack.c.b16 %v9637, %v9636
        %v9662 = vpack.c.b16 %v9639, %v9638
        %v9663 = vpack.c.b16 %v9641, %v9640
        %v9664 = vpack.c.b16 %v9643, %v9642
        %v9665 = vpack.c.b16 %v9645, %v9644
        %v9666 = vpack.c.b16 %v9647, %v9646
        %v9667 = vpack.c.b16 %v9649, %v9648
        %v9668 = vpack.c.b16 %v9651, %v9650
        %v9669 = vpack.c.b16 %v9653, %v9652
        %v9670 = vpack.c.b16 %v9655, %v9654
        %v9671 = vpack.c.b16 %v9657, %v9656
        %v9672 = vpack.c.b16 %v9659, %v9658
        %v9673 = vpack.c.b16 %v9660, %v9660
        %v9675 = vshrl.u32 %v9661, 16
        %v9677 = vrot.slane %v9675, 3
        %v9678 = vshll.u32 %v9661, 16
        %v9680 = vrot.slane %v9678, 4
        %v9681 = vor.u32 %v9677, %v9680
        %v9683 = vshrl.u32 %v9662, 16
        %v9685 = vrot.slane %v9683, 3
        %v9686 = vshll.u32 %v9662, 16
        %v9688 = vrot.slane %v9686, 4
        %v9689 = vor.u32 %v9685, %v9688
        %v9690 = vsel %vm3492, %v9681, %v9689
        %v9692 = vshrl.u32 %v9663, 16
        %v9694 = vrot.slane %v9692, 3
        %v9695 = vshll.u32 %v9663, 16
        %v9697 = vrot.slane %v9695, 4
        %v9698 = vor.u32 %v9694, %v9697
        %v9699 = vsel %vm3492, %v9689, %v9698
        %v9701 = vshrl.u32 %v9664, 16
        %v9703 = vrot.slane %v9701, 3
        %v9704 = vshll.u32 %v9664, 16
        %v9706 = vrot.slane %v9704, 4
        %v9707 = vor.u32 %v9703, %v9706
        %v9708 = vsel %vm3492, %v9698, %v9707
        %v9710 = vshrl.u32 %v9665, 16
        %v9712 = vrot.slane %v9710, 3
        %v9713 = vshll.u32 %v9665, 16
        %v9715 = vrot.slane %v9713, 4
        %v9716 = vor.u32 %v9712, %v9715
        %v9717 = vsel %vm3492, %v9707, %v9716
        %v9719 = vshrl.u32 %v9666, 16
        %v9721 = vrot.slane %v9719, 3
        %v9722 = vshll.u32 %v9666, 16
        %v9724 = vrot.slane %v9722, 4
        %v9725 = vor.u32 %v9721, %v9724
        %v9726 = vsel %vm3492, %v9716, %v9725
        %v9728 = vshrl.u32 %v9667, 16
        %v9730 = vrot.slane %v9728, 3
        %v9731 = vshll.u32 %v9667, 16
        %v9733 = vrot.slane %v9731, 4
        %v9734 = vor.u32 %v9730, %v9733
        %v9735 = vsel %vm3492, %v9725, %v9734
        %v9737 = vshrl.u32 %v9668, 16
        %v9739 = vrot.slane %v9737, 3
        %v9740 = vshll.u32 %v9668, 16
        %v9742 = vrot.slane %v9740, 4
        %v9743 = vor.u32 %v9739, %v9742
        %v9744 = vsel %vm3492, %v9734, %v9743
        %v9746 = vshrl.u32 %v9669, 16
        %v9748 = vrot.slane %v9746, 3
        %v9749 = vshll.u32 %v9669, 16
        %v9751 = vrot.slane %v9749, 4
        %v9752 = vor.u32 %v9748, %v9751
        %v9753 = vsel %vm3492, %v9743, %v9752
        %v9755 = vshrl.u32 %v9670, 16
        %v9757 = vrot.slane %v9755, 3
        %v9758 = vshll.u32 %v9670, 16
        %v9760 = vrot.slane %v9758, 4
        %v9761 = vor.u32 %v9757, %v9760
        %v9762 = vsel %vm3492, %v9752, %v9761
        %v9764 = vshrl.u32 %v9671, 16
        %v9766 = vrot.slane %v9764, 3
        %v9767 = vshll.u32 %v9671, 16
        %v9769 = vrot.slane %v9767, 4
        %v9770 = vor.u32 %v9766, %v9769
        %v9771 = vsel %vm3492, %v9761, %v9770
        %v9773 = vshrl.u32 %v9672, 16
        %v9775 = vrot.slane %v9773, 3
        %v9776 = vshll.u32 %v9672, 16
        %v9778 = vrot.slane %v9776, 4
        %v9779 = vor.u32 %v9775, %v9778
        %v9780 = vsel %vm3492, %v9770, %v9779
        %v9782 = vshrl.u32 %v9673, 16
        %v9784 = vrot.slane %v9782, 3
        %v9785 = vshll.u32 %v9673, 16
        %v9787 = vrot.slane %v9785, 4
        %v9788 = vor.u32 %v9784, %v9787
        %v9789 = vsel %vm3492, %v9779, %v9788
        %v9818 = vunpack.c.l.b16 %v9595
        %v9819 = vunpack.c.l.b16 %v9596
        %v9820 = vunpack.c.l.b16 %v9597
        %v9821 = vunpack.c.l.b16 %v9598
        %v9822 = vunpack.c.l.b16 %v9599
        %v9823 = vunpack.c.l.b16 %v9600
        %v9824 = vunpack.c.l.b16 %v9601
        %v9825 = vunpack.c.l.b16 %v9602
        %v9826 = vunpack.c.l.b16 %v9603
        %v9827 = vunpack.c.l.b16 %v9604
        %v9828 = vunpack.c.l.b16 %v9605
        %v9829 = vunpack.c.l.b16 %v9606
        %v9830 = vunpack.c.l.b16 %v9607
        %v9831 = vunpack.c.l.b16 %v9608
        %v9832 = vunpack.c.l.b16 %v9609
        %v9833 = vunpack.c.l.b16 %v9610
        %v9834 = vpack.c.b16 %v9819, %v9818
        %v9835 = vpack.c.b16 %v9821, %v9820
        %v9836 = vpack.c.b16 %v9823, %v9822
        %v9837 = vpack.c.b16 %v9825, %v9824
        %v9838 = vpack.c.b16 %v9827, %v9826
        %v9839 = vpack.c.b16 %v9829, %v9828
        %v9840 = vpack.c.b16 %v9831, %v9830
        %v9841 = vpack.c.b16 %v9833, %v9832
        %9850 = vmatprep.subr.bf16.mxu0 0
        %9851 = vmatpush1.bf16.msra.mxu0 %v9841
        %9852 = vmatprep.subr.bf16.mxu0 0
        %9853 = vmatpush1.bf16.msra.mxu0 %v9840
        %9854 = vmatprep.subr.bf16.mxu0 0
        %9855 = vmatpush1.bf16.msra.mxu0 %v9839
        %9856 = vmatprep.subr.bf16.mxu0 0
        %9857 = vmatpush1.bf16.msra.mxu0 %v9838
        %9858 = vmatprep.subr.bf16.mxu0 0
        %9859 = vmatpush1.bf16.msra.mxu0 %v9837
        %9860 = vmatprep.subr.bf16.mxu0 0
        %9861 = vmatpush1.bf16.msra.mxu0 %v9836
        %9862 = vmatprep.subr.bf16.mxu0 0
        %9863 = vmatpush1.bf16.msra.mxu0 %v9835
        %9864 = vmatprep.subr.bf16.mxu0 0
        %9865 = vmatpush1.bf16.msra.mxu0 %v9834
        %9866 = vmatprep.subr.bf16.mxu0 0
        %9867 = vmatpush2.bf16.msra.mxu0 0
        %9868 = vmatprep.subr.bf16.mxu0 0
        %9869 = vmatpush2.bf16.msra.mxu0 0
        %9870 = vmatprep.subr.bf16.mxu0 0
        %9871 = vmatpush2.bf16.msra.mxu0 0
        %9872 = vmatprep.subr.bf16.mxu0 0
        %9873 = vmatpush2.bf16.msra.mxu0 0
        %9874 = vmatprep.subr.bf16.mxu0 0
        %9875 = vmatpush2.bf16.msra.mxu0 0
        %9876 = vmatprep.subr.bf16.mxu0 0
        %9877 = vmatpush2.bf16.msra.mxu0 0
        %9878 = vmatprep.subr.bf16.mxu0 0
        %9879 = vmatpush2.bf16.msra.mxu0 0
        %9880 = vmatprep.subr.bf16.mxu0 0
        %9881 = vmatpush2.bf16.msra.mxu0 0
        %9882 = vmatprep.mubr.bf16.mxu0 0
        %9883 = vmatmul.mubr.bf16.gmra.mxu0 %v9690
        %v9884 = vpop.f32.mrf.mxu0
        %v9885 = vadd.f32 0.0, %v9884
        %v9886 = vpop.f32.mrf.mxu0
        %v9887 = vpop.f32.mrf.mxu0
        %v9888 = vadd.f32 0.0, %v9887
        %v9889 = vpop.f32.mrf.mxu0
        %9890 = vmatprep.mubr.bf16.mxu0 0
        %9891 = vmatmul.mubr.bf16.gmra.mxu0 %v9699
        %v9892 = vpop.f32.mrf.mxu0
        %v9893 = vadd.f32 0.0, %v9892
        %v9894 = vpop.f32.mrf.mxu0
        %v9895 = vpop.f32.mrf.mxu0
        %v9896 = vadd.f32 0.0, %v9895
        %v9897 = vpop.f32.mrf.mxu0
        %9898 = vmatprep.mubr.bf16.mxu0 0
        %9899 = vmatmul.mubr.bf16.gmra.mxu0 %v9708
        %v9900 = vpop.f32.mrf.mxu0
        %v9901 = vadd.f32 0.0, %v9900
        %v9902 = vpop.f32.mrf.mxu0
        %v9903 = vpop.f32.mrf.mxu0
        %v9904 = vadd.f32 0.0, %v9903
        %v9905 = vpop.f32.mrf.mxu0
        %9906 = vmatprep.mubr.bf16.mxu0 0
        %9907 = vmatmul.mubr.bf16.gmra.mxu0 %v9717
        %v9908 = vpop.f32.mrf.mxu0
        %v9909 = vadd.f32 0.0, %v9908
        %v9910 = vpop.f32.mrf.mxu0
        %v9911 = vpop.f32.mrf.mxu0
        %v9912 = vadd.f32 0.0, %v9911
        %v9913 = vpop.f32.mrf.mxu0
        %9914 = vmatprep.mubr.bf16.mxu0 0
        %9915 = vmatmul.mubr.bf16.gmra.mxu0 %v9726
        %v9916 = vpop.f32.mrf.mxu0
        %v9917 = vadd.f32 0.0, %v9916
        %v9918 = vpop.f32.mrf.mxu0
        %v9919 = vpop.f32.mrf.mxu0
        %v9920 = vadd.f32 0.0, %v9919
        %v9921 = vpop.f32.mrf.mxu0
        %9922 = vmatprep.mubr.bf16.mxu0 0
        %9923 = vmatmul.mubr.bf16.gmra.mxu0 %v9735
        %v9924 = vpop.f32.mrf.mxu0
        %v9925 = vadd.f32 0.0, %v9924
        %v9926 = vpop.f32.mrf.mxu0
        %v9927 = vpop.f32.mrf.mxu0
        %v9928 = vadd.f32 0.0, %v9927
        %v9929 = vpop.f32.mrf.mxu0
        %9930 = vmatprep.mubr.bf16.mxu0 0
        %9931 = vmatmul.mubr.bf16.gmra.mxu0 %v9744
        %v9932 = vpop.f32.mrf.mxu0
        %v9933 = vadd.f32 0.0, %v9932
        %v9934 = vpop.f32.mrf.mxu0
        %v9935 = vpop.f32.mrf.mxu0
        %v9936 = vadd.f32 0.0, %v9935
        %v9937 = vpop.f32.mrf.mxu0
        %9938 = vmatprep.mubr.bf16.mxu0 0
        %9939 = vmatmul.mubr.bf16.gmra.mxu0 %v9753
        %v9940 = vpop.f32.mrf.mxu0
        %v9941 = vadd.f32 0.0, %v9940
        %v9942 = vpop.f32.mrf.mxu0
        %v9943 = vpop.f32.mrf.mxu0
        %v9944 = vadd.f32 0.0, %v9943
        %v9945 = vpop.f32.mrf.mxu0
        %9946 = vmatprep.mubr.bf16.mxu0 0
        %9947 = vmatmul.mubr.bf16.gmra.mxu0 %v9762
        %v9948 = vpop.f32.mrf.mxu0
        %v9949 = vadd.f32 0.0, %v9948
        %v9950 = vpop.f32.mrf.mxu0
        %v9951 = vpop.f32.mrf.mxu0
        %v9952 = vadd.f32 0.0, %v9951
        %v9953 = vpop.f32.mrf.mxu0
        %9954 = vmatprep.mubr.bf16.mxu0 0
        %9955 = vmatmul.mubr.bf16.gmra.mxu0 %v9771
        %v9956 = vpop.f32.mrf.mxu0
        %v9957 = vadd.f32 0.0, %v9956
        %v9958 = vpop.f32.mrf.mxu0
        %v9959 = vpop.f32.mrf.mxu0
        %v9960 = vadd.f32 0.0, %v9959
        %v9961 = vpop.f32.mrf.mxu0
        %9962 = vmatprep.mubr.bf16.mxu0 0
        %9963 = vmatmul.mubr.bf16.gmra.mxu0 %v9780
        %v9964 = vpop.f32.mrf.mxu0
        %v9965 = vadd.f32 0.0, %v9964
        %v9966 = vpop.f32.mrf.mxu0
        %v9967 = vpop.f32.mrf.mxu0
        %v9968 = vadd.f32 0.0, %v9967
        %v9969 = vpop.f32.mrf.mxu0
        %9970 = vmatprep.mubr.bf16.mxu0 0
        %9971 = vmatmul.mubr.bf16.gmra.mxu0 %v9789
        %v9972 = vpop.f32.mrf.mxu0
        %v9973 = vadd.f32 0.0, %v9972
        %v9974 = vpop.f32.mrf.mxu0
        %v9975 = vpop.f32.mrf.mxu0
        %v9976 = vadd.f32 0.0, %v9975
        %v9977 = vpop.f32.mrf.mxu0
        %9978 = vdwg.mxu0
        %v9979 = vadd.f32 %v9545, %v9885
        %v9980 = vadd.f32 %v9546, %v9888
        %v9981 = vadd.f32 %v9547, %v9893
        %v9982 = vadd.f32 %v9548, %v9896
        %v9983 = vadd.f32 %v9549, %v9901
        %v9984 = vadd.f32 %v9550, %v9904
        %v9985 = vadd.f32 %v9551, %v9909
        %v9986 = vadd.f32 %v9552, %v9912
        %v9987 = vadd.f32 %v9553, %v9917
        %v9988 = vadd.f32 %v9554, %v9920
        %v9989 = vadd.f32 %v9555, %v9925
        %v9990 = vadd.f32 %v9556, %v9928
        %v9991 = vadd.f32 %v9557, %v9933
        %v9992 = vadd.f32 %v9558, %v9936
        %v9993 = vadd.f32 %v9559, %v9941
        %v9994 = vadd.f32 %v9560, %v9944
        %v9995 = vadd.f32 %v9561, %v9949
        %v9996 = vadd.f32 %v9562, %v9952
        %v9997 = vadd.f32 %v9563, %v9957
        %v9998 = vadd.f32 %v9564, %v9960
        %v9999 = vadd.f32 %v9565, %v9965
        %v10000 = vadd.f32 %v9566, %v9968
        %v10001 = vadd.f32 %v9567, %v9973
        %v10002 = vadd.f32 %v9568, %v9976
        %s10003 = scalar_lea.vmem [#allocation17], 448
        %v10004 = vld [vmem:[%s10003] sm:$0xf]
        %v10005 = vld [vmem:[%s10003 + $0x4] sm:$0xf]
        %v10006 = vld [vmem:[%s10003 + $0x8] sm:$0xf]
        %v10007 = vld [vmem:[%s10003 + $0xc] sm:$0xf]
        %v10008 = vld [vmem:[%s10003 + $0x10] sm:$0xf]
        %v10009 = vld [vmem:[%s10003 + $0x14] sm:$0xf]
        %v10010 = vld [vmem:[%s10003 + $0x18] sm:$0xf]
        %v10011 = vld [vmem:[%s10003 + $0x1c] sm:$0xf]
        %v10012 = vld [vmem:[%s10003 + $0x20] sm:$0xf]
        %v10013 = vld [vmem:[%s10003 + $0x24] sm:$0xf]
        %v10014 = vld [vmem:[%s10003 + $0x28] sm:$0xf]
        %v10015 = vld [vmem:[%s10003 + $0x2c] sm:$0xf]
        %v10016 = vld [vmem:[%s10003 + $0x30] sm:$0xf]
        %v10017 = vld [vmem:[%s10003 + $0x34] sm:$0xf]
        %v10018 = vld [vmem:[%s10003 + $0x38] sm:$0xf]
        %v10019 = vld [vmem:[%s10003 + $0x3c] sm:$0xf]
        %v10020 = vpack.c.b16 %v9638, %v9637
        %v10021 = vpack.c.b16 %v9640, %v9639
        %v10022 = vpack.c.b16 %v9642, %v9641
        %v10023 = vpack.c.b16 %v9644, %v9643
        %v10024 = vpack.c.b16 %v9646, %v9645
        %v10025 = vpack.c.b16 %v9648, %v9647
        %v10026 = vpack.c.b16 %v9650, %v9649
        %v10027 = vpack.c.b16 %v9652, %v9651
        %v10028 = vpack.c.b16 %v9654, %v9653
        %v10029 = vpack.c.b16 %v9656, %v9655
        %v10030 = vpack.c.b16 %v9658, %v9657
        %v10031 = vpack.c.b16 %v9660, %v9659
        %v10060 = vunpack.c.l.b16 %v10004
        %v10061 = vunpack.c.l.b16 %v10005
        %v10062 = vunpack.c.l.b16 %v10006
        %v10063 = vunpack.c.l.b16 %v10007
        %v10064 = vunpack.c.l.b16 %v10008
        %v10065 = vunpack.c.l.b16 %v10009
        %v10066 = vunpack.c.l.b16 %v10010
        %v10067 = vunpack.c.l.b16 %v10011
        %v10068 = vunpack.c.l.b16 %v10012
        %v10069 = vunpack.c.l.b16 %v10013
        %v10070 = vunpack.c.l.b16 %v10014
        %v10071 = vunpack.c.l.b16 %v10015
        %v10072 = vunpack.c.l.b16 %v10016
        %v10073 = vunpack.c.l.b16 %v10017
        %v10074 = vunpack.c.l.b16 %v10018
        %v10075 = vunpack.c.l.b16 %v10019
        %v10076 = vpack.c.b16 %v10061, %v10060
        %v10077 = vpack.c.b16 %v10063, %v10062
        %v10078 = vpack.c.b16 %v10065, %v10064
        %v10079 = vpack.c.b16 %v10067, %v10066
        %v10080 = vpack.c.b16 %v10069, %v10068
        %v10081 = vpack.c.b16 %v10071, %v10070
        %v10082 = vpack.c.b16 %v10073, %v10072
        %v10083 = vpack.c.b16 %v10075, %v10074
        %10092 = vmatprep.subr.bf16.mxu0 0
        %10093 = vmatpush1.bf16.msra.mxu0 %v10083
        %10094 = vmatprep.subr.bf16.mxu0 0
        %10095 = vmatpush1.bf16.msra.mxu0 %v10082
        %10096 = vmatprep.subr.bf16.mxu0 0
        %10097 = vmatpush1.bf16.msra.mxu0 %v10081
        %10098 = vmatprep.subr.bf16.mxu0 0
        %10099 = vmatpush1.bf16.msra.mxu0 %v10080
        %10100 = vmatprep.subr.bf16.mxu0 0
        %10101 = vmatpush1.bf16.msra.mxu0 %v10079
        %10102 = vmatprep.subr.bf16.mxu0 0
        %10103 = vmatpush1.bf16.msra.mxu0 %v10078
        %10104 = vmatprep.subr.bf16.mxu0 0
        %10105 = vmatpush1.bf16.msra.mxu0 %v10077
        %10106 = vmatprep.subr.bf16.mxu0 0
        %10107 = vmatpush1.bf16.msra.mxu0 %v10076
        %10108 = vmatprep.subr.bf16.mxu0 0
        %10109 = vmatpush2.bf16.msra.mxu0 0
        %10110 = vmatprep.subr.bf16.mxu0 0
        %10111 = vmatpush2.bf16.msra.mxu0 0
        %10112 = vmatprep.subr.bf16.mxu0 0
        %10113 = vmatpush2.bf16.msra.mxu0 0
        %10114 = vmatprep.subr.bf16.mxu0 0
        %10115 = vmatpush2.bf16.msra.mxu0 0
        %10116 = vmatprep.subr.bf16.mxu0 0
        %10117 = vmatpush2.bf16.msra.mxu0 0
        %10118 = vmatprep.subr.bf16.mxu0 0
        %10119 = vmatpush2.bf16.msra.mxu0 0
        %10120 = vmatprep.subr.bf16.mxu0 0
        %10121 = vmatpush2.bf16.msra.mxu0 0
        %10122 = vmatprep.subr.bf16.mxu0 0
        %10123 = vmatpush2.bf16.msra.mxu0 0
        %10124 = vmatprep.mubr.bf16.mxu0 0
        %10125 = vmatmul.mubr.bf16.gmra.mxu0 %v10020
        %v10126 = vpop.f32.mrf.mxu0
        %v10127 = vadd.f32 0.0, %v10126
        %v10128 = vpop.f32.mrf.mxu0
        %v10129 = vpop.f32.mrf.mxu0
        %v10130 = vadd.f32 0.0, %v10129
        %v10131 = vpop.f32.mrf.mxu0
        %10132 = vmatprep.mubr.bf16.mxu0 0
        %10133 = vmatmul.mubr.bf16.gmra.mxu0 %v10021
        %v10134 = vpop.f32.mrf.mxu0
        %v10135 = vadd.f32 0.0, %v10134
        %v10136 = vpop.f32.mrf.mxu0
        %v10137 = vpop.f32.mrf.mxu0
        %v10138 = vadd.f32 0.0, %v10137
        %v10139 = vpop.f32.mrf.mxu0
        %10140 = vmatprep.mubr.bf16.mxu0 0
        %10141 = vmatmul.mubr.bf16.gmra.mxu0 %v10022
        %v10142 = vpop.f32.mrf.mxu0
        %v10143 = vadd.f32 0.0, %v10142
        %v10144 = vpop.f32.mrf.mxu0
        %v10145 = vpop.f32.mrf.mxu0
        %v10146 = vadd.f32 0.0, %v10145
        %v10147 = vpop.f32.mrf.mxu0
        %10148 = vmatprep.mubr.bf16.mxu0 0
        %10149 = vmatmul.mubr.bf16.gmra.mxu0 %v10023
        %v10150 = vpop.f32.mrf.mxu0
        %v10151 = vadd.f32 0.0, %v10150
        %v10152 = vpop.f32.mrf.mxu0
        %v10153 = vpop.f32.mrf.mxu0
        %v10154 = vadd.f32 0.0, %v10153
        %v10155 = vpop.f32.mrf.mxu0
        %10156 = vmatprep.mubr.bf16.mxu0 0
        %10157 = vmatmul.mubr.bf16.gmra.mxu0 %v10024
        %v10158 = vpop.f32.mrf.mxu0
        %v10159 = vadd.f32 0.0, %v10158
        %v10160 = vpop.f32.mrf.mxu0
        %v10161 = vpop.f32.mrf.mxu0
        %v10162 = vadd.f32 0.0, %v10161
        %v10163 = vpop.f32.mrf.mxu0
        %10164 = vmatprep.mubr.bf16.mxu0 0
        %10165 = vmatmul.mubr.bf16.gmra.mxu0 %v10025
        %v10166 = vpop.f32.mrf.mxu0
        %v10167 = vadd.f32 0.0, %v10166
        %v10168 = vpop.f32.mrf.mxu0
        %v10169 = vpop.f32.mrf.mxu0
        %v10170 = vadd.f32 0.0, %v10169
        %v10171 = vpop.f32.mrf.mxu0
        %10172 = vmatprep.mubr.bf16.mxu0 0
        %10173 = vmatmul.mubr.bf16.gmra.mxu0 %v10026
        %v10174 = vpop.f32.mrf.mxu0
        %v10175 = vadd.f32 0.0, %v10174
        %v10176 = vpop.f32.mrf.mxu0
        %v10177 = vpop.f32.mrf.mxu0
        %v10178 = vadd.f32 0.0, %v10177
        %v10179 = vpop.f32.mrf.mxu0
        %10180 = vmatprep.mubr.bf16.mxu0 0
        %10181 = vmatmul.mubr.bf16.gmra.mxu0 %v10027
        %v10182 = vpop.f32.mrf.mxu0
        %v10183 = vadd.f32 0.0, %v10182
        %v10184 = vpop.f32.mrf.mxu0
        %v10185 = vpop.f32.mrf.mxu0
        %v10186 = vadd.f32 0.0, %v10185
        %v10187 = vpop.f32.mrf.mxu0
        %10188 = vmatprep.mubr.bf16.mxu0 0
        %10189 = vmatmul.mubr.bf16.gmra.mxu0 %v10028
        %v10190 = vpop.f32.mrf.mxu0
        %v10191 = vadd.f32 0.0, %v10190
        %v10192 = vpop.f32.mrf.mxu0
        %v10193 = vpop.f32.mrf.mxu0
        %v10194 = vadd.f32 0.0, %v10193
        %v10195 = vpop.f32.mrf.mxu0
        %10196 = vmatprep.mubr.bf16.mxu0 0
        %10197 = vmatmul.mubr.bf16.gmra.mxu0 %v10029
        %v10198 = vpop.f32.mrf.mxu0
        %v10199 = vadd.f32 0.0, %v10198
        %v10200 = vpop.f32.mrf.mxu0
        %v10201 = vpop.f32.mrf.mxu0
        %v10202 = vadd.f32 0.0, %v10201
        %v10203 = vpop.f32.mrf.mxu0
        %10204 = vmatprep.mubr.bf16.mxu0 0
        %10205 = vmatmul.mubr.bf16.gmra.mxu0 %v10030
        %v10206 = vpop.f32.mrf.mxu0
        %v10207 = vadd.f32 0.0, %v10206
        %v10208 = vpop.f32.mrf.mxu0
        %v10209 = vpop.f32.mrf.mxu0
        %v10210 = vadd.f32 0.0, %v10209
        %v10211 = vpop.f32.mrf.mxu0
        %10212 = vmatprep.mubr.bf16.mxu0 0
        %10213 = vmatmul.mubr.bf16.gmra.mxu0 %v10031
        %v10214 = vpop.f32.mrf.mxu0
        %v10215 = vadd.f32 0.0, %v10214
        %v10216 = vpop.f32.mrf.mxu0
        %v10217 = vpop.f32.mrf.mxu0
        %v10218 = vadd.f32 0.0, %v10217
        %v10219 = vpop.f32.mrf.mxu0
        %10220 = vdwg.mxu0
        %v10221 = vadd.f32 %v9979, %v10127
        %v10222 = vadd.f32 %v9980, %v10130
        %v10223 = vadd.f32 %v9981, %v10135
        %v10224 = vadd.f32 %v9982, %v10138
        %v10225 = vadd.f32 %v9983, %v10143
        %v10226 = vadd.f32 %v9984, %v10146
        %v10227 = vadd.f32 %v9985, %v10151
        %v10228 = vadd.f32 %v9986, %v10154
        %v10229 = vadd.f32 %v9987, %v10159
        %v10230 = vadd.f32 %v9988, %v10162
        %v10231 = vadd.f32 %v9989, %v10167
        %v10232 = vadd.f32 %v9990, %v10170
        %v10233 = vadd.f32 %v9991, %v10175
        %v10234 = vadd.f32 %v9992, %v10178
        %v10235 = vadd.f32 %v9993, %v10183
        %v10236 = vadd.f32 %v9994, %v10186
        %v10237 = vadd.f32 %v9995, %v10191
        %v10238 = vadd.f32 %v9996, %v10194
        %v10239 = vadd.f32 %v9997, %v10199
        %v10240 = vadd.f32 %v9998, %v10202
        %v10241 = vadd.f32 %v9999, %v10207
        %v10242 = vadd.f32 %v10000, %v10210
        %v10243 = vadd.f32 %v10001, %v10215
        %v10244 = vadd.f32 %v10002, %v10218
        %v10245 = vld [vmem:[#allocation6 + $0x24] sm:$0xf]
        %v10246 = vld [vmem:[#allocation6 + $0x28] sm:$0xf]
        %v10247 = vld [vmem:[#allocation6 + $0x2c] sm:$0xf]
        %v10248 = vld [vmem:[#allocation6 + $0x30] sm:$0xf]
        %v10249 = vld [vmem:[#allocation6 + $0x34] sm:$0xf]
        %v10250 = vld [vmem:[#allocation6 + $0x38] sm:$0xf]
        %v10251 = vld [vmem:[#allocation6 + $0x3c] sm:$0xf]
        %v10252 = vld [vmem:[#allocation6 + $0x40] sm:$0xf]
        %v10253 = vld [vmem:[#allocation6 + $0x44] sm:$0xf]
        %v10254 = vld [vmem:[#allocation6 + $0x48] sm:$0xf]
        %v10255 = vld [vmem:[#allocation6 + $0x4c] sm:$0xf]
        %v10256 = vld [vmem:[#allocation6 + $0x50] sm:$0xf]
        %v10257 = vld [vmem:[#allocation6 + $0x54] sm:$0xf]
        %v10258 = vld [vmem:[#allocation6 + $0x58] sm:$0xf]
        %v10259 = vld [vmem:[#allocation6 + $0x5c] sm:$0xf]
        %v10260 = vld [vmem:[#allocation6 + $0x60] sm:$0xf]
        %v10261 = vld [vmem:[#allocation6 + $0x64] sm:$0xf]
        %v10262 = vld [vmem:[#allocation6 + $0x68] sm:$0xf]
        %v10263 = vld [vmem:[#allocation6 + $0x6c] sm:$0xf]
        %v10264 = vld [vmem:[#allocation6 + $0x70] sm:$0xf]
        %v10265 = vld [vmem:[#allocation6 + $0x74] sm:$0xf]
        %v10266 = vld [vmem:[#allocation6 + $0x78] sm:$0xf]
        %v10267 = vld [vmem:[#allocation6 + $0x7c] sm:$0xf]
        %v10268 = vld [vmem:[#allocation6 + $0x80] sm:$0xf]
        %v10269 = vld [vmem:[#allocation6 + $0x84] sm:$0x1]
        %s10270 = scalar_lea.vmem [#allocation17], 512
        %v10271 = vld [vmem:[%s10270] sm:$0xf]
        %v10272 = vld [vmem:[%s10270 + $0x4] sm:$0xf]
        %v10273 = vld [vmem:[%s10270 + $0x8] sm:$0xf]
        %v10274 = vld [vmem:[%s10270 + $0xc] sm:$0xf]
        %v10275 = vld [vmem:[%s10270 + $0x10] sm:$0xf]
        %v10276 = vld [vmem:[%s10270 + $0x14] sm:$0xf]
        %v10277 = vld [vmem:[%s10270 + $0x18] sm:$0xf]
        %v10278 = vld [vmem:[%s10270 + $0x1c] sm:$0xf]
        %v10279 = vld [vmem:[%s10270 + $0x20] sm:$0xf]
        %v10280 = vld [vmem:[%s10270 + $0x24] sm:$0xf]
        %v10281 = vld [vmem:[%s10270 + $0x28] sm:$0xf]
        %v10282 = vld [vmem:[%s10270 + $0x2c] sm:$0xf]
        %v10283 = vld [vmem:[%s10270 + $0x30] sm:$0xf]
        %v10284 = vld [vmem:[%s10270 + $0x34] sm:$0xf]
        %v10285 = vld [vmem:[%s10270 + $0x38] sm:$0xf]
        %v10286 = vld [vmem:[%s10270 + $0x3c] sm:$0xf]
        %v10312 = vunpack.c.l.b16 %v10245
        %v10313 = vunpack.c.l.b16 %v10246
        %v10314 = vunpack.c.l.b16 %v10247
        %v10315 = vunpack.c.l.b16 %v10248
        %v10316 = vunpack.c.l.b16 %v10249
        %v10317 = vunpack.c.l.b16 %v10250
        %v10318 = vunpack.c.l.b16 %v10251
        %v10319 = vunpack.c.l.b16 %v10252
        %v10320 = vunpack.c.l.b16 %v10253
        %v10321 = vunpack.c.l.b16 %v10254
        %v10322 = vunpack.c.l.b16 %v10255
        %v10323 = vunpack.c.l.b16 %v10256
        %v10324 = vunpack.c.l.b16 %v10257
        %v10325 = vunpack.c.l.b16 %v10258
        %v10326 = vunpack.c.l.b16 %v10259
        %v10327 = vunpack.c.l.b16 %v10260
        %v10328 = vunpack.c.l.b16 %v10261
        %v10329 = vunpack.c.l.b16 %v10262
        %v10330 = vunpack.c.l.b16 %v10263
        %v10331 = vunpack.c.l.b16 %v10264
        %v10332 = vunpack.c.l.b16 %v10265
        %v10333 = vunpack.c.l.b16 %v10266
        %v10334 = vunpack.c.l.b16 %v10267
        %v10335 = vunpack.c.l.b16 %v10268
        %v10336 = vunpack.c.l.b16 %v10269
        %v10337 = vpack.c.b16 %v10313, %v10312
        %v10338 = vpack.c.b16 %v10315, %v10314
        %v10339 = vpack.c.b16 %v10317, %v10316
        %v10340 = vpack.c.b16 %v10319, %v10318
        %v10341 = vpack.c.b16 %v10321, %v10320
        %v10342 = vpack.c.b16 %v10323, %v10322
        %v10343 = vpack.c.b16 %v10325, %v10324
        %v10344 = vpack.c.b16 %v10327, %v10326
        %v10345 = vpack.c.b16 %v10329, %v10328
        %v10346 = vpack.c.b16 %v10331, %v10330
        %v10347 = vpack.c.b16 %v10333, %v10332
        %v10348 = vpack.c.b16 %v10335, %v10334
        %v10349 = vpack.c.b16 %v10336, %v10336
        %v10351 = vshrl.u32 %v10337, 16
        %v10353 = vshll.u32 %v10337, 16
        %v10355 = vrot.slane %v10353, 1
        %v10356 = vor.u32 %v10351, %v10355
        %v10358 = vshll.u32 %v10338, 16
        %v10360 = vrot.slane %v10358, 1
        %v10361 = vsel %vm3978, %v10356, %v10360
        %v10362 = vshrl.u32 %v10338, 16
        %v10364 = vor.u32 %v10362, %v10360
        %v10366 = vshll.u32 %v10339, 16
        %v10368 = vrot.slane %v10366, 1
        %v10369 = vsel %vm3978, %v10364, %v10368
        %v10370 = vshrl.u32 %v10339, 16
        %v10372 = vor.u32 %v10370, %v10368
        %v10374 = vshll.u32 %v10340, 16
        %v10376 = vrot.slane %v10374, 1
        %v10377 = vsel %vm3978, %v10372, %v10376
        %v10378 = vshrl.u32 %v10340, 16
        %v10380 = vor.u32 %v10378, %v10376
        %v10382 = vshll.u32 %v10341, 16
        %v10384 = vrot.slane %v10382, 1
        %v10385 = vsel %vm3978, %v10380, %v10384
        %v10386 = vshrl.u32 %v10341, 16
        %v10388 = vor.u32 %v10386, %v10384
        %v10390 = vshll.u32 %v10342, 16
        %v10392 = vrot.slane %v10390, 1
        %v10393 = vsel %vm3978, %v10388, %v10392
        %v10394 = vshrl.u32 %v10342, 16
        %v10396 = vor.u32 %v10394, %v10392
        %v10398 = vshll.u32 %v10343, 16
        %v10400 = vrot.slane %v10398, 1
        %v10401 = vsel %vm3978, %v10396, %v10400
        %v10402 = vshrl.u32 %v10343, 16
        %v10404 = vor.u32 %v10402, %v10400
        %v10406 = vshll.u32 %v10344, 16
        %v10408 = vrot.slane %v10406, 1
        %v10409 = vsel %vm3978, %v10404, %v10408
        %v10410 = vshrl.u32 %v10344, 16
        %v10412 = vor.u32 %v10410, %v10408
        %v10414 = vshll.u32 %v10345, 16
        %v10416 = vrot.slane %v10414, 1
        %v10417 = vsel %vm3978, %v10412, %v10416
        %v10418 = vshrl.u32 %v10345, 16
        %v10420 = vor.u32 %v10418, %v10416
        %v10422 = vshll.u32 %v10346, 16
        %v10424 = vrot.slane %v10422, 1
        %v10425 = vsel %vm3978, %v10420, %v10424
        %v10426 = vshrl.u32 %v10346, 16
        %v10428 = vor.u32 %v10426, %v10424
        %v10430 = vshll.u32 %v10347, 16
        %v10432 = vrot.slane %v10430, 1
        %v10433 = vsel %vm3978, %v10428, %v10432
        %v10434 = vshrl.u32 %v10347, 16
        %v10436 = vor.u32 %v10434, %v10432
        %v10438 = vshll.u32 %v10348, 16
        %v10440 = vrot.slane %v10438, 1
        %v10441 = vsel %vm3978, %v10436, %v10440
        %v10442 = vshrl.u32 %v10348, 16
        %v10444 = vor.u32 %v10442, %v10440
        %v10446 = vshll.u32 %v10349, 16
        %v10448 = vrot.slane %v10446, 1
        %v10449 = vsel %vm3978, %v10444, %v10448
        %v10478 = vunpack.c.l.b16 %v10271
        %v10479 = vunpack.c.l.b16 %v10272
        %v10480 = vunpack.c.l.b16 %v10273
        %v10481 = vunpack.c.l.b16 %v10274
        %v10482 = vunpack.c.l.b16 %v10275
        %v10483 = vunpack.c.l.b16 %v10276
        %v10484 = vunpack.c.l.b16 %v10277
        %v10485 = vunpack.c.l.b16 %v10278
        %v10486 = vunpack.c.l.b16 %v10279
        %v10487 = vunpack.c.l.b16 %v10280
        %v10488 = vunpack.c.l.b16 %v10281
        %v10489 = vunpack.c.l.b16 %v10282
        %v10490 = vunpack.c.l.b16 %v10283
        %v10491 = vunpack.c.l.b16 %v10284
        %v10492 = vunpack.c.l.b16 %v10285
        %v10493 = vunpack.c.l.b16 %v10286
        %v10494 = vpack.c.b16 %v10479, %v10478
        %v10495 = vpack.c.b16 %v10481, %v10480
        %v10496 = vpack.c.b16 %v10483, %v10482
        %v10497 = vpack.c.b16 %v10485, %v10484
        %v10498 = vpack.c.b16 %v10487, %v10486
        %v10499 = vpack.c.b16 %v10489, %v10488
        %v10500 = vpack.c.b16 %v10491, %v10490
        %v10501 = vpack.c.b16 %v10493, %v10492
        %10510 = vmatprep.subr.bf16.mxu0 0
        %10511 = vmatpush1.bf16.msra.mxu0 %v10501
        %10512 = vmatprep.subr.bf16.mxu0 0
        %10513 = vmatpush1.bf16.msra.mxu0 %v10500
        %10514 = vmatprep.subr.bf16.mxu0 0
        %10515 = vmatpush1.bf16.msra.mxu0 %v10499
        %10516 = vmatprep.subr.bf16.mxu0 0
        %10517 = vmatpush1.bf16.msra.mxu0 %v10498
        %10518 = vmatprep.subr.bf16.mxu0 0
        %10519 = vmatpush1.bf16.msra.mxu0 %v10497
        %10520 = vmatprep.subr.bf16.mxu0 0
        %10521 = vmatpush1.bf16.msra.mxu0 %v10496
        %10522 = vmatprep.subr.bf16.mxu0 0
        %10523 = vmatpush1.bf16.msra.mxu0 %v10495
        %10524 = vmatprep.subr.bf16.mxu0 0
        %10525 = vmatpush1.bf16.msra.mxu0 %v10494
        %10526 = vmatprep.subr.bf16.mxu0 0
        %10527 = vmatpush2.bf16.msra.mxu0 0
        %10528 = vmatprep.subr.bf16.mxu0 0
        %10529 = vmatpush2.bf16.msra.mxu0 0
        %10530 = vmatprep.subr.bf16.mxu0 0
        %10531 = vmatpush2.bf16.msra.mxu0 0
        %10532 = vmatprep.subr.bf16.mxu0 0
        %10533 = vmatpush2.bf16.msra.mxu0 0
        %10534 = vmatprep.subr.bf16.mxu0 0
        %10535 = vmatpush2.bf16.msra.mxu0 0
        %10536 = vmatprep.subr.bf16.mxu0 0
        %10537 = vmatpush2.bf16.msra.mxu0 0
        %10538 = vmatprep.subr.bf16.mxu0 0
        %10539 = vmatpush2.bf16.msra.mxu0 0
        %10540 = vmatprep.subr.bf16.mxu0 0
        %10541 = vmatpush2.bf16.msra.mxu0 0
        %10542 = vmatprep.mubr.bf16.mxu0 0
        %10543 = vmatmul.mubr.bf16.gmra.mxu0 %v10361
        %v10544 = vpop.f32.mrf.mxu0
        %v10545 = vadd.f32 0.0, %v10544
        %v10546 = vpop.f32.mrf.mxu0
        %v10547 = vpop.f32.mrf.mxu0
        %v10548 = vadd.f32 0.0, %v10547
        %v10549 = vpop.f32.mrf.mxu0
        %10550 = vmatprep.mubr.bf16.mxu0 0
        %10551 = vmatmul.mubr.bf16.gmra.mxu0 %v10369
        %v10552 = vpop.f32.mrf.mxu0
        %v10553 = vadd.f32 0.0, %v10552
        %v10554 = vpop.f32.mrf.mxu0
        %v10555 = vpop.f32.mrf.mxu0
        %v10556 = vadd.f32 0.0, %v10555
        %v10557 = vpop.f32.mrf.mxu0
        %10558 = vmatprep.mubr.bf16.mxu0 0
        %10559 = vmatmul.mubr.bf16.gmra.mxu0 %v10377
        %v10560 = vpop.f32.mrf.mxu0
        %v10561 = vadd.f32 0.0, %v10560
        %v10562 = vpop.f32.mrf.mxu0
        %v10563 = vpop.f32.mrf.mxu0
        %v10564 = vadd.f32 0.0, %v10563
        %v10565 = vpop.f32.mrf.mxu0
        %10566 = vmatprep.mubr.bf16.mxu0 0
        %10567 = vmatmul.mubr.bf16.gmra.mxu0 %v10385
        %v10568 = vpop.f32.mrf.mxu0
        %v10569 = vadd.f32 0.0, %v10568
        %v10570 = vpop.f32.mrf.mxu0
        %v10571 = vpop.f32.mrf.mxu0
        %v10572 = vadd.f32 0.0, %v10571
        %v10573 = vpop.f32.mrf.mxu0
        %10574 = vmatprep.mubr.bf16.mxu0 0
        %10575 = vmatmul.mubr.bf16.gmra.mxu0 %v10393
        %v10576 = vpop.f32.mrf.mxu0
        %v10577 = vadd.f32 0.0, %v10576
        %v10578 = vpop.f32.mrf.mxu0
        %v10579 = vpop.f32.mrf.mxu0
        %v10580 = vadd.f32 0.0, %v10579
        %v10581 = vpop.f32.mrf.mxu0
        %10582 = vmatprep.mubr.bf16.mxu0 0
        %10583 = vmatmul.mubr.bf16.gmra.mxu0 %v10401
        %v10584 = vpop.f32.mrf.mxu0
        %v10585 = vadd.f32 0.0, %v10584
        %v10586 = vpop.f32.mrf.mxu0
        %v10587 = vpop.f32.mrf.mxu0
        %v10588 = vadd.f32 0.0, %v10587
        %v10589 = vpop.f32.mrf.mxu0
        %10590 = vmatprep.mubr.bf16.mxu0 0
        %10591 = vmatmul.mubr.bf16.gmra.mxu0 %v10409
        %v10592 = vpop.f32.mrf.mxu0
        %v10593 = vadd.f32 0.0, %v10592
        %v10594 = vpop.f32.mrf.mxu0
        %v10595 = vpop.f32.mrf.mxu0
        %v10596 = vadd.f32 0.0, %v10595
        %v10597 = vpop.f32.mrf.mxu0
        %10598 = vmatprep.mubr.bf16.mxu0 0
        %10599 = vmatmul.mubr.bf16.gmra.mxu0 %v10417
        %v10600 = vpop.f32.mrf.mxu0
        %v10601 = vadd.f32 0.0, %v10600
        %v10602 = vpop.f32.mrf.mxu0
        %v10603 = vpop.f32.mrf.mxu0
        %v10604 = vadd.f32 0.0, %v10603
        %v10605 = vpop.f32.mrf.mxu0
        %10606 = vmatprep.mubr.bf16.mxu0 0
        %10607 = vmatmul.mubr.bf16.gmra.mxu0 %v10425
        %v10608 = vpop.f32.mrf.mxu0
        %v10609 = vadd.f32 0.0, %v10608
        %v10610 = vpop.f32.mrf.mxu0
        %v10611 = vpop.f32.mrf.mxu0
        %v10612 = vadd.f32 0.0, %v10611
        %v10613 = vpop.f32.mrf.mxu0
        %10614 = vmatprep.mubr.bf16.mxu0 0
        %10615 = vmatmul.mubr.bf16.gmra.mxu0 %v10433
        %v10616 = vpop.f32.mrf.mxu0
        %v10617 = vadd.f32 0.0, %v10616
        %v10618 = vpop.f32.mrf.mxu0
        %v10619 = vpop.f32.mrf.mxu0
        %v10620 = vadd.f32 0.0, %v10619
        %v10621 = vpop.f32.mrf.mxu0
        %10622 = vmatprep.mubr.bf16.mxu0 0
        %10623 = vmatmul.mubr.bf16.gmra.mxu0 %v10441
        %v10624 = vpop.f32.mrf.mxu0
        %v10625 = vadd.f32 0.0, %v10624
        %v10626 = vpop.f32.mrf.mxu0
        %v10627 = vpop.f32.mrf.mxu0
        %v10628 = vadd.f32 0.0, %v10627
        %v10629 = vpop.f32.mrf.mxu0
        %10630 = vmatprep.mubr.bf16.mxu0 0
        %10631 = vmatmul.mubr.bf16.gmra.mxu0 %v10449
        %v10632 = vpop.f32.mrf.mxu0
        %v10633 = vadd.f32 0.0, %v10632
        %v10634 = vpop.f32.mrf.mxu0
        %v10635 = vpop.f32.mrf.mxu0
        %v10636 = vadd.f32 0.0, %v10635
        %v10637 = vpop.f32.mrf.mxu0
        %10638 = vdwg.mxu0
        %v10639 = vadd.f32 %v10221, %v10545
        %v10640 = vadd.f32 %v10222, %v10548
        %v10641 = vadd.f32 %v10223, %v10553
        %v10642 = vadd.f32 %v10224, %v10556
        %v10643 = vadd.f32 %v10225, %v10561
        %v10644 = vadd.f32 %v10226, %v10564
        %v10645 = vadd.f32 %v10227, %v10569
        %v10646 = vadd.f32 %v10228, %v10572
        %v10647 = vadd.f32 %v10229, %v10577
        %v10648 = vadd.f32 %v10230, %v10580
        %v10649 = vadd.f32 %v10231, %v10585
        %v10650 = vadd.f32 %v10232, %v10588
        %v10651 = vadd.f32 %v10233, %v10593
        %v10652 = vadd.f32 %v10234, %v10596
        %v10653 = vadd.f32 %v10235, %v10601
        %v10654 = vadd.f32 %v10236, %v10604
        %v10655 = vadd.f32 %v10237, %v10609
        %v10656 = vadd.f32 %v10238, %v10612
        %v10657 = vadd.f32 %v10239, %v10617
        %v10658 = vadd.f32 %v10240, %v10620
        %v10659 = vadd.f32 %v10241, %v10625
        %v10660 = vadd.f32 %v10242, %v10628
        %v10661 = vadd.f32 %v10243, %v10633
        %v10662 = vadd.f32 %v10244, %v10636
        %10663 = vst [vmem:[%s302] sm:$0xff] %v10639
        %10664 = vst [vmem:[%s302 + $0x8] sm:$0xff] %v10640
        %10665 = vst [vmem:[%s302 + $0x10] sm:$0xff] %v10641
        %10666 = vst [vmem:[%s302 + $0x18] sm:$0xff] %v10642
        %10667 = vst [vmem:[%s302 + $0x20] sm:$0xff] %v10643
        %10668 = vst [vmem:[%s302 + $0x28] sm:$0xff] %v10644
        %10669 = vst [vmem:[%s302 + $0x30] sm:$0xff] %v10645
        %10670 = vst [vmem:[%s302 + $0x38] sm:$0xff] %v10646
        %10671 = vst [vmem:[%s302 + $0x40] sm:$0xff] %v10647
        %10672 = vst [vmem:[%s302 + $0x48] sm:$0xff] %v10648
        %10673 = vst [vmem:[%s302 + $0x50] sm:$0xff] %v10649
        %10674 = vst [vmem:[%s302 + $0x58] sm:$0xff] %v10650
        %10675 = vst [vmem:[%s302 + $0x60] sm:$0xff] %v10651
        %10676 = vst [vmem:[%s302 + $0x68] sm:$0xff] %v10652
        %10677 = vst [vmem:[%s302 + $0x70] sm:$0xff] %v10653
        %10678 = vst [vmem:[%s302 + $0x78] sm:$0xff] %v10654
        %10679 = vst [vmem:[%s302 + $0x80] sm:$0xff] %v10655
        %10680 = vst [vmem:[%s302 + $0x88] sm:$0xff] %v10656
        %10681 = vst [vmem:[%s302 + $0x90] sm:$0xff] %v10657
        %10682 = vst [vmem:[%s302 + $0x98] sm:$0xff] %v10658
        %10683 = vst [vmem:[%s302 + $0xa0] sm:$0xff] %v10659
        %10684 = vst [vmem:[%s302 + $0xa8] sm:$0xff] %v10660
        %10685 = vst [vmem:[%s302 + $0xb0] sm:$0xff] %v10661
        %10686 = vst [vmem:[%s302 + $0xb8] sm:$0xff] %v10662
        %s10687 = sand.u32 %s199, 1
        %s10688 = scalar_lea.sflag [#allocation16], %s10687
        %s10689 = sand.u32 %s199, 1
        %s10690 = smul.addr %s10689, 192
        %s10691 = scalar_lea.vmem [#allocation19], %s10690
        // Predicated region
        $region91: #{tpu_custom_call.1} parent=43 // pred_check
          %p10692 = pneg %p209
        $region92: #{tpu_custom_call.1} parent=43 // pred_check_branch
          %10694 = sbr.rel (%p10692) target = $region94
        $region93: #{tpu_custom_call.1} parent=43 // pred_region
          %s10695 = smul.u32 24, %s56
          %s10697 = ssub.s32 3072, 3072
          %10698 = vsyncadd %s10688, %s10697
          %s10699 = smul.addr %s55, 48
          %s10700 = sadd.s32 %s10695, %s10699
          %s10701 = smul.addr %s10700, 128
          %s10702 = scalar_lea.hbm %s13, %s10701
          %s10703 = sshll.u32 %s10691, 4
          %s10704 = int_to_ptr.vmem [resolvable:$true] %s10703
          %10709 = dma.vmem_to_hbm [thread:$0]  %s10704, 3072, %s10702, %s10688, 128, 128, 8
        $region94: #{tpu_custom_call.1} parent=43 // pred_fallthru
          _
      $region44: #{tpu_custom_call.1} parent=5 // pred_fallthru
        _
      %p10710 = scmp.le.s32.totalorder 2, %s46
      // Predicated region
      $region95: #{tpu_custom_call.1} parent=5 // pred_check
        %p10711 = pneg %p10710
      $region96: #{tpu_custom_call.1} parent=5 // pred_check_branch
        %10713 = sbr.rel (%p10711) target = $region98
      $region97: #{tpu_custom_call.1} parent=5 // pred_region
        %s10714 = ssub.s32 %s46, 2
        // Predicated region
        $region99: #{tpu_custom_call.1} parent=97 // pred_check
          %p10715 = pneg %p215
        $region100: #{tpu_custom_call.1} parent=97 // pred_check_branch
          %10717 = sbr.rel (%p10715) target = $region102
        $region101: #{tpu_custom_call.1} parent=97 // pred_region
          %s10718 = sand.u32 %s200, 1
          %s10719 = scalar_lea.sflag [#allocation16], %s10718
          %s10720 = sand.u32 %s200, 1
          %s10721 = smul.addr %s10720, 192
          %s10722 = scalar_lea.vmem [#allocation19], %s10721
          %10723 = dma.done %s10719, 3072
        $region102: #{tpu_custom_call.1} parent=97 // pred_fallthru
          _
      $region98: #{tpu_custom_call.1} parent=5 // pred_fallthru
        _
    $region6: #{tpu_custom_call.1} parent=1 // loop_footer
      %s50 = sadd.s32 1, %s46
    $region7: #{tpu_custom_call.1} parent=1 // loop_footer_branch
      %45 = sbr.rel target = $region3
    $region8: #{tpu_custom_call.1} parent=1 // loop_exit
      _
    %10724 = vsyncpa [#allocation15], 1
    %s10725 = scalar_lea.sflag [#allocation15], 1
    %10726 = vsyncpa %s10725, 1
    %10727 = vsyncpa [#allocation18], 1
    %10728 = vsyncpa [#allocation16], 1
    %s10729 = scalar_lea.sflag [#allocation16], 1
    %10730 = vsyncpa %s10729, 1
  %10731 = vsyncmov [#allocation7]
  %s10732 = vpop.sfrf %10731
  %p10733 = scmp.eq.s32.totalorder %s10732, 0
  %p10734 = pneg %p10733
  %10736 = shalt.err (%p10734)
  %s10737 = scalar_lea.sflag [#allocation7], 1
  %10738 = vsyncmov %s10737
  %s10739 = vpop.sfrf %10738
  %p10740 = scmp.eq.s32.totalorder %s10739, 0
  %p10741 = pneg %p10740
  %10743 = shalt.err (%p10741)

</llo_original>
